<compile_context>
chip_gen: v7x
topology: tpu7x:2x2x1
jax: 0.10.0
libtpu: 0.0.40
codegen_flags: <defaults>
</compile_context>

<pallas_src>
import functools

import jax
import jax.numpy as jnp
import numpy as np
from jax.experimental import pallas as pl
from jax.experimental.pallas import tpu as pltpu

# ---- "config" (synthetic, small) -------------------------------------------
NUM_CONV = 4            # cfg.MODEL.ROI_MASK_HEAD.NUM_CONV
IN_CHANNELS = 4         # input_shape.channels
CONV_DIM = 4            # cfg.MODEL.ROI_MASK_HEAD.CONV_DIM
NUM_MASK_CLASSES = 3    # cls_agnostic_mask=False, NUM_CLASSES=3
BN_EPS = 1e-4

# The torch module implicitly requires this (the attention residual is added to the conv
# output and self.scale uses input_channels); make it explicit.
assert CONV_DIM == IN_CHANNELS, "attention blocks require CONV_DIM == input channels"

# Small enough for v7x's 64 MiB physical VMEM as well as v5e/v6e (128 MiB).
VMEM_LIMIT_BYTES = 32 * 1024 * 1024
HEAD_ROW_TILE = 256

_COMPILER_PARAMS_1D = pltpu.CompilerParams(
    dimension_semantics=("parallel",), vmem_limit_bytes=VMEM_LIMIT_BYTES)
_COMPILER_PARAMS_2D = pltpu.CompilerParams(
    dimension_semantics=("parallel", "parallel"), vmem_limit_bytes=VMEM_LIMIT_BYTES)


# ---- Pallas kernels ---------------------------------------------------------

def _conv_stack_kernel(x_ref, w_ref, b_ref, o_ref, xpad_ref, *, n_layers, height):
    """n_layers of [3x3 conv + bias + ReLU], activation resident in VMEM.

    x_ref : (1, H, W*C)      input activation (one image per grid step)
    w_ref : (L, 3, W*C, W*C) bf16 per-dh block-structured weights (dw taps folded in)
    b_ref : (L, 1, W*C)      f32 biases tiled per pixel column
    xpad_ref scratch : (H+2, W*C) f32, rows 0 and H+1 provide the vertical zero halo.
    """
    xpad_ref[...] = jnp.zeros_like(xpad_ref)
    xpad_ref[1:height + 1, :] = x_ref[0]
    act = None
    for layer in range(n_layers):
        acc = None
        for dh in range(3):
            part = jnp.dot(
                xpad_ref[dh:dh + height, :].astype(jnp.bfloat16),
                w_ref[layer, dh],
                preferred_element_type=jnp.float32)
            acc = part if acc is None else acc + part
        act = jnp.maximum(acc + b_ref[layer], 0.0)
        if layer < n_layers - 1:
            xpad_ref[1:height + 1, :] = act     # halo rows stay zero
    o_ref[0] = act


def conv_stack(x_rows, w_packed, b_packed):
    """x_rows: (B, H, W*C) f32 -> (B, H, W*C) f32 after L fused conv+ReLU layers."""
    batch, height, wc = x_rows.shape
    n_layers = w_packed.shape[0]
    kernel = functools.partial(_conv_stack_kernel, n_layers=n_layers, height=height)
    return pl.pallas_call(
        kernel,
        grid=(batch,),
        out_shape=jax.ShapeDtypeStruct((batch, height, wc), jnp.float32),
        in_specs=[
            pl.BlockSpec((1, height, wc), lambda b: (b, 0, 0)),
            pl.BlockSpec(w_packed.shape, lambda b: (0, 0, 0, 0)),
            pl.BlockSpec(b_packed.shape, lambda b: (0, 0, 0)),
        ],
        out_specs=pl.BlockSpec((1, height, wc), lambda b: (b, 0, 0)),
        scratch_shapes=[pltpu.VMEM((height + 2, wc), jnp.float32)],
        compiler_params=_COMPILER_PARAMS_1D,
    )(x_rows, w_packed, b_packed)


def _attn_block_kernel(x_ref, wqkv_ref, wo_ref, shift_ref, o_ref, *, c, scale):
    """Fused non-local block with residual: x + BN(Wo @ softmax(QK^T*scale) V)."""
    x = x_ref[0]                                   # (HW, C) f32
    xb = x.astype(jnp.bfloat16)
    qkv = jnp.dot(xb, wqkv_ref[...], preferred_element_type=jnp.float32)  # (HW, 3C)
    q = qkv[:, 0:c]
    k = qkv[:, c:2 * c]
    v = qkv[:, 2 * c:3 * c]
    # QK^T without materializing a transpose: contract the channel dims directly.
    s = jax.lax.dot_general(
        q.astype(jnp.bfloat16), k.astype(jnp.bfloat16),
        dimension_numbers=(((1,), (1,)), ((), ())),
        preferred_element_type=jnp.float32) * scale                       # (HW, HW)
    s = s - jnp.max(s, axis=-1, keepdims=True)
    p = jnp.exp(s)
    denom = jnp.sum(p, axis=-1, keepdims=True)
    p = p * pl.reciprocal(denom, approx=True)
    rel = jnp.dot(p.astype(jnp.bfloat16), v.astype(jnp.bfloat16),
                  preferred_element_type=jnp.float32)                     # (HW, C)
    # output transform (1x1, no bias) with eval-mode BatchNorm folded into the weight.
    rel = jnp.dot(rel.astype(jnp.bfloat16), wo_ref[...],
                  preferred_element_type=jnp.float32) + shift_ref[...]
    o_ref[0] = x + rel


def attention_block(x_seq, attn_prep):
    """x_seq: (B, HW, C) f32 -> (B, HW, C) f32 (residual included)."""
    batch, hw, c = x_seq.shape
    kernel = functools.partial(_attn_block_kernel, c=c, scale=1.0 / float(c) ** 0.5)
    return pl.pallas_call(
        kernel,
        grid=(batch,),
        out_shape=jax.ShapeDtypeStruct((batch, hw, c), jnp.float32),
        in_specs=[
            pl.BlockSpec((1, hw, c), lambda b: (b, 0, 0)),
            pl.BlockSpec(attn_prep["w_qkv"].shape, lambda b: (0, 0)),
            pl.BlockSpec(attn_prep["w_out"].shape, lambda b: (0, 0)),
            pl.BlockSpec(attn_prep["shift"].shape, lambda b: (0, 0)),
        ],
        out_specs=pl.BlockSpec((1, hw, c), lambda b: (b, 0, 0)),
        compiler_params=_COMPILER_PARAMS_1D,
    )(x_seq, attn_prep["w_qkv"], attn_prep["w_out"], attn_prep["shift"])


def _head_kernel(x_ref, wd_ref, bd_ref, wp_ref, bp_ref, o_ref):
    """Fused ConvTranspose2d(2,2) + bias + ReLU + block-diagonal 1x1 predictor."""
    x = x_ref[0].astype(jnp.bfloat16)                                     # (rows, C)
    up = jnp.dot(x, wd_ref[0], preferred_element_type=jnp.float32) + bd_ref[0]
    up = jnp.maximum(up, 0.0)                                             # (rows, 4*C)
    o_ref[0] = (jnp.dot(up.astype(jnp.bfloat16), wp_ref[0],
                        preferred_element_type=jnp.float32) + bp_ref[0])  # (rows, 4*Ncls)


def fused_heads(x4, wd4, bd4, wp4, bp4):
    """All 4 head branches in one kernel; x4: (4, B*H*W, C) -> (4, B*H*W, 4*Ncls)."""
    nb, m, cin = x4.shape
    dd = wd4.shape[-1]
    dp = wp4.shape[-1]
    rt = HEAD_ROW_TILE if m % HEAD_ROW_TILE == 0 else m
    return pl.pallas_call(
        _head_kernel,
        grid=(nb, m // rt),
        out_shape=jax.ShapeDtypeStruct((nb, m, dp), jnp.float32),
        in_specs=[
            pl.BlockSpec((1, rt, cin), lambda i, j: (i, j, 0)),
            pl.BlockSpec((1, cin, dd), lambda i, j: (i, 0, 0)),
            pl.BlockSpec((1, 1, dd), lambda i, j: (i, 0, 0)),
            pl.BlockSpec((1, dd, dp), lambda i, j: (i, 0, 0)),
            pl.BlockSpec((1, 1, dp), lambda i, j: (i, 0, 0)),
        ],
        out_specs=pl.BlockSpec((1, rt, dp), lambda i, j: (i, j, 0)),
        compiler_params=_COMPILER_PARAMS_2D,
    )(x4, wd4, bd4, wp4, bp4)


# ---- full forward -----------------------------------------------------------

def mask_head_forward(prep, x_nchw):
    batch, c, height, width = x_nchw.shape
    assert c == IN_CHANNELS
    x = jnp.transpose(x_nchw, (0, 2, 3, 1)).astype(jnp.float32)    # NCHW -> NHWC
    x_rows = x.reshape(batch, height, width * c)                   # (B, H, W*C), free
    x_ori = x_rows

    def run_branch(x_in, bp):
        y = conv_stack(x_in, *bp["conv01"])                        # convs 0-1
        y = attention_block(y.reshape(batch, height * width, c), bp["attn"])
        y = y.reshape(batch, height, width * c)                    # free reshape
        y = conv_stack(y, *bp["conv23"])                           # convs 2-3
        return y

    # boundary branch (with bound_bo attention after layer 2); its output is both
    # x_bound_bo and x_bo in the torch code.
    xb = run_branch(x_rows, prep["boundary"])
    # mask branch on x_ori + x (with bound attention after layer 2); output == x_bound.
    xm = run_branch(x_ori + xb, prep["mask"])

    flat_m = xm.reshape(batch * height * width, c)
    flat_b = xb.reshape(batch * height * width, c)
    heads_x = jnp.stack([flat_m, flat_m, flat_b, flat_b], axis=0)  # (4, B*H*W, C)
    heads_out = fused_heads(heads_x, prep["head_wd"], prep["head_bd"],
                            prep["head_wp"], prep["head_bp"])      # (4, B*H*W, 4*Ncls)

    def to_nchw(y):
        # (B*H*W, 2*2*Ncls) -> (B, Ncls, 2H, 2W); pixel-shuffle folded into this single
        # transpose of the (small) predictor output.
        y = y.reshape(batch, height, width, 2, 2, NUM_MASK_CLASSES)
        y = jnp.transpose(y, (0, 5, 1, 3, 2, 4))
        return y.reshape(batch, NUM_MASK_CLASSES, 2 * height, 2 * width)

    mask = to_nchw(heads_out[0])
    boundary = to_nchw(heads_out[1])
    mask_bo = to_nchw(heads_out[2])
    boundary_bo = to_nchw(heads_out[3])
    return mask, boundary, mask_bo, boundary_bo


# ---- parameter packing (eager, outside jit) ----------------------------------

def prepare_params(params, height, width):
    """Pack module parameters into the layouts the Pallas kernels consume.

    The 3x3-conv packing folds the dw taps and horizontal zero padding into
    block-structured (W*C, W*C) matrices, so it depends on the ROI width.
    """
    del height  # only width enters the packing
    c = IN_CHANNELS
    wc = width * c

    def pack_conv_pair(layers):
        mats, biases = [], []
        for p in layers:
            w = np.asarray(p["w"], np.float32)            # (3, 3, Cin, Cout)
            m = np.zeros((3, wc, wc), np.float32)
            for dh in range(3):
                for dw in range(3):
                    for col in range(width):
                        src = col + dw - 1
                        if 0 <= src < width:               # horizontal zero-pad folded in
                            m[dh, src * c:(src + 1) * c, col * c:(col + 1) * c] = w[dh, dw]
            mats.append(m)
            biases.append(np.tile(np.asarray(p["b"], np.float32), width)[None, :])
        return (jnp.asarray(np.stack(mats), jnp.bfloat16),
                jnp.asarray(np.stack(biases), jnp.float32))

    def pack_attn(p):
        wqkv = np.concatenate([np.asarray(p["wq"], np.float32),
                               np.asarray(p["wk"], np.float32),
                               np.asarray(p["wv"], np.float32)], axis=1)     # (C, 3C)
        bn_scale = np.asarray(p["bn_scale"], np.float32)
        bn_shift = np.asarray(p["bn_shift"], np.float32)
        wo = np.asarray(p["wo"], np.float32) * bn_scale[None, :]             # fold BN scale
        return {"w_qkv": jnp.asarray(wqkv, jnp.bfloat16),
                "w_out": jnp.asarray(wo, jnp.bfloat16),
                "shift": jnp.asarray(bn_shift[None, :], jnp.float32)}

    def pack_deconv(p):
        w = np.asarray(p["w"], np.float32).reshape(c, 4 * c)   # lanes = (kh, kw, cout)
        b = np.tile(np.asarray(p["b"], np.float32), 4)[None, :]
        return w, b

    def pack_predictor(p):
        w = np.asarray(p["w"], np.float32)                     # (C, Ncls)
        ncls = w.shape[1]
        big = np.zeros((4 * c, 4 * ncls), np.float32)          # block-diag over the 4 taps
        for j in range(4):
            big[j * c:(j + 1) * c, j * ncls:(j + 1) * ncls] = w
        b = np.tile(np.asarray(p["b"], np.float32), 4)[None, :]
        return big, b

    head_pairs = [("deconv", "predictor"),
                  ("boundary_deconv", "boundary_predictor"),
                  ("bo_deconv", "predictor_bo"),
                  ("boundary_deconv_bo", "boundary_predictor_bo")]
    wd, bd, wp, bp = [], [], [], []
    for dk, pk in head_pairs:
        a, b_ = pack_deconv(params[dk]); wd.append(a); bd.append(b_)
        a, b_ = pack_predictor(params[pk]); wp.append(a); bp.append(b_)

    return {
        "boundary": {"conv01": pack_conv_pair(params["boundary_convs"][:2]),
                     "conv23": pack_conv_pair(params["boundary_convs"][2:]),
                     "attn": pack_attn(params["attn_bo"])},
        "mask": {"conv01": pack_conv_pair(params["mask_convs"][:2]),
                 "conv23": pack_conv_pair(params["mask_convs"][2:]),
                 "attn": pack_attn(params["attn"])},
        "head_wd": jnp.asarray(np.stack(wd), jnp.bfloat16),
        "head_bd": jnp.asarray(np.stack(bd), jnp.float32),
        "head_wp": jnp.asarray(np.stack(wp), jnp.bfloat16),
        "head_bp": jnp.asarray(np.stack(bp), jnp.float32),
    }


# ---- deterministic parameter init (synthetic; mirrors module shapes) --------

def init_params(key):
    keys = iter(jax.random.split(key, 64))

    def conv3x3_p(cin, cout):  # MSRA-style fill, zero bias
        std = (2.0 / (9 * cout)) ** 0.5
        return {"w": jax.random.normal(next(keys), (3, 3, cin, cout), jnp.float32) * std,
                "b": jnp.zeros((cout,), jnp.float32)}

    def conv1x1_w(cin, cout, std=None):
        if std is None:
            std = (2.0 / cout) ** 0.5
        return jax.random.normal(next(keys), (cin, cout), jnp.float32) * std

    def deconv_p(cin, cout):
        std = (2.0 / (4 * cout)) ** 0.5
        return {"w": jax.random.normal(next(keys), (cin, 2, 2, cout), jnp.float32) * std,
                "b": jnp.zeros((cout,), jnp.float32)}

    def attn_p(c):
        # BatchNorm defaults: gamma=1, beta=0, running_mean=0, running_var=1 (eval mode)
        bn_scale = jnp.full((c,), 1.0 / (1.0 + BN_EPS) ** 0.5, jnp.float32)
        bn_shift = jnp.zeros((c,), jnp.float32)
        return {"wq": conv1x1_w(c, c), "wk": conv1x1_w(c, c),
                "wv": conv1x1_w(c, c), "wo": conv1x1_w(c, c),
                "bn_scale": bn_scale, "bn_shift": bn_shift}

    def predictor_p(cin, cout):  # normal(std=0.001), zero bias
        return {"w": conv1x1_w(cin, cout, std=0.001),
                "b": jnp.zeros((cout,), jnp.float32)}

    return {
        "boundary_convs": [conv3x3_p(IN_CHANNELS if k == 0 else CONV_DIM, CONV_DIM)
                           for k in range(NUM_CONV)],
        "mask_convs": [conv3x3_p(IN_CHANNELS if k == 0 else CONV_DIM, CONV_DIM)
                       for k in range(NUM_CONV)],
        "attn_bo": attn_p(IN_CHANNELS),
        "attn": attn_p(IN_CHANNELS),
        "deconv": deconv_p(CONV_DIM, CONV_DIM),
        "bo_deconv": deconv_p(CONV_DIM, CONV_DIM),
        "boundary_deconv": deconv_p(CONV_DIM, CONV_DIM),
        "boundary_deconv_bo": deconv_p(CONV_DIM, CONV_DIM),
        "predictor": predictor_p(CONV_DIM, NUM_MASK_CLASSES),
        "predictor_bo": predictor_p(CONV_DIM, NUM_MASK_CLASSES),
        "boundary_predictor": predictor_p(CONV_DIM, NUM_MASK_CLASSES),
        "boundary_predictor_bo": predictor_p(CONV_DIM, NUM_MASK_CLASSES),
    }


if __name__ == "__main__":
    key = jax.random.PRNGKey(0)
    pkey, xkey = jax.random.split(key)
    params = init_params(pkey)

    B, C, H, W = 2, IN_CHANNELS, 16, 16
    prep = prepare_params(params, H, W)
    x = jax.random.normal(xkey, (B, C, H, W), jnp.float32)

    fwd = jax.jit(mask_head_forward)
    mask, boundary, mask_bo, boundary_bo = jax.block_until_ready(fwd(prep, x))

    assert mask.shape == (B, NUM_MASK_CLASSES, 2 * H, 2 * W)
    assert boundary.shape == (B, NUM_MASK_CLASSES, 2 * H, 2 * W)
    assert mask_bo.shape == (B, NUM_MASK_CLASSES, 2 * H, 2 * W)
    assert boundary_bo.shape == (B, NUM_MASK_CLASSES, 2 * H, 2 * W)
    assert all(bool(jnp.all(jnp.isfinite(t)))
               for t in (mask, boundary, mask_bo, boundary_bo))

    print("KERNEL_OK")
</pallas_src>

<mosaic_0001>
module attributes {stable_mosaic.version = 11 : i64} {
  func.func @_conv_stack_kernel(%arg0: i32, %arg1: memref<1x16x64xf32, #tpu.memory_space<vmem>>, %arg2: memref<2x3x64x64xbf16, #tpu.memory_space<vmem>>, %arg3: memref<2x1x64xf32, #tpu.memory_space<vmem>>, %arg4: memref<1x16x64xf32, #tpu.memory_space<vmem>>, %arg5: memref<18x64xf32, #tpu.memory_space<vmem>>) attributes {dimension_semantics = [#tpu.dimension_semantics<parallel>], iteration_bounds = array<i64: 2>, scalar_prefetch = 0 : i64, scratch_operands = 1 : i64, tpu.core_type = #tpu.core_type<tc>, window_params = [{transform_indices = @transform_0, window_bounds = array<i64: 1, 16, 64>}, {pipeline_mode = #tpu.pipeline_mode<synchronous>, transform_indices = @transform_1, window_bounds = array<i64: 2, 3, 64, 64>}, {pipeline_mode = #tpu.pipeline_mode<synchronous>, transform_indices = @transform_2, window_bounds = array<i64: 2, 1, 64>}, {transform_indices = @transform_3, window_bounds = array<i64: 1, 16, 64>}]} {
    %cst = arith.constant 0.000000e+00 : f32
    %0 = vector.broadcast %cst : f32 to vector<18x64xf32>
    %c0 = arith.constant 0 : index
    %c0_0 = arith.constant 0 : index
    %1 = vector.load %arg5[%c0, %c0_0] : memref<18x64xf32, #tpu.memory_space<vmem>>, vector<18x64xf32>
    tpu.vector_store %arg5[%c0, %c0_0], %0 {strides = array<i32>} : memref<18x64xf32, #tpu.memory_space<vmem>>, vector<18x64xf32>,
    %c0_1 = arith.constant 0 : index
    %c0_2 = arith.constant 0 : index
    %c0_3 = arith.constant 0 : index
    %2 = vector.load %arg1[%c0_1, %c0_2, %c0_3] : memref<1x16x64xf32, #tpu.memory_space<vmem>>, vector<1x16x64xf32>
    %3 = vector.shape_cast %2 : vector<1x16x64xf32> to vector<16x64xf32>
    %c1 = arith.constant 1 : index
    %c0_4 = arith.constant 0 : index
    %4 = vector.load %arg5[%c1, %c0_4] : memref<18x64xf32, #tpu.memory_space<vmem>>, vector<16x64xf32>
    tpu.vector_store %arg5[%c1, %c0_4], %3 {strides = array<i32>} : memref<18x64xf32, #tpu.memory_space<vmem>>, vector<16x64xf32>,
    %c0_5 = arith.constant 0 : index
    %c0_6 = arith.constant 0 : index
    %5 = vector.load %arg5[%c0_5, %c0_6] : memref<18x64xf32, #tpu.memory_space<vmem>>, vector<16x64xf32>
    %6 = arith.truncf %5 : vector<16x64xf32> to vector<16x64xbf16>
    %c0_7 = arith.constant 0 : index
    %c0_8 = arith.constant 0 : index
    %c0_9 = arith.constant 0 : index
    %c0_10 = arith.constant 0 : index
    %7 = vector.load %arg2[%c0_7, %c0_8, %c0_9, %c0_10] : memref<2x3x64x64xbf16, #tpu.memory_space<vmem>>, vector<1x1x64x64xbf16>
    %8 = vector.shape_cast %7 : vector<1x1x64x64xbf16> to vector<64x64xbf16>
    %cst_11 = arith.constant dense<0.000000e+00> : vector<16x64xf32>
    %9 = tpu.matmul %6, %8, %cst_11 {dimension_numbers = #tpu.dot_dimension_numbers<[1], [0], [0], [1], [0, 0, 1, 1], [], []>} : vector<16x64xbf16>, vector<64x64xbf16>, vector<16x64xf32> -> vector<16x64xf32>
    %c1_12 = arith.constant 1 : index
    %c0_13 = arith.constant 0 : index
    %10 = vector.load %arg5[%c1_12, %c0_13] : memref<18x64xf32, #tpu.memory_space<vmem>>, vector<16x64xf32>
    %11 = arith.truncf %10 : vector<16x64xf32> to vector<16x64xbf16>
    %c0_14 = arith.constant 0 : index
    %c1_15 = arith.constant 1 : index
    %c0_16 = arith.constant 0 : index
    %c0_17 = arith.constant 0 : index
    %12 = vector.load %arg2[%c0_14, %c1_15, %c0_16, %c0_17] : memref<2x3x64x64xbf16, #tpu.memory_space<vmem>>, vector<1x1x64x64xbf16>
    %13 = vector.shape_cast %12 : vector<1x1x64x64xbf16> to vector<64x64xbf16>
    %cst_18 = arith.constant dense<0.000000e+00> : vector<16x64xf32>
    %14 = tpu.matmul %11, %13, %cst_18 {dimension_numbers = #tpu.dot_dimension_numbers<[1], [0], [0], [1], [0, 0, 1, 1], [], []>} : vector<16x64xbf16>, vector<64x64xbf16>, vector<16x64xf32> -> vector<16x64xf32>
    %15 = arith.addf %9, %14 : vector<16x64xf32>
    %c2 = arith.constant 2 : index
    %c0_19 = arith.constant 0 : index
    %16 = vector.load %arg5[%c2, %c0_19] : memref<18x64xf32, #tpu.memory_space<vmem>>, vector<16x64xf32>
    %17 = arith.truncf %16 : vector<16x64xf32> to vector<16x64xbf16>
    %c0_20 = arith.constant 0 : index
    %c2_21 = arith.constant 2 : index
    %c0_22 = arith.constant 0 : index
    %c0_23 = arith.constant 0 : index
    %18 = vector.load %arg2[%c0_20, %c2_21, %c0_22, %c0_23] : memref<2x3x64x64xbf16, #tpu.memory_space<vmem>>, vector<1x1x64x64xbf16>
    %19 = vector.shape_cast %18 : vector<1x1x64x64xbf16> to vector<64x64xbf16>
    %cst_24 = arith.constant dense<0.000000e+00> : vector<16x64xf32>
    %20 = tpu.matmul %17, %19, %cst_24 {dimension_numbers = #tpu.dot_dimension_numbers<[1], [0], [0], [1], [0, 0, 1, 1], [], []>} : vector<16x64xbf16>, vector<64x64xbf16>, vector<16x64xf32> -> vector<16x64xf32>
    %21 = arith.addf %15, %20 : vector<16x64xf32>
    %c0_25 = arith.constant 0 : index
    %c0_26 = arith.constant 0 : index
    %c0_27 = arith.constant 0 : index
    %22 = vector.load %arg3[%c0_25, %c0_26, %c0_27] : memref<2x1x64xf32, #tpu.memory_space<vmem>>, vector<1x1x64xf32>
    %23 = vector.shape_cast %22 : vector<1x1x64xf32> to vector<1x64xf32>
    %24 = vector.broadcast %23 : vector<1x64xf32> to vector<16x64xf32>
    %25 = arith.addf %21, %24 : vector<16x64xf32>
    %cst_28 = arith.constant 0.000000e+00 : f32
    %26 = vector.broadcast %cst_28 : f32 to vector<16x64xf32>
    %27 = arith.maximumf %25, %26 : vector<16x64xf32>
    %c1_29 = arith.constant 1 : index
    %c0_30 = arith.constant 0 : index
    %28 = vector.load %arg5[%c1_29, %c0_30] : memref<18x64xf32, #tpu.memory_space<vmem>>, vector<16x64xf32>
    tpu.vector_store %arg5[%c1_29, %c0_30], %27 {strides = array<i32>} : memref<18x64xf32, #tpu.memory_space<vmem>>, vector<16x64xf32>,
    %c0_31 = arith.constant 0 : index
    %c0_32 = arith.constant 0 : index
    %29 = vector.load %arg5[%c0_31, %c0_32] : memref<18x64xf32, #tpu.memory_space<vmem>>, vector<16x64xf32>
    %30 = arith.truncf %29 : vector<16x64xf32> to vector<16x64xbf16>
    %c1_33 = arith.constant 1 : index
    %c0_34 = arith.constant 0 : index
    %c0_35 = arith.constant 0 : index
    %c0_36 = arith.constant 0 : index
    %31 = vector.load %arg2[%c1_33, %c0_34, %c0_35, %c0_36] : memref<2x3x64x64xbf16, #tpu.memory_space<vmem>>, vector<1x1x64x64xbf16>
    %32 = vector.shape_cast %31 : vector<1x1x64x64xbf16> to vector<64x64xbf16>
    %cst_37 = arith.constant dense<0.000000e+00> : vector<16x64xf32>
    %33 = tpu.matmul %30, %32, %cst_37 {dimension_numbers = #tpu.dot_dimension_numbers<[1], [0], [0], [1], [0, 0, 1, 1], [], []>} : vector<16x64xbf16>, vector<64x64xbf16>, vector<16x64xf32> -> vector<16x64xf32>
    %c1_38 = arith.constant 1 : index
    %c0_39 = arith.constant 0 : index
    %34 = vector.load %arg5[%c1_38, %c0_39] : memref<18x64xf32, #tpu.memory_space<vmem>>, vector<16x64xf32>
    %35 = arith.truncf %34 : vector<16x64xf32> to vector<16x64xbf16>
    %c1_40 = arith.constant 1 : index
    %c1_41 = arith.constant 1 : index
    %c0_42 = arith.constant 0 : index
    %c0_43 = arith.constant 0 : index
    %36 = vector.load %arg2[%c1_40, %c1_41, %c0_42, %c0_43] : memref<2x3x64x64xbf16, #tpu.memory_space<vmem>>, vector<1x1x64x64xbf16>
    %37 = vector.shape_cast %36 : vector<1x1x64x64xbf16> to vector<64x64xbf16>
    %cst_44 = arith.constant dense<0.000000e+00> : vector<16x64xf32>
    %38 = tpu.matmul %35, %37, %cst_44 {dimension_numbers = #tpu.dot_dimension_numbers<[1], [0], [0], [1], [0, 0, 1, 1], [], []>} : vector<16x64xbf16>, vector<64x64xbf16>, vector<16x64xf32> -> vector<16x64xf32>
    %39 = arith.addf %33, %38 : vector<16x64xf32>
    %c2_45 = arith.constant 2 : index
    %c0_46 = arith.constant 0 : index
    %40 = vector.load %arg5[%c2_45, %c0_46] : memref<18x64xf32, #tpu.memory_space<vmem>>, vector<16x64xf32>
    %41 = arith.truncf %40 : vector<16x64xf32> to vector<16x64xbf16>
    %c1_47 = arith.constant 1 : index
    %c2_48 = arith.constant 2 : index
    %c0_49 = arith.constant 0 : index
    %c0_50 = arith.constant 0 : index
    %42 = vector.load %arg2[%c1_47, %c2_48, %c0_49, %c0_50] : memref<2x3x64x64xbf16, #tpu.memory_space<vmem>>, vector<1x1x64x64xbf16>
    %43 = vector.shape_cast %42 : vector<1x1x64x64xbf16> to vector<64x64xbf16>
    %cst_51 = arith.constant dense<0.000000e+00> : vector<16x64xf32>
    %44 = tpu.matmul %41, %43, %cst_51 {dimension_numbers = #tpu.dot_dimension_numbers<[1], [0], [0], [1], [0, 0, 1, 1], [], []>} : vector<16x64xbf16>, vector<64x64xbf16>, vector<16x64xf32> -> vector<16x64xf32>
    %45 = arith.addf %39, %44 : vector<16x64xf32>
    %c1_52 = arith.constant 1 : index
    %c0_53 = arith.constant 0 : index
    %c0_54 = arith.constant 0 : index
    %46 = vector.load %arg3[%c1_52, %c0_53, %c0_54] : memref<2x1x64xf32, #tpu.memory_space<vmem>>, vector<1x1x64xf32>
    %47 = vector.shape_cast %46 : vector<1x1x64xf32> to vector<1x64xf32>
    %48 = vector.broadcast %47 : vector<1x64xf32> to vector<16x64xf32>
    %49 = arith.addf %45, %48 : vector<16x64xf32>
    %cst_55 = arith.constant 0.000000e+00 : f32
    %50 = vector.broadcast %cst_55 : f32 to vector<16x64xf32>
    %51 = arith.maximumf %49, %50 : vector<16x64xf32>
    %c0_56 = arith.constant 0 : index
    %c0_57 = arith.constant 0 : index
    %c0_58 = arith.constant 0 : index
    %52 = vector.load %arg4[%c0_56, %c0_57, %c0_58] : memref<1x16x64xf32, #tpu.memory_space<vmem>>, vector<1x16x64xf32>
    %53 = vector.shape_cast %52 : vector<1x16x64xf32> to vector<16x64xf32>
    %54 = vector.shape_cast %51 : vector<16x64xf32> to vector<1x16x64xf32>
    tpu.vector_store %arg4[%c0_56, %c0_57, %c0_58], %54 {strides = array<i32>} : memref<1x16x64xf32, #tpu.memory_space<vmem>>, vector<1x16x64xf32>,
    return
  }
  func.func @transform_0(%arg0: i32) -> (i32, i32, i32) {
    %c0_i32 = arith.constant 0 : i32
    %c0_i32_0 = arith.constant 0 : i32
    %c0_i32_1 = arith.constant 0 : i32
    return %arg0, %c0_i32, %c0_i32_0 : i32, i32, i32
  }
  func.func @transform_1(%arg0: i32) -> (i32, i32, i32, i32) {
    %c0_i32 = arith.constant 0 : i32
    %c0_i32_0 = arith.constant 0 : i32
    %c0_i32_1 = arith.constant 0 : i32
    %c0_i32_2 = arith.constant 0 : i32
    %c0_i32_3 = arith.constant 0 : i32
    return %c0_i32, %c0_i32_0, %c0_i32_1, %c0_i32_2 : i32, i32, i32, i32
  }
  func.func @transform_2(%arg0: i32) -> (i32, i32, i32) {
    %c0_i32 = arith.constant 0 : i32
    %c0_i32_0 = arith.constant 0 : i32
    %c0_i32_1 = arith.constant 0 : i32
    %c0_i32_2 = arith.constant 0 : i32
    return %c0_i32, %c0_i32_0, %c0_i32_1 : i32, i32, i32
  }
  func.func @transform_3(%arg0: i32) -> (i32, i32, i32) {
    %c0_i32 = arith.constant 0 : i32
    %c0_i32_0 = arith.constant 0 : i32
    %c0_i32_1 = arith.constant 0 : i32
    return %arg0, %c0_i32, %c0_i32_0 : i32, i32, i32
  }
}

module attributes {stable_mosaic.version = 11 : i64} {
  func.func @_attn_block_kernel(%arg0: i32, %arg1: memref<1x256x4xf32, #tpu.memory_space<vmem>>, %arg2: memref<4x12xbf16, #tpu.memory_space<vmem>>, %arg3: memref<4x4xbf16, #tpu.memory_space<vmem>>, %arg4: memref<1x4xf32, #tpu.memory_space<vmem>>, %arg5: memref<1x256x4xf32, #tpu.memory_space<vmem>>) attributes {dimension_semantics = [#tpu.dimension_semantics<parallel>], iteration_bounds = array<i64: 2>, scalar_prefetch = 0 : i64, scratch_operands = 0 : i64, tpu.core_type = #tpu.core_type<tc>, window_params = [{transform_indices = @transform_0, window_bounds = array<i64: 1, 256, 4>}, {pipeline_mode = #tpu.pipeline_mode<synchronous>, transform_indices = @transform_1, window_bounds = array<i64: 4, 12>}, {pipeline_mode = #tpu.pipeline_mode<synchronous>, transform_indices = @transform_2, window_bounds = array<i64: 4, 4>}, {pipeline_mode = #tpu.pipeline_mode<synchronous>, transform_indices = @transform_3, window_bounds = array<i64: 1, 4>}, {transform_indices = @transform_4, window_bounds = array<i64: 1, 256, 4>}]} {
    %c0 = arith.constant 0 : index
    %c0_0 = arith.constant 0 : index
    %c0_1 = arith.constant 0 : index
    %0 = vector.load %arg1[%c0, %c0_0, %c0_1] : memref<1x256x4xf32, #tpu.memory_space<vmem>>, vector<1x256x4xf32>
    %1 = vector.shape_cast %0 : vector<1x256x4xf32> to vector<256x4xf32>
    %2 = arith.truncf %1 : vector<256x4xf32> to vector<256x4xbf16>
    %c0_2 = arith.constant 0 : index
    %c0_3 = arith.constant 0 : index
    %3 = vector.load %arg2[%c0_2, %c0_3] : memref<4x12xbf16, #tpu.memory_space<vmem>>, vector<4x12xbf16>
    %cst = arith.constant dense<0.000000e+00> : vector<256x12xf32>
    %4 = tpu.matmul %2, %3, %cst {dimension_numbers = #tpu.dot_dimension_numbers<[1], [0], [0], [1], [0, 0, 1, 1], [], []>} : vector<256x4xbf16>, vector<4x12xbf16>, vector<256x12xf32> -> vector<256x12xf32>
    %5 = vector.extract_strided_slice %4 {offsets = [0, 0], sizes = [256, 4], strides = [1, 1]} : vector<256x12xf32> to vector<256x4xf32>
    %6 = vector.extract_strided_slice %4 {offsets = [0, 4], sizes = [256, 4], strides = [1, 1]} : vector<256x12xf32> to vector<256x4xf32>
    %7 = vector.extract_strided_slice %4 {offsets = [0, 8], sizes = [256, 4], strides = [1, 1]} : vector<256x12xf32> to vector<256x4xf32>
    %8 = arith.truncf %5 : vector<256x4xf32> to vector<256x4xbf16>
    %9 = arith.truncf %6 : vector<256x4xf32> to vector<256x4xbf16>
    %cst_4 = arith.constant dense<0.000000e+00> : vector<256x256xf32>
    %10 = tpu.matmul %8, %9, %cst_4 {dimension_numbers = #tpu.dot_dimension_numbers<[1], [1], [0], [0], [0, 0, 1, 0], [], []>} : vector<256x4xbf16>, vector<256x4xbf16>, vector<256x256xf32> -> vector<256x256xf32>
    %cst_5 = arith.constant 5.000000e-01 : f32
    %11 = vector.broadcast %cst_5 : f32 to vector<256x256xf32>
    %12 = arith.mulf %10, %11 : vector<256x256xf32>
    %cst_6 = arith.constant dense<0xFF800000> : vector<256xf32>
    %13 = vector.multi_reduction <maximumf>, %12, %cst_6 [1] : vector<256x256xf32> to vector<256xf32>
    %14 = vector.shape_cast %13 : vector<256xf32> to vector<256x1xf32>
    %15 = vector.broadcast %14 : vector<256x1xf32> to vector<256x256xf32>
    %16 = arith.subf %12, %15 : vector<256x256xf32>
    %17 = math.exp %16 : vector<256x256xf32>
    %cst_7 = arith.constant dense<0.000000e+00> : vector<256xf32>
    %18 = vector.multi_reduction <add>, %17, %cst_7 [1] : vector<256x256xf32> to vector<256xf32>
    %19 = vector.shape_cast %18 : vector<256xf32> to vector<256x1xf32>
    %20 = tpu.reciprocal %19 {approx = true} : vector<256x1xf32> -> vector<256x1xf32>
    %21 = vector.broadcast %20 : vector<256x1xf32> to vector<256x256xf32>
    %22 = arith.mulf %17, %21 : vector<256x256xf32>
    %23 = arith.truncf %22 : vector<256x256xf32> to vector<256x256xbf16>
    %24 = arith.truncf %7 : vector<256x4xf32> to vector<256x4xbf16>
    %cst_8 = arith.constant dense<0.000000e+00> : vector<256x4xf32>
    %25 = tpu.matmul %23, %24, %cst_8 {dimension_numbers = #tpu.dot_dimension_numbers<[1], [0], [0], [1], [0, 0, 1, 1], [], []>} : vector<256x256xbf16>, vector<256x4xbf16>, vector<256x4xf32> -> vector<256x4xf32>
    %26 = arith.truncf %25 : vector<256x4xf32> to vector<256x4xbf16>
    %c0_9 = arith.constant 0 : index
    %c0_10 = arith.constant 0 : index
    %27 = vector.load %arg3[%c0_9, %c0_10] : memref<4x4xbf16, #tpu.memory_space<vmem>>, vector<4x4xbf16>
    %cst_11 = arith.constant dense<0.000000e+00> : vector<256x4xf32>
    %28 = tpu.matmul %26, %27, %cst_11 {dimension_numbers = #tpu.dot_dimension_numbers<[1], [0], [0], [1], [0, 0, 1, 1], [], []>} : vector<256x4xbf16>, vector<4x4xbf16>, vector<256x4xf32> -> vector<256x4xf32>
    %c0_12 = arith.constant 0 : index
    %c0_13 = arith.constant 0 : index
    %29 = vector.load %arg4[%c0_12, %c0_13] : memref<1x4xf32, #tpu.memory_space<vmem>>, vector<1x4xf32>
    %30 = vector.broadcast %29 : vector<1x4xf32> to vector<256x4xf32>
    %31 = arith.addf %28, %30 : vector<256x4xf32>
    %32 = arith.addf %1, %31 : vector<256x4xf32>
    %c0_14 = arith.constant 0 : index
    %c0_15 = arith.constant 0 : index
    %c0_16 = arith.constant 0 : index
    %33 = vector.load %arg5[%c0_14, %c0_15, %c0_16] : memref<1x256x4xf32, #tpu.memory_space<vmem>>, vector<1x256x4xf32>
    %34 = vector.shape_cast %33 : vector<1x256x4xf32> to vector<256x4xf32>
    %35 = vector.shape_cast %32 : vector<256x4xf32> to vector<1x256x4xf32>
    tpu.vector_store %arg5[%c0_14, %c0_15, %c0_16], %35 {strides = array<i32>} : memref<1x256x4xf32, #tpu.memory_space<vmem>>, vector<1x256x4xf32>,
    return
  }
  func.func @transform_0(%arg0: i32) -> (i32, i32, i32) {
    %c0_i32 = arith.constant 0 : i32
    %c0_i32_0 = arith.constant 0 : i32
    %c0_i32_1 = arith.constant 0 : i32
    return %arg0, %c0_i32, %c0_i32_0 : i32, i32, i32
  }
  func.func @transform_1(%arg0: i32) -> (i32, i32) {
    %c0_i32 = arith.constant 0 : i32
    %c0_i32_0 = arith.constant 0 : i32
    %c0_i32_1 = arith.constant 0 : i32
    return %c0_i32, %c0_i32_0 : i32, i32
  }
  func.func @transform_2(%arg0: i32) -> (i32, i32) {
    %c0_i32 = arith.constant 0 : i32
    %c0_i32_0 = arith.constant 0 : i32
    %c0_i32_1 = arith.constant 0 : i32
    return %c0_i32, %c0_i32_0 : i32, i32
  }
  func.func @transform_3(%arg0: i32) -> (i32, i32) {
    %c0_i32 = arith.constant 0 : i32
    %c0_i32_0 = arith.constant 0 : i32
    %c0_i32_1 = arith.constant 0 : i32
    return %c0_i32, %c0_i32_0 : i32, i32
  }
  func.func @transform_4(%arg0: i32) -> (i32, i32, i32) {
    %c0_i32 = arith.constant 0 : i32
    %c0_i32_0 = arith.constant 0 : i32
    %c0_i32_1 = arith.constant 0 : i32
    return %arg0, %c0_i32, %c0_i32_0 : i32, i32, i32
  }
}

module attributes {stable_mosaic.version = 11 : i64} {
  func.func @_conv_stack_kernel(%arg0: i32, %arg1: memref<1x16x64xf32, #tpu.memory_space<vmem>>, %arg2: memref<2x3x64x64xbf16, #tpu.memory_space<vmem>>, %arg3: memref<2x1x64xf32, #tpu.memory_space<vmem>>, %arg4: memref<1x16x64xf32, #tpu.memory_space<vmem>>, %arg5: memref<18x64xf32, #tpu.memory_space<vmem>>) attributes {dimension_semantics = [#tpu.dimension_semantics<parallel>], iteration_bounds = array<i64: 2>, scalar_prefetch = 0 : i64, scratch_operands = 1 : i64, tpu.core_type = #tpu.core_type<tc>, window_params = [{transform_indices = @transform_0, window_bounds = array<i64: 1, 16, 64>}, {pipeline_mode = #tpu.pipeline_mode<synchronous>, transform_indices = @transform_1, window_bounds = array<i64: 2, 3, 64, 64>}, {pipeline_mode = #tpu.pipeline_mode<synchronous>, transform_indices = @transform_2, window_bounds = array<i64: 2, 1, 64>}, {transform_indices = @transform_3, window_bounds = array<i64: 1, 16, 64>}]} {
    %cst = arith.constant 0.000000e+00 : f32
    %0 = vector.broadcast %cst : f32 to vector<18x64xf32>
    %c0 = arith.constant 0 : index
    %c0_0 = arith.constant 0 : index
    %1 = vector.load %arg5[%c0, %c0_0] : memref<18x64xf32, #tpu.memory_space<vmem>>, vector<18x64xf32>
    tpu.vector_store %arg5[%c0, %c0_0], %0 {strides = array<i32>} : memref<18x64xf32, #tpu.memory_space<vmem>>, vector<18x64xf32>,
    %c0_1 = arith.constant 0 : index
    %c0_2 = arith.constant 0 : index
    %c0_3 = arith.constant 0 : index
    %2 = vector.load %arg1[%c0_1, %c0_2, %c0_3] : memref<1x16x64xf32, #tpu.memory_space<vmem>>, vector<1x16x64xf32>
    %3 = vector.shape_cast %2 : vector<1x16x64xf32> to vector<16x64xf32>
    %c1 = arith.constant 1 : index
    %c0_4 = arith.constant 0 : index
    %4 = vector.load %arg5[%c1, %c0_4] : memref<18x64xf32, #tpu.memory_space<vmem>>, vector<16x64xf32>
    tpu.vector_store %arg5[%c1, %c0_4], %3 {strides = array<i32>} : memref<18x64xf32, #tpu.memory_space<vmem>>, vector<16x64xf32>,
    %c0_5 = arith.constant 0 : index
    %c0_6 = arith.constant 0 : index
    %5 = vector.load %arg5[%c0_5, %c0_6] : memref<18x64xf32, #tpu.memory_space<vmem>>, vector<16x64xf32>
    %6 = arith.truncf %5 : vector<16x64xf32> to vector<16x64xbf16>
    %c0_7 = arith.constant 0 : index
    %c0_8 = arith.constant 0 : index
    %c0_9 = arith.constant 0 : index
    %c0_10 = arith.constant 0 : index
    %7 = vector.load %arg2[%c0_7, %c0_8, %c0_9, %c0_10] : memref<2x3x64x64xbf16, #tpu.memory_space<vmem>>, vector<1x1x64x64xbf16>
    %8 = vector.shape_cast %7 : vector<1x1x64x64xbf16> to vector<64x64xbf16>
    %cst_11 = arith.constant dense<0.000000e+00> : vector<16x64xf32>
    %9 = tpu.matmul %6, %8, %cst_11 {dimension_numbers = #tpu.dot_dimension_numbers<[1], [0], [0], [1], [0, 0, 1, 1], [], []>} : vector<16x64xbf16>, vector<64x64xbf16>, vector<16x64xf32> -> vector<16x64xf32>
    %c1_12 = arith.constant 1 : index
    %c0_13 = arith.constant 0 : index
    %10 = vector.load %arg5[%c1_12, %c0_13] : memref<18x64xf32, #tpu.memory_space<vmem>>, vector<16x64xf32>
    %11 = arith.truncf %10 : vector<16x64xf32> to vector<16x64xbf16>
    %c0_14 = arith.constant 0 : index
    %c1_15 = arith.constant 1 : index
    %c0_16 = arith.constant 0 : index
    %c0_17 = arith.constant 0 : index
    %12 = vector.load %arg2[%c0_14, %c1_15, %c0_16, %c0_17] : memref<2x3x64x64xbf16, #tpu.memory_space<vmem>>, vector<1x1x64x64xbf16>
    %13 = vector.shape_cast %12 : vector<1x1x64x64xbf16> to vector<64x64xbf16>
    %cst_18 = arith.constant dense<0.000000e+00> : vector<16x64xf32>
    %14 = tpu.matmul %11, %13, %cst_18 {dimension_numbers = #tpu.dot_dimension_numbers<[1], [0], [0], [1], [0, 0, 1, 1], [], []>} : vector<16x64xbf16>, vector<64x64xbf16>, vector<16x64xf32> -> vector<16x64xf32>
    %15 = arith.addf %9, %14 : vector<16x64xf32>
    %c2 = arith.constant 2 : index
    %c0_19 = arith.constant 0 : index
    %16 = vector.load %arg5[%c2, %c0_19] : memref<18x64xf32, #tpu.memory_space<vmem>>, vector<16x64xf32>
    %17 = arith.truncf %16 : vector<16x64xf32> to vector<16x64xbf16>
    %c0_20 = arith.constant 0 : index
    %c2_21 = arith.constant 2 : index
    %c0_22 = arith.constant 0 : index
    %c0_23 = arith.constant 0 : index
    %18 = vector.load %arg2[%c0_20, %c2_21, %c0_22, %c0_23] : memref<2x3x64x64xbf16, #tpu.memory_space<vmem>>, vector<1x1x64x64xbf16>
    %19 = vector.shape_cast %18 : vector<1x1x64x64xbf16> to vector<64x64xbf16>
    %cst_24 = arith.constant dense<0.000000e+00> : vector<16x64xf32>
    %20 = tpu.matmul %17, %19, %cst_24 {dimension_numbers = #tpu.dot_dimension_numbers<[1], [0], [0], [1], [0, 0, 1, 1], [], []>} : vector<16x64xbf16>, vector<64x64xbf16>, vector<16x64xf32> -> vector<16x64xf32>
    %21 = arith.addf %15, %20 : vector<16x64xf32>
    %c0_25 = arith.constant 0 : index
    %c0_26 = arith.constant 0 : index
    %c0_27 = arith.constant 0 : index
    %22 = vector.load %arg3[%c0_25, %c0_26, %c0_27] : memref<2x1x64xf32, #tpu.memory_space<vmem>>, vector<1x1x64xf32>
    %23 = vector.shape_cast %22 : vector<1x1x64xf32> to vector<1x64xf32>
    %24 = vector.broadcast %23 : vector<1x64xf32> to vector<16x64xf32>
    %25 = arith.addf %21, %24 : vector<16x64xf32>
    %cst_28 = arith.constant 0.000000e+00 : f32
    %26 = vector.broadcast %cst_28 : f32 to vector<16x64xf32>
    %27 = arith.maximumf %25, %26 : vector<16x64xf32>
    %c1_29 = arith.constant 1 : index
    %c0_30 = arith.constant 0 : index
    %28 = vector.load %arg5[%c1_29, %c0_30] : memref<18x64xf32, #tpu.memory_space<vmem>>, vector<16x64xf32>
    tpu.vector_store %arg5[%c1_29, %c0_30], %27 {strides = array<i32>} : memref<18x64xf32, #tpu.memory_space<vmem>>, vector<16x64xf32>,
    %c0_31 = arith.constant 0 : index
    %c0_32 = arith.constant 0 : index
    %29 = vector.load %arg5[%c0_31, %c0_32] : memref<18x64xf32, #tpu.memory_space<vmem>>, vector<16x64xf32>
    %30 = arith.truncf %29 : vector<16x64xf32> to vector<16x64xbf16>
    %c1_33 = arith.constant 1 : index
    %c0_34 = arith.constant 0 : index
    %c0_35 = arith.constant 0 : index
    %c0_36 = arith.constant 0 : index
    %31 = vector.load %arg2[%c1_33, %c0_34, %c0_35, %c0_36] : memref<2x3x64x64xbf16, #tpu.memory_space<vmem>>, vector<1x1x64x64xbf16>
    %32 = vector.shape_cast %31 : vector<1x1x64x64xbf16> to vector<64x64xbf16>
    %cst_37 = arith.constant dense<0.000000e+00> : vector<16x64xf32>
    %33 = tpu.matmul %30, %32, %cst_37 {dimension_numbers = #tpu.dot_dimension_numbers<[1], [0], [0], [1], [0, 0, 1, 1], [], []>} : vector<16x64xbf16>, vector<64x64xbf16>, vector<16x64xf32> -> vector<16x64xf32>
    %c1_38 = arith.constant 1 : index
    %c0_39 = arith.constant 0 : index
    %34 = vector.load %arg5[%c1_38, %c0_39] : memref<18x64xf32, #tpu.memory_space<vmem>>, vector<16x64xf32>
    %35 = arith.truncf %34 : vector<16x64xf32> to vector<16x64xbf16>
    %c1_40 = arith.constant 1 : index
    %c1_41 = arith.constant 1 : index
    %c0_42 = arith.constant 0 : index
    %c0_43 = arith.constant 0 : index
    %36 = vector.load %arg2[%c1_40, %c1_41, %c0_42, %c0_43] : memref<2x3x64x64xbf16, #tpu.memory_space<vmem>>, vector<1x1x64x64xbf16>
    %37 = vector.shape_cast %36 : vector<1x1x64x64xbf16> to vector<64x64xbf16>
    %cst_44 = arith.constant dense<0.000000e+00> : vector<16x64xf32>
    %38 = tpu.matmul %35, %37, %cst_44 {dimension_numbers = #tpu.dot_dimension_numbers<[1], [0], [0], [1], [0, 0, 1, 1], [], []>} : vector<16x64xbf16>, vector<64x64xbf16>, vector<16x64xf32> -> vector<16x64xf32>
    %39 = arith.addf %33, %38 : vector<16x64xf32>
    %c2_45 = arith.constant 2 : index
    %c0_46 = arith.constant 0 : index
    %40 = vector.load %arg5[%c2_45, %c0_46] : memref<18x64xf32, #tpu.memory_space<vmem>>, vector<16x64xf32>
    %41 = arith.truncf %40 : vector<16x64xf32> to vector<16x64xbf16>
    %c1_47 = arith.constant 1 : index
    %c2_48 = arith.constant 2 : index
    %c0_49 = arith.constant 0 : index
    %c0_50 = arith.constant 0 : index
    %42 = vector.load %arg2[%c1_47, %c2_48, %c0_49, %c0_50] : memref<2x3x64x64xbf16, #tpu.memory_space<vmem>>, vector<1x1x64x64xbf16>
    %43 = vector.shape_cast %42 : vector<1x1x64x64xbf16> to vector<64x64xbf16>
    %cst_51 = arith.constant dense<0.000000e+00> : vector<16x64xf32>
    %44 = tpu.matmul %41, %43, %cst_51 {dimension_numbers = #tpu.dot_dimension_numbers<[1], [0], [0], [1], [0, 0, 1, 1], [], []>} : vector<16x64xbf16>, vector<64x64xbf16>, vector<16x64xf32> -> vector<16x64xf32>
    %45 = arith.addf %39, %44 : vector<16x64xf32>
    %c1_52 = arith.constant 1 : index
    %c0_53 = arith.constant 0 : index
    %c0_54 = arith.constant 0 : index
    %46 = vector.load %arg3[%c1_52, %c0_53, %c0_54] : memref<2x1x64xf32, #tpu.memory_space<vmem>>, vector<1x1x64xf32>
    %47 = vector.shape_cast %46 : vector<1x1x64xf32> to vector<1x64xf32>
    %48 = vector.broadcast %47 : vector<1x64xf32> to vector<16x64xf32>
    %49 = arith.addf %45, %48 : vector<16x64xf32>
    %cst_55 = arith.constant 0.000000e+00 : f32
    %50 = vector.broadcast %cst_55 : f32 to vector<16x64xf32>
    %51 = arith.maximumf %49, %50 : vector<16x64xf32>
    %c0_56 = arith.constant 0 : index
    %c0_57 = arith.constant 0 : index
    %c0_58 = arith.constant 0 : index
    %52 = vector.load %arg4[%c0_56, %c0_57, %c0_58] : memref<1x16x64xf32, #tpu.memory_space<vmem>>, vector<1x16x64xf32>
    %53 = vector.shape_cast %52 : vector<1x16x64xf32> to vector<16x64xf32>
    %54 = vector.shape_cast %51 : vector<16x64xf32> to vector<1x16x64xf32>
    tpu.vector_store %arg4[%c0_56, %c0_57, %c0_58], %54 {strides = array<i32>} : memref<1x16x64xf32, #tpu.memory_space<vmem>>, vector<1x16x64xf32>,
    return
  }
  func.func @transform_0(%arg0: i32) -> (i32, i32, i32) {
    %c0_i32 = arith.constant 0 : i32
    %c0_i32_0 = arith.constant 0 : i32
    %c0_i32_1 = arith.constant 0 : i32
    return %arg0, %c0_i32, %c0_i32_0 : i32, i32, i32
  }
  func.func @transform_1(%arg0: i32) -> (i32, i32, i32, i32) {
    %c0_i32 = arith.constant 0 : i32
    %c0_i32_0 = arith.constant 0 : i32
    %c0_i32_1 = arith.constant 0 : i32
    %c0_i32_2 = arith.constant 0 : i32
    %c0_i32_3 = arith.constant 0 : i32
    return %c0_i32, %c0_i32_0, %c0_i32_1, %c0_i32_2 : i32, i32, i32, i32
  }
  func.func @transform_2(%arg0: i32) -> (i32, i32, i32) {
    %c0_i32 = arith.constant 0 : i32
    %c0_i32_0 = arith.constant 0 : i32
    %c0_i32_1 = arith.constant 0 : i32
    %c0_i32_2 = arith.constant 0 : i32
    return %c0_i32, %c0_i32_0, %c0_i32_1 : i32, i32, i32
  }
  func.func @transform_3(%arg0: i32) -> (i32, i32, i32) {
    %c0_i32 = arith.constant 0 : i32
    %c0_i32_0 = arith.constant 0 : i32
    %c0_i32_1 = arith.constant 0 : i32
    return %arg0, %c0_i32, %c0_i32_0 : i32, i32, i32
  }
}

module attributes {stable_mosaic.version = 11 : i64} {
  func.func @_attn_block_kernel(%arg0: i32, %arg1: memref<1x256x4xf32, #tpu.memory_space<vmem>>, %arg2: memref<4x12xbf16, #tpu.memory_space<vmem>>, %arg3: memref<4x4xbf16, #tpu.memory_space<vmem>>, %arg4: memref<1x4xf32, #tpu.memory_space<vmem>>, %arg5: memref<1x256x4xf32, #tpu.memory_space<vmem>>) attributes {dimension_semantics = [#tpu.dimension_semantics<parallel>], iteration_bounds = array<i64: 2>, scalar_prefetch = 0 : i64, scratch_operands = 0 : i64, tpu.core_type = #tpu.core_type<tc>, window_params = [{transform_indices = @transform_0, window_bounds = array<i64: 1, 256, 4>}, {pipeline_mode = #tpu.pipeline_mode<synchronous>, transform_indices = @transform_1, window_bounds = array<i64: 4, 12>}, {pipeline_mode = #tpu.pipeline_mode<synchronous>, transform_indices = @transform_2, window_bounds = array<i64: 4, 4>}, {pipeline_mode = #tpu.pipeline_mode<synchronous>, transform_indices = @transform_3, window_bounds = array<i64: 1, 4>}, {transform_indices = @transform_4, window_bounds = array<i64: 1, 256, 4>}]} {
    %c0 = arith.constant 0 : index
    %c0_0 = arith.constant 0 : index
    %c0_1 = arith.constant 0 : index
    %0 = vector.load %arg1[%c0, %c0_0, %c0_1] : memref<1x256x4xf32, #tpu.memory_space<vmem>>, vector<1x256x4xf32>
    %1 = vector.shape_cast %0 : vector<1x256x4xf32> to vector<256x4xf32>
    %2 = arith.truncf %1 : vector<256x4xf32> to vector<256x4xbf16>
    %c0_2 = arith.constant 0 : index
    %c0_3 = arith.constant 0 : index
    %3 = vector.load %arg2[%c0_2, %c0_3] : memref<4x12xbf16, #tpu.memory_space<vmem>>, vector<4x12xbf16>
    %cst = arith.constant dense<0.000000e+00> : vector<256x12xf32>
    %4 = tpu.matmul %2, %3, %cst {dimension_numbers = #tpu.dot_dimension_numbers<[1], [0], [0], [1], [0, 0, 1, 1], [], []>} : vector<256x4xbf16>, vector<4x12xbf16>, vector<256x12xf32> -> vector<256x12xf32>
    %5 = vector.extract_strided_slice %4 {offsets = [0, 0], sizes = [256, 4], strides = [1, 1]} : vector<256x12xf32> to vector<256x4xf32>
    %6 = vector.extract_strided_slice %4 {offsets = [0, 4], sizes = [256, 4], strides = [1, 1]} : vector<256x12xf32> to vector<256x4xf32>
    %7 = vector.extract_strided_slice %4 {offsets = [0, 8], sizes = [256, 4], strides = [1, 1]} : vector<256x12xf32> to vector<256x4xf32>
    %8 = arith.truncf %5 : vector<256x4xf32> to vector<256x4xbf16>
    %9 = arith.truncf %6 : vector<256x4xf32> to vector<256x4xbf16>
    %cst_4 = arith.constant dense<0.000000e+00> : vector<256x256xf32>
    %10 = tpu.matmul %8, %9, %cst_4 {dimension_numbers = #tpu.dot_dimension_numbers<[1], [1], [0], [0], [0, 0, 1, 0], [], []>} : vector<256x4xbf16>, vector<256x4xbf16>, vector<256x256xf32> -> vector<256x256xf32>
    %cst_5 = arith.constant 5.000000e-01 : f32
    %11 = vector.broadcast %cst_5 : f32 to vector<256x256xf32>
    %12 = arith.mulf %10, %11 : vector<256x256xf32>
    %cst_6 = arith.constant dense<0xFF800000> : vector<256xf32>
    %13 = vector.multi_reduction <maximumf>, %12, %cst_6 [1] : vector<256x256xf32> to vector<256xf32>
    %14 = vector.shape_cast %13 : vector<256xf32> to vector<256x1xf32>
    %15 = vector.broadcast %14 : vector<256x1xf32> to vector<256x256xf32>
    %16 = arith.subf %12, %15 : vector<256x256xf32>
    %17 = math.exp %16 : vector<256x256xf32>
    %cst_7 = arith.constant dense<0.000000e+00> : vector<256xf32>
    %18 = vector.multi_reduction <add>, %17, %cst_7 [1] : vector<256x256xf32> to vector<256xf32>
    %19 = vector.shape_cast %18 : vector<256xf32> to vector<256x1xf32>
    %20 = tpu.reciprocal %19 {approx = true} : vector<256x1xf32> -> vector<256x1xf32>
    %21 = vector.broadcast %20 : vector<256x1xf32> to vector<256x256xf32>
    %22 = arith.mulf %17, %21 : vector<256x256xf32>
    %23 = arith.truncf %22 : vector<256x256xf32> to vector<256x256xbf16>
    %24 = arith.truncf %7 : vector<256x4xf32> to vector<256x4xbf16>
    %cst_8 = arith.constant dense<0.000000e+00> : vector<256x4xf32>
    %25 = tpu.matmul %23, %24, %cst_8 {dimension_numbers = #tpu.dot_dimension_numbers<[1], [0], [0], [1], [0, 0, 1, 1], [], []>} : vector<256x256xbf16>, vector<256x4xbf16>, vector<256x4xf32> -> vector<256x4xf32>
    %26 = arith.truncf %25 : vector<256x4xf32> to vector<256x4xbf16>
    %c0_9 = arith.constant 0 : index
    %c0_10 = arith.constant 0 : index
    %27 = vector.load %arg3[%c0_9, %c0_10] : memref<4x4xbf16, #tpu.memory_space<vmem>>, vector<4x4xbf16>
    %cst_11 = arith.constant dense<0.000000e+00> : vector<256x4xf32>
    %28 = tpu.matmul %26, %27, %cst_11 {dimension_numbers = #tpu.dot_dimension_numbers<[1], [0], [0], [1], [0, 0, 1, 1], [], []>} : vector<256x4xbf16>, vector<4x4xbf16>, vector<256x4xf32> -> vector<256x4xf32>
    %c0_12 = arith.constant 0 : index
    %c0_13 = arith.constant 0 : index
    %29 = vector.load %arg4[%c0_12, %c0_13] : memref<1x4xf32, #tpu.memory_space<vmem>>, vector<1x4xf32>
    %30 = vector.broadcast %29 : vector<1x4xf32> to vector<256x4xf32>
    %31 = arith.addf %28, %30 : vector<256x4xf32>
    %32 = arith.addf %1, %31 : vector<256x4xf32>
    %c0_14 = arith.constant 0 : index
    %c0_15 = arith.constant 0 : index
    %c0_16 = arith.constant 0 : index
    %33 = vector.load %arg5[%c0_14, %c0_15, %c0_16] : memref<1x256x4xf32, #tpu.memory_space<vmem>>, vector<1x256x4xf32>
    %34 = vector.shape_cast %33 : vector<1x256x4xf32> to vector<256x4xf32>
    %35 = vector.shape_cast %32 : vector<256x4xf32> to vector<1x256x4xf32>
    tpu.vector_store %arg5[%c0_14, %c0_15, %c0_16], %35 {strides = array<i32>} : memref<1x256x4xf32, #tpu.memory_space<vmem>>, vector<1x256x4xf32>,
    return
  }
  func.func @transform_0(%arg0: i32) -> (i32, i32, i32) {
    %c0_i32 = arith.constant 0 : i32
    %c0_i32_0 = arith.constant 0 : i32
    %c0_i32_1 = arith.constant 0 : i32
    return %arg0, %c0_i32, %c0_i32_0 : i32, i32, i32
  }
  func.func @transform_1(%arg0: i32) -> (i32, i32) {
    %c0_i32 = arith.constant 0 : i32
    %c0_i32_0 = arith.constant 0 : i32
    %c0_i32_1 = arith.constant 0 : i32
    return %c0_i32, %c0_i32_0 : i32, i32
  }
  func.func @transform_2(%arg0: i32) -> (i32, i32) {
    %c0_i32 = arith.constant 0 : i32
    %c0_i32_0 = arith.constant 0 : i32
    %c0_i32_1 = arith.constant 0 : i32
    return %c0_i32, %c0_i32_0 : i32, i32
  }
  func.func @transform_3(%arg0: i32) -> (i32, i32) {
    %c0_i32 = arith.constant 0 : i32
    %c0_i32_0 = arith.constant 0 : i32
    %c0_i32_1 = arith.constant 0 : i32
    return %c0_i32, %c0_i32_0 : i32, i32
  }
  func.func @transform_4(%arg0: i32) -> (i32, i32, i32) {
    %c0_i32 = arith.constant 0 : i32
    %c0_i32_0 = arith.constant 0 : i32
    %c0_i32_1 = arith.constant 0 : i32
    return %arg0, %c0_i32, %c0_i32_0 : i32, i32, i32
  }
}

module attributes {stable_mosaic.version = 11 : i64} {
  func.func @_head_kernel(%arg0: i32, %arg1: i32, %arg2: memref<1x256x4xf32, #tpu.memory_space<vmem>>, %arg3: memref<1x4x16xbf16, #tpu.memory_space<vmem>>, %arg4: memref<1x1x16xf32, #tpu.memory_space<vmem>>, %arg5: memref<1x16x12xbf16, #tpu.memory_space<vmem>>, %arg6: memref<1x1x12xf32, #tpu.memory_space<vmem>>, %arg7: memref<1x256x12xf32, #tpu.memory_space<vmem>>) attributes {dimension_semantics = [#tpu.dimension_semantics<parallel>, #tpu.dimension_semantics<parallel>], iteration_bounds = array<i64: 4, 2>, scalar_prefetch = 0 : i64, scratch_operands = 0 : i64, tpu.core_type = #tpu.core_type<tc>, window_params = [{transform_indices = @transform_0, window_bounds = array<i64: 1, 256, 4>}, {transform_indices = @transform_1, window_bounds = array<i64: 1, 4, 16>}, {transform_indices = @transform_2, window_bounds = array<i64: 1, 1, 16>}, {transform_indices = @transform_3, window_bounds = array<i64: 1, 16, 12>}, {transform_indices = @transform_4, window_bounds = array<i64: 1, 1, 12>}, {transform_indices = @transform_5, window_bounds = array<i64: 1, 256, 12>}]} {
    %c0 = arith.constant 0 : index
    %c0_0 = arith.constant 0 : index
    %c0_1 = arith.constant 0 : index
    %0 = vector.load %arg2[%c0, %c0_0, %c0_1] : memref<1x256x4xf32, #tpu.memory_space<vmem>>, vector<1x256x4xf32>
    %1 = vector.shape_cast %0 : vector<1x256x4xf32> to vector<256x4xf32>
    %2 = arith.truncf %1 : vector<256x4xf32> to vector<256x4xbf16>
    %c0_2 = arith.constant 0 : index
    %c0_3 = arith.constant 0 : index
    %c0_4 = arith.constant 0 : index
    %3 = vector.load %arg3[%c0_2, %c0_3, %c0_4] : memref<1x4x16xbf16, #tpu.memory_space<vmem>>, vector<1x4x16xbf16>
    %4 = vector.shape_cast %3 : vector<1x4x16xbf16> to vector<4x16xbf16>
    %cst = arith.constant dense<0.000000e+00> : vector<256x16xf32>
    %5 = tpu.matmul %2, %4, %cst {dimension_numbers = #tpu.dot_dimension_numbers<[1], [0], [0], [1], [0, 0, 1, 1], [], []>} : vector<256x4xbf16>, vector<4x16xbf16>, vector<256x16xf32> -> vector<256x16xf32>
    %c0_5 = arith.constant 0 : index
    %c0_6 = arith.constant 0 : index
    %c0_7 = arith.constant 0 : index
    %6 = vector.load %arg4[%c0_5, %c0_6, %c0_7] : memref<1x1x16xf32, #tpu.memory_space<vmem>>, vector<1x1x16xf32>
    %7 = vector.shape_cast %6 : vector<1x1x16xf32> to vector<1x16xf32>
    %8 = vector.broadcast %7 : vector<1x16xf32> to vector<256x16xf32>
    %9 = arith.addf %5, %8 : vector<256x16xf32>
    %cst_8 = arith.constant 0.000000e+00 : f32
    %10 = vector.broadcast %cst_8 : f32 to vector<256x16xf32>
    %11 = arith.maximumf %9, %10 : vector<256x16xf32>
    %12 = arith.truncf %11 : vector<256x16xf32> to vector<256x16xbf16>
    %c0_9 = arith.constant 0 : index
    %c0_10 = arith.constant 0 : index
    %c0_11 = arith.constant 0 : index
    %13 = vector.load %arg5[%c0_9, %c0_10, %c0_11] : memref<1x16x12xbf16, #tpu.memory_space<vmem>>, vector<1x16x12xbf16>
    %14 = vector.shape_cast %13 : vector<1x16x12xbf16> to vector<16x12xbf16>
    %cst_12 = arith.constant dense<0.000000e+00> : vector<256x12xf32>
    %15 = tpu.matmul %12, %14, %cst_12 {dimension_numbers = #tpu.dot_dimension_numbers<[1], [0], [0], [1], [0, 0, 1, 1], [], []>} : vector<256x16xbf16>, vector<16x12xbf16>, vector<256x12xf32> -> vector<256x12xf32>
    %c0_13 = arith.constant 0 : index
    %c0_14 = arith.constant 0 : index
    %c0_15 = arith.constant 0 : index
    %16 = vector.load %arg6[%c0_13, %c0_14, %c0_15] : memref<1x1x12xf32, #tpu.memory_space<vmem>>, vector<1x1x12xf32>
    %17 = vector.shape_cast %16 : vector<1x1x12xf32> to vector<1x12xf32>
    %18 = vector.broadcast %17 : vector<1x12xf32> to vector<256x12xf32>
    %19 = arith.addf %15, %18 : vector<256x12xf32>
    %c0_16 = arith.constant 0 : index
    %c0_17 = arith.constant 0 : index
    %c0_18 = arith.constant 0 : index
    %20 = vector.load %arg7[%c0_16, %c0_17, %c0_18] : memref<1x256x12xf32, #tpu.memory_space<vmem>>, vector<1x256x12xf32>
    %21 = vector.shape_cast %20 : vector<1x256x12xf32> to vector<256x12xf32>
    %22 = vector.shape_cast %19 : vector<256x12xf32> to vector<1x256x12xf32>
    tpu.vector_store %arg7[%c0_16, %c0_17, %c0_18], %22 {strides = array<i32>} : memref<1x256x12xf32, #tpu.memory_space<vmem>>, vector<1x256x12xf32>,
    return
  }
  func.func @transform_0(%arg0: i32, %arg1: i32) -> (i32, i32, i32) {
    %c0_i32 = arith.constant 0 : i32
    %c0_i32_0 = arith.constant 0 : i32
    return %arg0, %arg1, %c0_i32 : i32, i32, i32
  }
  func.func @transform_1(%arg0: i32, %arg1: i32) -> (i32, i32, i32) {
    %c0_i32 = arith.constant 0 : i32
    %c0_i32_0 = arith.constant 0 : i32
    %c0_i32_1 = arith.constant 0 : i32
    return %arg0, %c0_i32, %c0_i32_0 : i32, i32, i32
  }
  func.func @transform_2(%arg0: i32, %arg1: i32) -> (i32, i32, i32) {
    %c0_i32 = arith.constant 0 : i32
    %c0_i32_0 = arith.constant 0 : i32
    %c0_i32_1 = arith.constant 0 : i32
    return %arg0, %c0_i32, %c0_i32_0 : i32, i32, i32
  }
  func.func @transform_3(%arg0: i32, %arg1: i32) -> (i32, i32, i32) {
    %c0_i32 = arith.constant 0 : i32
    %c0_i32_0 = arith.constant 0 : i32
    %c0_i32_1 = arith.constant 0 : i32
    return %arg0, %c0_i32, %c0_i32_0 : i32, i32, i32
  }
  func.func @transform_4(%arg0: i32, %arg1: i32) -> (i32, i32, i32) {
    %c0_i32 = arith.constant 0 : i32
    %c0_i32_0 = arith.constant 0 : i32
    %c0_i32_1 = arith.constant 0 : i32
    return %arg0, %c0_i32, %c0_i32_0 : i32, i32, i32
  }
  func.func @transform_5(%arg0: i32, %arg1: i32) -> (i32, i32, i32) {
    %c0_i32 = arith.constant 0 : i32
    %c0_i32_0 = arith.constant 0 : i32
    return %arg0, %arg1, %c0_i32 : i32, i32, i32
  }
}

</mosaic_0001>

<llo_original>
// kernel: mask_head_forward.7
$region0: #{mask_head_forward.7}
  #allocation0 [shape = 'u32[]', space=smem, size = 0x4, offset = 0x4, fixed_abs, tag = 'smem constant byte address 0x4 - core index']
  #allocation1 [shape = 'u32[144,128]{1,0:T(1,128)}', space=vmem, size = 0x12000, scoped, tag = 'internal scratch']
  #allocation2 [shape = 'f32[18,64]{1,0:T(8,128)}', space=vmem, size = 0x3000, scoped, tag = 'scratch operand']
  %s0 = inlined_call_operand.vmem [shape: f32[2,16,64], index: 0, kind: input, shape index: {}]
  %s1 = inlined_call_operand.hbm [shape: bf16[2,3,64,64], index: 1, kind: input, shape index: {}]
  %s2 = inlined_call_operand.hbm [shape: f32[2,1,64], index: 2, kind: input, shape index: {}]
  %s3 = inlined_call_operand.vmem [shape: f32[2,16,64], index: 3, kind: output, shape index: {}]
  %s4 = sld [smem:[#allocation0]]
  $region53: #{mask_head_forward.7} parent=0
    _
  %s6 = ssub.s32 1, %s4
  %s7 = scalar_select 0, %s6, %s4
  $region1: #{mask_head_forward.7} parent=0
    #allocation3 [shape = 'u8[98304]{0}', space=vmem, size = 0x18000, scoped, tag = 'input window, operand 1, single buffered']
    #allocation4 [shape = 's32[2]{0}', space=sflag, size = 0x8, scoped, tag = 'scoped memory for mask_head_forward.7']
    #allocation5 [shape = 'u8[1024]{0}', space=vmem, size = 0x400, scoped, tag = 'input window, operand 2, single buffered']
    #allocation6 [shape = 's32[1]{0}', space=sflag, size = 0x4, scoped, tag = 'scoped memory for mask_head_forward.7']
    %8 = vsyncpa [#allocation4], 0
    %9 = vsyncpa [#allocation6], 0
    loop: start=0, step=1, limit=4
    $region2: #{mask_head_forward.7} parent=1 // loop_pre_header
      _
    $region3: #{mask_head_forward.7} parent=1 // loop_header
      %s11 = sphi 0, %s15
      %p12 = scmp.ge.s32.totalorder %s11, 4
      %s21 = sphi 0, %s23
      %s24 = sphi 0, %s21
      %s25 = sphi 0, %s24
      %s41 = sphi 0, %s25
      %s45 = sphi 0, %s45
      %s47 = sphi 0, %s45
      %s48 = sphi 0, %s47
      %s62 = sphi 0, %s48
      %s66 = sphi 0, %s66
      %s68 = sphi 0, %s66
      %s69 = sphi 0, %s68
      %s83 = sphi 0, %s69
      %s89 = sphi 0, %s91
      %s92 = sphi 0, %s89
      %s93 = sphi 0, %s92
      %s109 = sphi 0, %s93
    $region4: #{mask_head_forward.7} parent=1 // loop_header_branch
      %14 = sbr.rel (%p12) target = $region8
    $region5: #{mask_head_forward.7} parent=1 // loop_body
      %s16 = ssub.s32 %s11, 1
      %s17 = ssub.s32 %s11, 2
      %s18 = sadd.s32 %s11, 1
      %s19 = ssub.s32 %s11, %s18
      %p20 = scmp.eq.s32.totalorder %s19, 0
      %s22 = sadd.s32 %s21, 1
      %s23 = scalar_select %p20, %s21, %s22
      %p26 = pneg %p20
      %p27 = scmp.eq.s32.totalorder %s11, 1
      %p28 = por %p26, %p27
      %p29 = scmp.ne.s32.totalorder %s21, %s24
      %p30 = scmp.eq.s32.totalorder %s11, 0
      %p31 = por %p29, %p30
      %p32 = scmp.ne.s32.totalorder %s21, %s24
      %p33 = scmp.eq.s32.totalorder %s16, 1
      %p34 = por %p32, %p33
      %p35 = scmp.ne.s32.totalorder %s24, %s25
      %p36 = scmp.eq.s32.totalorder %s16, 0
      %p37 = por %p35, %p36
      %p38 = scmp.ne.s32.totalorder %s24, %s25
      %p39 = scmp.eq.s32.totalorder %s17, 1
      %p40 = por %p38, %p39
      %p42 = scmp.ne.s32.totalorder %s25, %s41
      %p43 = scmp.eq.s32.totalorder %s17, 0
      %p44 = por %p42, %p43
      %s46 = sadd.s32 %s45, 1
      %p49 = scmp.eq.s32.totalorder %s11, 1
      %p50 = scmp.ne.s32.totalorder %s45, %s47
      %p51 = scmp.eq.s32.totalorder %s11, 0
      %p52 = por %p50, %p51
      %p53 = scmp.ne.s32.totalorder %s45, %s47
      %p54 = scmp.eq.s32.totalorder %s16, 1
      %p55 = por %p53, %p54
      %p56 = scmp.ne.s32.totalorder %s47, %s48
      %p57 = scmp.eq.s32.totalorder %s16, 0
      %p58 = por %p56, %p57
      %p59 = scmp.ne.s32.totalorder %s47, %s48
      %p60 = scmp.eq.s32.totalorder %s17, 1
      %p61 = por %p59, %p60
      %p63 = scmp.ne.s32.totalorder %s48, %s62
      %p64 = scmp.eq.s32.totalorder %s17, 0
      %p65 = por %p63, %p64
      %s67 = sadd.s32 %s66, 1
      %p70 = scmp.eq.s32.totalorder %s11, 1
      %p71 = scmp.ne.s32.totalorder %s66, %s68
      %p72 = scmp.eq.s32.totalorder %s11, 0
      %p73 = por %p71, %p72
      %p74 = scmp.ne.s32.totalorder %s66, %s68
      %p75 = scmp.eq.s32.totalorder %s16, 1
      %p76 = por %p74, %p75
      %p77 = scmp.ne.s32.totalorder %s68, %s69
      %p78 = scmp.eq.s32.totalorder %s16, 0
      %p79 = por %p77, %p78
      %p80 = scmp.ne.s32.totalorder %s68, %s69
      %p81 = scmp.eq.s32.totalorder %s17, 1
      %p82 = por %p80, %p81
      %p84 = scmp.ne.s32.totalorder %s69, %s83
      %p85 = scmp.eq.s32.totalorder %s17, 0
      %p86 = por %p84, %p85
      %s87 = ssub.s32 %s11, %s18
      %p88 = scmp.eq.s32.totalorder %s87, 0
      %s90 = sadd.s32 %s89, 1
      %s91 = scalar_select %p88, %s89, %s90
      %p94 = pneg %p88
      %p95 = scmp.eq.s32.totalorder %s11, 1
      %p96 = por %p94, %p95
      %p97 = scmp.ne.s32.totalorder %s89, %s92
      %p98 = scmp.eq.s32.totalorder %s11, 0
      %p99 = por %p97, %p98
      %p100 = scmp.ne.s32.totalorder %s89, %s92
      %p101 = scmp.eq.s32.totalorder %s16, 1
      %p102 = por %p100, %p101
      %p103 = scmp.ne.s32.totalorder %s92, %s93
      %p104 = scmp.eq.s32.totalorder %s16, 0
      %p105 = por %p103, %p104
      %p106 = scmp.ne.s32.totalorder %s92, %s93
      %p107 = scmp.eq.s32.totalorder %s17, 1
      %p108 = por %p106, %p107
      %p110 = scmp.ne.s32.totalorder %s93, %s109
      %p111 = scmp.eq.s32.totalorder %s17, 0
      %p112 = por %p110, %p111
      %p113 = scmp.le.s32.totalorder 1, %s11
      %p114 = scmp.lt.s32.totalorder %s11, 3
      %p115 = pnand %p113, %p114
      %p116 = pneg %p115
      // Predicated region
      $region9: #{mask_head_forward.7} parent=5 // pred_check
        _
      $region10: #{mask_head_forward.7} parent=5 // pred_check_branch
        %118 = sbr.rel (%p115) target = $region12
      $region11: #{mask_head_forward.7} parent=5 // pred_region
        %s119 = ssub.s32 %s11, 1
        // Predicated region
        $region13: #{mask_head_forward.7} parent=11 // pred_check
          %p120 = pneg %p58
        $region14: #{mask_head_forward.7} parent=11 // pred_check_branch
          %122 = sbr.rel (%p120) target = $region16
        $region15: #{mask_head_forward.7} parent=11 // pred_region
          %s124 = ssub.s32 3072, 3072
          %125 = vsyncadd [#allocation4], %s124
          %s126 = sshll.u32 [#allocation3], 4
          %s127 = int_to_ptr.vmem [resolvable:$true] %s126
          %132 = dma.hbm_to_vmem [thread:$0]  %s1, 3072, %s127, [#allocation4], 64, 64, 4
        $region16: #{mask_head_forward.7} parent=11 // pred_fallthru
          _
        // Predicated region
        $region17: #{mask_head_forward.7} parent=11 // pred_check
          %p133 = pneg %p79
        $region18: #{mask_head_forward.7} parent=11 // pred_check_branch
          %135 = sbr.rel (%p133) target = $region20
        $region19: #{mask_head_forward.7} parent=11 // pred_region
          %s137 = ssub.s32 32, 32
          %138 = vsyncadd [#allocation6], %s137
          %s139 = sshll.u32 [#allocation5], 4
          %s140 = int_to_ptr.vmem [resolvable:$true] %s139
          %145 = dma.hbm_to_vmem [thread:$0]  %s2, 32, %s140, [#allocation6], 16, 16, 1
        $region20: #{mask_head_forward.7} parent=11 // pred_fallthru
          _
      $region12: #{mask_head_forward.7} parent=5 // pred_fallthru
        _
      %p146 = scmp.lt.s32.totalorder %s11, 2
      // Predicated region
      $region21: #{mask_head_forward.7} parent=5 // pred_check
        %p147 = pneg %p146
      $region22: #{mask_head_forward.7} parent=5 // pred_check_branch
        %149 = sbr.rel (%p147) target = $region24
      $region23: #{mask_head_forward.7} parent=5 // pred_region
        // Predicated region
        $region25: #{mask_head_forward.7} parent=23 // pred_check
          %p150 = pneg %p31
        $region26: #{mask_head_forward.7} parent=23 // pred_check_branch
          %152 = sbr.rel (%p150) target = $region28
        $region27: #{mask_head_forward.7} parent=23 // pred_region
          %p153 = scmp.lt.s32.totalorder %s11, 1
          %s154 = scalar_select %p153, %s11, 1
          %s155 = smul.addr %s154, 2
          %s156 = smul.addr %s155, 8
          %s157 = scalar_lea.vmem %s0, %s156
        $region28: #{mask_head_forward.7} parent=23 // pred_fallthru
          _
      $region24: #{mask_head_forward.7} parent=5 // pred_fallthru
        _
      %p158 = scmp.le.s32.totalorder 1, %s11
      %p159 = scmp.lt.s32.totalorder %s11, 3
      %p160 = pnand %p158, %p159
      %p161 = pneg %p160
      // Predicated region
      $region29: #{mask_head_forward.7} parent=5 // pred_check
        _
      $region30: #{mask_head_forward.7} parent=5 // pred_check_branch
        %163 = sbr.rel (%p160) target = $region32
      $region31: #{mask_head_forward.7} parent=5 // pred_region
        %s164 = ssub.s32 %s11, 1
        // Predicated region
        $region33: #{mask_head_forward.7} parent=31 // pred_check
          %p165 = pneg %p58
        $region34: #{mask_head_forward.7} parent=31 // pred_check_branch
          %167 = sbr.rel (%p165) target = $region36
        $region35: #{mask_head_forward.7} parent=31 // pred_region
          %168 = dma.done [#allocation4], 3072
        $region36: #{mask_head_forward.7} parent=31 // pred_fallthru
          _
        // Predicated region
        $region37: #{mask_head_forward.7} parent=31 // pred_check
          %p169 = pneg %p79
        $region38: #{mask_head_forward.7} parent=31 // pred_check_branch
          %171 = sbr.rel (%p169) target = $region40
        $region39: #{mask_head_forward.7} parent=31 // pred_region
          %172 = dma.done [#allocation6], 32
        $region40: #{mask_head_forward.7} parent=31 // pred_fallthru
          _
        %p173 = scmp.lt.s32.totalorder %s16, 1
        %s174 = scalar_select %p173, %s16, 1
        %s175 = smul.addr %s174, 2
        %s176 = smul.addr %s175, 8
        %s177 = scalar_lea.vmem %s0, %s176
        %p178 = pneg %p37
        %p179 = pneg %p34
        %p180 = pneg %p58
        %p181 = pneg %p55
        %p182 = pneg %p79
        %p183 = pneg %p76
        %p184 = pneg %p105
        %p185 = pneg %p102
        %p186 = scmp.lt.s32.totalorder %s16, 1
        %s187 = scalar_select %p186, %s16, 1
        %s188 = smul.addr %s187, 2
        %s189 = smul.addr %s188, 8
        %s190 = scalar_lea.vmem %s3, %s189
        %p191 = scmp.lt.s32.totalorder %s16, 1
        %s192 = scalar_select %p191, %s16, 1
        %s193 = smul.addr %s192, 2
        %s194 = smul.addr %s193, 8
        %s195 = scalar_lea.vmem %s0, %s194
        %p196 = scmp.lt.s32.totalorder %s16, 1
        %s197 = scalar_select %p196, %s16, 1
        %s198 = smul.addr %s197, 2
        %s199 = smul.addr %s198, 8
        %s200 = scalar_lea.vmem %s3, %s199
        %vm202 = vcmask 523264
        %203 = vst.msk [vmem:[#allocation2] sm:$0xff] %vm202, 0.0
        %204 = vst.msk [vmem:[#allocation2 + $0x8] sm:$0xff] %vm202, 0.0
        %vm205 = vcmask 517120
        %206 = vst.msk [vmem:[#allocation2 + $0x10] sm:$0x3] %vm205, 0.0
        %v207 = vld [vmem:[%s195] sm:$0xff]
        %v208 = vld [vmem:[%s195 + $0x8] sm:$0xff]
        %209 = vst.msk [vmem:[#allocation2 + $0x1] sm:$0xff] %vm202, %v207
        %210 = vst.msk [vmem:[#allocation2 + $0x9] sm:$0xff] %vm202, %v208
        %v211 = vld [vmem:[#allocation2] sm:$0xff]
        %v212 = vld [vmem:[#allocation2 + $0x8] sm:$0xff]
        %v213 = vpack.c.bf16 %v212, %v211
        %v214 = vld [vmem:[#allocation3] sm:$0xf]
        %v215 = vld [vmem:[#allocation3 + $0x4] sm:$0xf]
        %v216 = vld [vmem:[#allocation3 + $0x8] sm:$0xf]
        %v217 = vld [vmem:[#allocation3 + $0xc] sm:$0xf]
        %v218 = vld [vmem:[#allocation3 + $0x10] sm:$0xf]
        %v219 = vld [vmem:[#allocation3 + $0x14] sm:$0xf]
        %v220 = vld [vmem:[#allocation3 + $0x18] sm:$0xf]
        %v221 = vld [vmem:[#allocation3 + $0x1c] sm:$0xf]
        %v222 = vld [vmem:[#allocation2 + $0x1] sm:$0xff]
        %v223 = vld [vmem:[#allocation2 + $0x9] sm:$0xff]
        %v224 = vpack.c.bf16 %v223, %v222
        %s225 = scalar_lea.vmem [#allocation3], 32
        %v226 = vld [vmem:[%s225] sm:$0xf]
        %v227 = vld [vmem:[%s225 + $0x4] sm:$0xf]
        %v228 = vld [vmem:[%s225 + $0x8] sm:$0xf]
        %v229 = vld [vmem:[%s225 + $0xc] sm:$0xf]
        %v230 = vld [vmem:[%s225 + $0x10] sm:$0xf]
        %v231 = vld [vmem:[%s225 + $0x14] sm:$0xf]
        %v232 = vld [vmem:[%s225 + $0x18] sm:$0xf]
        %v233 = vld [vmem:[%s225 + $0x1c] sm:$0xf]
        %v242 = vunpack.c.l.b16 %v226
        %v243 = vunpack.c.l.b16 %v227
        %v244 = vunpack.c.l.b16 %v228
        %v245 = vunpack.c.l.b16 %v229
        %v246 = vunpack.c.l.b16 %v230
        %v247 = vunpack.c.l.b16 %v231
        %v248 = vunpack.c.l.b16 %v232
        %v249 = vunpack.c.l.b16 %v233
        %v250 = vpack.c.b16 %v243, %v242
        %v251 = vpack.c.b16 %v245, %v244
        %v252 = vpack.c.b16 %v247, %v246
        %v253 = vpack.c.b16 %v249, %v248
        %v259 = vsel %vm202, %v224, 0
        %261 = vmatprep.subr.bf16.mxu0 0
        %262 = vmatpush1.bf16.msra.mxu0 %v250
        %263 = vmatprep.subr.bf16.mxu0 0
        %264 = vmatpush1.bf16.msra.mxu0 %v251
        %265 = vmatprep.subr.bf16.mxu0 0
        %266 = vmatpush1.bf16.msra.mxu0 %v252
        %267 = vmatprep.subr.bf16.mxu0 0
        %268 = vmatpush1.bf16.msra.mxu0 %v253
        %269 = vmatprep.subr.bf16.mxu0 0
        %270 = vmatpush1.bf16.msra.mxu0 0
        %271 = vmatprep.subr.bf16.mxu0 0
        %272 = vmatpush1.bf16.msra.mxu0 0
        %273 = vmatprep.subr.bf16.mxu0 0
        %274 = vmatpush1.bf16.msra.mxu0 0
        %275 = vmatprep.subr.bf16.mxu0 0
        %276 = vmatpush1.bf16.msra.mxu0 0
        %277 = vmatprep.subr.bf16.mxu0 0
        %278 = vmatpush1.bf16.msra.mxu0 0
        %279 = vmatprep.subr.bf16.mxu0 0
        %280 = vmatpush1.bf16.msra.mxu0 0
        %281 = vmatprep.subr.bf16.mxu0 0
        %282 = vmatpush1.bf16.msra.mxu0 0
        %283 = vmatprep.subr.bf16.mxu0 0
        %284 = vmatpush1.bf16.msra.mxu0 0
        %285 = vmatprep.subr.bf16.mxu0 0
        %286 = vmatpush1.bf16.msra.mxu0 0
        %287 = vmatprep.subr.bf16.mxu0 0
        %288 = vmatpush1.bf16.msra.mxu0 0
        %289 = vmatprep.subr.bf16.mxu0 0
        %290 = vmatpush1.bf16.msra.mxu0 0
        %291 = vmatprep.subr.bf16.mxu0 0
        %292 = vmatpush1.bf16.msra.mxu0 0
        %293 = vmatprep.mubr.bf16.mxu0 0
        %294 = vmatmul.mubr.bf16.gmra.mrb[0].mxu0 %v259
        %v295 = vpop.f32.mrb[0].mxu0
        %v296 = vadd.f32 0.0, %v295
        %v297 = vpop.f32.mrb[0].mxu0
        %v298 = vpop.f32.mrb[0].mxu0
        %v299 = vadd.f32 0.0, %v298
        %v300 = vpop.f32.mrb[0].mxu0
        %301 = vdwg.mxu0
        %v310 = vunpack.c.l.b16 %v214
        %v311 = vunpack.c.l.b16 %v215
        %v312 = vunpack.c.l.b16 %v216
        %v313 = vunpack.c.l.b16 %v217
        %v314 = vunpack.c.l.b16 %v218
        %v315 = vunpack.c.l.b16 %v219
        %v316 = vunpack.c.l.b16 %v220
        %v317 = vunpack.c.l.b16 %v221
        %v318 = vpack.c.b16 %v311, %v310
        %v319 = vpack.c.b16 %v313, %v312
        %v320 = vpack.c.b16 %v315, %v314
        %v321 = vpack.c.b16 %v317, %v316
        %v327 = vsel %vm202, %v213, 0
        %329 = vmatprep.subr.bf16.mxu0 0
        %330 = vmatpush1.bf16.msra.mxu0 %v318
        %331 = vmatprep.subr.bf16.mxu0 0
        %332 = vmatpush1.bf16.msra.mxu0 %v319
        %333 = vmatprep.subr.bf16.mxu0 0
        %334 = vmatpush1.bf16.msra.mxu0 %v320
        %335 = vmatprep.subr.bf16.mxu0 0
        %336 = vmatpush1.bf16.msra.mxu0 %v321
        %337 = vmatprep.subr.bf16.mxu0 0
        %338 = vmatpush1.bf16.msra.mxu0 0
        %339 = vmatprep.subr.bf16.mxu0 0
        %340 = vmatpush1.bf16.msra.mxu0 0
        %341 = vmatprep.subr.bf16.mxu0 0
        %342 = vmatpush1.bf16.msra.mxu0 0
        %343 = vmatprep.subr.bf16.mxu0 0
        %344 = vmatpush1.bf16.msra.mxu0 0
        %345 = vmatprep.subr.bf16.mxu0 0
        %346 = vmatpush1.bf16.msra.mxu0 0
        %347 = vmatprep.subr.bf16.mxu0 0
        %348 = vmatpush1.bf16.msra.mxu0 0
        %349 = vmatprep.subr.bf16.mxu0 0
        %350 = vmatpush1.bf16.msra.mxu0 0
        %351 = vmatprep.subr.bf16.mxu0 0
        %352 = vmatpush1.bf16.msra.mxu0 0
        %353 = vmatprep.subr.bf16.mxu0 0
        %354 = vmatpush1.bf16.msra.mxu0 0
        %355 = vmatprep.subr.bf16.mxu0 0
        %356 = vmatpush1.bf16.msra.mxu0 0
        %357 = vmatprep.subr.bf16.mxu0 0
        %358 = vmatpush1.bf16.msra.mxu0 0
        %359 = vmatprep.subr.bf16.mxu0 0
        %360 = vmatpush1.bf16.msra.mxu0 0
        %361 = vmatprep.mubr.bf16.mxu0 0
        %362 = vmatmul.mubr.bf16.gmra.mrb[0].mxu0 %v327
        %v363 = vpop.f32.mrb[0].mxu0
        %v364 = vadd.f32 %v296, %v363
        %v365 = vpop.f32.mrb[0].mxu0
        %v366 = vpop.f32.mrb[0].mxu0
        %v367 = vadd.f32 %v299, %v366
        %v368 = vpop.f32.mrb[0].mxu0
        %369 = vdwg.mxu0
        %v370 = vld [vmem:[#allocation2 + $0x2] sm:$0xff]
        %v371 = vld [vmem:[#allocation2 + $0xa] sm:$0xff]
        %v372 = vpack.c.bf16 %v371, %v370
        %s373 = scalar_lea.vmem [#allocation3], 64
        %v374 = vld [vmem:[%s373] sm:$0xf]
        %v375 = vld [vmem:[%s373 + $0x4] sm:$0xf]
        %v376 = vld [vmem:[%s373 + $0x8] sm:$0xf]
        %v377 = vld [vmem:[%s373 + $0xc] sm:$0xf]
        %v378 = vld [vmem:[%s373 + $0x10] sm:$0xf]
        %v379 = vld [vmem:[%s373 + $0x14] sm:$0xf]
        %v380 = vld [vmem:[%s373 + $0x18] sm:$0xf]
        %v381 = vld [vmem:[%s373 + $0x1c] sm:$0xf]
        %v390 = vunpack.c.l.b16 %v374
        %v391 = vunpack.c.l.b16 %v375
        %v392 = vunpack.c.l.b16 %v376
        %v393 = vunpack.c.l.b16 %v377
        %v394 = vunpack.c.l.b16 %v378
        %v395 = vunpack.c.l.b16 %v379
        %v396 = vunpack.c.l.b16 %v380
        %v397 = vunpack.c.l.b16 %v381
        %v398 = vpack.c.b16 %v391, %v390
        %v399 = vpack.c.b16 %v393, %v392
        %v400 = vpack.c.b16 %v395, %v394
        %v401 = vpack.c.b16 %v397, %v396
        %v407 = vsel %vm202, %v372, 0
        %409 = vmatprep.subr.bf16.mxu0 0
        %410 = vmatpush1.bf16.msra.mxu0 %v398
        %411 = vmatprep.subr.bf16.mxu0 0
        %412 = vmatpush1.bf16.msra.mxu0 %v399
        %413 = vmatprep.subr.bf16.mxu0 0
        %414 = vmatpush1.bf16.msra.mxu0 %v400
        %415 = vmatprep.subr.bf16.mxu0 0
        %416 = vmatpush1.bf16.msra.mxu0 %v401
        %417 = vmatprep.subr.bf16.mxu0 0
        %418 = vmatpush1.bf16.msra.mxu0 0
        %419 = vmatprep.subr.bf16.mxu0 0
        %420 = vmatpush1.bf16.msra.mxu0 0
        %421 = vmatprep.subr.bf16.mxu0 0
        %422 = vmatpush1.bf16.msra.mxu0 0
        %423 = vmatprep.subr.bf16.mxu0 0
        %424 = vmatpush1.bf16.msra.mxu0 0
        %425 = vmatprep.subr.bf16.mxu0 0
        %426 = vmatpush1.bf16.msra.mxu0 0
        %427 = vmatprep.subr.bf16.mxu0 0
        %428 = vmatpush1.bf16.msra.mxu0 0
        %429 = vmatprep.subr.bf16.mxu0 0
        %430 = vmatpush1.bf16.msra.mxu0 0
        %431 = vmatprep.subr.bf16.mxu0 0
        %432 = vmatpush1.bf16.msra.mxu0 0
        %433 = vmatprep.subr.bf16.mxu0 0
        %434 = vmatpush1.bf16.msra.mxu0 0
        %435 = vmatprep.subr.bf16.mxu0 0
        %436 = vmatpush1.bf16.msra.mxu0 0
        %437 = vmatprep.subr.bf16.mxu0 0
        %438 = vmatpush1.bf16.msra.mxu0 0
        %439 = vmatprep.subr.bf16.mxu0 0
        %440 = vmatpush1.bf16.msra.mxu0 0
        %441 = vmatprep.mubr.bf16.mxu0 0
        %442 = vmatmul.mubr.bf16.gmra.mrb[0].mxu0 %v407
        %v443 = vpop.f32.mrb[0].mxu0
        %v444 = vadd.f32 0.0, %v443
        %v445 = vpop.f32.mrb[0].mxu0
        %v446 = vpop.f32.mrb[0].mxu0
        %v447 = vadd.f32 0.0, %v446
        %v448 = vpop.f32.mrb[0].mxu0
        %449 = vdwg.mxu0
        %v450 = vadd.f32 %v364, %v444
        %v451 = vadd.f32 %v367, %v447
        %v452 = vld [vmem:[#allocation5] sm:$0x1]
        %v454 = vlaneseq
        %v455 = vshrl.u32 %v454, 7
        %v456 = vsub.s32 0, %v455
        %v457 = vrot.slane %v452, %v456
        %v459 = vadd.f32 %v450, %v457
        %v460 = vadd.f32 %v451, %v457
        %v461 = vmax.f32 %v459, 0.0
        %v462 = vmax.f32 %v460, 0.0
        %463 = vst.msk [vmem:[#allocation2 + $0x1] sm:$0xff] %vm202, %v461
        %464 = vst.msk [vmem:[#allocation2 + $0x9] sm:$0xff] %vm202, %v462
        %v465 = vld [vmem:[#allocation2] sm:$0xff]
        %v466 = vld [vmem:[#allocation2 + $0x8] sm:$0xff]
        %v467 = vpack.c.bf16 %v466, %v465
        %s468 = scalar_lea.vmem [#allocation3], 96
        %v469 = vld [vmem:[%s468] sm:$0xf]
        %v470 = vld [vmem:[%s468 + $0x4] sm:$0xf]
        %v471 = vld [vmem:[%s468 + $0x8] sm:$0xf]
        %v472 = vld [vmem:[%s468 + $0xc] sm:$0xf]
        %v473 = vld [vmem:[%s468 + $0x10] sm:$0xf]
        %v474 = vld [vmem:[%s468 + $0x14] sm:$0xf]
        %v475 = vld [vmem:[%s468 + $0x18] sm:$0xf]
        %v476 = vld [vmem:[%s468 + $0x1c] sm:$0xf]
        %v477 = vld [vmem:[#allocation2 + $0x1] sm:$0xff]
        %v478 = vld [vmem:[#allocation2 + $0x9] sm:$0xff]
        %v479 = vpack.c.bf16 %v478, %v477
        %s480 = scalar_lea.vmem [#allocation3], 128
        %v481 = vld [vmem:[%s480] sm:$0xf]
        %v482 = vld [vmem:[%s480 + $0x4] sm:$0xf]
        %v483 = vld [vmem:[%s480 + $0x8] sm:$0xf]
        %v484 = vld [vmem:[%s480 + $0xc] sm:$0xf]
        %v485 = vld [vmem:[%s480 + $0x10] sm:$0xf]
        %v486 = vld [vmem:[%s480 + $0x14] sm:$0xf]
        %v487 = vld [vmem:[%s480 + $0x18] sm:$0xf]
        %v488 = vld [vmem:[%s480 + $0x1c] sm:$0xf]
        %v497 = vunpack.c.l.b16 %v481
        %v498 = vunpack.c.l.b16 %v482
        %v499 = vunpack.c.l.b16 %v483
        %v500 = vunpack.c.l.b16 %v484
        %v501 = vunpack.c.l.b16 %v485
        %v502 = vunpack.c.l.b16 %v486
        %v503 = vunpack.c.l.b16 %v487
        %v504 = vunpack.c.l.b16 %v488
        %v505 = vpack.c.b16 %v498, %v497
        %v506 = vpack.c.b16 %v500, %v499
        %v507 = vpack.c.b16 %v502, %v501
        %v508 = vpack.c.b16 %v504, %v503
        %v514 = vsel %vm202, %v479, 0
        %516 = vmatprep.subr.bf16.mxu0 0
        %517 = vmatpush1.bf16.msra.mxu0 %v505
        %518 = vmatprep.subr.bf16.mxu0 0
        %519 = vmatpush1.bf16.msra.mxu0 %v506
        %520 = vmatprep.subr.bf16.mxu0 0
        %521 = vmatpush1.bf16.msra.mxu0 %v507
        %522 = vmatprep.subr.bf16.mxu0 0
        %523 = vmatpush1.bf16.msra.mxu0 %v508
        %524 = vmatprep.subr.bf16.mxu0 0
        %525 = vmatpush1.bf16.msra.mxu0 0
        %526 = vmatprep.subr.bf16.mxu0 0
        %527 = vmatpush1.bf16.msra.mxu0 0
        %528 = vmatprep.subr.bf16.mxu0 0
        %529 = vmatpush1.bf16.msra.mxu0 0
        %530 = vmatprep.subr.bf16.mxu0 0
        %531 = vmatpush1.bf16.msra.mxu0 0
        %532 = vmatprep.subr.bf16.mxu0 0
        %533 = vmatpush1.bf16.msra.mxu0 0
        %534 = vmatprep.subr.bf16.mxu0 0
        %535 = vmatpush1.bf16.msra.mxu0 0
        %536 = vmatprep.subr.bf16.mxu0 0
        %537 = vmatpush1.bf16.msra.mxu0 0
        %538 = vmatprep.subr.bf16.mxu0 0
        %539 = vmatpush1.bf16.msra.mxu0 0
        %540 = vmatprep.subr.bf16.mxu0 0
        %541 = vmatpush1.bf16.msra.mxu0 0
        %542 = vmatprep.subr.bf16.mxu0 0
        %543 = vmatpush1.bf16.msra.mxu0 0
        %544 = vmatprep.subr.bf16.mxu0 0
        %545 = vmatpush1.bf16.msra.mxu0 0
        %546 = vmatprep.subr.bf16.mxu0 0
        %547 = vmatpush1.bf16.msra.mxu0 0
        %548 = vmatprep.mubr.bf16.mxu0 0
        %549 = vmatmul.mubr.bf16.gmra.mrb[0].mxu0 %v514
        %v550 = vpop.f32.mrb[0].mxu0
        %v551 = vadd.f32 0.0, %v550
        %v552 = vpop.f32.mrb[0].mxu0
        %v553 = vpop.f32.mrb[0].mxu0
        %v554 = vadd.f32 0.0, %v553
        %v555 = vpop.f32.mrb[0].mxu0
        %556 = vdwg.mxu0
        %v565 = vunpack.c.l.b16 %v469
        %v566 = vunpack.c.l.b16 %v470
        %v567 = vunpack.c.l.b16 %v471
        %v568 = vunpack.c.l.b16 %v472
        %v569 = vunpack.c.l.b16 %v473
        %v570 = vunpack.c.l.b16 %v474
        %v571 = vunpack.c.l.b16 %v475
        %v572 = vunpack.c.l.b16 %v476
        %v573 = vpack.c.b16 %v566, %v565
        %v574 = vpack.c.b16 %v568, %v567
        %v575 = vpack.c.b16 %v570, %v569
        %v576 = vpack.c.b16 %v572, %v571
        %v582 = vsel %vm202, %v467, 0
        %584 = vmatprep.subr.bf16.mxu0 0
        %585 = vmatpush1.bf16.msra.mxu0 %v573
        %586 = vmatprep.subr.bf16.mxu0 0
        %587 = vmatpush1.bf16.msra.mxu0 %v574
        %588 = vmatprep.subr.bf16.mxu0 0
        %589 = vmatpush1.bf16.msra.mxu0 %v575
        %590 = vmatprep.subr.bf16.mxu0 0
        %591 = vmatpush1.bf16.msra.mxu0 %v576
        %592 = vmatprep.subr.bf16.mxu0 0
        %593 = vmatpush1.bf16.msra.mxu0 0
        %594 = vmatprep.subr.bf16.mxu0 0
        %595 = vmatpush1.bf16.msra.mxu0 0
        %596 = vmatprep.subr.bf16.mxu0 0
        %597 = vmatpush1.bf16.msra.mxu0 0
        %598 = vmatprep.subr.bf16.mxu0 0
        %599 = vmatpush1.bf16.msra.mxu0 0
        %600 = vmatprep.subr.bf16.mxu0 0
        %601 = vmatpush1.bf16.msra.mxu0 0
        %602 = vmatprep.subr.bf16.mxu0 0
        %603 = vmatpush1.bf16.msra.mxu0 0
        %604 = vmatprep.subr.bf16.mxu0 0
        %605 = vmatpush1.bf16.msra.mxu0 0
        %606 = vmatprep.subr.bf16.mxu0 0
        %607 = vmatpush1.bf16.msra.mxu0 0
        %608 = vmatprep.subr.bf16.mxu0 0
        %609 = vmatpush1.bf16.msra.mxu0 0
        %610 = vmatprep.subr.bf16.mxu0 0
        %611 = vmatpush1.bf16.msra.mxu0 0
        %612 = vmatprep.subr.bf16.mxu0 0
        %613 = vmatpush1.bf16.msra.mxu0 0
        %614 = vmatprep.subr.bf16.mxu0 0
        %615 = vmatpush1.bf16.msra.mxu0 0
        %616 = vmatprep.mubr.bf16.mxu0 0
        %617 = vmatmul.mubr.bf16.gmra.mrb[0].mxu0 %v582
        %v618 = vpop.f32.mrb[0].mxu0
        %v619 = vadd.f32 %v551, %v618
        %v620 = vpop.f32.mrb[0].mxu0
        %v621 = vpop.f32.mrb[0].mxu0
        %v622 = vadd.f32 %v554, %v621
        %v623 = vpop.f32.mrb[0].mxu0
        %624 = vdwg.mxu0
        %v625 = vld [vmem:[#allocation2 + $0x2] sm:$0xff]
        %v626 = vld [vmem:[#allocation2 + $0xa] sm:$0xff]
        %v627 = vpack.c.bf16 %v626, %v625
        %s628 = scalar_lea.vmem [#allocation3], 160
        %v629 = vld [vmem:[%s628] sm:$0xf]
        %v630 = vld [vmem:[%s628 + $0x4] sm:$0xf]
        %v631 = vld [vmem:[%s628 + $0x8] sm:$0xf]
        %v632 = vld [vmem:[%s628 + $0xc] sm:$0xf]
        %v633 = vld [vmem:[%s628 + $0x10] sm:$0xf]
        %v634 = vld [vmem:[%s628 + $0x14] sm:$0xf]
        %v635 = vld [vmem:[%s628 + $0x18] sm:$0xf]
        %v636 = vld [vmem:[%s628 + $0x1c] sm:$0xf]
        %v645 = vunpack.c.l.b16 %v629
        %v646 = vunpack.c.l.b16 %v630
        %v647 = vunpack.c.l.b16 %v631
        %v648 = vunpack.c.l.b16 %v632
        %v649 = vunpack.c.l.b16 %v633
        %v650 = vunpack.c.l.b16 %v634
        %v651 = vunpack.c.l.b16 %v635
        %v652 = vunpack.c.l.b16 %v636
        %v653 = vpack.c.b16 %v646, %v645
        %v654 = vpack.c.b16 %v648, %v647
        %v655 = vpack.c.b16 %v650, %v649
        %v656 = vpack.c.b16 %v652, %v651
        %v662 = vsel %vm202, %v627, 0
        %664 = vmatprep.subr.bf16.mxu0 0
        %665 = vmatpush1.bf16.msra.mxu0 %v653
        %666 = vmatprep.subr.bf16.mxu0 0
        %667 = vmatpush1.bf16.msra.mxu0 %v654
        %668 = vmatprep.subr.bf16.mxu0 0
        %669 = vmatpush1.bf16.msra.mxu0 %v655
        %670 = vmatprep.subr.bf16.mxu0 0
        %671 = vmatpush1.bf16.msra.mxu0 %v656
        %672 = vmatprep.subr.bf16.mxu0 0
        %673 = vmatpush1.bf16.msra.mxu0 0
        %674 = vmatprep.subr.bf16.mxu0 0
        %675 = vmatpush1.bf16.msra.mxu0 0
        %676 = vmatprep.subr.bf16.mxu0 0
        %677 = vmatpush1.bf16.msra.mxu0 0
        %678 = vmatprep.subr.bf16.mxu0 0
        %679 = vmatpush1.bf16.msra.mxu0 0
        %680 = vmatprep.subr.bf16.mxu0 0
        %681 = vmatpush1.bf16.msra.mxu0 0
        %682 = vmatprep.subr.bf16.mxu0 0
        %683 = vmatpush1.bf16.msra.mxu0 0
        %684 = vmatprep.subr.bf16.mxu0 0
        %685 = vmatpush1.bf16.msra.mxu0 0
        %686 = vmatprep.subr.bf16.mxu0 0
        %687 = vmatpush1.bf16.msra.mxu0 0
        %688 = vmatprep.subr.bf16.mxu0 0
        %689 = vmatpush1.bf16.msra.mxu0 0
        %690 = vmatprep.subr.bf16.mxu0 0
        %691 = vmatpush1.bf16.msra.mxu0 0
        %692 = vmatprep.subr.bf16.mxu0 0
        %693 = vmatpush1.bf16.msra.mxu0 0
        %694 = vmatprep.subr.bf16.mxu0 0
        %695 = vmatpush1.bf16.msra.mxu0 0
        %696 = vmatprep.mubr.bf16.mxu0 0
        %697 = vmatmul.mubr.bf16.gmra.mrb[0].mxu0 %v662
        %v698 = vpop.f32.mrb[0].mxu0
        %v699 = vadd.f32 0.0, %v698
        %v700 = vpop.f32.mrb[0].mxu0
        %v701 = vpop.f32.mrb[0].mxu0
        %v702 = vadd.f32 0.0, %v701
        %v703 = vpop.f32.mrb[0].mxu0
        %704 = vdwg.mxu0
        %v705 = vadd.f32 %v619, %v699
        %v706 = vadd.f32 %v622, %v702
        %s707 = scalar_lea.vmem [#allocation5], 1
        %v708 = vld [vmem:[%s707] sm:$0x1]
        %v710 = vlaneseq
        %v711 = vshrl.u32 %v710, 7
        %v712 = vsub.s32 0, %v711
        %v713 = vrot.slane %v708, %v712
        %v715 = vadd.f32 %v705, %v713
        %v716 = vadd.f32 %v706, %v713
        %v717 = vmax.f32 %v715, 0.0
        %v718 = vmax.f32 %v716, 0.0
        %719 = vst.msk [vmem:[%s200] sm:$0xff] %vm202, %v717
        %720 = vst.msk [vmem:[%s200 + $0x8] sm:$0xff] %vm202, %v718
        %p721 = scmp.lt.s32.totalorder %s16, 1
        %s722 = scalar_select %p721, %s16, 1
        %s723 = smul.addr %s722, 2
        %s724 = smul.addr %s723, 8
        %s725 = scalar_lea.vmem %s3, %s724
        // Predicated region
        $region41: #{mask_head_forward.7} parent=31 // pred_check
          %p726 = pneg %p102
        $region42: #{mask_head_forward.7} parent=31 // pred_check_branch
          %728 = sbr.rel (%p726) target = $region44
        $region43: #{mask_head_forward.7} parent=31 // pred_region
          _
        $region44: #{mask_head_forward.7} parent=31 // pred_fallthru
          _
      $region32: #{mask_head_forward.7} parent=5 // pred_fallthru
        _
      %p729 = scmp.le.s32.totalorder 2, %s11
      // Predicated region
      $region45: #{mask_head_forward.7} parent=5 // pred_check
        %p730 = pneg %p729
      $region46: #{mask_head_forward.7} parent=5 // pred_check_branch
        %732 = sbr.rel (%p730) target = $region48
      $region47: #{mask_head_forward.7} parent=5 // pred_region
        %s733 = ssub.s32 %s11, 2
        // Predicated region
        $region49: #{mask_head_forward.7} parent=47 // pred_check
          %p734 = pneg %p108
        $region50: #{mask_head_forward.7} parent=47 // pred_check_branch
          %736 = sbr.rel (%p734) target = $region52
        $region51: #{mask_head_forward.7} parent=47 // pred_region
          %p737 = scmp.lt.s32.totalorder %s17, 1
          %s738 = scalar_select %p737, %s17, 1
          %s739 = smul.addr %s738, 2
          %s740 = smul.addr %s739, 8
          %s741 = scalar_lea.vmem %s3, %s740
        $region52: #{mask_head_forward.7} parent=47 // pred_fallthru
          _
      $region48: #{mask_head_forward.7} parent=5 // pred_fallthru
        _
    $region6: #{mask_head_forward.7} parent=1 // loop_footer
      %s15 = sadd.s32 1, %s11
    $region7: #{mask_head_forward.7} parent=1 // loop_footer_branch
      %10 = sbr.rel target = $region3
    $region8: #{mask_head_forward.7} parent=1 // loop_exit
      _
    %742 = vsyncpa [#allocation4], 1
    %s743 = scalar_lea.sflag [#allocation4], 1
    %744 = vsyncpa %s743, 1
    %745 = vsyncpa [#allocation6], 1

// kernel: mask_head_forward.8
$region0: #{mask_head_forward.8}
  #allocation0 [shape = 'u32[]', space=smem, size = 0x4, offset = 0x4, fixed_abs, tag = 'smem constant byte address 0x4 - core index']
  #allocation1 [shape = 'u32[144,128]{1,0:T(1,128)}', space=vmem, size = 0x12000, scoped, tag = 'internal scratch']
  %s0 = inlined_call_operand.vmem [shape: f32[2,256,4], index: 0, kind: input, shape index: {}]
  %s1 = inlined_call_operand.hbm [shape: bf16[4,12], index: 1, kind: input, shape index: {}]
  %s2 = inlined_call_operand.hbm [shape: bf16[4,4], index: 2, kind: input, shape index: {}]
  %s3 = inlined_call_operand.hbm [shape: f32[1,4], index: 3, kind: input, shape index: {}]
  %s4 = inlined_call_operand.vmem [shape: f32[2,256,4], index: 4, kind: output, shape index: {}]
  %s5 = sld [smem:[#allocation0]]
  $region61: #{mask_head_forward.8} parent=0
    _
  %s7 = ssub.s32 1, %s5
  %s8 = scalar_select 0, %s7, %s5
  $region1: #{mask_head_forward.8} parent=0
    #allocation2 [shape = 'u8[1024]{0}', space=vmem, size = 0x400, scoped, tag = 'input window, operand 1, single buffered']
    #allocation3 [shape = 's32[2]{0}', space=sflag, size = 0x8, scoped, tag = 'scoped memory for mask_head_forward.8']
    #allocation4 [shape = 'u8[1024]{0}', space=vmem, size = 0x400, scoped, tag = 'input window, operand 2, single buffered']
    #allocation5 [shape = 's32[1]{0}', space=sflag, size = 0x4, scoped, tag = 'scoped memory for mask_head_forward.8']
    #allocation6 [shape = 'u8[512]{0}', space=vmem, size = 0x400, scoped, tag = 'input window, operand 3, single buffered']
    %9 = vsyncpa [#allocation3], 0
    %10 = vsyncpa [#allocation5], 0
    loop: start=0, step=1, limit=4
    $region2: #{mask_head_forward.8} parent=1 // loop_pre_header
      _
    $region3: #{mask_head_forward.8} parent=1 // loop_header
      %s12 = sphi 0, %s16
      %p13 = scmp.ge.s32.totalorder %s12, 4
      %s22 = sphi 0, %s24
      %s25 = sphi 0, %s22
      %s26 = sphi 0, %s25
      %s42 = sphi 0, %s26
      %s46 = sphi 0, %s46
      %s48 = sphi 0, %s46
      %s49 = sphi 0, %s48
      %s63 = sphi 0, %s49
      %s67 = sphi 0, %s67
      %s69 = sphi 0, %s67
      %s70 = sphi 0, %s69
      %s84 = sphi 0, %s70
      %s88 = sphi 0, %s88
      %s90 = sphi 0, %s88
      %s91 = sphi 0, %s90
      %s105 = sphi 0, %s91
      %s111 = sphi 0, %s113
      %s114 = sphi 0, %s111
      %s115 = sphi 0, %s114
      %s131 = sphi 0, %s115
    $region4: #{mask_head_forward.8} parent=1 // loop_header_branch
      %15 = sbr.rel (%p13) target = $region8
    $region5: #{mask_head_forward.8} parent=1 // loop_body
      %s17 = ssub.s32 %s12, 1
      %s18 = ssub.s32 %s12, 2
      %s19 = sadd.s32 %s12, 1
      %s20 = ssub.s32 %s12, %s19
      %p21 = scmp.eq.s32.totalorder %s20, 0
      %s23 = sadd.s32 %s22, 1
      %s24 = scalar_select %p21, %s22, %s23
      %p27 = pneg %p21
      %p28 = scmp.eq.s32.totalorder %s12, 1
      %p29 = por %p27, %p28
      %p30 = scmp.ne.s32.totalorder %s22, %s25
      %p31 = scmp.eq.s32.totalorder %s12, 0
      %p32 = por %p30, %p31
      %p33 = scmp.ne.s32.totalorder %s22, %s25
      %p34 = scmp.eq.s32.totalorder %s17, 1
      %p35 = por %p33, %p34
      %p36 = scmp.ne.s32.totalorder %s25, %s26
      %p37 = scmp.eq.s32.totalorder %s17, 0
      %p38 = por %p36, %p37
      %p39 = scmp.ne.s32.totalorder %s25, %s26
      %p40 = scmp.eq.s32.totalorder %s18, 1
      %p41 = por %p39, %p40
      %p43 = scmp.ne.s32.totalorder %s26, %s42
      %p44 = scmp.eq.s32.totalorder %s18, 0
      %p45 = por %p43, %p44
      %s47 = sadd.s32 %s46, 1
      %p50 = scmp.eq.s32.totalorder %s12, 1
      %p51 = scmp.ne.s32.totalorder %s46, %s48
      %p52 = scmp.eq.s32.totalorder %s12, 0
      %p53 = por %p51, %p52
      %p54 = scmp.ne.s32.totalorder %s46, %s48
      %p55 = scmp.eq.s32.totalorder %s17, 1
      %p56 = por %p54, %p55
      %p57 = scmp.ne.s32.totalorder %s48, %s49
      %p58 = scmp.eq.s32.totalorder %s17, 0
      %p59 = por %p57, %p58
      %p60 = scmp.ne.s32.totalorder %s48, %s49
      %p61 = scmp.eq.s32.totalorder %s18, 1
      %p62 = por %p60, %p61
      %p64 = scmp.ne.s32.totalorder %s49, %s63
      %p65 = scmp.eq.s32.totalorder %s18, 0
      %p66 = por %p64, %p65
      %s68 = sadd.s32 %s67, 1
      %p71 = scmp.eq.s32.totalorder %s12, 1
      %p72 = scmp.ne.s32.totalorder %s67, %s69
      %p73 = scmp.eq.s32.totalorder %s12, 0
      %p74 = por %p72, %p73
      %p75 = scmp.ne.s32.totalorder %s67, %s69
      %p76 = scmp.eq.s32.totalorder %s17, 1
      %p77 = por %p75, %p76
      %p78 = scmp.ne.s32.totalorder %s69, %s70
      %p79 = scmp.eq.s32.totalorder %s17, 0
      %p80 = por %p78, %p79
      %p81 = scmp.ne.s32.totalorder %s69, %s70
      %p82 = scmp.eq.s32.totalorder %s18, 1
      %p83 = por %p81, %p82
      %p85 = scmp.ne.s32.totalorder %s70, %s84
      %p86 = scmp.eq.s32.totalorder %s18, 0
      %p87 = por %p85, %p86
      %s89 = sadd.s32 %s88, 1
      %p92 = scmp.eq.s32.totalorder %s12, 1
      %p93 = scmp.ne.s32.totalorder %s88, %s90
      %p94 = scmp.eq.s32.totalorder %s12, 0
      %p95 = por %p93, %p94
      %p96 = scmp.ne.s32.totalorder %s88, %s90
      %p97 = scmp.eq.s32.totalorder %s17, 1
      %p98 = por %p96, %p97
      %p99 = scmp.ne.s32.totalorder %s90, %s91
      %p100 = scmp.eq.s32.totalorder %s17, 0
      %p101 = por %p99, %p100
      %p102 = scmp.ne.s32.totalorder %s90, %s91
      %p103 = scmp.eq.s32.totalorder %s18, 1
      %p104 = por %p102, %p103
      %p106 = scmp.ne.s32.totalorder %s91, %s105
      %p107 = scmp.eq.s32.totalorder %s18, 0
      %p108 = por %p106, %p107
      %s109 = ssub.s32 %s12, %s19
      %p110 = scmp.eq.s32.totalorder %s109, 0
      %s112 = sadd.s32 %s111, 1
      %s113 = scalar_select %p110, %s111, %s112
      %p116 = pneg %p110
      %p117 = scmp.eq.s32.totalorder %s12, 1
      %p118 = por %p116, %p117
      %p119 = scmp.ne.s32.totalorder %s111, %s114
      %p120 = scmp.eq.s32.totalorder %s12, 0
      %p121 = por %p119, %p120
      %p122 = scmp.ne.s32.totalorder %s111, %s114
      %p123 = scmp.eq.s32.totalorder %s17, 1
      %p124 = por %p122, %p123
      %p125 = scmp.ne.s32.totalorder %s114, %s115
      %p126 = scmp.eq.s32.totalorder %s17, 0
      %p127 = por %p125, %p126
      %p128 = scmp.ne.s32.totalorder %s114, %s115
      %p129 = scmp.eq.s32.totalorder %s18, 1
      %p130 = por %p128, %p129
      %p132 = scmp.ne.s32.totalorder %s115, %s131
      %p133 = scmp.eq.s32.totalorder %s18, 0
      %p134 = por %p132, %p133
      %p135 = scmp.le.s32.totalorder 1, %s12
      %p136 = scmp.lt.s32.totalorder %s12, 3
      %p137 = pnand %p135, %p136
      %p138 = pneg %p137
      // Predicated region
      $region9: #{mask_head_forward.8} parent=5 // pred_check
        _
      $region10: #{mask_head_forward.8} parent=5 // pred_check_branch
        %140 = sbr.rel (%p137) target = $region12
      $region11: #{mask_head_forward.8} parent=5 // pred_region
        %s141 = ssub.s32 %s12, 1
        // Predicated region
        $region13: #{mask_head_forward.8} parent=11 // pred_check
          %p142 = pneg %p59
        $region14: #{mask_head_forward.8} parent=11 // pred_check_branch
          %144 = sbr.rel (%p142) target = $region16
        $region15: #{mask_head_forward.8} parent=11 // pred_region
          %s146 = ssub.s32 32, 32
          %147 = vsyncadd [#allocation3], %s146
          %s149 = sshll.u32 [#allocation2], 4
          %s150 = int_to_ptr.vmem [resolvable:$true] %s149
          %152 = dma.hbm_to_vmem [thread:$0]  %s1, 32, %s150, [#allocation3]
        $region16: #{mask_head_forward.8} parent=11 // pred_fallthru
          _
        // Predicated region
        $region17: #{mask_head_forward.8} parent=11 // pred_check
          %p153 = pneg %p80
        $region18: #{mask_head_forward.8} parent=11 // pred_check_branch
          %155 = sbr.rel (%p153) target = $region20
        $region19: #{mask_head_forward.8} parent=11 // pred_region
          %s157 = ssub.s32 32, 32
          %158 = vsyncadd [#allocation5], %s157
          %s160 = sshll.u32 [#allocation4], 4
          %s161 = int_to_ptr.vmem [resolvable:$true] %s160
          %163 = dma.hbm_to_vmem [thread:$0]  %s2, 32, %s161, [#allocation5]
        $region20: #{mask_head_forward.8} parent=11 // pred_fallthru
          _
        // Predicated region
        $region21: #{mask_head_forward.8} parent=11 // pred_check
          %p164 = pneg %p101
        $region22: #{mask_head_forward.8} parent=11 // pred_check_branch
          %166 = sbr.rel (%p164) target = $region24
        $region23: #{mask_head_forward.8} parent=11 // pred_region
          %s168 = ssub.s32 16, 16
          %169 = vsyncadd [#allocation5], %s168
          %s171 = sshll.u32 [#allocation6], 4
          %s172 = int_to_ptr.vmem [resolvable:$true] %s171
          %174 = dma.hbm_to_vmem [thread:$0]  %s3, 16, %s172, [#allocation5]
        $region24: #{mask_head_forward.8} parent=11 // pred_fallthru
          _
      $region12: #{mask_head_forward.8} parent=5 // pred_fallthru
        _
      %p175 = scmp.lt.s32.totalorder %s12, 2
      // Predicated region
      $region25: #{mask_head_forward.8} parent=5 // pred_check
        %p176 = pneg %p175
      $region26: #{mask_head_forward.8} parent=5 // pred_check_branch
        %178 = sbr.rel (%p176) target = $region28
      $region27: #{mask_head_forward.8} parent=5 // pred_region
        // Predicated region
        $region29: #{mask_head_forward.8} parent=27 // pred_check
          %p179 = pneg %p32
        $region30: #{mask_head_forward.8} parent=27 // pred_check_branch
          %181 = sbr.rel (%p179) target = $region32
        $region31: #{mask_head_forward.8} parent=27 // pred_region
          %p182 = scmp.lt.s32.totalorder %s12, 1
          %s183 = scalar_select %p182, %s12, 1
          %s184 = smul.addr %s183, 32
          %s185 = smul.addr %s184, 8
          %s186 = scalar_lea.vmem %s0, %s185
        $region32: #{mask_head_forward.8} parent=27 // pred_fallthru
          _
      $region28: #{mask_head_forward.8} parent=5 // pred_fallthru
        _
      %p187 = scmp.le.s32.totalorder 1, %s12
      %p188 = scmp.lt.s32.totalorder %s12, 3
      %p189 = pnand %p187, %p188
      %p190 = pneg %p189
      // Predicated region
      $region33: #{mask_head_forward.8} parent=5 // pred_check
        _
      $region34: #{mask_head_forward.8} parent=5 // pred_check_branch
        %192 = sbr.rel (%p189) target = $region36
      $region35: #{mask_head_forward.8} parent=5 // pred_region
        %s193 = ssub.s32 %s12, 1
        // Predicated region
        $region37: #{mask_head_forward.8} parent=35 // pred_check
          %p194 = pneg %p59
        $region38: #{mask_head_forward.8} parent=35 // pred_check_branch
          %196 = sbr.rel (%p194) target = $region40
        $region39: #{mask_head_forward.8} parent=35 // pred_region
          %197 = dma.done [#allocation3], 32
        $region40: #{mask_head_forward.8} parent=35 // pred_fallthru
          _
        // Predicated region
        $region41: #{mask_head_forward.8} parent=35 // pred_check
          %p198 = pneg %p80
        $region42: #{mask_head_forward.8} parent=35 // pred_check_branch
          %200 = sbr.rel (%p198) target = $region44
        $region43: #{mask_head_forward.8} parent=35 // pred_region
          %201 = dma.done [#allocation5], 32
        $region44: #{mask_head_forward.8} parent=35 // pred_fallthru
          _
        // Predicated region
        $region45: #{mask_head_forward.8} parent=35 // pred_check
          %p202 = pneg %p101
        $region46: #{mask_head_forward.8} parent=35 // pred_check_branch
          %204 = sbr.rel (%p202) target = $region48
        $region47: #{mask_head_forward.8} parent=35 // pred_region
          %205 = dma.done [#allocation5], 16
        $region48: #{mask_head_forward.8} parent=35 // pred_fallthru
          _
        %p206 = scmp.lt.s32.totalorder %s17, 1
        %s207 = scalar_select %p206, %s17, 1
        %s208 = smul.addr %s207, 32
        %s209 = smul.addr %s208, 8
        %s210 = scalar_lea.vmem %s0, %s209
        %p211 = pneg %p38
        %p212 = pneg %p35
        %p213 = pneg %p59
        %p214 = pneg %p56
        %p215 = pneg %p80
        %p216 = pneg %p77
        %p217 = pneg %p101
        %p218 = pneg %p98
        %p219 = pneg %p127
        %p220 = pneg %p124
        %p221 = scmp.lt.s32.totalorder %s17, 1
        %s222 = scalar_select %p221, %s17, 1
        %s223 = smul.addr %s222, 32
        %s224 = smul.addr %s223, 8
        %s225 = scalar_lea.vmem %s4, %s224
        %p226 = scmp.lt.s32.totalorder %s17, 1
        %s227 = scalar_select %p226, %s17, 1
        %s228 = smul.addr %s227, 32
        %s229 = smul.addr %s228, 8
        %s230 = scalar_lea.vmem %s0, %s229
        %p231 = scmp.lt.s32.totalorder %s17, 1
        %s232 = scalar_select %p231, %s17, 1
        %s233 = smul.addr %s232, 32
        %s234 = smul.addr %s233, 8
        %s235 = scalar_lea.vmem %s4, %s234
        %v237 = vld [vmem:[%s230] sm:$0xff]
        %v238 = vld [vmem:[%s230 + $0x8] sm:$0xff]
        %v239 = vld [vmem:[%s230 + $0x10] sm:$0xff]
        %v240 = vld [vmem:[%s230 + $0x18] sm:$0xff]
        %v241 = vld [vmem:[%s230 + $0x20] sm:$0xff]
        %v242 = vld [vmem:[%s230 + $0x28] sm:$0xff]
        %v243 = vld [vmem:[%s230 + $0x30] sm:$0xff]
        %v244 = vld [vmem:[%s230 + $0x38] sm:$0xff]
        %v245 = vld [vmem:[%s230 + $0x40] sm:$0xff]
        %v246 = vld [vmem:[%s230 + $0x48] sm:$0xff]
        %v247 = vld [vmem:[%s230 + $0x50] sm:$0xff]
        %v248 = vld [vmem:[%s230 + $0x58] sm:$0xff]
        %v249 = vld [vmem:[%s230 + $0x60] sm:$0xff]
        %v250 = vld [vmem:[%s230 + $0x68] sm:$0xff]
        %v251 = vld [vmem:[%s230 + $0x70] sm:$0xff]
        %v252 = vld [vmem:[%s230 + $0x78] sm:$0xff]
        %v253 = vld [vmem:[%s230 + $0x80] sm:$0xff]
        %v254 = vld [vmem:[%s230 + $0x88] sm:$0xff]
        %v255 = vld [vmem:[%s230 + $0x90] sm:$0xff]
        %v256 = vld [vmem:[%s230 + $0x98] sm:$0xff]
        %v257 = vld [vmem:[%s230 + $0xa0] sm:$0xff]
        %v258 = vld [vmem:[%s230 + $0xa8] sm:$0xff]
        %v259 = vld [vmem:[%s230 + $0xb0] sm:$0xff]
        %v260 = vld [vmem:[%s230 + $0xb8] sm:$0xff]
        %v261 = vld [vmem:[%s230 + $0xc0] sm:$0xff]
        %v262 = vld [vmem:[%s230 + $0xc8] sm:$0xff]
        %v263 = vld [vmem:[%s230 + $0xd0] sm:$0xff]
        %v264 = vld [vmem:[%s230 + $0xd8] sm:$0xff]
        %v265 = vld [vmem:[%s230 + $0xe0] sm:$0xff]
        %v266 = vld [vmem:[%s230 + $0xe8] sm:$0xff]
        %v267 = vld [vmem:[%s230 + $0xf0] sm:$0xff]
        %v268 = vld [vmem:[%s230 + $0xf8] sm:$0xff]
        %v269 = vpack.c.bf16 %v238, %v237
        %v270 = vpack.c.bf16 %v240, %v239
        %v271 = vpack.c.bf16 %v242, %v241
        %v272 = vpack.c.bf16 %v244, %v243
        %v273 = vpack.c.bf16 %v246, %v245
        %v274 = vpack.c.bf16 %v248, %v247
        %v275 = vpack.c.bf16 %v250, %v249
        %v276 = vpack.c.bf16 %v252, %v251
        %v277 = vpack.c.bf16 %v254, %v253
        %v278 = vpack.c.bf16 %v256, %v255
        %v279 = vpack.c.bf16 %v258, %v257
        %v280 = vpack.c.bf16 %v260, %v259
        %v281 = vpack.c.bf16 %v262, %v261
        %v282 = vpack.c.bf16 %v264, %v263
        %v283 = vpack.c.bf16 %v266, %v265
        %v284 = vpack.c.bf16 %v268, %v267
        %v285 = vld [vmem:[#allocation2] sm:$0x3]
        %vm286 = vcmask 31744
        %v288 = vsel %vm286, %v269, 0
        %v291 = vsel %vm286, %v270, 0
        %v294 = vsel %vm286, %v271, 0
        %v297 = vsel %vm286, %v272, 0
        %v300 = vsel %vm286, %v273, 0
        %v303 = vsel %vm286, %v274, 0
        %v306 = vsel %vm286, %v275, 0
        %v309 = vsel %vm286, %v276, 0
        %v312 = vsel %vm286, %v277, 0
        %v315 = vsel %vm286, %v278, 0
        %v318 = vsel %vm286, %v279, 0
        %v321 = vsel %vm286, %v280, 0
        %v324 = vsel %vm286, %v281, 0
        %v327 = vsel %vm286, %v282, 0
        %v330 = vsel %vm286, %v283, 0
        %v333 = vsel %vm286, %v284, 0
        %vm335 = vcmask 1041408
        %v337 = vsel %vm335, %v285, 0
        %339 = vmatprep.subr.bf16.mxu0 0
        %340 = vmatpush1.bf16.msra.mxu0 %v337
        %341 = vmatprep.subr.bf16.mxu0 0
        %342 = vmatpush1.bf16.msra.mxu0 0
        %343 = vmatprep.subr.bf16.mxu0 0
        %344 = vmatpush1.bf16.msra.mxu0 0
        %345 = vmatprep.subr.bf16.mxu0 0
        %346 = vmatpush1.bf16.msra.mxu0 0
        %347 = vmatprep.subr.bf16.mxu0 0
        %348 = vmatpush1.bf16.msra.mxu0 0
        %349 = vmatprep.subr.bf16.mxu0 0
        %350 = vmatpush1.bf16.msra.mxu0 0
        %351 = vmatprep.subr.bf16.mxu0 0
        %352 = vmatpush1.bf16.msra.mxu0 0
        %353 = vmatprep.subr.bf16.mxu0 0
        %354 = vmatpush1.bf16.msra.mxu0 0
        %355 = vmatprep.subr.bf16.mxu0 0
        %356 = vmatpush1.bf16.msra.mxu0 0
        %357 = vmatprep.subr.bf16.mxu0 0
        %358 = vmatpush1.bf16.msra.mxu0 0
        %359 = vmatprep.subr.bf16.mxu0 0
        %360 = vmatpush1.bf16.msra.mxu0 0
        %361 = vmatprep.subr.bf16.mxu0 0
        %362 = vmatpush1.bf16.msra.mxu0 0
        %363 = vmatprep.subr.bf16.mxu0 0
        %364 = vmatpush1.bf16.msra.mxu0 0
        %365 = vmatprep.subr.bf16.mxu0 0
        %366 = vmatpush1.bf16.msra.mxu0 0
        %367 = vmatprep.subr.bf16.mxu0 0
        %368 = vmatpush1.bf16.msra.mxu0 0
        %369 = vmatprep.subr.bf16.mxu0 0
        %370 = vmatpush1.bf16.msra.mxu0 0
        %371 = vmatprep.mubr.bf16.mxu0 0
        %372 = vmatmul.mubr.bf16.gmra.mrb[0].mxu0 %v288
        %v373 = vpop.f32.mrb[0].mxu0
        %v374 = vadd.f32 0.0, %v373
        %v375 = vpop.f32.mrb[0].mxu0
        %v376 = vpop.f32.mrb[0].mxu0
        %v377 = vadd.f32 0.0, %v376
        %v378 = vpop.f32.mrb[0].mxu0
        %379 = vmatprep.mubr.bf16.mxu0 0
        %380 = vmatmul.mubr.bf16.gmra.mrb[0].mxu0 %v291
        %v381 = vpop.f32.mrb[0].mxu0
        %v382 = vadd.f32 0.0, %v381
        %v383 = vpop.f32.mrb[0].mxu0
        %v384 = vpop.f32.mrb[0].mxu0
        %v385 = vadd.f32 0.0, %v384
        %v386 = vpop.f32.mrb[0].mxu0
        %387 = vmatprep.mubr.bf16.mxu0 0
        %388 = vmatmul.mubr.bf16.gmra.mrb[0].mxu0 %v294
        %v389 = vpop.f32.mrb[0].mxu0
        %v390 = vadd.f32 0.0, %v389
        %v391 = vpop.f32.mrb[0].mxu0
        %v392 = vpop.f32.mrb[0].mxu0
        %v393 = vadd.f32 0.0, %v392
        %v394 = vpop.f32.mrb[0].mxu0
        %395 = vmatprep.mubr.bf16.mxu0 0
        %396 = vmatmul.mubr.bf16.gmra.mrb[0].mxu0 %v297
        %v397 = vpop.f32.mrb[0].mxu0
        %v398 = vadd.f32 0.0, %v397
        %v399 = vpop.f32.mrb[0].mxu0
        %v400 = vpop.f32.mrb[0].mxu0
        %v401 = vadd.f32 0.0, %v400
        %v402 = vpop.f32.mrb[0].mxu0
        %403 = vmatprep.mubr.bf16.mxu0 0
        %404 = vmatmul.mubr.bf16.gmra.mrb[0].mxu0 %v300
        %v405 = vpop.f32.mrb[0].mxu0
        %v406 = vadd.f32 0.0, %v405
        %v407 = vpop.f32.mrb[0].mxu0
        %v408 = vpop.f32.mrb[0].mxu0
        %v409 = vadd.f32 0.0, %v408
        %v410 = vpop.f32.mrb[0].mxu0
        %411 = vmatprep.mubr.bf16.mxu0 0
        %412 = vmatmul.mubr.bf16.gmra.mrb[0].mxu0 %v303
        %v413 = vpop.f32.mrb[0].mxu0
        %v414 = vadd.f32 0.0, %v413
        %v415 = vpop.f32.mrb[0].mxu0
        %v416 = vpop.f32.mrb[0].mxu0
        %v417 = vadd.f32 0.0, %v416
        %v418 = vpop.f32.mrb[0].mxu0
        %419 = vmatprep.mubr.bf16.mxu0 0
        %420 = vmatmul.mubr.bf16.gmra.mrb[0].mxu0 %v306
        %v421 = vpop.f32.mrb[0].mxu0
        %v422 = vadd.f32 0.0, %v421
        %v423 = vpop.f32.mrb[0].mxu0
        %v424 = vpop.f32.mrb[0].mxu0
        %v425 = vadd.f32 0.0, %v424
        %v426 = vpop.f32.mrb[0].mxu0
        %427 = vmatprep.mubr.bf16.mxu0 0
        %428 = vmatmul.mubr.bf16.gmra.mrb[0].mxu0 %v309
        %v429 = vpop.f32.mrb[0].mxu0
        %v430 = vadd.f32 0.0, %v429
        %v431 = vpop.f32.mrb[0].mxu0
        %v432 = vpop.f32.mrb[0].mxu0
        %v433 = vadd.f32 0.0, %v432
        %v434 = vpop.f32.mrb[0].mxu0
        %435 = vmatprep.mubr.bf16.mxu0 0
        %436 = vmatmul.mubr.bf16.gmra.mrb[0].mxu0 %v312
        %v437 = vpop.f32.mrb[0].mxu0
        %v438 = vadd.f32 0.0, %v437
        %v439 = vpop.f32.mrb[0].mxu0
        %v440 = vpop.f32.mrb[0].mxu0
        %v441 = vadd.f32 0.0, %v440
        %v442 = vpop.f32.mrb[0].mxu0
        %443 = vmatprep.mubr.bf16.mxu0 0
        %444 = vmatmul.mubr.bf16.gmra.mrb[0].mxu0 %v315
        %v445 = vpop.f32.mrb[0].mxu0
        %v446 = vadd.f32 0.0, %v445
        %v447 = vpop.f32.mrb[0].mxu0
        %v448 = vpop.f32.mrb[0].mxu0
        %v449 = vadd.f32 0.0, %v448
        %v450 = vpop.f32.mrb[0].mxu0
        %451 = vmatprep.mubr.bf16.mxu0 0
        %452 = vmatmul.mubr.bf16.gmra.mrb[0].mxu0 %v318
        %v453 = vpop.f32.mrb[0].mxu0
        %v454 = vadd.f32 0.0, %v453
        %v455 = vpop.f32.mrb[0].mxu0
        %v456 = vpop.f32.mrb[0].mxu0
        %v457 = vadd.f32 0.0, %v456
        %v458 = vpop.f32.mrb[0].mxu0
        %459 = vmatprep.mubr.bf16.mxu0 0
        %460 = vmatmul.mubr.bf16.gmra.mrb[0].mxu0 %v321
        %v461 = vpop.f32.mrb[0].mxu0
        %v462 = vadd.f32 0.0, %v461
        %v463 = vpop.f32.mrb[0].mxu0
        %v464 = vpop.f32.mrb[0].mxu0
        %v465 = vadd.f32 0.0, %v464
        %v466 = vpop.f32.mrb[0].mxu0
        %467 = vmatprep.mubr.bf16.mxu0 0
        %468 = vmatmul.mubr.bf16.gmra.mrb[0].mxu0 %v324
        %v469 = vpop.f32.mrb[0].mxu0
        %v470 = vadd.f32 0.0, %v469
        %v471 = vpop.f32.mrb[0].mxu0
        %v472 = vpop.f32.mrb[0].mxu0
        %v473 = vadd.f32 0.0, %v472
        %v474 = vpop.f32.mrb[0].mxu0
        %475 = vmatprep.mubr.bf16.mxu0 0
        %476 = vmatmul.mubr.bf16.gmra.mrb[0].mxu0 %v327
        %v477 = vpop.f32.mrb[0].mxu0
        %v478 = vadd.f32 0.0, %v477
        %v479 = vpop.f32.mrb[0].mxu0
        %v480 = vpop.f32.mrb[0].mxu0
        %v481 = vadd.f32 0.0, %v480
        %v482 = vpop.f32.mrb[0].mxu0
        %483 = vmatprep.mubr.bf16.mxu0 0
        %484 = vmatmul.mubr.bf16.gmra.mrb[0].mxu0 %v330
        %v485 = vpop.f32.mrb[0].mxu0
        %v486 = vadd.f32 0.0, %v485
        %v487 = vpop.f32.mrb[0].mxu0
        %v488 = vpop.f32.mrb[0].mxu0
        %v489 = vadd.f32 0.0, %v488
        %v490 = vpop.f32.mrb[0].mxu0
        %491 = vmatprep.mubr.bf16.mxu0 0
        %492 = vmatmul.mubr.bf16.gmra.mrb[0].mxu0 %v333
        %v493 = vpop.f32.mrb[0].mxu0
        %v494 = vadd.f32 0.0, %v493
        %v495 = vpop.f32.mrb[0].mxu0
        %v496 = vpop.f32.mrb[0].mxu0
        %v497 = vadd.f32 0.0, %v496
        %v498 = vpop.f32.mrb[0].mxu0
        %499 = vdwg.mxu0
        %v500 = vpack.c.bf16 %v377, %v374
        %v501 = vpack.c.bf16 %v385, %v382
        %v502 = vpack.c.bf16 %v393, %v390
        %v503 = vpack.c.bf16 %v401, %v398
        %v504 = vpack.c.bf16 %v409, %v406
        %v505 = vpack.c.bf16 %v417, %v414
        %v506 = vpack.c.bf16 %v425, %v422
        %v507 = vpack.c.bf16 %v433, %v430
        %v508 = vpack.c.bf16 %v441, %v438
        %v509 = vpack.c.bf16 %v449, %v446
        %v510 = vpack.c.bf16 %v457, %v454
        %v511 = vpack.c.bf16 %v465, %v462
        %v512 = vpack.c.bf16 %v473, %v470
        %v513 = vpack.c.bf16 %v481, %v478
        %v514 = vpack.c.bf16 %v489, %v486
        %v515 = vpack.c.bf16 %v497, %v494
        %532 = vrot.lane.b32.xlu0 %v500, 124
        %v533 = vpop.permute.xlu0 %532
        %534 = vrot.lane.b32.xlu0 %v501, 124
        %v535 = vpop.permute.xlu0 %534
        %536 = vrot.lane.b32.xlu0 %v502, 124
        %v537 = vpop.permute.xlu0 %536
        %538 = vrot.lane.b32.xlu0 %v503, 124
        %v539 = vpop.permute.xlu0 %538
        %540 = vrot.lane.b32.xlu0 %v504, 124
        %v541 = vpop.permute.xlu0 %540
        %542 = vrot.lane.b32.xlu0 %v505, 124
        %v543 = vpop.permute.xlu0 %542
        %544 = vrot.lane.b32.xlu0 %v506, 124
        %v545 = vpop.permute.xlu0 %544
        %546 = vrot.lane.b32.xlu0 %v507, 124
        %v547 = vpop.permute.xlu0 %546
        %548 = vrot.lane.b32.xlu0 %v508, 124
        %v549 = vpop.permute.xlu0 %548
        %550 = vrot.lane.b32.xlu0 %v509, 124
        %v551 = vpop.permute.xlu0 %550
        %552 = vrot.lane.b32.xlu0 %v510, 124
        %v553 = vpop.permute.xlu0 %552
        %554 = vrot.lane.b32.xlu0 %v511, 124
        %v555 = vpop.permute.xlu0 %554
        %556 = vrot.lane.b32.xlu0 %v512, 124
        %v557 = vpop.permute.xlu0 %556
        %558 = vrot.lane.b32.xlu0 %v513, 124
        %v559 = vpop.permute.xlu0 %558
        %560 = vrot.lane.b32.xlu0 %v514, 124
        %v561 = vpop.permute.xlu0 %560
        %562 = vrot.lane.b32.xlu0 %v515, 124
        %v563 = vpop.permute.xlu0 %562
        %v565 = vsel %vm286, %v500, 0
        %v568 = vsel %vm286, %v501, 0
        %v571 = vsel %vm286, %v502, 0
        %v574 = vsel %vm286, %v503, 0
        %v577 = vsel %vm286, %v504, 0
        %v580 = vsel %vm286, %v505, 0
        %v583 = vsel %vm286, %v506, 0
        %v586 = vsel %vm286, %v507, 0
        %v589 = vsel %vm286, %v508, 0
        %v592 = vsel %vm286, %v509, 0
        %v595 = vsel %vm286, %v510, 0
        %v598 = vsel %vm286, %v511, 0
        %v601 = vsel %vm286, %v512, 0
        %v604 = vsel %vm286, %v513, 0
        %v607 = vsel %vm286, %v514, 0
        %v610 = vsel %vm286, %v515, 0
        %v613 = vsel %vm286, %v533, 0
        %v616 = vsel %vm286, %v535, 0
        %v619 = vsel %vm286, %v537, 0
        %v622 = vsel %vm286, %v539, 0
        %v625 = vsel %vm286, %v541, 0
        %v628 = vsel %vm286, %v543, 0
        %v631 = vsel %vm286, %v545, 0
        %v634 = vsel %vm286, %v547, 0
        %v637 = vsel %vm286, %v549, 0
        %v640 = vsel %vm286, %v551, 0
        %v643 = vsel %vm286, %v553, 0
        %v646 = vsel %vm286, %v555, 0
        %v649 = vsel %vm286, %v557, 0
        %v652 = vsel %vm286, %v559, 0
        %v655 = vsel %vm286, %v561, 0
        %v658 = vsel %vm286, %v563, 0
        %660 = vmatprep.subr.bf16.mxu0 0
        %661 = vmatpush1.bf16.xpose.msra.mxu0 %v613
        %662 = vmatprep.subr.bf16.mxu0 0
        %663 = vmatpush1.bf16.xpose.msra.mxu0 %v616
        %664 = vmatprep.subr.bf16.mxu0 0
        %665 = vmatpush1.bf16.xpose.msra.mxu0 %v619
        %666 = vmatprep.subr.bf16.mxu0 0
        %667 = vmatpush1.bf16.xpose.msra.mxu0 %v622
        %668 = vmatprep.subr.bf16.mxu0 0
        %669 = vmatpush1.bf16.xpose.msra.mxu0 %v625
        %670 = vmatprep.subr.bf16.mxu0 0
        %671 = vmatpush1.bf16.xpose.msra.mxu0 %v628
        %672 = vmatprep.subr.bf16.mxu0 0
        %673 = vmatpush1.bf16.xpose.msra.mxu0 %v631
        %674 = vmatprep.subr.bf16.mxu0 0
        %675 = vmatpush1.bf16.xpose.msra.mxu0 %v634
        %676 = vmatprep.subr.bf16.mxu0 0
        %677 = vmatpush1.bf16.xpose.msra.mxu0 %v637
        %678 = vmatprep.subr.bf16.mxu0 0
        %679 = vmatpush1.bf16.xpose.msra.mxu0 %v640
        %680 = vmatprep.subr.bf16.mxu0 0
        %681 = vmatpush1.bf16.xpose.msra.mxu0 %v643
        %682 = vmatprep.subr.bf16.mxu0 0
        %683 = vmatpush1.bf16.xpose.msra.mxu0 %v646
        %684 = vmatprep.subr.bf16.mxu0 0
        %685 = vmatpush1.bf16.xpose.msra.mxu0 %v649
        %686 = vmatprep.subr.bf16.mxu0 0
        %687 = vmatpush1.bf16.xpose.msra.mxu0 %v652
        %688 = vmatprep.subr.bf16.mxu0 0
        %689 = vmatpush1.bf16.xpose.msra.mxu0 %v655
        %690 = vmatprep.subr.bf16.mxu0 0
        %691 = vmatpush1.bf16.xpose.msra.mxu0 %v658
        %692 = vmatprep.mubr.bf16.mxu0 0
        %693 = vmatmul.mubr.bf16.gmra.mrb[0].mxu0 %v565
        %v694 = vpop.f32.mrb[0].mxu0
        %v695 = vadd.f32 0.0, %v694
        %v696 = vpop.f32.mrb[0].mxu0
        %v697 = vadd.f32 0.0, %v696
        %v698 = vpop.f32.mrb[0].mxu0
        %v699 = vadd.f32 0.0, %v698
        %v700 = vpop.f32.mrb[0].mxu0
        %v701 = vadd.f32 0.0, %v700
        %702 = vmatprep.mubr.bf16.mxu0 0
        %703 = vmatmul.mubr.bf16.gmra.mrb[0].mxu0 %v568
        %v704 = vpop.f32.mrb[0].mxu0
        %v705 = vadd.f32 0.0, %v704
        %v706 = vpop.f32.mrb[0].mxu0
        %v707 = vadd.f32 0.0, %v706
        %v708 = vpop.f32.mrb[0].mxu0
        %v709 = vadd.f32 0.0, %v708
        %v710 = vpop.f32.mrb[0].mxu0
        %v711 = vadd.f32 0.0, %v710
        %712 = vmatprep.mubr.bf16.mxu0 0
        %713 = vmatmul.mubr.bf16.gmra.mrb[0].mxu0 %v571
        %v714 = vpop.f32.mrb[0].mxu0
        %v715 = vadd.f32 0.0, %v714
        %v716 = vpop.f32.mrb[0].mxu0
        %v717 = vadd.f32 0.0, %v716
        %v718 = vpop.f32.mrb[0].mxu0
        %v719 = vadd.f32 0.0, %v718
        %v720 = vpop.f32.mrb[0].mxu0
        %v721 = vadd.f32 0.0, %v720
        %722 = vmatprep.mubr.bf16.mxu0 0
        %723 = vmatmul.mubr.bf16.gmra.mrb[0].mxu0 %v574
        %v724 = vpop.f32.mrb[0].mxu0
        %v725 = vadd.f32 0.0, %v724
        %v726 = vpop.f32.mrb[0].mxu0
        %v727 = vadd.f32 0.0, %v726
        %v728 = vpop.f32.mrb[0].mxu0
        %v729 = vadd.f32 0.0, %v728
        %v730 = vpop.f32.mrb[0].mxu0
        %v731 = vadd.f32 0.0, %v730
        %732 = vmatprep.mubr.bf16.mxu0 0
        %733 = vmatmul.mubr.bf16.gmra.mrb[0].mxu0 %v577
        %v734 = vpop.f32.mrb[0].mxu0
        %v735 = vadd.f32 0.0, %v734
        %v736 = vpop.f32.mrb[0].mxu0
        %v737 = vadd.f32 0.0, %v736
        %v738 = vpop.f32.mrb[0].mxu0
        %v739 = vadd.f32 0.0, %v738
        %v740 = vpop.f32.mrb[0].mxu0
        %v741 = vadd.f32 0.0, %v740
        %742 = vmatprep.mubr.bf16.mxu0 0
        %743 = vmatmul.mubr.bf16.gmra.mrb[0].mxu0 %v580
        %v744 = vpop.f32.mrb[0].mxu0
        %v745 = vadd.f32 0.0, %v744
        %v746 = vpop.f32.mrb[0].mxu0
        %v747 = vadd.f32 0.0, %v746
        %v748 = vpop.f32.mrb[0].mxu0
        %v749 = vadd.f32 0.0, %v748
        %v750 = vpop.f32.mrb[0].mxu0
        %v751 = vadd.f32 0.0, %v750
        %752 = vmatprep.mubr.bf16.mxu0 0
        %753 = vmatmul.mubr.bf16.gmra.mrb[0].mxu0 %v583
        %v754 = vpop.f32.mrb[0].mxu0
        %v755 = vadd.f32 0.0, %v754
        %v756 = vpop.f32.mrb[0].mxu0
        %v757 = vadd.f32 0.0, %v756
        %v758 = vpop.f32.mrb[0].mxu0
        %v759 = vadd.f32 0.0, %v758
        %v760 = vpop.f32.mrb[0].mxu0
        %v761 = vadd.f32 0.0, %v760
        %762 = vmatprep.mubr.bf16.mxu0 0
        %763 = vmatmul.mubr.bf16.gmra.mrb[0].mxu0 %v586
        %v764 = vpop.f32.mrb[0].mxu0
        %v765 = vadd.f32 0.0, %v764
        %v766 = vpop.f32.mrb[0].mxu0
        %v767 = vadd.f32 0.0, %v766
        %v768 = vpop.f32.mrb[0].mxu0
        %v769 = vadd.f32 0.0, %v768
        %v770 = vpop.f32.mrb[0].mxu0
        %v771 = vadd.f32 0.0, %v770
        %772 = vmatprep.mubr.bf16.mxu0 0
        %773 = vmatmul.mubr.bf16.gmra.mrb[0].mxu0 %v589
        %v774 = vpop.f32.mrb[0].mxu0
        %v775 = vadd.f32 0.0, %v774
        %v776 = vpop.f32.mrb[0].mxu0
        %v777 = vadd.f32 0.0, %v776
        %v778 = vpop.f32.mrb[0].mxu0
        %v779 = vadd.f32 0.0, %v778
        %v780 = vpop.f32.mrb[0].mxu0
        %v781 = vadd.f32 0.0, %v780
        %782 = vmatprep.mubr.bf16.mxu0 0
        %783 = vmatmul.mubr.bf16.gmra.mrb[0].mxu0 %v592
        %v784 = vpop.f32.mrb[0].mxu0
        %v785 = vadd.f32 0.0, %v784
        %v786 = vpop.f32.mrb[0].mxu0
        %v787 = vadd.f32 0.0, %v786
        %v788 = vpop.f32.mrb[0].mxu0
        %v789 = vadd.f32 0.0, %v788
        %v790 = vpop.f32.mrb[0].mxu0
        %v791 = vadd.f32 0.0, %v790
        %792 = vmatprep.mubr.bf16.mxu0 0
        %793 = vmatmul.mubr.bf16.gmra.mrb[0].mxu0 %v595
        %v794 = vpop.f32.mrb[0].mxu0
        %v795 = vadd.f32 0.0, %v794
        %v796 = vpop.f32.mrb[0].mxu0
        %v797 = vadd.f32 0.0, %v796
        %v798 = vpop.f32.mrb[0].mxu0
        %v799 = vadd.f32 0.0, %v798
        %v800 = vpop.f32.mrb[0].mxu0
        %v801 = vadd.f32 0.0, %v800
        %802 = vmatprep.mubr.bf16.mxu0 0
        %803 = vmatmul.mubr.bf16.gmra.mrb[0].mxu0 %v598
        %v804 = vpop.f32.mrb[0].mxu0
        %v805 = vadd.f32 0.0, %v804
        %v806 = vpop.f32.mrb[0].mxu0
        %v807 = vadd.f32 0.0, %v806
        %v808 = vpop.f32.mrb[0].mxu0
        %v809 = vadd.f32 0.0, %v808
        %v810 = vpop.f32.mrb[0].mxu0
        %v811 = vadd.f32 0.0, %v810
        %812 = vmatprep.mubr.bf16.mxu0 0
        %813 = vmatmul.mubr.bf16.gmra.mrb[0].mxu0 %v601
        %v814 = vpop.f32.mrb[0].mxu0
        %v815 = vadd.f32 0.0, %v814
        %v816 = vpop.f32.mrb[0].mxu0
        %v817 = vadd.f32 0.0, %v816
        %v818 = vpop.f32.mrb[0].mxu0
        %v819 = vadd.f32 0.0, %v818
        %v820 = vpop.f32.mrb[0].mxu0
        %v821 = vadd.f32 0.0, %v820
        %822 = vmatprep.mubr.bf16.mxu0 0
        %823 = vmatmul.mubr.bf16.gmra.mrb[0].mxu0 %v604
        %v824 = vpop.f32.mrb[0].mxu0
        %v825 = vadd.f32 0.0, %v824
        %v826 = vpop.f32.mrb[0].mxu0
        %v827 = vadd.f32 0.0, %v826
        %v828 = vpop.f32.mrb[0].mxu0
        %v829 = vadd.f32 0.0, %v828
        %v830 = vpop.f32.mrb[0].mxu0
        %v831 = vadd.f32 0.0, %v830
        %832 = vmatprep.mubr.bf16.mxu0 0
        %833 = vmatmul.mubr.bf16.gmra.mrb[0].mxu0 %v607
        %v834 = vpop.f32.mrb[0].mxu0
        %v835 = vadd.f32 0.0, %v834
        %v836 = vpop.f32.mrb[0].mxu0
        %v837 = vadd.f32 0.0, %v836
        %v838 = vpop.f32.mrb[0].mxu0
        %v839 = vadd.f32 0.0, %v838
        %v840 = vpop.f32.mrb[0].mxu0
        %v841 = vadd.f32 0.0, %v840
        %842 = vmatprep.mubr.bf16.mxu0 0
        %843 = vmatmul.mubr.bf16.gmra.mrb[0].mxu0 %v610
        %v844 = vpop.f32.mrb[0].mxu0
        %v845 = vadd.f32 0.0, %v844
        %v846 = vpop.f32.mrb[0].mxu0
        %v847 = vadd.f32 0.0, %v846
        %v848 = vpop.f32.mrb[0].mxu0
        %v849 = vadd.f32 0.0, %v848
        %v850 = vpop.f32.mrb[0].mxu0
        %v851 = vadd.f32 0.0, %v850
        %852 = vdwg.mxu0
        %v853 = vmul.f32 %v695, 0.5
        %v854 = vmul.f32 %v697, 0.5
        %v855 = vmul.f32 %v699, 0.5
        %v856 = vmul.f32 %v701, 0.5
        %v857 = vmul.f32 %v705, 0.5
        %v858 = vmul.f32 %v707, 0.5
        %v859 = vmul.f32 %v709, 0.5
        %v860 = vmul.f32 %v711, 0.5
        %v861 = vmul.f32 %v715, 0.5
        %v862 = vmul.f32 %v717, 0.5
        %v863 = vmul.f32 %v719, 0.5
        %v864 = vmul.f32 %v721, 0.5
        %v865 = vmul.f32 %v725, 0.5
        %v866 = vmul.f32 %v727, 0.5
        %v867 = vmul.f32 %v729, 0.5
        %v868 = vmul.f32 %v731, 0.5
        %v869 = vmul.f32 %v735, 0.5
        %v870 = vmul.f32 %v737, 0.5
        %v871 = vmul.f32 %v739, 0.5
        %v872 = vmul.f32 %v741, 0.5
        %v873 = vmul.f32 %v745, 0.5
        %v874 = vmul.f32 %v747, 0.5
        %v875 = vmul.f32 %v749, 0.5
        %v876 = vmul.f32 %v751, 0.5
        %v877 = vmul.f32 %v755, 0.5
        %v878 = vmul.f32 %v757, 0.5
        %v879 = vmul.f32 %v759, 0.5
        %v880 = vmul.f32 %v761, 0.5
        %v881 = vmul.f32 %v765, 0.5
        %v882 = vmul.f32 %v767, 0.5
        %v883 = vmul.f32 %v769, 0.5
        %v884 = vmul.f32 %v771, 0.5
        %v885 = vmul.f32 %v775, 0.5
        %v886 = vmul.f32 %v777, 0.5
        %v887 = vmul.f32 %v779, 0.5
        %v888 = vmul.f32 %v781, 0.5
        %v889 = vmul.f32 %v785, 0.5
        %v890 = vmul.f32 %v787, 0.5
        %v891 = vmul.f32 %v789, 0.5
        %v892 = vmul.f32 %v791, 0.5
        %v893 = vmul.f32 %v795, 0.5
        %v894 = vmul.f32 %v797, 0.5
        %v895 = vmul.f32 %v799, 0.5
        %v896 = vmul.f32 %v801, 0.5
        %v897 = vmul.f32 %v805, 0.5
        %v898 = vmul.f32 %v807, 0.5
        %v899 = vmul.f32 %v809, 0.5
        %v900 = vmul.f32 %v811, 0.5
        %v901 = vmul.f32 %v815, 0.5
        %v902 = vmul.f32 %v817, 0.5
        %v903 = vmul.f32 %v819, 0.5
        %v904 = vmul.f32 %v821, 0.5
        %v905 = vmul.f32 %v825, 0.5
        %v906 = vmul.f32 %v827, 0.5
        %v907 = vmul.f32 %v829, 0.5
        %v908 = vmul.f32 %v831, 0.5
        %v909 = vmul.f32 %v835, 0.5
        %v910 = vmul.f32 %v837, 0.5
        %v911 = vmul.f32 %v839, 0.5
        %v912 = vmul.f32 %v841, 0.5
        %v913 = vmul.f32 %v845, 0.5
        %v914 = vmul.f32 %v847, 0.5
        %v915 = vmul.f32 %v849, 0.5
        %v916 = vmul.f32 %v851, 0.5
        %v917 = vmax.f32 %v853, %v854
        %918 = vmax.xlane.f32.xlu0 %v917
        %v919 = vpop.xlane.xlu0 %918
        %v920 = vmax.f32 %v855, %v856
        %921 = vmax.xlane.f32.xlu0 %v920
        %v922 = vpop.xlane.xlu0 %921
        %v923 = vmax.f32 %v857, %v858
        %924 = vmax.xlane.f32.xlu0 %v923
        %v925 = vpop.xlane.xlu0 %924
        %v926 = vmax.f32 %v859, %v860
        %927 = vmax.xlane.f32.xlu0 %v926
        %v928 = vpop.xlane.xlu0 %927
        %v929 = vmax.f32 %v861, %v862
        %930 = vmax.xlane.f32.xlu0 %v929
        %v931 = vpop.xlane.xlu0 %930
        %v932 = vmax.f32 %v863, %v864
        %933 = vmax.xlane.f32.xlu0 %v932
        %v934 = vpop.xlane.xlu0 %933
        %v935 = vmax.f32 %v865, %v866
        %936 = vmax.xlane.f32.xlu0 %v935
        %v937 = vpop.xlane.xlu0 %936
        %v938 = vmax.f32 %v867, %v868
        %939 = vmax.xlane.f32.xlu0 %v938
        %v940 = vpop.xlane.xlu0 %939
        %v941 = vmax.f32 %v869, %v870
        %942 = vmax.xlane.f32.xlu0 %v941
        %v943 = vpop.xlane.xlu0 %942
        %v944 = vmax.f32 %v871, %v872
        %945 = vmax.xlane.f32.xlu0 %v944
        %v946 = vpop.xlane.xlu0 %945
        %v947 = vmax.f32 %v873, %v874
        %948 = vmax.xlane.f32.xlu0 %v947
        %v949 = vpop.xlane.xlu0 %948
        %v950 = vmax.f32 %v875, %v876
        %951 = vmax.xlane.f32.xlu0 %v950
        %v952 = vpop.xlane.xlu0 %951
        %v953 = vmax.f32 %v877, %v878
        %954 = vmax.xlane.f32.xlu0 %v953
        %v955 = vpop.xlane.xlu0 %954
        %v956 = vmax.f32 %v879, %v880
        %957 = vmax.xlane.f32.xlu0 %v956
        %v958 = vpop.xlane.xlu0 %957
        %v959 = vmax.f32 %v881, %v882
        %960 = vmax.xlane.f32.xlu0 %v959
        %v961 = vpop.xlane.xlu0 %960
        %v962 = vmax.f32 %v883, %v884
        %963 = vmax.xlane.f32.xlu0 %v962
        %v964 = vpop.xlane.xlu0 %963
        %v965 = vmax.f32 %v885, %v886
        %966 = vmax.xlane.f32.xlu0 %v965
        %v967 = vpop.xlane.xlu0 %966
        %v968 = vmax.f32 %v887, %v888
        %969 = vmax.xlane.f32.xlu0 %v968
        %v970 = vpop.xlane.xlu0 %969
        %v971 = vmax.f32 %v889, %v890
        %972 = vmax.xlane.f32.xlu0 %v971
        %v973 = vpop.xlane.xlu0 %972
        %v974 = vmax.f32 %v891, %v892
        %975 = vmax.xlane.f32.xlu0 %v974
        %v976 = vpop.xlane.xlu0 %975
        %v977 = vmax.f32 %v893, %v894
        %978 = vmax.xlane.f32.xlu0 %v977
        %v979 = vpop.xlane.xlu0 %978
        %v980 = vmax.f32 %v895, %v896
        %981 = vmax.xlane.f32.xlu0 %v980
        %v982 = vpop.xlane.xlu0 %981
        %v983 = vmax.f32 %v897, %v898
        %984 = vmax.xlane.f32.xlu0 %v983
        %v985 = vpop.xlane.xlu0 %984
        %v986 = vmax.f32 %v899, %v900
        %987 = vmax.xlane.f32.xlu0 %v986
        %v988 = vpop.xlane.xlu0 %987
        %v989 = vmax.f32 %v901, %v902
        %990 = vmax.xlane.f32.xlu0 %v989
        %v991 = vpop.xlane.xlu0 %990
        %v992 = vmax.f32 %v903, %v904
        %993 = vmax.xlane.f32.xlu0 %v992
        %v994 = vpop.xlane.xlu0 %993
        %v995 = vmax.f32 %v905, %v906
        %996 = vmax.xlane.f32.xlu0 %v995
        %v997 = vpop.xlane.xlu0 %996
        %v998 = vmax.f32 %v907, %v908
        %999 = vmax.xlane.f32.xlu0 %v998
        %v1000 = vpop.xlane.xlu0 %999
        %v1001 = vmax.f32 %v909, %v910
        %1002 = vmax.xlane.f32.xlu0 %v1001
        %v1003 = vpop.xlane.xlu0 %1002
        %v1004 = vmax.f32 %v911, %v912
        %1005 = vmax.xlane.f32.xlu0 %v1004
        %v1006 = vpop.xlane.xlu0 %1005
        %v1007 = vmax.f32 %v913, %v914
        %1008 = vmax.xlane.f32.xlu0 %v1007
        %v1009 = vpop.xlane.xlu0 %1008
        %v1010 = vmax.f32 %v915, %v916
        %1011 = vmax.xlane.f32.xlu0 %v1010
        %v1012 = vpop.xlane.xlu0 %1011
        %v1013 = vsub.f32 %v853, %v919
        %v1014 = vsub.f32 %v854, %v919
        %v1015 = vsub.f32 %v855, %v922
        %v1016 = vsub.f32 %v856, %v922
        %v1017 = vsub.f32 %v857, %v925
        %v1018 = vsub.f32 %v858, %v925
        %v1019 = vsub.f32 %v859, %v928
        %v1020 = vsub.f32 %v860, %v928
        %v1021 = vsub.f32 %v861, %v931
        %v1022 = vsub.f32 %v862, %v931
        %v1023 = vsub.f32 %v863, %v934
        %v1024 = vsub.f32 %v864, %v934
        %v1025 = vsub.f32 %v865, %v937
        %v1026 = vsub.f32 %v866, %v937
        %v1027 = vsub.f32 %v867, %v940
        %v1028 = vsub.f32 %v868, %v940
        %v1029 = vsub.f32 %v869, %v943
        %v1030 = vsub.f32 %v870, %v943
        %v1031 = vsub.f32 %v871, %v946
        %v1032 = vsub.f32 %v872, %v946
        %v1033 = vsub.f32 %v873, %v949
        %v1034 = vsub.f32 %v874, %v949
        %v1035 = vsub.f32 %v875, %v952
        %v1036 = vsub.f32 %v876, %v952
        %v1037 = vsub.f32 %v877, %v955
        %v1038 = vsub.f32 %v878, %v955
        %v1039 = vsub.f32 %v879, %v958
        %v1040 = vsub.f32 %v880, %v958
        %v1041 = vsub.f32 %v881, %v961
        %v1042 = vsub.f32 %v882, %v961
        %v1043 = vsub.f32 %v883, %v964
        %v1044 = vsub.f32 %v884, %v964
        %v1045 = vsub.f32 %v885, %v967
        %v1046 = vsub.f32 %v886, %v967
        %v1047 = vsub.f32 %v887, %v970
        %v1048 = vsub.f32 %v888, %v970
        %v1049 = vsub.f32 %v889, %v973
        %v1050 = vsub.f32 %v890, %v973
        %v1051 = vsub.f32 %v891, %v976
        %v1052 = vsub.f32 %v892, %v976
        %v1053 = vsub.f32 %v893, %v979
        %v1054 = vsub.f32 %v894, %v979
        %v1055 = vsub.f32 %v895, %v982
        %v1056 = vsub.f32 %v896, %v982
        %v1057 = vsub.f32 %v897, %v985
        %v1058 = vsub.f32 %v898, %v985
        %v1059 = vsub.f32 %v899, %v988
        %v1060 = vsub.f32 %v900, %v988
        %v1061 = vsub.f32 %v901, %v991
        %v1062 = vsub.f32 %v902, %v991
        %v1063 = vsub.f32 %v903, %v994
        %v1064 = vsub.f32 %v904, %v994
        %v1065 = vsub.f32 %v905, %v997
        %v1066 = vsub.f32 %v906, %v997
        %v1067 = vsub.f32 %v907, %v1000
        %v1068 = vsub.f32 %v908, %v1000
        %v1069 = vsub.f32 %v909, %v1003
        %v1070 = vsub.f32 %v910, %v1003
        %v1071 = vsub.f32 %v911, %v1006
        %v1072 = vsub.f32 %v912, %v1006
        %v1073 = vsub.f32 %v913, %v1009
        %v1074 = vsub.f32 %v914, %v1009
        %v1075 = vsub.f32 %v915, %v1012
        %v1076 = vsub.f32 %v916, %v1012
        %v1077 = vmul.f32 %v1013, 1.442695
        %v1078 = vpow.pop %v1077
        %v1079 = vmul.f32 %v1014, 1.442695
        %v1080 = vpow.pop %v1079
        %v1081 = vmul.f32 %v1015, 1.442695
        %v1082 = vpow.pop %v1081
        %v1083 = vmul.f32 %v1016, 1.442695
        %v1084 = vpow.pop %v1083
        %v1085 = vmul.f32 %v1017, 1.442695
        %v1086 = vpow.pop %v1085
        %v1087 = vmul.f32 %v1018, 1.442695
        %v1088 = vpow.pop %v1087
        %v1089 = vmul.f32 %v1019, 1.442695
        %v1090 = vpow.pop %v1089
        %v1091 = vmul.f32 %v1020, 1.442695
        %v1092 = vpow.pop %v1091
        %v1093 = vmul.f32 %v1021, 1.442695
        %v1094 = vpow.pop %v1093
        %v1095 = vmul.f32 %v1022, 1.442695
        %v1096 = vpow.pop %v1095
        %v1097 = vmul.f32 %v1023, 1.442695
        %v1098 = vpow.pop %v1097
        %v1099 = vmul.f32 %v1024, 1.442695
        %v1100 = vpow.pop %v1099
        %v1101 = vmul.f32 %v1025, 1.442695
        %v1102 = vpow.pop %v1101
        %v1103 = vmul.f32 %v1026, 1.442695
        %v1104 = vpow.pop %v1103
        %v1105 = vmul.f32 %v1027, 1.442695
        %v1106 = vpow.pop %v1105
        %v1107 = vmul.f32 %v1028, 1.442695
        %v1108 = vpow.pop %v1107
        %v1109 = vmul.f32 %v1029, 1.442695
        %v1110 = vpow.pop %v1109
        %v1111 = vmul.f32 %v1030, 1.442695
        %v1112 = vpow.pop %v1111
        %v1113 = vmul.f32 %v1031, 1.442695
        %v1114 = vpow.pop %v1113
        %v1115 = vmul.f32 %v1032, 1.442695
        %v1116 = vpow.pop %v1115
        %v1117 = vmul.f32 %v1033, 1.442695
        %v1118 = vpow.pop %v1117
        %v1119 = vmul.f32 %v1034, 1.442695
        %v1120 = vpow.pop %v1119
        %v1121 = vmul.f32 %v1035, 1.442695
        %v1122 = vpow.pop %v1121
        %v1123 = vmul.f32 %v1036, 1.442695
        %v1124 = vpow.pop %v1123
        %v1125 = vmul.f32 %v1037, 1.442695
        %v1126 = vpow.pop %v1125
        %v1127 = vmul.f32 %v1038, 1.442695
        %v1128 = vpow.pop %v1127
        %v1129 = vmul.f32 %v1039, 1.442695
        %v1130 = vpow.pop %v1129
        %v1131 = vmul.f32 %v1040, 1.442695
        %v1132 = vpow.pop %v1131
        %v1133 = vmul.f32 %v1041, 1.442695
        %v1134 = vpow.pop %v1133
        %v1135 = vmul.f32 %v1042, 1.442695
        %v1136 = vpow.pop %v1135
        %v1137 = vmul.f32 %v1043, 1.442695
        %v1138 = vpow.pop %v1137
        %v1139 = vmul.f32 %v1044, 1.442695
        %v1140 = vpow.pop %v1139
        %v1141 = vmul.f32 %v1045, 1.442695
        %v1142 = vpow.pop %v1141
        %v1143 = vmul.f32 %v1046, 1.442695
        %v1144 = vpow.pop %v1143
        %v1145 = vmul.f32 %v1047, 1.442695
        %v1146 = vpow.pop %v1145
        %v1147 = vmul.f32 %v1048, 1.442695
        %v1148 = vpow.pop %v1147
        %v1149 = vmul.f32 %v1049, 1.442695
        %v1150 = vpow.pop %v1149
        %v1151 = vmul.f32 %v1050, 1.442695
        %v1152 = vpow.pop %v1151
        %v1153 = vmul.f32 %v1051, 1.442695
        %v1154 = vpow.pop %v1153
        %v1155 = vmul.f32 %v1052, 1.442695
        %v1156 = vpow.pop %v1155
        %v1157 = vmul.f32 %v1053, 1.442695
        %v1158 = vpow.pop %v1157
        %v1159 = vmul.f32 %v1054, 1.442695
        %v1160 = vpow.pop %v1159
        %v1161 = vmul.f32 %v1055, 1.442695
        %v1162 = vpow.pop %v1161
        %v1163 = vmul.f32 %v1056, 1.442695
        %v1164 = vpow.pop %v1163
        %v1165 = vmul.f32 %v1057, 1.442695
        %v1166 = vpow.pop %v1165
        %v1167 = vmul.f32 %v1058, 1.442695
        %v1168 = vpow.pop %v1167
        %v1169 = vmul.f32 %v1059, 1.442695
        %v1170 = vpow.pop %v1169
        %v1171 = vmul.f32 %v1060, 1.442695
        %v1172 = vpow.pop %v1171
        %v1173 = vmul.f32 %v1061, 1.442695
        %v1174 = vpow.pop %v1173
        %v1175 = vmul.f32 %v1062, 1.442695
        %v1176 = vpow.pop %v1175
        %v1177 = vmul.f32 %v1063, 1.442695
        %v1178 = vpow.pop %v1177
        %v1179 = vmul.f32 %v1064, 1.442695
        %v1180 = vpow.pop %v1179
        %v1181 = vmul.f32 %v1065, 1.442695
        %v1182 = vpow.pop %v1181
        %v1183 = vmul.f32 %v1066, 1.442695
        %v1184 = vpow.pop %v1183
        %v1185 = vmul.f32 %v1067, 1.442695
        %v1186 = vpow.pop %v1185
        %v1187 = vmul.f32 %v1068, 1.442695
        %v1188 = vpow.pop %v1187
        %v1189 = vmul.f32 %v1069, 1.442695
        %v1190 = vpow.pop %v1189
        %v1191 = vmul.f32 %v1070, 1.442695
        %v1192 = vpow.pop %v1191
        %v1193 = vmul.f32 %v1071, 1.442695
        %v1194 = vpow.pop %v1193
        %v1195 = vmul.f32 %v1072, 1.442695
        %v1196 = vpow.pop %v1195
        %v1197 = vmul.f32 %v1073, 1.442695
        %v1198 = vpow.pop %v1197
        %v1199 = vmul.f32 %v1074, 1.442695
        %v1200 = vpow.pop %v1199
        %v1201 = vmul.f32 %v1075, 1.442695
        %v1202 = vpow.pop %v1201
        %v1203 = vmul.f32 %v1076, 1.442695
        %v1204 = vpow.pop %v1203
        %v1205 = vadd.f32 %v1078, %v1080
        %1206 = vadd.xlane.f32.xlu0 %v1205
        %v1207 = vpop.xlane.xlu0 %1206
        %v1208 = vadd.f32 %v1082, %v1084
        %1209 = vadd.xlane.f32.xlu0 %v1208
        %v1210 = vpop.xlane.xlu0 %1209
        %v1211 = vadd.f32 %v1086, %v1088
        %1212 = vadd.xlane.f32.xlu0 %v1211
        %v1213 = vpop.xlane.xlu0 %1212
        %v1214 = vadd.f32 %v1090, %v1092
        %1215 = vadd.xlane.f32.xlu0 %v1214
        %v1216 = vpop.xlane.xlu0 %1215
        %v1217 = vadd.f32 %v1094, %v1096
        %1218 = vadd.xlane.f32.xlu0 %v1217
        %v1219 = vpop.xlane.xlu0 %1218
        %v1220 = vadd.f32 %v1098, %v1100
        %1221 = vadd.xlane.f32.xlu0 %v1220
        %v1222 = vpop.xlane.xlu0 %1221
        %v1223 = vadd.f32 %v1102, %v1104
        %1224 = vadd.xlane.f32.xlu0 %v1223
        %v1225 = vpop.xlane.xlu0 %1224
        %v1226 = vadd.f32 %v1106, %v1108
        %1227 = vadd.xlane.f32.xlu0 %v1226
        %v1228 = vpop.xlane.xlu0 %1227
        %v1229 = vadd.f32 %v1110, %v1112
        %1230 = vadd.xlane.f32.xlu0 %v1229
        %v1231 = vpop.xlane.xlu0 %1230
        %v1232 = vadd.f32 %v1114, %v1116
        %1233 = vadd.xlane.f32.xlu0 %v1232
        %v1234 = vpop.xlane.xlu0 %1233
        %v1235 = vadd.f32 %v1118, %v1120
        %1236 = vadd.xlane.f32.xlu0 %v1235
        %v1237 = vpop.xlane.xlu0 %1236
        %v1238 = vadd.f32 %v1122, %v1124
        %1239 = vadd.xlane.f32.xlu0 %v1238
        %v1240 = vpop.xlane.xlu0 %1239
        %v1241 = vadd.f32 %v1126, %v1128
        %1242 = vadd.xlane.f32.xlu0 %v1241
        %v1243 = vpop.xlane.xlu0 %1242
        %v1244 = vadd.f32 %v1130, %v1132
        %1245 = vadd.xlane.f32.xlu0 %v1244
        %v1246 = vpop.xlane.xlu0 %1245
        %v1247 = vadd.f32 %v1134, %v1136
        %1248 = vadd.xlane.f32.xlu0 %v1247
        %v1249 = vpop.xlane.xlu0 %1248
        %v1250 = vadd.f32 %v1138, %v1140
        %1251 = vadd.xlane.f32.xlu0 %v1250
        %v1252 = vpop.xlane.xlu0 %1251
        %v1253 = vadd.f32 %v1142, %v1144
        %1254 = vadd.xlane.f32.xlu0 %v1253
        %v1255 = vpop.xlane.xlu0 %1254
        %v1256 = vadd.f32 %v1146, %v1148
        %1257 = vadd.xlane.f32.xlu0 %v1256
        %v1258 = vpop.xlane.xlu0 %1257
        %v1259 = vadd.f32 %v1150, %v1152
        %1260 = vadd.xlane.f32.xlu0 %v1259
        %v1261 = vpop.xlane.xlu0 %1260
        %v1262 = vadd.f32 %v1154, %v1156
        %1263 = vadd.xlane.f32.xlu0 %v1262
        %v1264 = vpop.xlane.xlu0 %1263
        %v1265 = vadd.f32 %v1158, %v1160
        %1266 = vadd.xlane.f32.xlu0 %v1265
        %v1267 = vpop.xlane.xlu0 %1266
        %v1268 = vadd.f32 %v1162, %v1164
        %1269 = vadd.xlane.f32.xlu0 %v1268
        %v1270 = vpop.xlane.xlu0 %1269
        %v1271 = vadd.f32 %v1166, %v1168
        %1272 = vadd.xlane.f32.xlu0 %v1271
        %v1273 = vpop.xlane.xlu0 %1272
        %v1274 = vadd.f32 %v1170, %v1172
        %1275 = vadd.xlane.f32.xlu0 %v1274
        %v1276 = vpop.xlane.xlu0 %1275
        %v1277 = vadd.f32 %v1174, %v1176
        %1278 = vadd.xlane.f32.xlu0 %v1277
        %v1279 = vpop.xlane.xlu0 %1278
        %v1280 = vadd.f32 %v1178, %v1180
        %1281 = vadd.xlane.f32.xlu0 %v1280
        %v1282 = vpop.xlane.xlu0 %1281
        %v1283 = vadd.f32 %v1182, %v1184
        %1284 = vadd.xlane.f32.xlu0 %v1283
        %v1285 = vpop.xlane.xlu0 %1284
        %v1286 = vadd.f32 %v1186, %v1188
        %1287 = vadd.xlane.f32.xlu0 %v1286
        %v1288 = vpop.xlane.xlu0 %1287
        %v1289 = vadd.f32 %v1190, %v1192
        %1290 = vadd.xlane.f32.xlu0 %v1289
        %v1291 = vpop.xlane.xlu0 %1290
        %v1292 = vadd.f32 %v1194, %v1196
        %1293 = vadd.xlane.f32.xlu0 %v1292
        %v1294 = vpop.xlane.xlu0 %1293
        %v1295 = vadd.f32 %v1198, %v1200
        %1296 = vadd.xlane.f32.xlu0 %v1295
        %v1297 = vpop.xlane.xlu0 %1296
        %v1298 = vadd.f32 %v1202, %v1204
        %1299 = vadd.xlane.f32.xlu0 %v1298
        %v1300 = vpop.xlane.xlu0 %1299
        %v1301 = vrcp.pop %v1207
        %v1302 = vrcp.pop %v1210
        %v1303 = vrcp.pop %v1213
        %v1304 = vrcp.pop %v1216
        %v1305 = vrcp.pop %v1219
        %v1306 = vrcp.pop %v1222
        %v1307 = vrcp.pop %v1225
        %v1308 = vrcp.pop %v1228
        %v1309 = vrcp.pop %v1231
        %v1310 = vrcp.pop %v1234
        %v1311 = vrcp.pop %v1237
        %v1312 = vrcp.pop %v1240
        %v1313 = vrcp.pop %v1243
        %v1314 = vrcp.pop %v1246
        %v1315 = vrcp.pop %v1249
        %v1316 = vrcp.pop %v1252
        %v1317 = vrcp.pop %v1255
        %v1318 = vrcp.pop %v1258
        %v1319 = vrcp.pop %v1261
        %v1320 = vrcp.pop %v1264
        %v1321 = vrcp.pop %v1267
        %v1322 = vrcp.pop %v1270
        %v1323 = vrcp.pop %v1273
        %v1324 = vrcp.pop %v1276
        %v1325 = vrcp.pop %v1279
        %v1326 = vrcp.pop %v1282
        %v1327 = vrcp.pop %v1285
        %v1328 = vrcp.pop %v1288
        %v1329 = vrcp.pop %v1291
        %v1330 = vrcp.pop %v1294
        %v1331 = vrcp.pop %v1297
        %v1332 = vrcp.pop %v1300
        %v1333 = vmul.f32 %v1078, %v1301
        %v1334 = vmul.f32 %v1080, %v1301
        %v1335 = vmul.f32 %v1082, %v1302
        %v1336 = vmul.f32 %v1084, %v1302
        %v1337 = vmul.f32 %v1086, %v1303
        %v1338 = vmul.f32 %v1088, %v1303
        %v1339 = vmul.f32 %v1090, %v1304
        %v1340 = vmul.f32 %v1092, %v1304
        %v1341 = vmul.f32 %v1094, %v1305
        %v1342 = vmul.f32 %v1096, %v1305
        %v1343 = vmul.f32 %v1098, %v1306
        %v1344 = vmul.f32 %v1100, %v1306
        %v1345 = vmul.f32 %v1102, %v1307
        %v1346 = vmul.f32 %v1104, %v1307
        %v1347 = vmul.f32 %v1106, %v1308
        %v1348 = vmul.f32 %v1108, %v1308
        %v1349 = vmul.f32 %v1110, %v1309
        %v1350 = vmul.f32 %v1112, %v1309
        %v1351 = vmul.f32 %v1114, %v1310
        %v1352 = vmul.f32 %v1116, %v1310
        %v1353 = vmul.f32 %v1118, %v1311
        %v1354 = vmul.f32 %v1120, %v1311
        %v1355 = vmul.f32 %v1122, %v1312
        %v1356 = vmul.f32 %v1124, %v1312
        %v1357 = vmul.f32 %v1126, %v1313
        %v1358 = vmul.f32 %v1128, %v1313
        %v1359 = vmul.f32 %v1130, %v1314
        %v1360 = vmul.f32 %v1132, %v1314
        %v1361 = vmul.f32 %v1134, %v1315
        %v1362 = vmul.f32 %v1136, %v1315
        %v1363 = vmul.f32 %v1138, %v1316
        %v1364 = vmul.f32 %v1140, %v1316
        %v1365 = vmul.f32 %v1142, %v1317
        %v1366 = vmul.f32 %v1144, %v1317
        %v1367 = vmul.f32 %v1146, %v1318
        %v1368 = vmul.f32 %v1148, %v1318
        %v1369 = vmul.f32 %v1150, %v1319
        %v1370 = vmul.f32 %v1152, %v1319
        %v1371 = vmul.f32 %v1154, %v1320
        %v1372 = vmul.f32 %v1156, %v1320
        %v1373 = vmul.f32 %v1158, %v1321
        %v1374 = vmul.f32 %v1160, %v1321
        %v1375 = vmul.f32 %v1162, %v1322
        %v1376 = vmul.f32 %v1164, %v1322
        %v1377 = vmul.f32 %v1166, %v1323
        %v1378 = vmul.f32 %v1168, %v1323
        %v1379 = vmul.f32 %v1170, %v1324
        %v1380 = vmul.f32 %v1172, %v1324
        %v1381 = vmul.f32 %v1174, %v1325
        %v1382 = vmul.f32 %v1176, %v1325
        %v1383 = vmul.f32 %v1178, %v1326
        %v1384 = vmul.f32 %v1180, %v1326
        %v1385 = vmul.f32 %v1182, %v1327
        %v1386 = vmul.f32 %v1184, %v1327
        %v1387 = vmul.f32 %v1186, %v1328
        %v1388 = vmul.f32 %v1188, %v1328
        %v1389 = vmul.f32 %v1190, %v1329
        %v1390 = vmul.f32 %v1192, %v1329
        %v1391 = vmul.f32 %v1194, %v1330
        %v1392 = vmul.f32 %v1196, %v1330
        %v1393 = vmul.f32 %v1198, %v1331
        %v1394 = vmul.f32 %v1200, %v1331
        %v1395 = vmul.f32 %v1202, %v1332
        %v1396 = vmul.f32 %v1204, %v1332
        %v1397 = vpack.c.bf16 %v1335, %v1333
        %v1398 = vpack.c.bf16 %v1336, %v1334
        %v1399 = vpack.c.bf16 %v1339, %v1337
        %v1400 = vpack.c.bf16 %v1340, %v1338
        %v1401 = vpack.c.bf16 %v1343, %v1341
        %v1402 = vpack.c.bf16 %v1344, %v1342
        %v1403 = vpack.c.bf16 %v1347, %v1345
        %v1404 = vpack.c.bf16 %v1348, %v1346
        %v1405 = vpack.c.bf16 %v1351, %v1349
        %v1406 = vpack.c.bf16 %v1352, %v1350
        %v1407 = vpack.c.bf16 %v1355, %v1353
        %v1408 = vpack.c.bf16 %v1356, %v1354
        %v1409 = vpack.c.bf16 %v1359, %v1357
        %v1410 = vpack.c.bf16 %v1360, %v1358
        %v1411 = vpack.c.bf16 %v1363, %v1361
        %v1412 = vpack.c.bf16 %v1364, %v1362
        %v1413 = vpack.c.bf16 %v1367, %v1365
        %v1414 = vpack.c.bf16 %v1368, %v1366
        %v1415 = vpack.c.bf16 %v1371, %v1369
        %v1416 = vpack.c.bf16 %v1372, %v1370
        %v1417 = vpack.c.bf16 %v1375, %v1373
        %v1418 = vpack.c.bf16 %v1376, %v1374
        %v1419 = vpack.c.bf16 %v1379, %v1377
        %v1420 = vpack.c.bf16 %v1380, %v1378
        %v1421 = vpack.c.bf16 %v1383, %v1381
        %v1422 = vpack.c.bf16 %v1384, %v1382
        %v1423 = vpack.c.bf16 %v1387, %v1385
        %v1424 = vpack.c.bf16 %v1388, %v1386
        %v1425 = vpack.c.bf16 %v1391, %v1389
        %v1426 = vpack.c.bf16 %v1392, %v1390
        %v1427 = vpack.c.bf16 %v1395, %v1393
        %v1428 = vpack.c.bf16 %v1396, %v1394
        %1429 = vrot.lane.b32.xlu0 %v500, 120
        %v1430 = vpop.permute.xlu0 %1429
        %1431 = vrot.lane.b32.xlu0 %v501, 120
        %v1432 = vpop.permute.xlu0 %1431
        %1433 = vrot.lane.b32.xlu0 %v502, 120
        %v1434 = vpop.permute.xlu0 %1433
        %1435 = vrot.lane.b32.xlu0 %v503, 120
        %v1436 = vpop.permute.xlu0 %1435
        %1437 = vrot.lane.b32.xlu0 %v504, 120
        %v1438 = vpop.permute.xlu0 %1437
        %1439 = vrot.lane.b32.xlu0 %v505, 120
        %v1440 = vpop.permute.xlu0 %1439
        %1441 = vrot.lane.b32.xlu0 %v506, 120
        %v1442 = vpop.permute.xlu0 %1441
        %1443 = vrot.lane.b32.xlu0 %v507, 120
        %v1444 = vpop.permute.xlu0 %1443
        %1445 = vrot.lane.b32.xlu0 %v508, 120
        %v1446 = vpop.permute.xlu0 %1445
        %1447 = vrot.lane.b32.xlu0 %v509, 120
        %v1448 = vpop.permute.xlu0 %1447
        %1449 = vrot.lane.b32.xlu0 %v510, 120
        %v1450 = vpop.permute.xlu0 %1449
        %1451 = vrot.lane.b32.xlu0 %v511, 120
        %v1452 = vpop.permute.xlu0 %1451
        %1453 = vrot.lane.b32.xlu0 %v512, 120
        %v1454 = vpop.permute.xlu0 %1453
        %1455 = vrot.lane.b32.xlu0 %v513, 120
        %v1456 = vpop.permute.xlu0 %1455
        %1457 = vrot.lane.b32.xlu0 %v514, 120
        %v1458 = vpop.permute.xlu0 %1457
        %1459 = vrot.lane.b32.xlu0 %v515, 120
        %v1460 = vpop.permute.xlu0 %1459
        %1477 = vmatprep.subr.bf16.mxu0 0
        %1478 = vmatpush1.bf16.msra.mxu0 %v1430
        %1479 = vmatprep.subr.bf16.mxu0 0
        %1480 = vmatpush1.bf16.msra.mxu0 %v1432
        %1481 = vmatprep.subr.bf16.mxu0 0
        %1482 = vmatpush1.bf16.msra.mxu0 %v1434
        %1483 = vmatprep.subr.bf16.mxu0 0
        %1484 = vmatpush1.bf16.msra.mxu0 %v1436
        %1485 = vmatprep.subr.bf16.mxu0 0
        %1486 = vmatpush1.bf16.msra.mxu0 %v1438
        %1487 = vmatprep.subr.bf16.mxu0 0
        %1488 = vmatpush1.bf16.msra.mxu0 %v1440
        %1489 = vmatprep.subr.bf16.mxu0 0
        %1490 = vmatpush1.bf16.msra.mxu0 %v1442
        %1491 = vmatprep.subr.bf16.mxu0 0
        %1492 = vmatpush1.bf16.msra.mxu0 %v1444
        %1493 = vmatprep.subr.bf16.mxu0 0
        %1494 = vmatpush1.bf16.msra.mxu0 %v1446
        %1495 = vmatprep.subr.bf16.mxu0 0
        %1496 = vmatpush1.bf16.msra.mxu0 %v1448
        %1497 = vmatprep.subr.bf16.mxu0 0
        %1498 = vmatpush1.bf16.msra.mxu0 %v1450
        %1499 = vmatprep.subr.bf16.mxu0 0
        %1500 = vmatpush1.bf16.msra.mxu0 %v1452
        %1501 = vmatprep.subr.bf16.mxu0 0
        %1502 = vmatpush1.bf16.msra.mxu0 %v1454
        %1503 = vmatprep.subr.bf16.mxu0 0
        %1504 = vmatpush1.bf16.msra.mxu0 %v1456
        %1505 = vmatprep.subr.bf16.mxu0 0
        %1506 = vmatpush1.bf16.msra.mxu0 %v1458
        %1507 = vmatprep.subr.bf16.mxu0 0
        %1508 = vmatpush1.bf16.msra.mxu0 %v1460
        %1509 = vmatprep.mubr.bf16.mxu0 %v1398
        %1510 = vmatmul.mubr.bf16.gmra.mrb[0].mxu0 %v1397
        %v1511 = vpop.f32.mrb[0].mxu0
        %v1512 = vadd.f32 0.0, %v1511
        %v1513 = vpop.f32.mrb[0].mxu0
        %v1514 = vpop.f32.mrb[0].mxu0
        %v1515 = vadd.f32 0.0, %v1514
        %v1516 = vpop.f32.mrb[0].mxu0
        %1517 = vmatprep.mubr.bf16.mxu0 %v1400
        %1518 = vmatmul.mubr.bf16.gmra.mrb[0].mxu0 %v1399
        %v1519 = vpop.f32.mrb[0].mxu0
        %v1520 = vadd.f32 0.0, %v1519
        %v1521 = vpop.f32.mrb[0].mxu0
        %v1522 = vpop.f32.mrb[0].mxu0
        %v1523 = vadd.f32 0.0, %v1522
        %v1524 = vpop.f32.mrb[0].mxu0
        %1525 = vmatprep.mubr.bf16.mxu0 %v1402
        %1526 = vmatmul.mubr.bf16.gmra.mrb[0].mxu0 %v1401
        %v1527 = vpop.f32.mrb[0].mxu0
        %v1528 = vadd.f32 0.0, %v1527
        %v1529 = vpop.f32.mrb[0].mxu0
        %v1530 = vpop.f32.mrb[0].mxu0
        %v1531 = vadd.f32 0.0, %v1530
        %v1532 = vpop.f32.mrb[0].mxu0
        %1533 = vmatprep.mubr.bf16.mxu0 %v1404
        %1534 = vmatmul.mubr.bf16.gmra.mrb[0].mxu0 %v1403
        %v1535 = vpop.f32.mrb[0].mxu0
        %v1536 = vadd.f32 0.0, %v1535
        %v1537 = vpop.f32.mrb[0].mxu0
        %v1538 = vpop.f32.mrb[0].mxu0
        %v1539 = vadd.f32 0.0, %v1538
        %v1540 = vpop.f32.mrb[0].mxu0
        %1541 = vmatprep.mubr.bf16.mxu0 %v1406
        %1542 = vmatmul.mubr.bf16.gmra.mrb[0].mxu0 %v1405
        %v1543 = vpop.f32.mrb[0].mxu0
        %v1544 = vadd.f32 0.0, %v1543
        %v1545 = vpop.f32.mrb[0].mxu0
        %v1546 = vpop.f32.mrb[0].mxu0
        %v1547 = vadd.f32 0.0, %v1546
        %v1548 = vpop.f32.mrb[0].mxu0
        %1549 = vmatprep.mubr.bf16.mxu0 %v1408
        %1550 = vmatmul.mubr.bf16.gmra.mrb[0].mxu0 %v1407
        %v1551 = vpop.f32.mrb[0].mxu0
        %v1552 = vadd.f32 0.0, %v1551
        %v1553 = vpop.f32.mrb[0].mxu0
        %v1554 = vpop.f32.mrb[0].mxu0
        %v1555 = vadd.f32 0.0, %v1554
        %v1556 = vpop.f32.mrb[0].mxu0
        %1557 = vmatprep.mubr.bf16.mxu0 %v1410
        %1558 = vmatmul.mubr.bf16.gmra.mrb[0].mxu0 %v1409
        %v1559 = vpop.f32.mrb[0].mxu0
        %v1560 = vadd.f32 0.0, %v1559
        %v1561 = vpop.f32.mrb[0].mxu0
        %v1562 = vpop.f32.mrb[0].mxu0
        %v1563 = vadd.f32 0.0, %v1562
        %v1564 = vpop.f32.mrb[0].mxu0
        %1565 = vmatprep.mubr.bf16.mxu0 %v1412
        %1566 = vmatmul.mubr.bf16.gmra.mrb[0].mxu0 %v1411
        %v1567 = vpop.f32.mrb[0].mxu0
        %v1568 = vadd.f32 0.0, %v1567
        %v1569 = vpop.f32.mrb[0].mxu0
        %v1570 = vpop.f32.mrb[0].mxu0
        %v1571 = vadd.f32 0.0, %v1570
        %v1572 = vpop.f32.mrb[0].mxu0
        %1573 = vmatprep.mubr.bf16.mxu0 %v1414
        %1574 = vmatmul.mubr.bf16.gmra.mrb[0].mxu0 %v1413
        %v1575 = vpop.f32.mrb[0].mxu0
        %v1576 = vadd.f32 0.0, %v1575
        %v1577 = vpop.f32.mrb[0].mxu0
        %v1578 = vpop.f32.mrb[0].mxu0
        %v1579 = vadd.f32 0.0, %v1578
        %v1580 = vpop.f32.mrb[0].mxu0
        %1581 = vmatprep.mubr.bf16.mxu0 %v1416
        %1582 = vmatmul.mubr.bf16.gmra.mrb[0].mxu0 %v1415
        %v1583 = vpop.f32.mrb[0].mxu0
        %v1584 = vadd.f32 0.0, %v1583
        %v1585 = vpop.f32.mrb[0].mxu0
        %v1586 = vpop.f32.mrb[0].mxu0
        %v1587 = vadd.f32 0.0, %v1586
        %v1588 = vpop.f32.mrb[0].mxu0
        %1589 = vmatprep.mubr.bf16.mxu0 %v1418
        %1590 = vmatmul.mubr.bf16.gmra.mrb[0].mxu0 %v1417
        %v1591 = vpop.f32.mrb[0].mxu0
        %v1592 = vadd.f32 0.0, %v1591
        %v1593 = vpop.f32.mrb[0].mxu0
        %v1594 = vpop.f32.mrb[0].mxu0
        %v1595 = vadd.f32 0.0, %v1594
        %v1596 = vpop.f32.mrb[0].mxu0
        %1597 = vmatprep.mubr.bf16.mxu0 %v1420
        %1598 = vmatmul.mubr.bf16.gmra.mrb[0].mxu0 %v1419
        %v1599 = vpop.f32.mrb[0].mxu0
        %v1600 = vadd.f32 0.0, %v1599
        %v1601 = vpop.f32.mrb[0].mxu0
        %v1602 = vpop.f32.mrb[0].mxu0
        %v1603 = vadd.f32 0.0, %v1602
        %v1604 = vpop.f32.mrb[0].mxu0
        %1605 = vmatprep.mubr.bf16.mxu0 %v1422
        %1606 = vmatmul.mubr.bf16.gmra.mrb[0].mxu0 %v1421
        %v1607 = vpop.f32.mrb[0].mxu0
        %v1608 = vadd.f32 0.0, %v1607
        %v1609 = vpop.f32.mrb[0].mxu0
        %v1610 = vpop.f32.mrb[0].mxu0
        %v1611 = vadd.f32 0.0, %v1610
        %v1612 = vpop.f32.mrb[0].mxu0
        %1613 = vmatprep.mubr.bf16.mxu0 %v1424
        %1614 = vmatmul.mubr.bf16.gmra.mrb[0].mxu0 %v1423
        %v1615 = vpop.f32.mrb[0].mxu0
        %v1616 = vadd.f32 0.0, %v1615
        %v1617 = vpop.f32.mrb[0].mxu0
        %v1618 = vpop.f32.mrb[0].mxu0
        %v1619 = vadd.f32 0.0, %v1618
        %v1620 = vpop.f32.mrb[0].mxu0
        %1621 = vmatprep.mubr.bf16.mxu0 %v1426
        %1622 = vmatmul.mubr.bf16.gmra.mrb[0].mxu0 %v1425
        %v1623 = vpop.f32.mrb[0].mxu0
        %v1624 = vadd.f32 0.0, %v1623
        %v1625 = vpop.f32.mrb[0].mxu0
        %v1626 = vpop.f32.mrb[0].mxu0
        %v1627 = vadd.f32 0.0, %v1626
        %v1628 = vpop.f32.mrb[0].mxu0
        %1629 = vmatprep.mubr.bf16.mxu0 %v1428
        %1630 = vmatmul.mubr.bf16.gmra.mrb[0].mxu0 %v1427
        %v1631 = vpop.f32.mrb[0].mxu0
        %v1632 = vadd.f32 0.0, %v1631
        %v1633 = vpop.f32.mrb[0].mxu0
        %v1634 = vpop.f32.mrb[0].mxu0
        %v1635 = vadd.f32 0.0, %v1634
        %v1636 = vpop.f32.mrb[0].mxu0
        %1637 = vdwg.mxu0
        %v1638 = vpack.c.bf16 %v1515, %v1512
        %v1639 = vpack.c.bf16 %v1523, %v1520
        %v1640 = vpack.c.bf16 %v1531, %v1528
        %v1641 = vpack.c.bf16 %v1539, %v1536
        %v1642 = vpack.c.bf16 %v1547, %v1544
        %v1643 = vpack.c.bf16 %v1555, %v1552
        %v1644 = vpack.c.bf16 %v1563, %v1560
        %v1645 = vpack.c.bf16 %v1571, %v1568
        %v1646 = vpack.c.bf16 %v1579, %v1576
        %v1647 = vpack.c.bf16 %v1587, %v1584
        %v1648 = vpack.c.bf16 %v1595, %v1592
        %v1649 = vpack.c.bf16 %v1603, %v1600
        %v1650 = vpack.c.bf16 %v1611, %v1608
        %v1651 = vpack.c.bf16 %v1619, %v1616
        %v1652 = vpack.c.bf16 %v1627, %v1624
        %v1653 = vpack.c.bf16 %v1635, %v1632
        %v1654 = vld [vmem:[#allocation4] sm:$0x3]
        %v1655 = vld [vmem:[#allocation6] sm:$0x1]
        %v1657 = vlaneseq
        %v1658 = vshrl.u32 %v1657, 7
        %v1659 = vsub.s32 0, %v1658
        %v1660 = vrot.slane %v1655, %v1659
        %v1663 = vsel %vm286, %v1638, 0
        %v1666 = vsel %vm286, %v1639, 0
        %v1669 = vsel %vm286, %v1640, 0
        %v1672 = vsel %vm286, %v1641, 0
        %v1675 = vsel %vm286, %v1642, 0
        %v1678 = vsel %vm286, %v1643, 0
        %v1681 = vsel %vm286, %v1644, 0
        %v1684 = vsel %vm286, %v1645, 0
        %v1687 = vsel %vm286, %v1646, 0
        %v1690 = vsel %vm286, %v1647, 0
        %v1693 = vsel %vm286, %v1648, 0
        %v1696 = vsel %vm286, %v1649, 0
        %v1699 = vsel %vm286, %v1650, 0
        %v1702 = vsel %vm286, %v1651, 0
        %v1705 = vsel %vm286, %v1652, 0
        %v1708 = vsel %vm286, %v1653, 0
        %v1711 = vsel %vm335, %v1654, 0
        %1713 = vmatprep.subr.bf16.mxu0 0
        %1714 = vmatpush1.bf16.msra.mxu0 %v1711
        %1715 = vmatprep.subr.bf16.mxu0 0
        %1716 = vmatpush1.bf16.msra.mxu0 0
        %1717 = vmatprep.subr.bf16.mxu0 0
        %1718 = vmatpush1.bf16.msra.mxu0 0
        %1719 = vmatprep.subr.bf16.mxu0 0
        %1720 = vmatpush1.bf16.msra.mxu0 0
        %1721 = vmatprep.subr.bf16.mxu0 0
        %1722 = vmatpush1.bf16.msra.mxu0 0
        %1723 = vmatprep.subr.bf16.mxu0 0
        %1724 = vmatpush1.bf16.msra.mxu0 0
        %1725 = vmatprep.subr.bf16.mxu0 0
        %1726 = vmatpush1.bf16.msra.mxu0 0
        %1727 = vmatprep.subr.bf16.mxu0 0
        %1728 = vmatpush1.bf16.msra.mxu0 0
        %1729 = vmatprep.subr.bf16.mxu0 0
        %1730 = vmatpush1.bf16.msra.mxu0 0
        %1731 = vmatprep.subr.bf16.mxu0 0
        %1732 = vmatpush1.bf16.msra.mxu0 0
        %1733 = vmatprep.subr.bf16.mxu0 0
        %1734 = vmatpush1.bf16.msra.mxu0 0
        %1735 = vmatprep.subr.bf16.mxu0 0
        %1736 = vmatpush1.bf16.msra.mxu0 0
        %1737 = vmatprep.subr.bf16.mxu0 0
        %1738 = vmatpush1.bf16.msra.mxu0 0
        %1739 = vmatprep.subr.bf16.mxu0 0
        %1740 = vmatpush1.bf16.msra.mxu0 0
        %1741 = vmatprep.subr.bf16.mxu0 0
        %1742 = vmatpush1.bf16.msra.mxu0 0
        %1743 = vmatprep.subr.bf16.mxu0 0
        %1744 = vmatpush1.bf16.msra.mxu0 0
        %1745 = vmatprep.mubr.bf16.mxu0 0
        %1746 = vmatmul.mubr.bf16.gmra.mrb[0].mxu0 %v1663
        %v1747 = vpop.f32.mrb[0].mxu0
        %v1748 = vadd.f32 %v1660, %v1747
        %v1749 = vpop.f32.mrb[0].mxu0
        %v1750 = vpop.f32.mrb[0].mxu0
        %v1751 = vadd.f32 %v1660, %v1750
        %v1752 = vpop.f32.mrb[0].mxu0
        %1753 = vmatprep.mubr.bf16.mxu0 0
        %1754 = vmatmul.mubr.bf16.gmra.mrb[0].mxu0 %v1666
        %v1755 = vpop.f32.mrb[0].mxu0
        %v1756 = vadd.f32 %v1660, %v1755
        %v1757 = vpop.f32.mrb[0].mxu0
        %v1758 = vpop.f32.mrb[0].mxu0
        %v1759 = vadd.f32 %v1660, %v1758
        %v1760 = vpop.f32.mrb[0].mxu0
        %1761 = vmatprep.mubr.bf16.mxu0 0
        %1762 = vmatmul.mubr.bf16.gmra.mrb[0].mxu0 %v1669
        %v1763 = vpop.f32.mrb[0].mxu0
        %v1764 = vadd.f32 %v1660, %v1763
        %v1765 = vpop.f32.mrb[0].mxu0
        %v1766 = vpop.f32.mrb[0].mxu0
        %v1767 = vadd.f32 %v1660, %v1766
        %v1768 = vpop.f32.mrb[0].mxu0
        %1769 = vmatprep.mubr.bf16.mxu0 0
        %1770 = vmatmul.mubr.bf16.gmra.mrb[0].mxu0 %v1672
        %v1771 = vpop.f32.mrb[0].mxu0
        %v1772 = vadd.f32 %v1660, %v1771
        %v1773 = vpop.f32.mrb[0].mxu0
        %v1774 = vpop.f32.mrb[0].mxu0
        %v1775 = vadd.f32 %v1660, %v1774
        %v1776 = vpop.f32.mrb[0].mxu0
        %1777 = vmatprep.mubr.bf16.mxu0 0
        %1778 = vmatmul.mubr.bf16.gmra.mrb[0].mxu0 %v1675
        %v1779 = vpop.f32.mrb[0].mxu0
        %v1780 = vadd.f32 %v1660, %v1779
        %v1781 = vpop.f32.mrb[0].mxu0
        %v1782 = vpop.f32.mrb[0].mxu0
        %v1783 = vadd.f32 %v1660, %v1782
        %v1784 = vpop.f32.mrb[0].mxu0
        %1785 = vmatprep.mubr.bf16.mxu0 0
        %1786 = vmatmul.mubr.bf16.gmra.mrb[0].mxu0 %v1678
        %v1787 = vpop.f32.mrb[0].mxu0
        %v1788 = vadd.f32 %v1660, %v1787
        %v1789 = vpop.f32.mrb[0].mxu0
        %v1790 = vpop.f32.mrb[0].mxu0
        %v1791 = vadd.f32 %v1660, %v1790
        %v1792 = vpop.f32.mrb[0].mxu0
        %1793 = vmatprep.mubr.bf16.mxu0 0
        %1794 = vmatmul.mubr.bf16.gmra.mrb[0].mxu0 %v1681
        %v1795 = vpop.f32.mrb[0].mxu0
        %v1796 = vadd.f32 %v1660, %v1795
        %v1797 = vpop.f32.mrb[0].mxu0
        %v1798 = vpop.f32.mrb[0].mxu0
        %v1799 = vadd.f32 %v1660, %v1798
        %v1800 = vpop.f32.mrb[0].mxu0
        %1801 = vmatprep.mubr.bf16.mxu0 0
        %1802 = vmatmul.mubr.bf16.gmra.mrb[0].mxu0 %v1684
        %v1803 = vpop.f32.mrb[0].mxu0
        %v1804 = vadd.f32 %v1660, %v1803
        %v1805 = vpop.f32.mrb[0].mxu0
        %v1806 = vpop.f32.mrb[0].mxu0
        %v1807 = vadd.f32 %v1660, %v1806
        %v1808 = vpop.f32.mrb[0].mxu0
        %1809 = vmatprep.mubr.bf16.mxu0 0
        %1810 = vmatmul.mubr.bf16.gmra.mrb[0].mxu0 %v1687
        %v1811 = vpop.f32.mrb[0].mxu0
        %v1812 = vadd.f32 %v1660, %v1811
        %v1813 = vpop.f32.mrb[0].mxu0
        %v1814 = vpop.f32.mrb[0].mxu0
        %v1815 = vadd.f32 %v1660, %v1814
        %v1816 = vpop.f32.mrb[0].mxu0
        %1817 = vmatprep.mubr.bf16.mxu0 0
        %1818 = vmatmul.mubr.bf16.gmra.mrb[0].mxu0 %v1690
        %v1819 = vpop.f32.mrb[0].mxu0
        %v1820 = vadd.f32 %v1660, %v1819
        %v1821 = vpop.f32.mrb[0].mxu0
        %v1822 = vpop.f32.mrb[0].mxu0
        %v1823 = vadd.f32 %v1660, %v1822
        %v1824 = vpop.f32.mrb[0].mxu0
        %1825 = vmatprep.mubr.bf16.mxu0 0
        %1826 = vmatmul.mubr.bf16.gmra.mrb[0].mxu0 %v1693
        %v1827 = vpop.f32.mrb[0].mxu0
        %v1828 = vadd.f32 %v1660, %v1827
        %v1829 = vpop.f32.mrb[0].mxu0
        %v1830 = vpop.f32.mrb[0].mxu0
        %v1831 = vadd.f32 %v1660, %v1830
        %v1832 = vpop.f32.mrb[0].mxu0
        %1833 = vmatprep.mubr.bf16.mxu0 0
        %1834 = vmatmul.mubr.bf16.gmra.mrb[0].mxu0 %v1696
        %v1835 = vpop.f32.mrb[0].mxu0
        %v1836 = vadd.f32 %v1660, %v1835
        %v1837 = vpop.f32.mrb[0].mxu0
        %v1838 = vpop.f32.mrb[0].mxu0
        %v1839 = vadd.f32 %v1660, %v1838
        %v1840 = vpop.f32.mrb[0].mxu0
        %1841 = vmatprep.mubr.bf16.mxu0 0
        %1842 = vmatmul.mubr.bf16.gmra.mrb[0].mxu0 %v1699
        %v1843 = vpop.f32.mrb[0].mxu0
        %v1844 = vadd.f32 %v1660, %v1843
        %v1845 = vpop.f32.mrb[0].mxu0
        %v1846 = vpop.f32.mrb[0].mxu0
        %v1847 = vadd.f32 %v1660, %v1846
        %v1848 = vpop.f32.mrb[0].mxu0
        %1849 = vmatprep.mubr.bf16.mxu0 0
        %1850 = vmatmul.mubr.bf16.gmra.mrb[0].mxu0 %v1702
        %v1851 = vpop.f32.mrb[0].mxu0
        %v1852 = vadd.f32 %v1660, %v1851
        %v1853 = vpop.f32.mrb[0].mxu0
        %v1854 = vpop.f32.mrb[0].mxu0
        %v1855 = vadd.f32 %v1660, %v1854
        %v1856 = vpop.f32.mrb[0].mxu0
        %1857 = vmatprep.mubr.bf16.mxu0 0
        %1858 = vmatmul.mubr.bf16.gmra.mrb[0].mxu0 %v1705
        %v1859 = vpop.f32.mrb[0].mxu0
        %v1860 = vadd.f32 %v1660, %v1859
        %v1861 = vpop.f32.mrb[0].mxu0
        %v1862 = vpop.f32.mrb[0].mxu0
        %v1863 = vadd.f32 %v1660, %v1862
        %v1864 = vpop.f32.mrb[0].mxu0
        %1865 = vmatprep.mubr.bf16.mxu0 0
        %1866 = vmatmul.mubr.bf16.gmra.mrb[0].mxu0 %v1708
        %v1867 = vpop.f32.mrb[0].mxu0
        %v1868 = vadd.f32 %v1660, %v1867
        %v1869 = vpop.f32.mrb[0].mxu0
        %v1870 = vpop.f32.mrb[0].mxu0
        %v1871 = vadd.f32 %v1660, %v1870
        %v1872 = vpop.f32.mrb[0].mxu0
        %1873 = vdwg.mxu0
        %v1874 = vadd.f32 %v237, %v1748
        %v1875 = vadd.f32 %v238, %v1751
        %v1876 = vadd.f32 %v239, %v1756
        %v1877 = vadd.f32 %v240, %v1759
        %v1878 = vadd.f32 %v241, %v1764
        %v1879 = vadd.f32 %v242, %v1767
        %v1880 = vadd.f32 %v243, %v1772
        %v1881 = vadd.f32 %v244, %v1775
        %v1882 = vadd.f32 %v245, %v1780
        %v1883 = vadd.f32 %v246, %v1783
        %v1884 = vadd.f32 %v247, %v1788
        %v1885 = vadd.f32 %v248, %v1791
        %v1886 = vadd.f32 %v249, %v1796
        %v1887 = vadd.f32 %v250, %v1799
        %v1888 = vadd.f32 %v251, %v1804
        %v1889 = vadd.f32 %v252, %v1807
        %v1890 = vadd.f32 %v253, %v1812
        %v1891 = vadd.f32 %v254, %v1815
        %v1892 = vadd.f32 %v255, %v1820
        %v1893 = vadd.f32 %v256, %v1823
        %v1894 = vadd.f32 %v257, %v1828
        %v1895 = vadd.f32 %v258, %v1831
        %v1896 = vadd.f32 %v259, %v1836
        %v1897 = vadd.f32 %v260, %v1839
        %v1898 = vadd.f32 %v261, %v1844
        %v1899 = vadd.f32 %v262, %v1847
        %v1900 = vadd.f32 %v263, %v1852
        %v1901 = vadd.f32 %v264, %v1855
        %v1902 = vadd.f32 %v265, %v1860
        %v1903 = vadd.f32 %v266, %v1863
        %v1904 = vadd.f32 %v267, %v1868
        %v1905 = vadd.f32 %v268, %v1871
        %1906 = vst.msk [vmem:[%s235] sm:$0xff] %vm286, %v1874
        %1907 = vst.msk [vmem:[%s235 + $0x8] sm:$0xff] %vm286, %v1875
        %1908 = vst.msk [vmem:[%s235 + $0x10] sm:$0xff] %vm286, %v1876
        %1909 = vst.msk [vmem:[%s235 + $0x18] sm:$0xff] %vm286, %v1877
        %1910 = vst.msk [vmem:[%s235 + $0x20] sm:$0xff] %vm286, %v1878
        %1911 = vst.msk [vmem:[%s235 + $0x28] sm:$0xff] %vm286, %v1879
        %1912 = vst.msk [vmem:[%s235 + $0x30] sm:$0xff] %vm286, %v1880
        %1913 = vst.msk [vmem:[%s235 + $0x38] sm:$0xff] %vm286, %v1881
        %1914 = vst.msk [vmem:[%s235 + $0x40] sm:$0xff] %vm286, %v1882
        %1915 = vst.msk [vmem:[%s235 + $0x48] sm:$0xff] %vm286, %v1883
        %1916 = vst.msk [vmem:[%s235 + $0x50] sm:$0xff] %vm286, %v1884
        %1917 = vst.msk [vmem:[%s235 + $0x58] sm:$0xff] %vm286, %v1885
        %1918 = vst.msk [vmem:[%s235 + $0x60] sm:$0xff] %vm286, %v1886
        %1919 = vst.msk [vmem:[%s235 + $0x68] sm:$0xff] %vm286, %v1887
        %1920 = vst.msk [vmem:[%s235 + $0x70] sm:$0xff] %vm286, %v1888
        %1921 = vst.msk [vmem:[%s235 + $0x78] sm:$0xff] %vm286, %v1889
        %1922 = vst.msk [vmem:[%s235 + $0x80] sm:$0xff] %vm286, %v1890
        %1923 = vst.msk [vmem:[%s235 + $0x88] sm:$0xff] %vm286, %v1891
        %1924 = vst.msk [vmem:[%s235 + $0x90] sm:$0xff] %vm286, %v1892
        %1925 = vst.msk [vmem:[%s235 + $0x98] sm:$0xff] %vm286, %v1893
        %1926 = vst.msk [vmem:[%s235 + $0xa0] sm:$0xff] %vm286, %v1894
        %1927 = vst.msk [vmem:[%s235 + $0xa8] sm:$0xff] %vm286, %v1895
        %1928 = vst.msk [vmem:[%s235 + $0xb0] sm:$0xff] %vm286, %v1896
        %1929 = vst.msk [vmem:[%s235 + $0xb8] sm:$0xff] %vm286, %v1897
        %1930 = vst.msk [vmem:[%s235 + $0xc0] sm:$0xff] %vm286, %v1898
        %1931 = vst.msk [vmem:[%s235 + $0xc8] sm:$0xff] %vm286, %v1899
        %1932 = vst.msk [vmem:[%s235 + $0xd0] sm:$0xff] %vm286, %v1900
        %1933 = vst.msk [vmem:[%s235 + $0xd8] sm:$0xff] %vm286, %v1901
        %1934 = vst.msk [vmem:[%s235 + $0xe0] sm:$0xff] %vm286, %v1902
        %1935 = vst.msk [vmem:[%s235 + $0xe8] sm:$0xff] %vm286, %v1903
        %1936 = vst.msk [vmem:[%s235 + $0xf0] sm:$0xff] %vm286, %v1904
        %1937 = vst.msk [vmem:[%s235 + $0xf8] sm:$0xff] %vm286, %v1905
        %p1938 = scmp.lt.s32.totalorder %s17, 1
        %s1939 = scalar_select %p1938, %s17, 1
        %s1940 = smul.addr %s1939, 32
        %s1941 = smul.addr %s1940, 8
        %s1942 = scalar_lea.vmem %s4, %s1941
        // Predicated region
        $region49: #{mask_head_forward.8} parent=35 // pred_check
          %p1943 = pneg %p124
        $region50: #{mask_head_forward.8} parent=35 // pred_check_branch
          %1945 = sbr.rel (%p1943) target = $region52
        $region51: #{mask_head_forward.8} parent=35 // pred_region
          _
        $region52: #{mask_head_forward.8} parent=35 // pred_fallthru
          _
      $region36: #{mask_head_forward.8} parent=5 // pred_fallthru
        _
      %p1946 = scmp.le.s32.totalorder 2, %s12
      // Predicated region
      $region53: #{mask_head_forward.8} parent=5 // pred_check
        %p1947 = pneg %p1946
      $region54: #{mask_head_forward.8} parent=5 // pred_check_branch
        %1949 = sbr.rel (%p1947) target = $region56
      $region55: #{mask_head_forward.8} parent=5 // pred_region
        %s1950 = ssub.s32 %s12, 2
        // Predicated region
        $region57: #{mask_head_forward.8} parent=55 // pred_check
          %p1951 = pneg %p130
        $region58: #{mask_head_forward.8} parent=55 // pred_check_branch
          %1953 = sbr.rel (%p1951) target = $region60
        $region59: #{mask_head_forward.8} parent=55 // pred_region
          %p1954 = scmp.lt.s32.totalorder %s18, 1
          %s1955 = scalar_select %p1954, %s18, 1
          %s1956 = smul.addr %s1955, 32
          %s1957 = smul.addr %s1956, 8
          %s1958 = scalar_lea.vmem %s4, %s1957
        $region60: #{mask_head_forward.8} parent=55 // pred_fallthru
          _
      $region56: #{mask_head_forward.8} parent=5 // pred_fallthru
        _
    $region6: #{mask_head_forward.8} parent=1 // loop_footer
      %s16 = sadd.s32 1, %s12
    $region7: #{mask_head_forward.8} parent=1 // loop_footer_branch
      %11 = sbr.rel target = $region3
    $region8: #{mask_head_forward.8} parent=1 // loop_exit
      _
    %1959 = vsyncpa [#allocation3], 1
    %s1960 = scalar_lea.sflag [#allocation3], 1
    %1961 = vsyncpa %s1960, 1
    %1962 = vsyncpa [#allocation5], 1

// kernel: mask_head_forward.10
$region0: #{mask_head_forward.10}
  #allocation0 [shape = 'u32[]', space=smem, size = 0x4, offset = 0x4, fixed_abs, tag = 'smem constant byte address 0x4 - core index']
  #allocation1 [shape = 'u32[144,128]{1,0:T(1,128)}', space=vmem, size = 0x12000, scoped, tag = 'internal scratch']
  #allocation2 [shape = 'f32[18,64]{1,0:T(8,128)}', space=vmem, size = 0x3000, scoped, tag = 'scratch operand']
  %s0 = inlined_call_operand.vmem [shape: f32[2,16,64], index: 0, kind: input, shape index: {}]
  %s1 = inlined_call_operand.vmem [shape: bf16[2,3,64,64], index: 1, kind: input, shape index: {}]
  %s2 = inlined_call_operand.vmem [shape: f32[2,1,64], index: 2, kind: input, shape index: {}]
  %s3 = inlined_call_operand.vmem [shape: f32[2,16,64], index: 3, kind: output, shape index: {}]
  %s4 = sld [smem:[#allocation0]]
  $region45: #{mask_head_forward.10} parent=0
    _
  %s6 = ssub.s32 1, %s4
  %s7 = scalar_select 0, %s6, %s4
  loop: start=0, step=1, limit=4
  $region2: #{mask_head_forward.10} parent=0 // loop_pre_header
    _
  $region3: #{mask_head_forward.10} parent=0 // loop_header
    %s9 = sphi 0, %s13
    %p10 = scmp.ge.s32.totalorder %s9, 4
    %s19 = sphi 0, %s21
    %s22 = sphi 0, %s19
    %s23 = sphi 0, %s22
    %s39 = sphi 0, %s23
    %s43 = sphi 0, %s43
    %s45 = sphi 0, %s43
    %s46 = sphi 0, %s45
    %s60 = sphi 0, %s46
    %s64 = sphi 0, %s64
    %s66 = sphi 0, %s64
    %s67 = sphi 0, %s66
    %s81 = sphi 0, %s67
    %s87 = sphi 0, %s89
    %s90 = sphi 0, %s87
    %s91 = sphi 0, %s90
    %s107 = sphi 0, %s91
  $region4: #{mask_head_forward.10} parent=0 // loop_header_branch
    %12 = sbr.rel (%p10) target = $region8
  $region5: #{mask_head_forward.10} parent=0 // loop_body
    %s14 = ssub.s32 %s9, 1
    %s15 = ssub.s32 %s9, 2
    %s16 = sadd.s32 %s9, 1
    %s17 = ssub.s32 %s9, %s16
    %p18 = scmp.eq.s32.totalorder %s17, 0
    %s20 = sadd.s32 %s19, 1
    %s21 = scalar_select %p18, %s19, %s20
    %p24 = pneg %p18
    %p25 = scmp.eq.s32.totalorder %s9, 1
    %p26 = por %p24, %p25
    %p27 = scmp.ne.s32.totalorder %s19, %s22
    %p28 = scmp.eq.s32.totalorder %s9, 0
    %p29 = por %p27, %p28
    %p30 = scmp.ne.s32.totalorder %s19, %s22
    %p31 = scmp.eq.s32.totalorder %s14, 1
    %p32 = por %p30, %p31
    %p33 = scmp.ne.s32.totalorder %s22, %s23
    %p34 = scmp.eq.s32.totalorder %s14, 0
    %p35 = por %p33, %p34
    %p36 = scmp.ne.s32.totalorder %s22, %s23
    %p37 = scmp.eq.s32.totalorder %s15, 1
    %p38 = por %p36, %p37
    %p40 = scmp.ne.s32.totalorder %s23, %s39
    %p41 = scmp.eq.s32.totalorder %s15, 0
    %p42 = por %p40, %p41
    %s44 = sadd.s32 %s43, 1
    %p47 = scmp.eq.s32.totalorder %s9, 1
    %p48 = scmp.ne.s32.totalorder %s43, %s45
    %p49 = scmp.eq.s32.totalorder %s9, 0
    %p50 = por %p48, %p49
    %p51 = scmp.ne.s32.totalorder %s43, %s45
    %p52 = scmp.eq.s32.totalorder %s14, 1
    %p53 = por %p51, %p52
    %p54 = scmp.ne.s32.totalorder %s45, %s46
    %p55 = scmp.eq.s32.totalorder %s14, 0
    %p56 = por %p54, %p55
    %p57 = scmp.ne.s32.totalorder %s45, %s46
    %p58 = scmp.eq.s32.totalorder %s15, 1
    %p59 = por %p57, %p58
    %p61 = scmp.ne.s32.totalorder %s46, %s60
    %p62 = scmp.eq.s32.totalorder %s15, 0
    %p63 = por %p61, %p62
    %s65 = sadd.s32 %s64, 1
    %p68 = scmp.eq.s32.totalorder %s9, 1
    %p69 = scmp.ne.s32.totalorder %s64, %s66
    %p70 = scmp.eq.s32.totalorder %s9, 0
    %p71 = por %p69, %p70
    %p72 = scmp.ne.s32.totalorder %s64, %s66
    %p73 = scmp.eq.s32.totalorder %s14, 1
    %p74 = por %p72, %p73
    %p75 = scmp.ne.s32.totalorder %s66, %s67
    %p76 = scmp.eq.s32.totalorder %s14, 0
    %p77 = por %p75, %p76
    %p78 = scmp.ne.s32.totalorder %s66, %s67
    %p79 = scmp.eq.s32.totalorder %s15, 1
    %p80 = por %p78, %p79
    %p82 = scmp.ne.s32.totalorder %s67, %s81
    %p83 = scmp.eq.s32.totalorder %s15, 0
    %p84 = por %p82, %p83
    %s85 = ssub.s32 %s9, %s16
    %p86 = scmp.eq.s32.totalorder %s85, 0
    %s88 = sadd.s32 %s87, 1
    %s89 = scalar_select %p86, %s87, %s88
    %p92 = pneg %p86
    %p93 = scmp.eq.s32.totalorder %s9, 1
    %p94 = por %p92, %p93
    %p95 = scmp.ne.s32.totalorder %s87, %s90
    %p96 = scmp.eq.s32.totalorder %s9, 0
    %p97 = por %p95, %p96
    %p98 = scmp.ne.s32.totalorder %s87, %s90
    %p99 = scmp.eq.s32.totalorder %s14, 1
    %p100 = por %p98, %p99
    %p101 = scmp.ne.s32.totalorder %s90, %s91
    %p102 = scmp.eq.s32.totalorder %s14, 0
    %p103 = por %p101, %p102
    %p104 = scmp.ne.s32.totalorder %s90, %s91
    %p105 = scmp.eq.s32.totalorder %s15, 1
    %p106 = por %p104, %p105
    %p108 = scmp.ne.s32.totalorder %s91, %s107
    %p109 = scmp.eq.s32.totalorder %s15, 0
    %p110 = por %p108, %p109
    %p111 = scmp.le.s32.totalorder 1, %s9
    %p112 = scmp.lt.s32.totalorder %s9, 3
    %p113 = pnand %p111, %p112
    %p114 = pneg %p113
    // Predicated region
    $region9: #{mask_head_forward.10} parent=5 // pred_check
      _
    $region10: #{mask_head_forward.10} parent=5 // pred_check_branch
      %116 = sbr.rel (%p113) target = $region12
    $region11: #{mask_head_forward.10} parent=5 // pred_region
      %s117 = ssub.s32 %s9, 1
      // Predicated region
      $region13: #{mask_head_forward.10} parent=11 // pred_check
        %p118 = pneg %p56
      $region14: #{mask_head_forward.10} parent=11 // pred_check_branch
        %120 = sbr.rel (%p118) target = $region16
      $region15: #{mask_head_forward.10} parent=11 // pred_region
        _
      $region16: #{mask_head_forward.10} parent=11 // pred_fallthru
        _
      // Predicated region
      $region17: #{mask_head_forward.10} parent=11 // pred_check
        %p121 = pneg %p77
      $region18: #{mask_head_forward.10} parent=11 // pred_check_branch
        %123 = sbr.rel (%p121) target = $region20
      $region19: #{mask_head_forward.10} parent=11 // pred_region
        _
      $region20: #{mask_head_forward.10} parent=11 // pred_fallthru
        _
    $region12: #{mask_head_forward.10} parent=5 // pred_fallthru
      _
    %p124 = scmp.lt.s32.totalorder %s9, 2
    // Predicated region
    $region21: #{mask_head_forward.10} parent=5 // pred_check
      %p125 = pneg %p124
    $region22: #{mask_head_forward.10} parent=5 // pred_check_branch
      %127 = sbr.rel (%p125) target = $region24
    $region23: #{mask_head_forward.10} parent=5 // pred_region
      // Predicated region
      $region25: #{mask_head_forward.10} parent=23 // pred_check
        %p128 = pneg %p29
      $region26: #{mask_head_forward.10} parent=23 // pred_check_branch
        %130 = sbr.rel (%p128) target = $region28
      $region27: #{mask_head_forward.10} parent=23 // pred_region
        %p131 = scmp.lt.s32.totalorder %s9, 1
        %s132 = scalar_select %p131, %s9, 1
        %s133 = smul.addr %s132, 2
        %s134 = smul.addr %s133, 8
        %s135 = scalar_lea.vmem %s0, %s134
      $region28: #{mask_head_forward.10} parent=23 // pred_fallthru
        _
    $region24: #{mask_head_forward.10} parent=5 // pred_fallthru
      _
    %p136 = scmp.le.s32.totalorder 1, %s9
    %p137 = scmp.lt.s32.totalorder %s9, 3
    %p138 = pnand %p136, %p137
    %p139 = pneg %p138
    // Predicated region
    $region29: #{mask_head_forward.10} parent=5 // pred_check
      _
    $region30: #{mask_head_forward.10} parent=5 // pred_check_branch
      %141 = sbr.rel (%p138) target = $region32
    $region31: #{mask_head_forward.10} parent=5 // pred_region
      %s142 = ssub.s32 %s9, 1
      %p143 = scmp.lt.s32.totalorder %s14, 1
      %s144 = scalar_select %p143, %s14, 1
      %s145 = smul.addr %s144, 2
      %s146 = smul.addr %s145, 8
      %s147 = scalar_lea.vmem %s0, %s146
      %p148 = pneg %p35
      %p149 = pneg %p32
      %p150 = pneg %p56
      %p151 = pneg %p53
      %p152 = pneg %p77
      %p153 = pneg %p74
      %p154 = pneg %p103
      %p155 = pneg %p100
      %p156 = scmp.lt.s32.totalorder %s14, 1
      %s157 = scalar_select %p156, %s14, 1
      %s158 = smul.addr %s157, 2
      %s159 = smul.addr %s158, 8
      %s160 = scalar_lea.vmem %s3, %s159
      %p161 = scmp.lt.s32.totalorder %s14, 1
      %s162 = scalar_select %p161, %s14, 1
      %s163 = smul.addr %s162, 2
      %s164 = smul.addr %s163, 8
      %s165 = scalar_lea.vmem %s0, %s164
      %p166 = scmp.lt.s32.totalorder %s14, 1
      %s167 = scalar_select %p166, %s14, 1
      %s168 = smul.addr %s167, 2
      %s169 = smul.addr %s168, 8
      %s170 = scalar_lea.vmem %s3, %s169
      %vm172 = vcmask 523264
      %173 = vst.msk [vmem:[#allocation2] sm:$0xff] %vm172, 0.0
      %174 = vst.msk [vmem:[#allocation2 + $0x8] sm:$0xff] %vm172, 0.0
      %vm175 = vcmask 517120
      %176 = vst.msk [vmem:[#allocation2 + $0x10] sm:$0x3] %vm175, 0.0
      %v177 = vld [vmem:[%s165] sm:$0xff]
      %v178 = vld [vmem:[%s165 + $0x8] sm:$0xff]
      %179 = vst.msk [vmem:[#allocation2 + $0x1] sm:$0xff] %vm172, %v177
      %180 = vst.msk [vmem:[#allocation2 + $0x9] sm:$0xff] %vm172, %v178
      %v181 = vld [vmem:[#allocation2] sm:$0xff]
      %v182 = vld [vmem:[#allocation2 + $0x8] sm:$0xff]
      %v183 = vpack.c.bf16 %v182, %v181
      %v184 = vld [vmem:[%s1] sm:$0xf]
      %v185 = vld [vmem:[%s1 + $0x4] sm:$0xf]
      %v186 = vld [vmem:[%s1 + $0x8] sm:$0xf]
      %v187 = vld [vmem:[%s1 + $0xc] sm:$0xf]
      %v188 = vld [vmem:[%s1 + $0x10] sm:$0xf]
      %v189 = vld [vmem:[%s1 + $0x14] sm:$0xf]
      %v190 = vld [vmem:[%s1 + $0x18] sm:$0xf]
      %v191 = vld [vmem:[%s1 + $0x1c] sm:$0xf]
      %v192 = vld [vmem:[#allocation2 + $0x1] sm:$0xff]
      %v193 = vld [vmem:[#allocation2 + $0x9] sm:$0xff]
      %v194 = vpack.c.bf16 %v193, %v192
      %s195 = scalar_lea.vmem %s1, 32
      %v196 = vld [vmem:[%s195] sm:$0xf]
      %v197 = vld [vmem:[%s195 + $0x4] sm:$0xf]
      %v198 = vld [vmem:[%s195 + $0x8] sm:$0xf]
      %v199 = vld [vmem:[%s195 + $0xc] sm:$0xf]
      %v200 = vld [vmem:[%s195 + $0x10] sm:$0xf]
      %v201 = vld [vmem:[%s195 + $0x14] sm:$0xf]
      %v202 = vld [vmem:[%s195 + $0x18] sm:$0xf]
      %v203 = vld [vmem:[%s195 + $0x1c] sm:$0xf]
      %v212 = vunpack.c.l.b16 %v196
      %v213 = vunpack.c.l.b16 %v197
      %v214 = vunpack.c.l.b16 %v198
      %v215 = vunpack.c.l.b16 %v199
      %v216 = vunpack.c.l.b16 %v200
      %v217 = vunpack.c.l.b16 %v201
      %v218 = vunpack.c.l.b16 %v202
      %v219 = vunpack.c.l.b16 %v203
      %v220 = vpack.c.b16 %v213, %v212
      %v221 = vpack.c.b16 %v215, %v214
      %v222 = vpack.c.b16 %v217, %v216
      %v223 = vpack.c.b16 %v219, %v218
      %v229 = vsel %vm172, %v194, 0
      %231 = vmatprep.subr.bf16.mxu0 0
      %232 = vmatpush1.bf16.msra.mxu0 %v220
      %233 = vmatprep.subr.bf16.mxu0 0
      %234 = vmatpush1.bf16.msra.mxu0 %v221
      %235 = vmatprep.subr.bf16.mxu0 0
      %236 = vmatpush1.bf16.msra.mxu0 %v222
      %237 = vmatprep.subr.bf16.mxu0 0
      %238 = vmatpush1.bf16.msra.mxu0 %v223
      %239 = vmatprep.subr.bf16.mxu0 0
      %240 = vmatpush1.bf16.msra.mxu0 0
      %241 = vmatprep.subr.bf16.mxu0 0
      %242 = vmatpush1.bf16.msra.mxu0 0
      %243 = vmatprep.subr.bf16.mxu0 0
      %244 = vmatpush1.bf16.msra.mxu0 0
      %245 = vmatprep.subr.bf16.mxu0 0
      %246 = vmatpush1.bf16.msra.mxu0 0
      %247 = vmatprep.subr.bf16.mxu0 0
      %248 = vmatpush1.bf16.msra.mxu0 0
      %249 = vmatprep.subr.bf16.mxu0 0
      %250 = vmatpush1.bf16.msra.mxu0 0
      %251 = vmatprep.subr.bf16.mxu0 0
      %252 = vmatpush1.bf16.msra.mxu0 0
      %253 = vmatprep.subr.bf16.mxu0 0
      %254 = vmatpush1.bf16.msra.mxu0 0
      %255 = vmatprep.subr.bf16.mxu0 0
      %256 = vmatpush1.bf16.msra.mxu0 0
      %257 = vmatprep.subr.bf16.mxu0 0
      %258 = vmatpush1.bf16.msra.mxu0 0
      %259 = vmatprep.subr.bf16.mxu0 0
      %260 = vmatpush1.bf16.msra.mxu0 0
      %261 = vmatprep.subr.bf16.mxu0 0
      %262 = vmatpush1.bf16.msra.mxu0 0
      %263 = vmatprep.mubr.bf16.mxu0 0
      %264 = vmatmul.mubr.bf16.gmra.mrb[0].mxu0 %v229
      %v265 = vpop.f32.mrb[0].mxu0
      %v266 = vadd.f32 0.0, %v265
      %v267 = vpop.f32.mrb[0].mxu0
      %v268 = vpop.f32.mrb[0].mxu0
      %v269 = vadd.f32 0.0, %v268
      %v270 = vpop.f32.mrb[0].mxu0
      %271 = vdwg.mxu0
      %v280 = vunpack.c.l.b16 %v184
      %v281 = vunpack.c.l.b16 %v185
      %v282 = vunpack.c.l.b16 %v186
      %v283 = vunpack.c.l.b16 %v187
      %v284 = vunpack.c.l.b16 %v188
      %v285 = vunpack.c.l.b16 %v189
      %v286 = vunpack.c.l.b16 %v190
      %v287 = vunpack.c.l.b16 %v191
      %v288 = vpack.c.b16 %v281, %v280
      %v289 = vpack.c.b16 %v283, %v282
      %v290 = vpack.c.b16 %v285, %v284
      %v291 = vpack.c.b16 %v287, %v286
      %v297 = vsel %vm172, %v183, 0
      %299 = vmatprep.subr.bf16.mxu0 0
      %300 = vmatpush1.bf16.msra.mxu0 %v288
      %301 = vmatprep.subr.bf16.mxu0 0
      %302 = vmatpush1.bf16.msra.mxu0 %v289
      %303 = vmatprep.subr.bf16.mxu0 0
      %304 = vmatpush1.bf16.msra.mxu0 %v290
      %305 = vmatprep.subr.bf16.mxu0 0
      %306 = vmatpush1.bf16.msra.mxu0 %v291
      %307 = vmatprep.subr.bf16.mxu0 0
      %308 = vmatpush1.bf16.msra.mxu0 0
      %309 = vmatprep.subr.bf16.mxu0 0
      %310 = vmatpush1.bf16.msra.mxu0 0
      %311 = vmatprep.subr.bf16.mxu0 0
      %312 = vmatpush1.bf16.msra.mxu0 0
      %313 = vmatprep.subr.bf16.mxu0 0
      %314 = vmatpush1.bf16.msra.mxu0 0
      %315 = vmatprep.subr.bf16.mxu0 0
      %316 = vmatpush1.bf16.msra.mxu0 0
      %317 = vmatprep.subr.bf16.mxu0 0
      %318 = vmatpush1.bf16.msra.mxu0 0
      %319 = vmatprep.subr.bf16.mxu0 0
      %320 = vmatpush1.bf16.msra.mxu0 0
      %321 = vmatprep.subr.bf16.mxu0 0
      %322 = vmatpush1.bf16.msra.mxu0 0
      %323 = vmatprep.subr.bf16.mxu0 0
      %324 = vmatpush1.bf16.msra.mxu0 0
      %325 = vmatprep.subr.bf16.mxu0 0
      %326 = vmatpush1.bf16.msra.mxu0 0
      %327 = vmatprep.subr.bf16.mxu0 0
      %328 = vmatpush1.bf16.msra.mxu0 0
      %329 = vmatprep.subr.bf16.mxu0 0
      %330 = vmatpush1.bf16.msra.mxu0 0
      %331 = vmatprep.mubr.bf16.mxu0 0
      %332 = vmatmul.mubr.bf16.gmra.mrb[0].mxu0 %v297
      %v333 = vpop.f32.mrb[0].mxu0
      %v334 = vadd.f32 %v266, %v333
      %v335 = vpop.f32.mrb[0].mxu0
      %v336 = vpop.f32.mrb[0].mxu0
      %v337 = vadd.f32 %v269, %v336
      %v338 = vpop.f32.mrb[0].mxu0
      %339 = vdwg.mxu0
      %v340 = vld [vmem:[#allocation2 + $0x2] sm:$0xff]
      %v341 = vld [vmem:[#allocation2 + $0xa] sm:$0xff]
      %v342 = vpack.c.bf16 %v341, %v340
      %s343 = scalar_lea.vmem %s1, 64
      %v344 = vld [vmem:[%s343] sm:$0xf]
      %v345 = vld [vmem:[%s343 + $0x4] sm:$0xf]
      %v346 = vld [vmem:[%s343 + $0x8] sm:$0xf]
      %v347 = vld [vmem:[%s343 + $0xc] sm:$0xf]
      %v348 = vld [vmem:[%s343 + $0x10] sm:$0xf]
      %v349 = vld [vmem:[%s343 + $0x14] sm:$0xf]
      %v350 = vld [vmem:[%s343 + $0x18] sm:$0xf]
      %v351 = vld [vmem:[%s343 + $0x1c] sm:$0xf]
      %v360 = vunpack.c.l.b16 %v344
      %v361 = vunpack.c.l.b16 %v345
      %v362 = vunpack.c.l.b16 %v346
      %v363 = vunpack.c.l.b16 %v347
      %v364 = vunpack.c.l.b16 %v348
      %v365 = vunpack.c.l.b16 %v349
      %v366 = vunpack.c.l.b16 %v350
      %v367 = vunpack.c.l.b16 %v351
      %v368 = vpack.c.b16 %v361, %v360
      %v369 = vpack.c.b16 %v363, %v362
      %v370 = vpack.c.b16 %v365, %v364
      %v371 = vpack.c.b16 %v367, %v366
      %v377 = vsel %vm172, %v342, 0
      %379 = vmatprep.subr.bf16.mxu0 0
      %380 = vmatpush1.bf16.msra.mxu0 %v368
      %381 = vmatprep.subr.bf16.mxu0 0
      %382 = vmatpush1.bf16.msra.mxu0 %v369
      %383 = vmatprep.subr.bf16.mxu0 0
      %384 = vmatpush1.bf16.msra.mxu0 %v370
      %385 = vmatprep.subr.bf16.mxu0 0
      %386 = vmatpush1.bf16.msra.mxu0 %v371
      %387 = vmatprep.subr.bf16.mxu0 0
      %388 = vmatpush1.bf16.msra.mxu0 0
      %389 = vmatprep.subr.bf16.mxu0 0
      %390 = vmatpush1.bf16.msra.mxu0 0
      %391 = vmatprep.subr.bf16.mxu0 0
      %392 = vmatpush1.bf16.msra.mxu0 0
      %393 = vmatprep.subr.bf16.mxu0 0
      %394 = vmatpush1.bf16.msra.mxu0 0
      %395 = vmatprep.subr.bf16.mxu0 0
      %396 = vmatpush1.bf16.msra.mxu0 0
      %397 = vmatprep.subr.bf16.mxu0 0
      %398 = vmatpush1.bf16.msra.mxu0 0
      %399 = vmatprep.subr.bf16.mxu0 0
      %400 = vmatpush1.bf16.msra.mxu0 0
      %401 = vmatprep.subr.bf16.mxu0 0
      %402 = vmatpush1.bf16.msra.mxu0 0
      %403 = vmatprep.subr.bf16.mxu0 0
      %404 = vmatpush1.bf16.msra.mxu0 0
      %405 = vmatprep.subr.bf16.mxu0 0
      %406 = vmatpush1.bf16.msra.mxu0 0
      %407 = vmatprep.subr.bf16.mxu0 0
      %408 = vmatpush1.bf16.msra.mxu0 0
      %409 = vmatprep.subr.bf16.mxu0 0
      %410 = vmatpush1.bf16.msra.mxu0 0
      %411 = vmatprep.mubr.bf16.mxu0 0
      %412 = vmatmul.mubr.bf16.gmra.mrb[0].mxu0 %v377
      %v413 = vpop.f32.mrb[0].mxu0
      %v414 = vadd.f32 0.0, %v413
      %v415 = vpop.f32.mrb[0].mxu0
      %v416 = vpop.f32.mrb[0].mxu0
      %v417 = vadd.f32 0.0, %v416
      %v418 = vpop.f32.mrb[0].mxu0
      %419 = vdwg.mxu0
      %v420 = vadd.f32 %v334, %v414
      %v421 = vadd.f32 %v337, %v417
      %v422 = vld [vmem:[%s2] sm:$0x1]
      %v424 = vlaneseq
      %v425 = vshrl.u32 %v424, 7
      %v426 = vsub.s32 0, %v425
      %v427 = vrot.slane %v422, %v426
      %v429 = vadd.f32 %v420, %v427
      %v430 = vadd.f32 %v421, %v427
      %v431 = vmax.f32 %v429, 0.0
      %v432 = vmax.f32 %v430, 0.0
      %433 = vst.msk [vmem:[#allocation2 + $0x1] sm:$0xff] %vm172, %v431
      %434 = vst.msk [vmem:[#allocation2 + $0x9] sm:$0xff] %vm172, %v432
      %v435 = vld [vmem:[#allocation2] sm:$0xff]
      %v436 = vld [vmem:[#allocation2 + $0x8] sm:$0xff]
      %v437 = vpack.c.bf16 %v436, %v435
      %s438 = scalar_lea.vmem %s1, 96
      %v439 = vld [vmem:[%s438] sm:$0xf]
      %v440 = vld [vmem:[%s438 + $0x4] sm:$0xf]
      %v441 = vld [vmem:[%s438 + $0x8] sm:$0xf]
      %v442 = vld [vmem:[%s438 + $0xc] sm:$0xf]
      %v443 = vld [vmem:[%s438 + $0x10] sm:$0xf]
      %v444 = vld [vmem:[%s438 + $0x14] sm:$0xf]
      %v445 = vld [vmem:[%s438 + $0x18] sm:$0xf]
      %v446 = vld [vmem:[%s438 + $0x1c] sm:$0xf]
      %v447 = vld [vmem:[#allocation2 + $0x1] sm:$0xff]
      %v448 = vld [vmem:[#allocation2 + $0x9] sm:$0xff]
      %v449 = vpack.c.bf16 %v448, %v447
      %s450 = scalar_lea.vmem %s1, 128
      %v451 = vld [vmem:[%s450] sm:$0xf]
      %v452 = vld [vmem:[%s450 + $0x4] sm:$0xf]
      %v453 = vld [vmem:[%s450 + $0x8] sm:$0xf]
      %v454 = vld [vmem:[%s450 + $0xc] sm:$0xf]
      %v455 = vld [vmem:[%s450 + $0x10] sm:$0xf]
      %v456 = vld [vmem:[%s450 + $0x14] sm:$0xf]
      %v457 = vld [vmem:[%s450 + $0x18] sm:$0xf]
      %v458 = vld [vmem:[%s450 + $0x1c] sm:$0xf]
      %v467 = vunpack.c.l.b16 %v451
      %v468 = vunpack.c.l.b16 %v452
      %v469 = vunpack.c.l.b16 %v453
      %v470 = vunpack.c.l.b16 %v454
      %v471 = vunpack.c.l.b16 %v455
      %v472 = vunpack.c.l.b16 %v456
      %v473 = vunpack.c.l.b16 %v457
      %v474 = vunpack.c.l.b16 %v458
      %v475 = vpack.c.b16 %v468, %v467
      %v476 = vpack.c.b16 %v470, %v469
      %v477 = vpack.c.b16 %v472, %v471
      %v478 = vpack.c.b16 %v474, %v473
      %v484 = vsel %vm172, %v449, 0
      %486 = vmatprep.subr.bf16.mxu0 0
      %487 = vmatpush1.bf16.msra.mxu0 %v475
      %488 = vmatprep.subr.bf16.mxu0 0
      %489 = vmatpush1.bf16.msra.mxu0 %v476
      %490 = vmatprep.subr.bf16.mxu0 0
      %491 = vmatpush1.bf16.msra.mxu0 %v477
      %492 = vmatprep.subr.bf16.mxu0 0
      %493 = vmatpush1.bf16.msra.mxu0 %v478
      %494 = vmatprep.subr.bf16.mxu0 0
      %495 = vmatpush1.bf16.msra.mxu0 0
      %496 = vmatprep.subr.bf16.mxu0 0
      %497 = vmatpush1.bf16.msra.mxu0 0
      %498 = vmatprep.subr.bf16.mxu0 0
      %499 = vmatpush1.bf16.msra.mxu0 0
      %500 = vmatprep.subr.bf16.mxu0 0
      %501 = vmatpush1.bf16.msra.mxu0 0
      %502 = vmatprep.subr.bf16.mxu0 0
      %503 = vmatpush1.bf16.msra.mxu0 0
      %504 = vmatprep.subr.bf16.mxu0 0
      %505 = vmatpush1.bf16.msra.mxu0 0
      %506 = vmatprep.subr.bf16.mxu0 0
      %507 = vmatpush1.bf16.msra.mxu0 0
      %508 = vmatprep.subr.bf16.mxu0 0
      %509 = vmatpush1.bf16.msra.mxu0 0
      %510 = vmatprep.subr.bf16.mxu0 0
      %511 = vmatpush1.bf16.msra.mxu0 0
      %512 = vmatprep.subr.bf16.mxu0 0
      %513 = vmatpush1.bf16.msra.mxu0 0
      %514 = vmatprep.subr.bf16.mxu0 0
      %515 = vmatpush1.bf16.msra.mxu0 0
      %516 = vmatprep.subr.bf16.mxu0 0
      %517 = vmatpush1.bf16.msra.mxu0 0
      %518 = vmatprep.mubr.bf16.mxu0 0
      %519 = vmatmul.mubr.bf16.gmra.mrb[0].mxu0 %v484
      %v520 = vpop.f32.mrb[0].mxu0
      %v521 = vadd.f32 0.0, %v520
      %v522 = vpop.f32.mrb[0].mxu0
      %v523 = vpop.f32.mrb[0].mxu0
      %v524 = vadd.f32 0.0, %v523
      %v525 = vpop.f32.mrb[0].mxu0
      %526 = vdwg.mxu0
      %v535 = vunpack.c.l.b16 %v439
      %v536 = vunpack.c.l.b16 %v440
      %v537 = vunpack.c.l.b16 %v441
      %v538 = vunpack.c.l.b16 %v442
      %v539 = vunpack.c.l.b16 %v443
      %v540 = vunpack.c.l.b16 %v444
      %v541 = vunpack.c.l.b16 %v445
      %v542 = vunpack.c.l.b16 %v446
      %v543 = vpack.c.b16 %v536, %v535
      %v544 = vpack.c.b16 %v538, %v537
      %v545 = vpack.c.b16 %v540, %v539
      %v546 = vpack.c.b16 %v542, %v541
      %v552 = vsel %vm172, %v437, 0
      %554 = vmatprep.subr.bf16.mxu0 0
      %555 = vmatpush1.bf16.msra.mxu0 %v543
      %556 = vmatprep.subr.bf16.mxu0 0
      %557 = vmatpush1.bf16.msra.mxu0 %v544
      %558 = vmatprep.subr.bf16.mxu0 0
      %559 = vmatpush1.bf16.msra.mxu0 %v545
      %560 = vmatprep.subr.bf16.mxu0 0
      %561 = vmatpush1.bf16.msra.mxu0 %v546
      %562 = vmatprep.subr.bf16.mxu0 0
      %563 = vmatpush1.bf16.msra.mxu0 0
      %564 = vmatprep.subr.bf16.mxu0 0
      %565 = vmatpush1.bf16.msra.mxu0 0
      %566 = vmatprep.subr.bf16.mxu0 0
      %567 = vmatpush1.bf16.msra.mxu0 0
      %568 = vmatprep.subr.bf16.mxu0 0
      %569 = vmatpush1.bf16.msra.mxu0 0
      %570 = vmatprep.subr.bf16.mxu0 0
      %571 = vmatpush1.bf16.msra.mxu0 0
      %572 = vmatprep.subr.bf16.mxu0 0
      %573 = vmatpush1.bf16.msra.mxu0 0
      %574 = vmatprep.subr.bf16.mxu0 0
      %575 = vmatpush1.bf16.msra.mxu0 0
      %576 = vmatprep.subr.bf16.mxu0 0
      %577 = vmatpush1.bf16.msra.mxu0 0
      %578 = vmatprep.subr.bf16.mxu0 0
      %579 = vmatpush1.bf16.msra.mxu0 0
      %580 = vmatprep.subr.bf16.mxu0 0
      %581 = vmatpush1.bf16.msra.mxu0 0
      %582 = vmatprep.subr.bf16.mxu0 0
      %583 = vmatpush1.bf16.msra.mxu0 0
      %584 = vmatprep.subr.bf16.mxu0 0
      %585 = vmatpush1.bf16.msra.mxu0 0
      %586 = vmatprep.mubr.bf16.mxu0 0
      %587 = vmatmul.mubr.bf16.gmra.mrb[0].mxu0 %v552
      %v588 = vpop.f32.mrb[0].mxu0
      %v589 = vadd.f32 %v521, %v588
      %v590 = vpop.f32.mrb[0].mxu0
      %v591 = vpop.f32.mrb[0].mxu0
      %v592 = vadd.f32 %v524, %v591
      %v593 = vpop.f32.mrb[0].mxu0
      %594 = vdwg.mxu0
      %v595 = vld [vmem:[#allocation2 + $0x2] sm:$0xff]
      %v596 = vld [vmem:[#allocation2 + $0xa] sm:$0xff]
      %v597 = vpack.c.bf16 %v596, %v595
      %s598 = scalar_lea.vmem %s1, 160
      %v599 = vld [vmem:[%s598] sm:$0xf]
      %v600 = vld [vmem:[%s598 + $0x4] sm:$0xf]
      %v601 = vld [vmem:[%s598 + $0x8] sm:$0xf]
      %v602 = vld [vmem:[%s598 + $0xc] sm:$0xf]
      %v603 = vld [vmem:[%s598 + $0x10] sm:$0xf]
      %v604 = vld [vmem:[%s598 + $0x14] sm:$0xf]
      %v605 = vld [vmem:[%s598 + $0x18] sm:$0xf]
      %v606 = vld [vmem:[%s598 + $0x1c] sm:$0xf]
      %v615 = vunpack.c.l.b16 %v599
      %v616 = vunpack.c.l.b16 %v600
      %v617 = vunpack.c.l.b16 %v601
      %v618 = vunpack.c.l.b16 %v602
      %v619 = vunpack.c.l.b16 %v603
      %v620 = vunpack.c.l.b16 %v604
      %v621 = vunpack.c.l.b16 %v605
      %v622 = vunpack.c.l.b16 %v606
      %v623 = vpack.c.b16 %v616, %v615
      %v624 = vpack.c.b16 %v618, %v617
      %v625 = vpack.c.b16 %v620, %v619
      %v626 = vpack.c.b16 %v622, %v621
      %v632 = vsel %vm172, %v597, 0
      %634 = vmatprep.subr.bf16.mxu0 0
      %635 = vmatpush1.bf16.msra.mxu0 %v623
      %636 = vmatprep.subr.bf16.mxu0 0
      %637 = vmatpush1.bf16.msra.mxu0 %v624
      %638 = vmatprep.subr.bf16.mxu0 0
      %639 = vmatpush1.bf16.msra.mxu0 %v625
      %640 = vmatprep.subr.bf16.mxu0 0
      %641 = vmatpush1.bf16.msra.mxu0 %v626
      %642 = vmatprep.subr.bf16.mxu0 0
      %643 = vmatpush1.bf16.msra.mxu0 0
      %644 = vmatprep.subr.bf16.mxu0 0
      %645 = vmatpush1.bf16.msra.mxu0 0
      %646 = vmatprep.subr.bf16.mxu0 0
      %647 = vmatpush1.bf16.msra.mxu0 0
      %648 = vmatprep.subr.bf16.mxu0 0
      %649 = vmatpush1.bf16.msra.mxu0 0
      %650 = vmatprep.subr.bf16.mxu0 0
      %651 = vmatpush1.bf16.msra.mxu0 0
      %652 = vmatprep.subr.bf16.mxu0 0
      %653 = vmatpush1.bf16.msra.mxu0 0
      %654 = vmatprep.subr.bf16.mxu0 0
      %655 = vmatpush1.bf16.msra.mxu0 0
      %656 = vmatprep.subr.bf16.mxu0 0
      %657 = vmatpush1.bf16.msra.mxu0 0
      %658 = vmatprep.subr.bf16.mxu0 0
      %659 = vmatpush1.bf16.msra.mxu0 0
      %660 = vmatprep.subr.bf16.mxu0 0
      %661 = vmatpush1.bf16.msra.mxu0 0
      %662 = vmatprep.subr.bf16.mxu0 0
      %663 = vmatpush1.bf16.msra.mxu0 0
      %664 = vmatprep.subr.bf16.mxu0 0
      %665 = vmatpush1.bf16.msra.mxu0 0
      %666 = vmatprep.mubr.bf16.mxu0 0
      %667 = vmatmul.mubr.bf16.gmra.mrb[0].mxu0 %v632
      %v668 = vpop.f32.mrb[0].mxu0
      %v669 = vadd.f32 0.0, %v668
      %v670 = vpop.f32.mrb[0].mxu0
      %v671 = vpop.f32.mrb[0].mxu0
      %v672 = vadd.f32 0.0, %v671
      %v673 = vpop.f32.mrb[0].mxu0
      %674 = vdwg.mxu0
      %v675 = vadd.f32 %v589, %v669
      %v676 = vadd.f32 %v592, %v672
      %s677 = scalar_lea.vmem %s2, 1
      %v678 = vld [vmem:[%s677] sm:$0x1]
      %v680 = vlaneseq
      %v681 = vshrl.u32 %v680, 7
      %v682 = vsub.s32 0, %v681
      %v683 = vrot.slane %v678, %v682
      %v685 = vadd.f32 %v675, %v683
      %v686 = vadd.f32 %v676, %v683
      %v687 = vmax.f32 %v685, 0.0
      %v688 = vmax.f32 %v686, 0.0
      %689 = vst.msk [vmem:[%s170] sm:$0xff] %vm172, %v687
      %690 = vst.msk [vmem:[%s170 + $0x8] sm:$0xff] %vm172, %v688
      %p691 = scmp.lt.s32.totalorder %s14, 1
      %s692 = scalar_select %p691, %s14, 1
      %s693 = smul.addr %s692, 2
      %s694 = smul.addr %s693, 8
      %s695 = scalar_lea.vmem %s3, %s694
      // Predicated region
      $region33: #{mask_head_forward.10} parent=31 // pred_check
        %p696 = pneg %p100
      $region34: #{mask_head_forward.10} parent=31 // pred_check_branch
        %698 = sbr.rel (%p696) target = $region36
      $region35: #{mask_head_forward.10} parent=31 // pred_region
        _
      $region36: #{mask_head_forward.10} parent=31 // pred_fallthru
        _
    $region32: #{mask_head_forward.10} parent=5 // pred_fallthru
      _
    %p699 = scmp.le.s32.totalorder 2, %s9
    // Predicated region
    $region37: #{mask_head_forward.10} parent=5 // pred_check
      %p700 = pneg %p699
    $region38: #{mask_head_forward.10} parent=5 // pred_check_branch
      %702 = sbr.rel (%p700) target = $region40
    $region39: #{mask_head_forward.10} parent=5 // pred_region
      %s703 = ssub.s32 %s9, 2
      // Predicated region
      $region41: #{mask_head_forward.10} parent=39 // pred_check
        %p704 = pneg %p106
      $region42: #{mask_head_forward.10} parent=39 // pred_check_branch
        %706 = sbr.rel (%p704) target = $region44
      $region43: #{mask_head_forward.10} parent=39 // pred_region
        %p707 = scmp.lt.s32.totalorder %s15, 1
        %s708 = scalar_select %p707, %s15, 1
        %s709 = smul.addr %s708, 2
        %s710 = smul.addr %s709, 8
        %s711 = scalar_lea.vmem %s3, %s710
      $region44: #{mask_head_forward.10} parent=39 // pred_fallthru
        _
    $region40: #{mask_head_forward.10} parent=5 // pred_fallthru
      _
  $region6: #{mask_head_forward.10} parent=0 // loop_footer
    %s13 = sadd.s32 1, %s9
  $region7: #{mask_head_forward.10} parent=0 // loop_footer_branch
    %8 = sbr.rel target = $region3
  $region8: #{mask_head_forward.10} parent=0 // loop_exit
    _

// kernel: mask_head_forward.11
$region0: #{mask_head_forward.11}
  #allocation0 [shape = 'u32[]', space=smem, size = 0x4, offset = 0x4, fixed_abs, tag = 'smem constant byte address 0x4 - core index']
  #allocation1 [shape = 'u32[144,128]{1,0:T(1,128)}', space=vmem, size = 0x12000, scoped, tag = 'internal scratch']
  %s0 = inlined_call_operand.vmem [shape: f32[2,256,4], index: 0, kind: input, shape index: {}]
  %s1 = inlined_call_operand.vmem [shape: bf16[4,12], index: 1, kind: input, shape index: {}]
  %s2 = inlined_call_operand.vmem [shape: bf16[4,4], index: 2, kind: input, shape index: {}]
  %s3 = inlined_call_operand.vmem [shape: f32[1,4], index: 3, kind: input, shape index: {}]
  %s4 = inlined_call_operand.vmem [shape: f32[2,256,4], index: 4, kind: output, shape index: {}]
  %s5 = sld [smem:[#allocation0]]
  $region49: #{mask_head_forward.11} parent=0
    _
  %s7 = ssub.s32 1, %s5
  %s8 = scalar_select 0, %s7, %s5
  loop: start=0, step=1, limit=4
  $region2: #{mask_head_forward.11} parent=0 // loop_pre_header
    _
  $region3: #{mask_head_forward.11} parent=0 // loop_header
    %s10 = sphi 0, %s14
    %p11 = scmp.ge.s32.totalorder %s10, 4
    %s20 = sphi 0, %s22
    %s23 = sphi 0, %s20
    %s24 = sphi 0, %s23
    %s40 = sphi 0, %s24
    %s44 = sphi 0, %s44
    %s46 = sphi 0, %s44
    %s47 = sphi 0, %s46
    %s61 = sphi 0, %s47
    %s65 = sphi 0, %s65
    %s67 = sphi 0, %s65
    %s68 = sphi 0, %s67
    %s82 = sphi 0, %s68
    %s86 = sphi 0, %s86
    %s88 = sphi 0, %s86
    %s89 = sphi 0, %s88
    %s103 = sphi 0, %s89
    %s109 = sphi 0, %s111
    %s112 = sphi 0, %s109
    %s113 = sphi 0, %s112
    %s129 = sphi 0, %s113
  $region4: #{mask_head_forward.11} parent=0 // loop_header_branch
    %13 = sbr.rel (%p11) target = $region8
  $region5: #{mask_head_forward.11} parent=0 // loop_body
    %s15 = ssub.s32 %s10, 1
    %s16 = ssub.s32 %s10, 2
    %s17 = sadd.s32 %s10, 1
    %s18 = ssub.s32 %s10, %s17
    %p19 = scmp.eq.s32.totalorder %s18, 0
    %s21 = sadd.s32 %s20, 1
    %s22 = scalar_select %p19, %s20, %s21
    %p25 = pneg %p19
    %p26 = scmp.eq.s32.totalorder %s10, 1
    %p27 = por %p25, %p26
    %p28 = scmp.ne.s32.totalorder %s20, %s23
    %p29 = scmp.eq.s32.totalorder %s10, 0
    %p30 = por %p28, %p29
    %p31 = scmp.ne.s32.totalorder %s20, %s23
    %p32 = scmp.eq.s32.totalorder %s15, 1
    %p33 = por %p31, %p32
    %p34 = scmp.ne.s32.totalorder %s23, %s24
    %p35 = scmp.eq.s32.totalorder %s15, 0
    %p36 = por %p34, %p35
    %p37 = scmp.ne.s32.totalorder %s23, %s24
    %p38 = scmp.eq.s32.totalorder %s16, 1
    %p39 = por %p37, %p38
    %p41 = scmp.ne.s32.totalorder %s24, %s40
    %p42 = scmp.eq.s32.totalorder %s16, 0
    %p43 = por %p41, %p42
    %s45 = sadd.s32 %s44, 1
    %p48 = scmp.eq.s32.totalorder %s10, 1
    %p49 = scmp.ne.s32.totalorder %s44, %s46
    %p50 = scmp.eq.s32.totalorder %s10, 0
    %p51 = por %p49, %p50
    %p52 = scmp.ne.s32.totalorder %s44, %s46
    %p53 = scmp.eq.s32.totalorder %s15, 1
    %p54 = por %p52, %p53
    %p55 = scmp.ne.s32.totalorder %s46, %s47
    %p56 = scmp.eq.s32.totalorder %s15, 0
    %p57 = por %p55, %p56
    %p58 = scmp.ne.s32.totalorder %s46, %s47
    %p59 = scmp.eq.s32.totalorder %s16, 1
    %p60 = por %p58, %p59
    %p62 = scmp.ne.s32.totalorder %s47, %s61
    %p63 = scmp.eq.s32.totalorder %s16, 0
    %p64 = por %p62, %p63
    %s66 = sadd.s32 %s65, 1
    %p69 = scmp.eq.s32.totalorder %s10, 1
    %p70 = scmp.ne.s32.totalorder %s65, %s67
    %p71 = scmp.eq.s32.totalorder %s10, 0
    %p72 = por %p70, %p71
    %p73 = scmp.ne.s32.totalorder %s65, %s67
    %p74 = scmp.eq.s32.totalorder %s15, 1
    %p75 = por %p73, %p74
    %p76 = scmp.ne.s32.totalorder %s67, %s68
    %p77 = scmp.eq.s32.totalorder %s15, 0
    %p78 = por %p76, %p77
    %p79 = scmp.ne.s32.totalorder %s67, %s68
    %p80 = scmp.eq.s32.totalorder %s16, 1
    %p81 = por %p79, %p80
    %p83 = scmp.ne.s32.totalorder %s68, %s82
    %p84 = scmp.eq.s32.totalorder %s16, 0
    %p85 = por %p83, %p84
    %s87 = sadd.s32 %s86, 1
    %p90 = scmp.eq.s32.totalorder %s10, 1
    %p91 = scmp.ne.s32.totalorder %s86, %s88
    %p92 = scmp.eq.s32.totalorder %s10, 0
    %p93 = por %p91, %p92
    %p94 = scmp.ne.s32.totalorder %s86, %s88
    %p95 = scmp.eq.s32.totalorder %s15, 1
    %p96 = por %p94, %p95
    %p97 = scmp.ne.s32.totalorder %s88, %s89
    %p98 = scmp.eq.s32.totalorder %s15, 0
    %p99 = por %p97, %p98
    %p100 = scmp.ne.s32.totalorder %s88, %s89
    %p101 = scmp.eq.s32.totalorder %s16, 1
    %p102 = por %p100, %p101
    %p104 = scmp.ne.s32.totalorder %s89, %s103
    %p105 = scmp.eq.s32.totalorder %s16, 0
    %p106 = por %p104, %p105
    %s107 = ssub.s32 %s10, %s17
    %p108 = scmp.eq.s32.totalorder %s107, 0
    %s110 = sadd.s32 %s109, 1
    %s111 = scalar_select %p108, %s109, %s110
    %p114 = pneg %p108
    %p115 = scmp.eq.s32.totalorder %s10, 1
    %p116 = por %p114, %p115
    %p117 = scmp.ne.s32.totalorder %s109, %s112
    %p118 = scmp.eq.s32.totalorder %s10, 0
    %p119 = por %p117, %p118
    %p120 = scmp.ne.s32.totalorder %s109, %s112
    %p121 = scmp.eq.s32.totalorder %s15, 1
    %p122 = por %p120, %p121
    %p123 = scmp.ne.s32.totalorder %s112, %s113
    %p124 = scmp.eq.s32.totalorder %s15, 0
    %p125 = por %p123, %p124
    %p126 = scmp.ne.s32.totalorder %s112, %s113
    %p127 = scmp.eq.s32.totalorder %s16, 1
    %p128 = por %p126, %p127
    %p130 = scmp.ne.s32.totalorder %s113, %s129
    %p131 = scmp.eq.s32.totalorder %s16, 0
    %p132 = por %p130, %p131
    %p133 = scmp.le.s32.totalorder 1, %s10
    %p134 = scmp.lt.s32.totalorder %s10, 3
    %p135 = pnand %p133, %p134
    %p136 = pneg %p135
    // Predicated region
    $region9: #{mask_head_forward.11} parent=5 // pred_check
      _
    $region10: #{mask_head_forward.11} parent=5 // pred_check_branch
      %138 = sbr.rel (%p135) target = $region12
    $region11: #{mask_head_forward.11} parent=5 // pred_region
      %s139 = ssub.s32 %s10, 1
      // Predicated region
      $region13: #{mask_head_forward.11} parent=11 // pred_check
        %p140 = pneg %p57
      $region14: #{mask_head_forward.11} parent=11 // pred_check_branch
        %142 = sbr.rel (%p140) target = $region16
      $region15: #{mask_head_forward.11} parent=11 // pred_region
        _
      $region16: #{mask_head_forward.11} parent=11 // pred_fallthru
        _
      // Predicated region
      $region17: #{mask_head_forward.11} parent=11 // pred_check
        %p143 = pneg %p78
      $region18: #{mask_head_forward.11} parent=11 // pred_check_branch
        %145 = sbr.rel (%p143) target = $region20
      $region19: #{mask_head_forward.11} parent=11 // pred_region
        _
      $region20: #{mask_head_forward.11} parent=11 // pred_fallthru
        _
      // Predicated region
      $region21: #{mask_head_forward.11} parent=11 // pred_check
        %p146 = pneg %p99
      $region22: #{mask_head_forward.11} parent=11 // pred_check_branch
        %148 = sbr.rel (%p146) target = $region24
      $region23: #{mask_head_forward.11} parent=11 // pred_region
        _
      $region24: #{mask_head_forward.11} parent=11 // pred_fallthru
        _
    $region12: #{mask_head_forward.11} parent=5 // pred_fallthru
      _
    %p149 = scmp.lt.s32.totalorder %s10, 2
    // Predicated region
    $region25: #{mask_head_forward.11} parent=5 // pred_check
      %p150 = pneg %p149
    $region26: #{mask_head_forward.11} parent=5 // pred_check_branch
      %152 = sbr.rel (%p150) target = $region28
    $region27: #{mask_head_forward.11} parent=5 // pred_region
      // Predicated region
      $region29: #{mask_head_forward.11} parent=27 // pred_check
        %p153 = pneg %p30
      $region30: #{mask_head_forward.11} parent=27 // pred_check_branch
        %155 = sbr.rel (%p153) target = $region32
      $region31: #{mask_head_forward.11} parent=27 // pred_region
        %p156 = scmp.lt.s32.totalorder %s10, 1
        %s157 = scalar_select %p156, %s10, 1
        %s158 = smul.addr %s157, 32
        %s159 = smul.addr %s158, 8
        %s160 = scalar_lea.vmem %s0, %s159
      $region32: #{mask_head_forward.11} parent=27 // pred_fallthru
        _
    $region28: #{mask_head_forward.11} parent=5 // pred_fallthru
      _
    %p161 = scmp.le.s32.totalorder 1, %s10
    %p162 = scmp.lt.s32.totalorder %s10, 3
    %p163 = pnand %p161, %p162
    %p164 = pneg %p163
    // Predicated region
    $region33: #{mask_head_forward.11} parent=5 // pred_check
      _
    $region34: #{mask_head_forward.11} parent=5 // pred_check_branch
      %166 = sbr.rel (%p163) target = $region36
    $region35: #{mask_head_forward.11} parent=5 // pred_region
      %s167 = ssub.s32 %s10, 1
      %p168 = scmp.lt.s32.totalorder %s15, 1
      %s169 = scalar_select %p168, %s15, 1
      %s170 = smul.addr %s169, 32
      %s171 = smul.addr %s170, 8
      %s172 = scalar_lea.vmem %s0, %s171
      %p173 = pneg %p36
      %p174 = pneg %p33
      %p175 = pneg %p57
      %p176 = pneg %p54
      %p177 = pneg %p78
      %p178 = pneg %p75
      %p179 = pneg %p99
      %p180 = pneg %p96
      %p181 = pneg %p125
      %p182 = pneg %p122
      %p183 = scmp.lt.s32.totalorder %s15, 1
      %s184 = scalar_select %p183, %s15, 1
      %s185 = smul.addr %s184, 32
      %s186 = smul.addr %s185, 8
      %s187 = scalar_lea.vmem %s4, %s186
      %p188 = scmp.lt.s32.totalorder %s15, 1
      %s189 = scalar_select %p188, %s15, 1
      %s190 = smul.addr %s189, 32
      %s191 = smul.addr %s190, 8
      %s192 = scalar_lea.vmem %s0, %s191
      %p193 = scmp.lt.s32.totalorder %s15, 1
      %s194 = scalar_select %p193, %s15, 1
      %s195 = smul.addr %s194, 32
      %s196 = smul.addr %s195, 8
      %s197 = scalar_lea.vmem %s4, %s196
      %v199 = vld [vmem:[%s192] sm:$0xff]
      %v200 = vld [vmem:[%s192 + $0x8] sm:$0xff]
      %v201 = vld [vmem:[%s192 + $0x10] sm:$0xff]
      %v202 = vld [vmem:[%s192 + $0x18] sm:$0xff]
      %v203 = vld [vmem:[%s192 + $0x20] sm:$0xff]
      %v204 = vld [vmem:[%s192 + $0x28] sm:$0xff]
      %v205 = vld [vmem:[%s192 + $0x30] sm:$0xff]
      %v206 = vld [vmem:[%s192 + $0x38] sm:$0xff]
      %v207 = vld [vmem:[%s192 + $0x40] sm:$0xff]
      %v208 = vld [vmem:[%s192 + $0x48] sm:$0xff]
      %v209 = vld [vmem:[%s192 + $0x50] sm:$0xff]
      %v210 = vld [vmem:[%s192 + $0x58] sm:$0xff]
      %v211 = vld [vmem:[%s192 + $0x60] sm:$0xff]
      %v212 = vld [vmem:[%s192 + $0x68] sm:$0xff]
      %v213 = vld [vmem:[%s192 + $0x70] sm:$0xff]
      %v214 = vld [vmem:[%s192 + $0x78] sm:$0xff]
      %v215 = vld [vmem:[%s192 + $0x80] sm:$0xff]
      %v216 = vld [vmem:[%s192 + $0x88] sm:$0xff]
      %v217 = vld [vmem:[%s192 + $0x90] sm:$0xff]
      %v218 = vld [vmem:[%s192 + $0x98] sm:$0xff]
      %v219 = vld [vmem:[%s192 + $0xa0] sm:$0xff]
      %v220 = vld [vmem:[%s192 + $0xa8] sm:$0xff]
      %v221 = vld [vmem:[%s192 + $0xb0] sm:$0xff]
      %v222 = vld [vmem:[%s192 + $0xb8] sm:$0xff]
      %v223 = vld [vmem:[%s192 + $0xc0] sm:$0xff]
      %v224 = vld [vmem:[%s192 + $0xc8] sm:$0xff]
      %v225 = vld [vmem:[%s192 + $0xd0] sm:$0xff]
      %v226 = vld [vmem:[%s192 + $0xd8] sm:$0xff]
      %v227 = vld [vmem:[%s192 + $0xe0] sm:$0xff]
      %v228 = vld [vmem:[%s192 + $0xe8] sm:$0xff]
      %v229 = vld [vmem:[%s192 + $0xf0] sm:$0xff]
      %v230 = vld [vmem:[%s192 + $0xf8] sm:$0xff]
      %v231 = vpack.c.bf16 %v200, %v199
      %v232 = vpack.c.bf16 %v202, %v201
      %v233 = vpack.c.bf16 %v204, %v203
      %v234 = vpack.c.bf16 %v206, %v205
      %v235 = vpack.c.bf16 %v208, %v207
      %v236 = vpack.c.bf16 %v210, %v209
      %v237 = vpack.c.bf16 %v212, %v211
      %v238 = vpack.c.bf16 %v214, %v213
      %v239 = vpack.c.bf16 %v216, %v215
      %v240 = vpack.c.bf16 %v218, %v217
      %v241 = vpack.c.bf16 %v220, %v219
      %v242 = vpack.c.bf16 %v222, %v221
      %v243 = vpack.c.bf16 %v224, %v223
      %v244 = vpack.c.bf16 %v226, %v225
      %v245 = vpack.c.bf16 %v228, %v227
      %v246 = vpack.c.bf16 %v230, %v229
      %v247 = vld [vmem:[%s1] sm:$0x3]
      %vm248 = vcmask 31744
      %v250 = vsel %vm248, %v231, 0
      %v253 = vsel %vm248, %v232, 0
      %v256 = vsel %vm248, %v233, 0
      %v259 = vsel %vm248, %v234, 0
      %v262 = vsel %vm248, %v235, 0
      %v265 = vsel %vm248, %v236, 0
      %v268 = vsel %vm248, %v237, 0
      %v271 = vsel %vm248, %v238, 0
      %v274 = vsel %vm248, %v239, 0
      %v277 = vsel %vm248, %v240, 0
      %v280 = vsel %vm248, %v241, 0
      %v283 = vsel %vm248, %v242, 0
      %v286 = vsel %vm248, %v243, 0
      %v289 = vsel %vm248, %v244, 0
      %v292 = vsel %vm248, %v245, 0
      %v295 = vsel %vm248, %v246, 0
      %vm297 = vcmask 1041408
      %v299 = vsel %vm297, %v247, 0
      %301 = vmatprep.subr.bf16.mxu0 0
      %302 = vmatpush1.bf16.msra.mxu0 %v299
      %303 = vmatprep.subr.bf16.mxu0 0
      %304 = vmatpush1.bf16.msra.mxu0 0
      %305 = vmatprep.subr.bf16.mxu0 0
      %306 = vmatpush1.bf16.msra.mxu0 0
      %307 = vmatprep.subr.bf16.mxu0 0
      %308 = vmatpush1.bf16.msra.mxu0 0
      %309 = vmatprep.subr.bf16.mxu0 0
      %310 = vmatpush1.bf16.msra.mxu0 0
      %311 = vmatprep.subr.bf16.mxu0 0
      %312 = vmatpush1.bf16.msra.mxu0 0
      %313 = vmatprep.subr.bf16.mxu0 0
      %314 = vmatpush1.bf16.msra.mxu0 0
      %315 = vmatprep.subr.bf16.mxu0 0
      %316 = vmatpush1.bf16.msra.mxu0 0
      %317 = vmatprep.subr.bf16.mxu0 0
      %318 = vmatpush1.bf16.msra.mxu0 0
      %319 = vmatprep.subr.bf16.mxu0 0
      %320 = vmatpush1.bf16.msra.mxu0 0
      %321 = vmatprep.subr.bf16.mxu0 0
      %322 = vmatpush1.bf16.msra.mxu0 0
      %323 = vmatprep.subr.bf16.mxu0 0
      %324 = vmatpush1.bf16.msra.mxu0 0
      %325 = vmatprep.subr.bf16.mxu0 0
      %326 = vmatpush1.bf16.msra.mxu0 0
      %327 = vmatprep.subr.bf16.mxu0 0
      %328 = vmatpush1.bf16.msra.mxu0 0
      %329 = vmatprep.subr.bf16.mxu0 0
      %330 = vmatpush1.bf16.msra.mxu0 0
      %331 = vmatprep.subr.bf16.mxu0 0
      %332 = vmatpush1.bf16.msra.mxu0 0
      %333 = vmatprep.mubr.bf16.mxu0 0
      %334 = vmatmul.mubr.bf16.gmra.mrb[0].mxu0 %v250
      %v335 = vpop.f32.mrb[0].mxu0
      %v336 = vadd.f32 0.0, %v335
      %v337 = vpop.f32.mrb[0].mxu0
      %v338 = vpop.f32.mrb[0].mxu0
      %v339 = vadd.f32 0.0, %v338
      %v340 = vpop.f32.mrb[0].mxu0
      %341 = vmatprep.mubr.bf16.mxu0 0
      %342 = vmatmul.mubr.bf16.gmra.mrb[0].mxu0 %v253
      %v343 = vpop.f32.mrb[0].mxu0
      %v344 = vadd.f32 0.0, %v343
      %v345 = vpop.f32.mrb[0].mxu0
      %v346 = vpop.f32.mrb[0].mxu0
      %v347 = vadd.f32 0.0, %v346
      %v348 = vpop.f32.mrb[0].mxu0
      %349 = vmatprep.mubr.bf16.mxu0 0
      %350 = vmatmul.mubr.bf16.gmra.mrb[0].mxu0 %v256
      %v351 = vpop.f32.mrb[0].mxu0
      %v352 = vadd.f32 0.0, %v351
      %v353 = vpop.f32.mrb[0].mxu0
      %v354 = vpop.f32.mrb[0].mxu0
      %v355 = vadd.f32 0.0, %v354
      %v356 = vpop.f32.mrb[0].mxu0
      %357 = vmatprep.mubr.bf16.mxu0 0
      %358 = vmatmul.mubr.bf16.gmra.mrb[0].mxu0 %v259
      %v359 = vpop.f32.mrb[0].mxu0
      %v360 = vadd.f32 0.0, %v359
      %v361 = vpop.f32.mrb[0].mxu0
      %v362 = vpop.f32.mrb[0].mxu0
      %v363 = vadd.f32 0.0, %v362
      %v364 = vpop.f32.mrb[0].mxu0
      %365 = vmatprep.mubr.bf16.mxu0 0
      %366 = vmatmul.mubr.bf16.gmra.mrb[0].mxu0 %v262
      %v367 = vpop.f32.mrb[0].mxu0
      %v368 = vadd.f32 0.0, %v367
      %v369 = vpop.f32.mrb[0].mxu0
      %v370 = vpop.f32.mrb[0].mxu0
      %v371 = vadd.f32 0.0, %v370
      %v372 = vpop.f32.mrb[0].mxu0
      %373 = vmatprep.mubr.bf16.mxu0 0
      %374 = vmatmul.mubr.bf16.gmra.mrb[0].mxu0 %v265
      %v375 = vpop.f32.mrb[0].mxu0
      %v376 = vadd.f32 0.0, %v375
      %v377 = vpop.f32.mrb[0].mxu0
      %v378 = vpop.f32.mrb[0].mxu0
      %v379 = vadd.f32 0.0, %v378
      %v380 = vpop.f32.mrb[0].mxu0
      %381 = vmatprep.mubr.bf16.mxu0 0
      %382 = vmatmul.mubr.bf16.gmra.mrb[0].mxu0 %v268
      %v383 = vpop.f32.mrb[0].mxu0
      %v384 = vadd.f32 0.0, %v383
      %v385 = vpop.f32.mrb[0].mxu0
      %v386 = vpop.f32.mrb[0].mxu0
      %v387 = vadd.f32 0.0, %v386
      %v388 = vpop.f32.mrb[0].mxu0
      %389 = vmatprep.mubr.bf16.mxu0 0
      %390 = vmatmul.mubr.bf16.gmra.mrb[0].mxu0 %v271
      %v391 = vpop.f32.mrb[0].mxu0
      %v392 = vadd.f32 0.0, %v391
      %v393 = vpop.f32.mrb[0].mxu0
      %v394 = vpop.f32.mrb[0].mxu0
      %v395 = vadd.f32 0.0, %v394
      %v396 = vpop.f32.mrb[0].mxu0
      %397 = vmatprep.mubr.bf16.mxu0 0
      %398 = vmatmul.mubr.bf16.gmra.mrb[0].mxu0 %v274
      %v399 = vpop.f32.mrb[0].mxu0
      %v400 = vadd.f32 0.0, %v399
      %v401 = vpop.f32.mrb[0].mxu0
      %v402 = vpop.f32.mrb[0].mxu0
      %v403 = vadd.f32 0.0, %v402
      %v404 = vpop.f32.mrb[0].mxu0
      %405 = vmatprep.mubr.bf16.mxu0 0
      %406 = vmatmul.mubr.bf16.gmra.mrb[0].mxu0 %v277
      %v407 = vpop.f32.mrb[0].mxu0
      %v408 = vadd.f32 0.0, %v407
      %v409 = vpop.f32.mrb[0].mxu0
      %v410 = vpop.f32.mrb[0].mxu0
      %v411 = vadd.f32 0.0, %v410
      %v412 = vpop.f32.mrb[0].mxu0
      %413 = vmatprep.mubr.bf16.mxu0 0
      %414 = vmatmul.mubr.bf16.gmra.mrb[0].mxu0 %v280
      %v415 = vpop.f32.mrb[0].mxu0
      %v416 = vadd.f32 0.0, %v415
      %v417 = vpop.f32.mrb[0].mxu0
      %v418 = vpop.f32.mrb[0].mxu0
      %v419 = vadd.f32 0.0, %v418
      %v420 = vpop.f32.mrb[0].mxu0
      %421 = vmatprep.mubr.bf16.mxu0 0
      %422 = vmatmul.mubr.bf16.gmra.mrb[0].mxu0 %v283
      %v423 = vpop.f32.mrb[0].mxu0
      %v424 = vadd.f32 0.0, %v423
      %v425 = vpop.f32.mrb[0].mxu0
      %v426 = vpop.f32.mrb[0].mxu0
      %v427 = vadd.f32 0.0, %v426
      %v428 = vpop.f32.mrb[0].mxu0
      %429 = vmatprep.mubr.bf16.mxu0 0
      %430 = vmatmul.mubr.bf16.gmra.mrb[0].mxu0 %v286
      %v431 = vpop.f32.mrb[0].mxu0
      %v432 = vadd.f32 0.0, %v431
      %v433 = vpop.f32.mrb[0].mxu0
      %v434 = vpop.f32.mrb[0].mxu0
      %v435 = vadd.f32 0.0, %v434
      %v436 = vpop.f32.mrb[0].mxu0
      %437 = vmatprep.mubr.bf16.mxu0 0
      %438 = vmatmul.mubr.bf16.gmra.mrb[0].mxu0 %v289
      %v439 = vpop.f32.mrb[0].mxu0
      %v440 = vadd.f32 0.0, %v439
      %v441 = vpop.f32.mrb[0].mxu0
      %v442 = vpop.f32.mrb[0].mxu0
      %v443 = vadd.f32 0.0, %v442
      %v444 = vpop.f32.mrb[0].mxu0
      %445 = vmatprep.mubr.bf16.mxu0 0
      %446 = vmatmul.mubr.bf16.gmra.mrb[0].mxu0 %v292
      %v447 = vpop.f32.mrb[0].mxu0
      %v448 = vadd.f32 0.0, %v447
      %v449 = vpop.f32.mrb[0].mxu0
      %v450 = vpop.f32.mrb[0].mxu0
      %v451 = vadd.f32 0.0, %v450
      %v452 = vpop.f32.mrb[0].mxu0
      %453 = vmatprep.mubr.bf16.mxu0 0
      %454 = vmatmul.mubr.bf16.gmra.mrb[0].mxu0 %v295
      %v455 = vpop.f32.mrb[0].mxu0
      %v456 = vadd.f32 0.0, %v455
      %v457 = vpop.f32.mrb[0].mxu0
      %v458 = vpop.f32.mrb[0].mxu0
      %v459 = vadd.f32 0.0, %v458
      %v460 = vpop.f32.mrb[0].mxu0
      %461 = vdwg.mxu0
      %v462 = vpack.c.bf16 %v339, %v336
      %v463 = vpack.c.bf16 %v347, %v344
      %v464 = vpack.c.bf16 %v355, %v352
      %v465 = vpack.c.bf16 %v363, %v360
      %v466 = vpack.c.bf16 %v371, %v368
      %v467 = vpack.c.bf16 %v379, %v376
      %v468 = vpack.c.bf16 %v387, %v384
      %v469 = vpack.c.bf16 %v395, %v392
      %v470 = vpack.c.bf16 %v403, %v400
      %v471 = vpack.c.bf16 %v411, %v408
      %v472 = vpack.c.bf16 %v419, %v416
      %v473 = vpack.c.bf16 %v427, %v424
      %v474 = vpack.c.bf16 %v435, %v432
      %v475 = vpack.c.bf16 %v443, %v440
      %v476 = vpack.c.bf16 %v451, %v448
      %v477 = vpack.c.bf16 %v459, %v456
      %494 = vrot.lane.b32.xlu0 %v462, 124
      %v495 = vpop.permute.xlu0 %494
      %496 = vrot.lane.b32.xlu0 %v463, 124
      %v497 = vpop.permute.xlu0 %496
      %498 = vrot.lane.b32.xlu0 %v464, 124
      %v499 = vpop.permute.xlu0 %498
      %500 = vrot.lane.b32.xlu0 %v465, 124
      %v501 = vpop.permute.xlu0 %500
      %502 = vrot.lane.b32.xlu0 %v466, 124
      %v503 = vpop.permute.xlu0 %502
      %504 = vrot.lane.b32.xlu0 %v467, 124
      %v505 = vpop.permute.xlu0 %504
      %506 = vrot.lane.b32.xlu0 %v468, 124
      %v507 = vpop.permute.xlu0 %506
      %508 = vrot.lane.b32.xlu0 %v469, 124
      %v509 = vpop.permute.xlu0 %508
      %510 = vrot.lane.b32.xlu0 %v470, 124
      %v511 = vpop.permute.xlu0 %510
      %512 = vrot.lane.b32.xlu0 %v471, 124
      %v513 = vpop.permute.xlu0 %512
      %514 = vrot.lane.b32.xlu0 %v472, 124
      %v515 = vpop.permute.xlu0 %514
      %516 = vrot.lane.b32.xlu0 %v473, 124
      %v517 = vpop.permute.xlu0 %516
      %518 = vrot.lane.b32.xlu0 %v474, 124
      %v519 = vpop.permute.xlu0 %518
      %520 = vrot.lane.b32.xlu0 %v475, 124
      %v521 = vpop.permute.xlu0 %520
      %522 = vrot.lane.b32.xlu0 %v476, 124
      %v523 = vpop.permute.xlu0 %522
      %524 = vrot.lane.b32.xlu0 %v477, 124
      %v525 = vpop.permute.xlu0 %524
      %v527 = vsel %vm248, %v462, 0
      %v530 = vsel %vm248, %v463, 0
      %v533 = vsel %vm248, %v464, 0
      %v536 = vsel %vm248, %v465, 0
      %v539 = vsel %vm248, %v466, 0
      %v542 = vsel %vm248, %v467, 0
      %v545 = vsel %vm248, %v468, 0
      %v548 = vsel %vm248, %v469, 0
      %v551 = vsel %vm248, %v470, 0
      %v554 = vsel %vm248, %v471, 0
      %v557 = vsel %vm248, %v472, 0
      %v560 = vsel %vm248, %v473, 0
      %v563 = vsel %vm248, %v474, 0
      %v566 = vsel %vm248, %v475, 0
      %v569 = vsel %vm248, %v476, 0
      %v572 = vsel %vm248, %v477, 0
      %v575 = vsel %vm248, %v495, 0
      %v578 = vsel %vm248, %v497, 0
      %v581 = vsel %vm248, %v499, 0
      %v584 = vsel %vm248, %v501, 0
      %v587 = vsel %vm248, %v503, 0
      %v590 = vsel %vm248, %v505, 0
      %v593 = vsel %vm248, %v507, 0
      %v596 = vsel %vm248, %v509, 0
      %v599 = vsel %vm248, %v511, 0
      %v602 = vsel %vm248, %v513, 0
      %v605 = vsel %vm248, %v515, 0
      %v608 = vsel %vm248, %v517, 0
      %v611 = vsel %vm248, %v519, 0
      %v614 = vsel %vm248, %v521, 0
      %v617 = vsel %vm248, %v523, 0
      %v620 = vsel %vm248, %v525, 0
      %622 = vmatprep.subr.bf16.mxu0 0
      %623 = vmatpush1.bf16.xpose.msra.mxu0 %v575
      %624 = vmatprep.subr.bf16.mxu0 0
      %625 = vmatpush1.bf16.xpose.msra.mxu0 %v578
      %626 = vmatprep.subr.bf16.mxu0 0
      %627 = vmatpush1.bf16.xpose.msra.mxu0 %v581
      %628 = vmatprep.subr.bf16.mxu0 0
      %629 = vmatpush1.bf16.xpose.msra.mxu0 %v584
      %630 = vmatprep.subr.bf16.mxu0 0
      %631 = vmatpush1.bf16.xpose.msra.mxu0 %v587
      %632 = vmatprep.subr.bf16.mxu0 0
      %633 = vmatpush1.bf16.xpose.msra.mxu0 %v590
      %634 = vmatprep.subr.bf16.mxu0 0
      %635 = vmatpush1.bf16.xpose.msra.mxu0 %v593
      %636 = vmatprep.subr.bf16.mxu0 0
      %637 = vmatpush1.bf16.xpose.msra.mxu0 %v596
      %638 = vmatprep.subr.bf16.mxu0 0
      %639 = vmatpush1.bf16.xpose.msra.mxu0 %v599
      %640 = vmatprep.subr.bf16.mxu0 0
      %641 = vmatpush1.bf16.xpose.msra.mxu0 %v602
      %642 = vmatprep.subr.bf16.mxu0 0
      %643 = vmatpush1.bf16.xpose.msra.mxu0 %v605
      %644 = vmatprep.subr.bf16.mxu0 0
      %645 = vmatpush1.bf16.xpose.msra.mxu0 %v608
      %646 = vmatprep.subr.bf16.mxu0 0
      %647 = vmatpush1.bf16.xpose.msra.mxu0 %v611
      %648 = vmatprep.subr.bf16.mxu0 0
      %649 = vmatpush1.bf16.xpose.msra.mxu0 %v614
      %650 = vmatprep.subr.bf16.mxu0 0
      %651 = vmatpush1.bf16.xpose.msra.mxu0 %v617
      %652 = vmatprep.subr.bf16.mxu0 0
      %653 = vmatpush1.bf16.xpose.msra.mxu0 %v620
      %654 = vmatprep.mubr.bf16.mxu0 0
      %655 = vmatmul.mubr.bf16.gmra.mrb[0].mxu0 %v527
      %v656 = vpop.f32.mrb[0].mxu0
      %v657 = vadd.f32 0.0, %v656
      %v658 = vpop.f32.mrb[0].mxu0
      %v659 = vadd.f32 0.0, %v658
      %v660 = vpop.f32.mrb[0].mxu0
      %v661 = vadd.f32 0.0, %v660
      %v662 = vpop.f32.mrb[0].mxu0
      %v663 = vadd.f32 0.0, %v662
      %664 = vmatprep.mubr.bf16.mxu0 0
      %665 = vmatmul.mubr.bf16.gmra.mrb[0].mxu0 %v530
      %v666 = vpop.f32.mrb[0].mxu0
      %v667 = vadd.f32 0.0, %v666
      %v668 = vpop.f32.mrb[0].mxu0
      %v669 = vadd.f32 0.0, %v668
      %v670 = vpop.f32.mrb[0].mxu0
      %v671 = vadd.f32 0.0, %v670
      %v672 = vpop.f32.mrb[0].mxu0
      %v673 = vadd.f32 0.0, %v672
      %674 = vmatprep.mubr.bf16.mxu0 0
      %675 = vmatmul.mubr.bf16.gmra.mrb[0].mxu0 %v533
      %v676 = vpop.f32.mrb[0].mxu0
      %v677 = vadd.f32 0.0, %v676
      %v678 = vpop.f32.mrb[0].mxu0
      %v679 = vadd.f32 0.0, %v678
      %v680 = vpop.f32.mrb[0].mxu0
      %v681 = vadd.f32 0.0, %v680
      %v682 = vpop.f32.mrb[0].mxu0
      %v683 = vadd.f32 0.0, %v682
      %684 = vmatprep.mubr.bf16.mxu0 0
      %685 = vmatmul.mubr.bf16.gmra.mrb[0].mxu0 %v536
      %v686 = vpop.f32.mrb[0].mxu0
      %v687 = vadd.f32 0.0, %v686
      %v688 = vpop.f32.mrb[0].mxu0
      %v689 = vadd.f32 0.0, %v688
      %v690 = vpop.f32.mrb[0].mxu0
      %v691 = vadd.f32 0.0, %v690
      %v692 = vpop.f32.mrb[0].mxu0
      %v693 = vadd.f32 0.0, %v692
      %694 = vmatprep.mubr.bf16.mxu0 0
      %695 = vmatmul.mubr.bf16.gmra.mrb[0].mxu0 %v539
      %v696 = vpop.f32.mrb[0].mxu0
      %v697 = vadd.f32 0.0, %v696
      %v698 = vpop.f32.mrb[0].mxu0
      %v699 = vadd.f32 0.0, %v698
      %v700 = vpop.f32.mrb[0].mxu0
      %v701 = vadd.f32 0.0, %v700
      %v702 = vpop.f32.mrb[0].mxu0
      %v703 = vadd.f32 0.0, %v702
      %704 = vmatprep.mubr.bf16.mxu0 0
      %705 = vmatmul.mubr.bf16.gmra.mrb[0].mxu0 %v542
      %v706 = vpop.f32.mrb[0].mxu0
      %v707 = vadd.f32 0.0, %v706
      %v708 = vpop.f32.mrb[0].mxu0
      %v709 = vadd.f32 0.0, %v708
      %v710 = vpop.f32.mrb[0].mxu0
      %v711 = vadd.f32 0.0, %v710
      %v712 = vpop.f32.mrb[0].mxu0
      %v713 = vadd.f32 0.0, %v712
      %714 = vmatprep.mubr.bf16.mxu0 0
      %715 = vmatmul.mubr.bf16.gmra.mrb[0].mxu0 %v545
      %v716 = vpop.f32.mrb[0].mxu0
      %v717 = vadd.f32 0.0, %v716
      %v718 = vpop.f32.mrb[0].mxu0
      %v719 = vadd.f32 0.0, %v718
      %v720 = vpop.f32.mrb[0].mxu0
      %v721 = vadd.f32 0.0, %v720
      %v722 = vpop.f32.mrb[0].mxu0
      %v723 = vadd.f32 0.0, %v722
      %724 = vmatprep.mubr.bf16.mxu0 0
      %725 = vmatmul.mubr.bf16.gmra.mrb[0].mxu0 %v548
      %v726 = vpop.f32.mrb[0].mxu0
      %v727 = vadd.f32 0.0, %v726
      %v728 = vpop.f32.mrb[0].mxu0
      %v729 = vadd.f32 0.0, %v728
      %v730 = vpop.f32.mrb[0].mxu0
      %v731 = vadd.f32 0.0, %v730
      %v732 = vpop.f32.mrb[0].mxu0
      %v733 = vadd.f32 0.0, %v732
      %734 = vmatprep.mubr.bf16.mxu0 0
      %735 = vmatmul.mubr.bf16.gmra.mrb[0].mxu0 %v551
      %v736 = vpop.f32.mrb[0].mxu0
      %v737 = vadd.f32 0.0, %v736
      %v738 = vpop.f32.mrb[0].mxu0
      %v739 = vadd.f32 0.0, %v738
      %v740 = vpop.f32.mrb[0].mxu0
      %v741 = vadd.f32 0.0, %v740
      %v742 = vpop.f32.mrb[0].mxu0
      %v743 = vadd.f32 0.0, %v742
      %744 = vmatprep.mubr.bf16.mxu0 0
      %745 = vmatmul.mubr.bf16.gmra.mrb[0].mxu0 %v554
      %v746 = vpop.f32.mrb[0].mxu0
      %v747 = vadd.f32 0.0, %v746
      %v748 = vpop.f32.mrb[0].mxu0
      %v749 = vadd.f32 0.0, %v748
      %v750 = vpop.f32.mrb[0].mxu0
      %v751 = vadd.f32 0.0, %v750
      %v752 = vpop.f32.mrb[0].mxu0
      %v753 = vadd.f32 0.0, %v752
      %754 = vmatprep.mubr.bf16.mxu0 0
      %755 = vmatmul.mubr.bf16.gmra.mrb[0].mxu0 %v557
      %v756 = vpop.f32.mrb[0].mxu0
      %v757 = vadd.f32 0.0, %v756
      %v758 = vpop.f32.mrb[0].mxu0
      %v759 = vadd.f32 0.0, %v758
      %v760 = vpop.f32.mrb[0].mxu0
      %v761 = vadd.f32 0.0, %v760
      %v762 = vpop.f32.mrb[0].mxu0
      %v763 = vadd.f32 0.0, %v762
      %764 = vmatprep.mubr.bf16.mxu0 0
      %765 = vmatmul.mubr.bf16.gmra.mrb[0].mxu0 %v560
      %v766 = vpop.f32.mrb[0].mxu0
      %v767 = vadd.f32 0.0, %v766
      %v768 = vpop.f32.mrb[0].mxu0
      %v769 = vadd.f32 0.0, %v768
      %v770 = vpop.f32.mrb[0].mxu0
      %v771 = vadd.f32 0.0, %v770
      %v772 = vpop.f32.mrb[0].mxu0
      %v773 = vadd.f32 0.0, %v772
      %774 = vmatprep.mubr.bf16.mxu0 0
      %775 = vmatmul.mubr.bf16.gmra.mrb[0].mxu0 %v563
      %v776 = vpop.f32.mrb[0].mxu0
      %v777 = vadd.f32 0.0, %v776
      %v778 = vpop.f32.mrb[0].mxu0
      %v779 = vadd.f32 0.0, %v778
      %v780 = vpop.f32.mrb[0].mxu0
      %v781 = vadd.f32 0.0, %v780
      %v782 = vpop.f32.mrb[0].mxu0
      %v783 = vadd.f32 0.0, %v782
      %784 = vmatprep.mubr.bf16.mxu0 0
      %785 = vmatmul.mubr.bf16.gmra.mrb[0].mxu0 %v566
      %v786 = vpop.f32.mrb[0].mxu0
      %v787 = vadd.f32 0.0, %v786
      %v788 = vpop.f32.mrb[0].mxu0
      %v789 = vadd.f32 0.0, %v788
      %v790 = vpop.f32.mrb[0].mxu0
      %v791 = vadd.f32 0.0, %v790
      %v792 = vpop.f32.mrb[0].mxu0
      %v793 = vadd.f32 0.0, %v792
      %794 = vmatprep.mubr.bf16.mxu0 0
      %795 = vmatmul.mubr.bf16.gmra.mrb[0].mxu0 %v569
      %v796 = vpop.f32.mrb[0].mxu0
      %v797 = vadd.f32 0.0, %v796
      %v798 = vpop.f32.mrb[0].mxu0
      %v799 = vadd.f32 0.0, %v798
      %v800 = vpop.f32.mrb[0].mxu0
      %v801 = vadd.f32 0.0, %v800
      %v802 = vpop.f32.mrb[0].mxu0
      %v803 = vadd.f32 0.0, %v802
      %804 = vmatprep.mubr.bf16.mxu0 0
      %805 = vmatmul.mubr.bf16.gmra.mrb[0].mxu0 %v572
      %v806 = vpop.f32.mrb[0].mxu0
      %v807 = vadd.f32 0.0, %v806
      %v808 = vpop.f32.mrb[0].mxu0
      %v809 = vadd.f32 0.0, %v808
      %v810 = vpop.f32.mrb[0].mxu0
      %v811 = vadd.f32 0.0, %v810
      %v812 = vpop.f32.mrb[0].mxu0
      %v813 = vadd.f32 0.0, %v812
      %814 = vdwg.mxu0
      %v815 = vmul.f32 %v657, 0.5
      %v816 = vmul.f32 %v659, 0.5
      %v817 = vmul.f32 %v661, 0.5
      %v818 = vmul.f32 %v663, 0.5
      %v819 = vmul.f32 %v667, 0.5
      %v820 = vmul.f32 %v669, 0.5
      %v821 = vmul.f32 %v671, 0.5
      %v822 = vmul.f32 %v673, 0.5
      %v823 = vmul.f32 %v677, 0.5
      %v824 = vmul.f32 %v679, 0.5
      %v825 = vmul.f32 %v681, 0.5
      %v826 = vmul.f32 %v683, 0.5
      %v827 = vmul.f32 %v687, 0.5
      %v828 = vmul.f32 %v689, 0.5
      %v829 = vmul.f32 %v691, 0.5
      %v830 = vmul.f32 %v693, 0.5
      %v831 = vmul.f32 %v697, 0.5
      %v832 = vmul.f32 %v699, 0.5
      %v833 = vmul.f32 %v701, 0.5
      %v834 = vmul.f32 %v703, 0.5
      %v835 = vmul.f32 %v707, 0.5
      %v836 = vmul.f32 %v709, 0.5
      %v837 = vmul.f32 %v711, 0.5
      %v838 = vmul.f32 %v713, 0.5
      %v839 = vmul.f32 %v717, 0.5
      %v840 = vmul.f32 %v719, 0.5
      %v841 = vmul.f32 %v721, 0.5
      %v842 = vmul.f32 %v723, 0.5
      %v843 = vmul.f32 %v727, 0.5
      %v844 = vmul.f32 %v729, 0.5
      %v845 = vmul.f32 %v731, 0.5
      %v846 = vmul.f32 %v733, 0.5
      %v847 = vmul.f32 %v737, 0.5
      %v848 = vmul.f32 %v739, 0.5
      %v849 = vmul.f32 %v741, 0.5
      %v850 = vmul.f32 %v743, 0.5
      %v851 = vmul.f32 %v747, 0.5
      %v852 = vmul.f32 %v749, 0.5
      %v853 = vmul.f32 %v751, 0.5
      %v854 = vmul.f32 %v753, 0.5
      %v855 = vmul.f32 %v757, 0.5
      %v856 = vmul.f32 %v759, 0.5
      %v857 = vmul.f32 %v761, 0.5
      %v858 = vmul.f32 %v763, 0.5
      %v859 = vmul.f32 %v767, 0.5
      %v860 = vmul.f32 %v769, 0.5
      %v861 = vmul.f32 %v771, 0.5
      %v862 = vmul.f32 %v773, 0.5
      %v863 = vmul.f32 %v777, 0.5
      %v864 = vmul.f32 %v779, 0.5
      %v865 = vmul.f32 %v781, 0.5
      %v866 = vmul.f32 %v783, 0.5
      %v867 = vmul.f32 %v787, 0.5
      %v868 = vmul.f32 %v789, 0.5
      %v869 = vmul.f32 %v791, 0.5
      %v870 = vmul.f32 %v793, 0.5
      %v871 = vmul.f32 %v797, 0.5
      %v872 = vmul.f32 %v799, 0.5
      %v873 = vmul.f32 %v801, 0.5
      %v874 = vmul.f32 %v803, 0.5
      %v875 = vmul.f32 %v807, 0.5
      %v876 = vmul.f32 %v809, 0.5
      %v877 = vmul.f32 %v811, 0.5
      %v878 = vmul.f32 %v813, 0.5
      %v879 = vmax.f32 %v815, %v816
      %880 = vmax.xlane.f32.xlu0 %v879
      %v881 = vpop.xlane.xlu0 %880
      %v882 = vmax.f32 %v817, %v818
      %883 = vmax.xlane.f32.xlu0 %v882
      %v884 = vpop.xlane.xlu0 %883
      %v885 = vmax.f32 %v819, %v820
      %886 = vmax.xlane.f32.xlu0 %v885
      %v887 = vpop.xlane.xlu0 %886
      %v888 = vmax.f32 %v821, %v822
      %889 = vmax.xlane.f32.xlu0 %v888
      %v890 = vpop.xlane.xlu0 %889
      %v891 = vmax.f32 %v823, %v824
      %892 = vmax.xlane.f32.xlu0 %v891
      %v893 = vpop.xlane.xlu0 %892
      %v894 = vmax.f32 %v825, %v826
      %895 = vmax.xlane.f32.xlu0 %v894
      %v896 = vpop.xlane.xlu0 %895
      %v897 = vmax.f32 %v827, %v828
      %898 = vmax.xlane.f32.xlu0 %v897
      %v899 = vpop.xlane.xlu0 %898
      %v900 = vmax.f32 %v829, %v830
      %901 = vmax.xlane.f32.xlu0 %v900
      %v902 = vpop.xlane.xlu0 %901
      %v903 = vmax.f32 %v831, %v832
      %904 = vmax.xlane.f32.xlu0 %v903
      %v905 = vpop.xlane.xlu0 %904
      %v906 = vmax.f32 %v833, %v834
      %907 = vmax.xlane.f32.xlu0 %v906
      %v908 = vpop.xlane.xlu0 %907
      %v909 = vmax.f32 %v835, %v836
      %910 = vmax.xlane.f32.xlu0 %v909
      %v911 = vpop.xlane.xlu0 %910
      %v912 = vmax.f32 %v837, %v838
      %913 = vmax.xlane.f32.xlu0 %v912
      %v914 = vpop.xlane.xlu0 %913
      %v915 = vmax.f32 %v839, %v840
      %916 = vmax.xlane.f32.xlu0 %v915
      %v917 = vpop.xlane.xlu0 %916
      %v918 = vmax.f32 %v841, %v842
      %919 = vmax.xlane.f32.xlu0 %v918
      %v920 = vpop.xlane.xlu0 %919
      %v921 = vmax.f32 %v843, %v844
      %922 = vmax.xlane.f32.xlu0 %v921
      %v923 = vpop.xlane.xlu0 %922
      %v924 = vmax.f32 %v845, %v846
      %925 = vmax.xlane.f32.xlu0 %v924
      %v926 = vpop.xlane.xlu0 %925
      %v927 = vmax.f32 %v847, %v848
      %928 = vmax.xlane.f32.xlu0 %v927
      %v929 = vpop.xlane.xlu0 %928
      %v930 = vmax.f32 %v849, %v850
      %931 = vmax.xlane.f32.xlu0 %v930
      %v932 = vpop.xlane.xlu0 %931
      %v933 = vmax.f32 %v851, %v852
      %934 = vmax.xlane.f32.xlu0 %v933
      %v935 = vpop.xlane.xlu0 %934
      %v936 = vmax.f32 %v853, %v854
      %937 = vmax.xlane.f32.xlu0 %v936
      %v938 = vpop.xlane.xlu0 %937
      %v939 = vmax.f32 %v855, %v856
      %940 = vmax.xlane.f32.xlu0 %v939
      %v941 = vpop.xlane.xlu0 %940
      %v942 = vmax.f32 %v857, %v858
      %943 = vmax.xlane.f32.xlu0 %v942
      %v944 = vpop.xlane.xlu0 %943
      %v945 = vmax.f32 %v859, %v860
      %946 = vmax.xlane.f32.xlu0 %v945
      %v947 = vpop.xlane.xlu0 %946
      %v948 = vmax.f32 %v861, %v862
      %949 = vmax.xlane.f32.xlu0 %v948
      %v950 = vpop.xlane.xlu0 %949
      %v951 = vmax.f32 %v863, %v864
      %952 = vmax.xlane.f32.xlu0 %v951
      %v953 = vpop.xlane.xlu0 %952
      %v954 = vmax.f32 %v865, %v866
      %955 = vmax.xlane.f32.xlu0 %v954
      %v956 = vpop.xlane.xlu0 %955
      %v957 = vmax.f32 %v867, %v868
      %958 = vmax.xlane.f32.xlu0 %v957
      %v959 = vpop.xlane.xlu0 %958
      %v960 = vmax.f32 %v869, %v870
      %961 = vmax.xlane.f32.xlu0 %v960
      %v962 = vpop.xlane.xlu0 %961
      %v963 = vmax.f32 %v871, %v872
      %964 = vmax.xlane.f32.xlu0 %v963
      %v965 = vpop.xlane.xlu0 %964
      %v966 = vmax.f32 %v873, %v874
      %967 = vmax.xlane.f32.xlu0 %v966
      %v968 = vpop.xlane.xlu0 %967
      %v969 = vmax.f32 %v875, %v876
      %970 = vmax.xlane.f32.xlu0 %v969
      %v971 = vpop.xlane.xlu0 %970
      %v972 = vmax.f32 %v877, %v878
      %973 = vmax.xlane.f32.xlu0 %v972
      %v974 = vpop.xlane.xlu0 %973
      %v975 = vsub.f32 %v815, %v881
      %v976 = vsub.f32 %v816, %v881
      %v977 = vsub.f32 %v817, %v884
      %v978 = vsub.f32 %v818, %v884
      %v979 = vsub.f32 %v819, %v887
      %v980 = vsub.f32 %v820, %v887
      %v981 = vsub.f32 %v821, %v890
      %v982 = vsub.f32 %v822, %v890
      %v983 = vsub.f32 %v823, %v893
      %v984 = vsub.f32 %v824, %v893
      %v985 = vsub.f32 %v825, %v896
      %v986 = vsub.f32 %v826, %v896
      %v987 = vsub.f32 %v827, %v899
      %v988 = vsub.f32 %v828, %v899
      %v989 = vsub.f32 %v829, %v902
      %v990 = vsub.f32 %v830, %v902
      %v991 = vsub.f32 %v831, %v905
      %v992 = vsub.f32 %v832, %v905
      %v993 = vsub.f32 %v833, %v908
      %v994 = vsub.f32 %v834, %v908
      %v995 = vsub.f32 %v835, %v911
      %v996 = vsub.f32 %v836, %v911
      %v997 = vsub.f32 %v837, %v914
      %v998 = vsub.f32 %v838, %v914
      %v999 = vsub.f32 %v839, %v917
      %v1000 = vsub.f32 %v840, %v917
      %v1001 = vsub.f32 %v841, %v920
      %v1002 = vsub.f32 %v842, %v920
      %v1003 = vsub.f32 %v843, %v923
      %v1004 = vsub.f32 %v844, %v923
      %v1005 = vsub.f32 %v845, %v926
      %v1006 = vsub.f32 %v846, %v926
      %v1007 = vsub.f32 %v847, %v929
      %v1008 = vsub.f32 %v848, %v929
      %v1009 = vsub.f32 %v849, %v932
      %v1010 = vsub.f32 %v850, %v932
      %v1011 = vsub.f32 %v851, %v935
      %v1012 = vsub.f32 %v852, %v935
      %v1013 = vsub.f32 %v853, %v938
      %v1014 = vsub.f32 %v854, %v938
      %v1015 = vsub.f32 %v855, %v941
      %v1016 = vsub.f32 %v856, %v941
      %v1017 = vsub.f32 %v857, %v944
      %v1018 = vsub.f32 %v858, %v944
      %v1019 = vsub.f32 %v859, %v947
      %v1020 = vsub.f32 %v860, %v947
      %v1021 = vsub.f32 %v861, %v950
      %v1022 = vsub.f32 %v862, %v950
      %v1023 = vsub.f32 %v863, %v953
      %v1024 = vsub.f32 %v864, %v953
      %v1025 = vsub.f32 %v865, %v956
      %v1026 = vsub.f32 %v866, %v956
      %v1027 = vsub.f32 %v867, %v959
      %v1028 = vsub.f32 %v868, %v959
      %v1029 = vsub.f32 %v869, %v962
      %v1030 = vsub.f32 %v870, %v962
      %v1031 = vsub.f32 %v871, %v965
      %v1032 = vsub.f32 %v872, %v965
      %v1033 = vsub.f32 %v873, %v968
      %v1034 = vsub.f32 %v874, %v968
      %v1035 = vsub.f32 %v875, %v971
      %v1036 = vsub.f32 %v876, %v971
      %v1037 = vsub.f32 %v877, %v974
      %v1038 = vsub.f32 %v878, %v974
      %v1039 = vmul.f32 %v975, 1.442695
      %v1040 = vpow.pop %v1039
      %v1041 = vmul.f32 %v976, 1.442695
      %v1042 = vpow.pop %v1041
      %v1043 = vmul.f32 %v977, 1.442695
      %v1044 = vpow.pop %v1043
      %v1045 = vmul.f32 %v978, 1.442695
      %v1046 = vpow.pop %v1045
      %v1047 = vmul.f32 %v979, 1.442695
      %v1048 = vpow.pop %v1047
      %v1049 = vmul.f32 %v980, 1.442695
      %v1050 = vpow.pop %v1049
      %v1051 = vmul.f32 %v981, 1.442695
      %v1052 = vpow.pop %v1051
      %v1053 = vmul.f32 %v982, 1.442695
      %v1054 = vpow.pop %v1053
      %v1055 = vmul.f32 %v983, 1.442695
      %v1056 = vpow.pop %v1055
      %v1057 = vmul.f32 %v984, 1.442695
      %v1058 = vpow.pop %v1057
      %v1059 = vmul.f32 %v985, 1.442695
      %v1060 = vpow.pop %v1059
      %v1061 = vmul.f32 %v986, 1.442695
      %v1062 = vpow.pop %v1061
      %v1063 = vmul.f32 %v987, 1.442695
      %v1064 = vpow.pop %v1063
      %v1065 = vmul.f32 %v988, 1.442695
      %v1066 = vpow.pop %v1065
      %v1067 = vmul.f32 %v989, 1.442695
      %v1068 = vpow.pop %v1067
      %v1069 = vmul.f32 %v990, 1.442695
      %v1070 = vpow.pop %v1069
      %v1071 = vmul.f32 %v991, 1.442695
      %v1072 = vpow.pop %v1071
      %v1073 = vmul.f32 %v992, 1.442695
      %v1074 = vpow.pop %v1073
      %v1075 = vmul.f32 %v993, 1.442695
      %v1076 = vpow.pop %v1075
      %v1077 = vmul.f32 %v994, 1.442695
      %v1078 = vpow.pop %v1077
      %v1079 = vmul.f32 %v995, 1.442695
      %v1080 = vpow.pop %v1079
      %v1081 = vmul.f32 %v996, 1.442695
      %v1082 = vpow.pop %v1081
      %v1083 = vmul.f32 %v997, 1.442695
      %v1084 = vpow.pop %v1083
      %v1085 = vmul.f32 %v998, 1.442695
      %v1086 = vpow.pop %v1085
      %v1087 = vmul.f32 %v999, 1.442695
      %v1088 = vpow.pop %v1087
      %v1089 = vmul.f32 %v1000, 1.442695
      %v1090 = vpow.pop %v1089
      %v1091 = vmul.f32 %v1001, 1.442695
      %v1092 = vpow.pop %v1091
      %v1093 = vmul.f32 %v1002, 1.442695
      %v1094 = vpow.pop %v1093
      %v1095 = vmul.f32 %v1003, 1.442695
      %v1096 = vpow.pop %v1095
      %v1097 = vmul.f32 %v1004, 1.442695
      %v1098 = vpow.pop %v1097
      %v1099 = vmul.f32 %v1005, 1.442695
      %v1100 = vpow.pop %v1099
      %v1101 = vmul.f32 %v1006, 1.442695
      %v1102 = vpow.pop %v1101
      %v1103 = vmul.f32 %v1007, 1.442695
      %v1104 = vpow.pop %v1103
      %v1105 = vmul.f32 %v1008, 1.442695
      %v1106 = vpow.pop %v1105
      %v1107 = vmul.f32 %v1009, 1.442695
      %v1108 = vpow.pop %v1107
      %v1109 = vmul.f32 %v1010, 1.442695
      %v1110 = vpow.pop %v1109
      %v1111 = vmul.f32 %v1011, 1.442695
      %v1112 = vpow.pop %v1111
      %v1113 = vmul.f32 %v1012, 1.442695
      %v1114 = vpow.pop %v1113
      %v1115 = vmul.f32 %v1013, 1.442695
      %v1116 = vpow.pop %v1115
      %v1117 = vmul.f32 %v1014, 1.442695
      %v1118 = vpow.pop %v1117
      %v1119 = vmul.f32 %v1015, 1.442695
      %v1120 = vpow.pop %v1119
      %v1121 = vmul.f32 %v1016, 1.442695
      %v1122 = vpow.pop %v1121
      %v1123 = vmul.f32 %v1017, 1.442695
      %v1124 = vpow.pop %v1123
      %v1125 = vmul.f32 %v1018, 1.442695
      %v1126 = vpow.pop %v1125
      %v1127 = vmul.f32 %v1019, 1.442695
      %v1128 = vpow.pop %v1127
      %v1129 = vmul.f32 %v1020, 1.442695
      %v1130 = vpow.pop %v1129
      %v1131 = vmul.f32 %v1021, 1.442695
      %v1132 = vpow.pop %v1131
      %v1133 = vmul.f32 %v1022, 1.442695
      %v1134 = vpow.pop %v1133
      %v1135 = vmul.f32 %v1023, 1.442695
      %v1136 = vpow.pop %v1135
      %v1137 = vmul.f32 %v1024, 1.442695
      %v1138 = vpow.pop %v1137
      %v1139 = vmul.f32 %v1025, 1.442695
      %v1140 = vpow.pop %v1139
      %v1141 = vmul.f32 %v1026, 1.442695
      %v1142 = vpow.pop %v1141
      %v1143 = vmul.f32 %v1027, 1.442695
      %v1144 = vpow.pop %v1143
      %v1145 = vmul.f32 %v1028, 1.442695
      %v1146 = vpow.pop %v1145
      %v1147 = vmul.f32 %v1029, 1.442695
      %v1148 = vpow.pop %v1147
      %v1149 = vmul.f32 %v1030, 1.442695
      %v1150 = vpow.pop %v1149
      %v1151 = vmul.f32 %v1031, 1.442695
      %v1152 = vpow.pop %v1151
      %v1153 = vmul.f32 %v1032, 1.442695
      %v1154 = vpow.pop %v1153
      %v1155 = vmul.f32 %v1033, 1.442695
      %v1156 = vpow.pop %v1155
      %v1157 = vmul.f32 %v1034, 1.442695
      %v1158 = vpow.pop %v1157
      %v1159 = vmul.f32 %v1035, 1.442695
      %v1160 = vpow.pop %v1159
      %v1161 = vmul.f32 %v1036, 1.442695
      %v1162 = vpow.pop %v1161
      %v1163 = vmul.f32 %v1037, 1.442695
      %v1164 = vpow.pop %v1163
      %v1165 = vmul.f32 %v1038, 1.442695
      %v1166 = vpow.pop %v1165
      %v1167 = vadd.f32 %v1040, %v1042
      %1168 = vadd.xlane.f32.xlu0 %v1167
      %v1169 = vpop.xlane.xlu0 %1168
      %v1170 = vadd.f32 %v1044, %v1046
      %1171 = vadd.xlane.f32.xlu0 %v1170
      %v1172 = vpop.xlane.xlu0 %1171
      %v1173 = vadd.f32 %v1048, %v1050
      %1174 = vadd.xlane.f32.xlu0 %v1173
      %v1175 = vpop.xlane.xlu0 %1174
      %v1176 = vadd.f32 %v1052, %v1054
      %1177 = vadd.xlane.f32.xlu0 %v1176
      %v1178 = vpop.xlane.xlu0 %1177
      %v1179 = vadd.f32 %v1056, %v1058
      %1180 = vadd.xlane.f32.xlu0 %v1179
      %v1181 = vpop.xlane.xlu0 %1180
      %v1182 = vadd.f32 %v1060, %v1062
      %1183 = vadd.xlane.f32.xlu0 %v1182
      %v1184 = vpop.xlane.xlu0 %1183
      %v1185 = vadd.f32 %v1064, %v1066
      %1186 = vadd.xlane.f32.xlu0 %v1185
      %v1187 = vpop.xlane.xlu0 %1186
      %v1188 = vadd.f32 %v1068, %v1070
      %1189 = vadd.xlane.f32.xlu0 %v1188
      %v1190 = vpop.xlane.xlu0 %1189
      %v1191 = vadd.f32 %v1072, %v1074
      %1192 = vadd.xlane.f32.xlu0 %v1191
      %v1193 = vpop.xlane.xlu0 %1192
      %v1194 = vadd.f32 %v1076, %v1078
      %1195 = vadd.xlane.f32.xlu0 %v1194
      %v1196 = vpop.xlane.xlu0 %1195
      %v1197 = vadd.f32 %v1080, %v1082
      %1198 = vadd.xlane.f32.xlu0 %v1197
      %v1199 = vpop.xlane.xlu0 %1198
      %v1200 = vadd.f32 %v1084, %v1086
      %1201 = vadd.xlane.f32.xlu0 %v1200
      %v1202 = vpop.xlane.xlu0 %1201
      %v1203 = vadd.f32 %v1088, %v1090
      %1204 = vadd.xlane.f32.xlu0 %v1203
      %v1205 = vpop.xlane.xlu0 %1204
      %v1206 = vadd.f32 %v1092, %v1094
      %1207 = vadd.xlane.f32.xlu0 %v1206
      %v1208 = vpop.xlane.xlu0 %1207
      %v1209 = vadd.f32 %v1096, %v1098
      %1210 = vadd.xlane.f32.xlu0 %v1209
      %v1211 = vpop.xlane.xlu0 %1210
      %v1212 = vadd.f32 %v1100, %v1102
      %1213 = vadd.xlane.f32.xlu0 %v1212
      %v1214 = vpop.xlane.xlu0 %1213
      %v1215 = vadd.f32 %v1104, %v1106
      %1216 = vadd.xlane.f32.xlu0 %v1215
      %v1217 = vpop.xlane.xlu0 %1216
      %v1218 = vadd.f32 %v1108, %v1110
      %1219 = vadd.xlane.f32.xlu0 %v1218
      %v1220 = vpop.xlane.xlu0 %1219
      %v1221 = vadd.f32 %v1112, %v1114
      %1222 = vadd.xlane.f32.xlu0 %v1221
      %v1223 = vpop.xlane.xlu0 %1222
      %v1224 = vadd.f32 %v1116, %v1118
      %1225 = vadd.xlane.f32.xlu0 %v1224
      %v1226 = vpop.xlane.xlu0 %1225
      %v1227 = vadd.f32 %v1120, %v1122
      %1228 = vadd.xlane.f32.xlu0 %v1227
      %v1229 = vpop.xlane.xlu0 %1228
      %v1230 = vadd.f32 %v1124, %v1126
      %1231 = vadd.xlane.f32.xlu0 %v1230
      %v1232 = vpop.xlane.xlu0 %1231
      %v1233 = vadd.f32 %v1128, %v1130
      %1234 = vadd.xlane.f32.xlu0 %v1233
      %v1235 = vpop.xlane.xlu0 %1234
      %v1236 = vadd.f32 %v1132, %v1134
      %1237 = vadd.xlane.f32.xlu0 %v1236
      %v1238 = vpop.xlane.xlu0 %1237
      %v1239 = vadd.f32 %v1136, %v1138
      %1240 = vadd.xlane.f32.xlu0 %v1239
      %v1241 = vpop.xlane.xlu0 %1240
      %v1242 = vadd.f32 %v1140, %v1142
      %1243 = vadd.xlane.f32.xlu0 %v1242
      %v1244 = vpop.xlane.xlu0 %1243
      %v1245 = vadd.f32 %v1144, %v1146
      %1246 = vadd.xlane.f32.xlu0 %v1245
      %v1247 = vpop.xlane.xlu0 %1246
      %v1248 = vadd.f32 %v1148, %v1150
      %1249 = vadd.xlane.f32.xlu0 %v1248
      %v1250 = vpop.xlane.xlu0 %1249
      %v1251 = vadd.f32 %v1152, %v1154
      %1252 = vadd.xlane.f32.xlu0 %v1251
      %v1253 = vpop.xlane.xlu0 %1252
      %v1254 = vadd.f32 %v1156, %v1158
      %1255 = vadd.xlane.f32.xlu0 %v1254
      %v1256 = vpop.xlane.xlu0 %1255
      %v1257 = vadd.f32 %v1160, %v1162
      %1258 = vadd.xlane.f32.xlu0 %v1257
      %v1259 = vpop.xlane.xlu0 %1258
      %v1260 = vadd.f32 %v1164, %v1166
      %1261 = vadd.xlane.f32.xlu0 %v1260
      %v1262 = vpop.xlane.xlu0 %1261
      %v1263 = vrcp.pop %v1169
      %v1264 = vrcp.pop %v1172
      %v1265 = vrcp.pop %v1175
      %v1266 = vrcp.pop %v1178
      %v1267 = vrcp.pop %v1181
      %v1268 = vrcp.pop %v1184
      %v1269 = vrcp.pop %v1187
      %v1270 = vrcp.pop %v1190
      %v1271 = vrcp.pop %v1193
      %v1272 = vrcp.pop %v1196
      %v1273 = vrcp.pop %v1199
      %v1274 = vrcp.pop %v1202
      %v1275 = vrcp.pop %v1205
      %v1276 = vrcp.pop %v1208
      %v1277 = vrcp.pop %v1211
      %v1278 = vrcp.pop %v1214
      %v1279 = vrcp.pop %v1217
      %v1280 = vrcp.pop %v1220
      %v1281 = vrcp.pop %v1223
      %v1282 = vrcp.pop %v1226
      %v1283 = vrcp.pop %v1229
      %v1284 = vrcp.pop %v1232
      %v1285 = vrcp.pop %v1235
      %v1286 = vrcp.pop %v1238
      %v1287 = vrcp.pop %v1241
      %v1288 = vrcp.pop %v1244
      %v1289 = vrcp.pop %v1247
      %v1290 = vrcp.pop %v1250
      %v1291 = vrcp.pop %v1253
      %v1292 = vrcp.pop %v1256
      %v1293 = vrcp.pop %v1259
      %v1294 = vrcp.pop %v1262
      %v1295 = vmul.f32 %v1040, %v1263
      %v1296 = vmul.f32 %v1042, %v1263
      %v1297 = vmul.f32 %v1044, %v1264
      %v1298 = vmul.f32 %v1046, %v1264
      %v1299 = vmul.f32 %v1048, %v1265
      %v1300 = vmul.f32 %v1050, %v1265
      %v1301 = vmul.f32 %v1052, %v1266
      %v1302 = vmul.f32 %v1054, %v1266
      %v1303 = vmul.f32 %v1056, %v1267
      %v1304 = vmul.f32 %v1058, %v1267
      %v1305 = vmul.f32 %v1060, %v1268
      %v1306 = vmul.f32 %v1062, %v1268
      %v1307 = vmul.f32 %v1064, %v1269
      %v1308 = vmul.f32 %v1066, %v1269
      %v1309 = vmul.f32 %v1068, %v1270
      %v1310 = vmul.f32 %v1070, %v1270
      %v1311 = vmul.f32 %v1072, %v1271
      %v1312 = vmul.f32 %v1074, %v1271
      %v1313 = vmul.f32 %v1076, %v1272
      %v1314 = vmul.f32 %v1078, %v1272
      %v1315 = vmul.f32 %v1080, %v1273
      %v1316 = vmul.f32 %v1082, %v1273
      %v1317 = vmul.f32 %v1084, %v1274
      %v1318 = vmul.f32 %v1086, %v1274
      %v1319 = vmul.f32 %v1088, %v1275
      %v1320 = vmul.f32 %v1090, %v1275
      %v1321 = vmul.f32 %v1092, %v1276
      %v1322 = vmul.f32 %v1094, %v1276
      %v1323 = vmul.f32 %v1096, %v1277
      %v1324 = vmul.f32 %v1098, %v1277
      %v1325 = vmul.f32 %v1100, %v1278
      %v1326 = vmul.f32 %v1102, %v1278
      %v1327 = vmul.f32 %v1104, %v1279
      %v1328 = vmul.f32 %v1106, %v1279
      %v1329 = vmul.f32 %v1108, %v1280
      %v1330 = vmul.f32 %v1110, %v1280
      %v1331 = vmul.f32 %v1112, %v1281
      %v1332 = vmul.f32 %v1114, %v1281
      %v1333 = vmul.f32 %v1116, %v1282
      %v1334 = vmul.f32 %v1118, %v1282
      %v1335 = vmul.f32 %v1120, %v1283
      %v1336 = vmul.f32 %v1122, %v1283
      %v1337 = vmul.f32 %v1124, %v1284
      %v1338 = vmul.f32 %v1126, %v1284
      %v1339 = vmul.f32 %v1128, %v1285
      %v1340 = vmul.f32 %v1130, %v1285
      %v1341 = vmul.f32 %v1132, %v1286
      %v1342 = vmul.f32 %v1134, %v1286
      %v1343 = vmul.f32 %v1136, %v1287
      %v1344 = vmul.f32 %v1138, %v1287
      %v1345 = vmul.f32 %v1140, %v1288
      %v1346 = vmul.f32 %v1142, %v1288
      %v1347 = vmul.f32 %v1144, %v1289
      %v1348 = vmul.f32 %v1146, %v1289
      %v1349 = vmul.f32 %v1148, %v1290
      %v1350 = vmul.f32 %v1150, %v1290
      %v1351 = vmul.f32 %v1152, %v1291
      %v1352 = vmul.f32 %v1154, %v1291
      %v1353 = vmul.f32 %v1156, %v1292
      %v1354 = vmul.f32 %v1158, %v1292
      %v1355 = vmul.f32 %v1160, %v1293
      %v1356 = vmul.f32 %v1162, %v1293
      %v1357 = vmul.f32 %v1164, %v1294
      %v1358 = vmul.f32 %v1166, %v1294
      %v1359 = vpack.c.bf16 %v1297, %v1295
      %v1360 = vpack.c.bf16 %v1298, %v1296
      %v1361 = vpack.c.bf16 %v1301, %v1299
      %v1362 = vpack.c.bf16 %v1302, %v1300
      %v1363 = vpack.c.bf16 %v1305, %v1303
      %v1364 = vpack.c.bf16 %v1306, %v1304
      %v1365 = vpack.c.bf16 %v1309, %v1307
      %v1366 = vpack.c.bf16 %v1310, %v1308
      %v1367 = vpack.c.bf16 %v1313, %v1311
      %v1368 = vpack.c.bf16 %v1314, %v1312
      %v1369 = vpack.c.bf16 %v1317, %v1315
      %v1370 = vpack.c.bf16 %v1318, %v1316
      %v1371 = vpack.c.bf16 %v1321, %v1319
      %v1372 = vpack.c.bf16 %v1322, %v1320
      %v1373 = vpack.c.bf16 %v1325, %v1323
      %v1374 = vpack.c.bf16 %v1326, %v1324
      %v1375 = vpack.c.bf16 %v1329, %v1327
      %v1376 = vpack.c.bf16 %v1330, %v1328
      %v1377 = vpack.c.bf16 %v1333, %v1331
      %v1378 = vpack.c.bf16 %v1334, %v1332
      %v1379 = vpack.c.bf16 %v1337, %v1335
      %v1380 = vpack.c.bf16 %v1338, %v1336
      %v1381 = vpack.c.bf16 %v1341, %v1339
      %v1382 = vpack.c.bf16 %v1342, %v1340
      %v1383 = vpack.c.bf16 %v1345, %v1343
      %v1384 = vpack.c.bf16 %v1346, %v1344
      %v1385 = vpack.c.bf16 %v1349, %v1347
      %v1386 = vpack.c.bf16 %v1350, %v1348
      %v1387 = vpack.c.bf16 %v1353, %v1351
      %v1388 = vpack.c.bf16 %v1354, %v1352
      %v1389 = vpack.c.bf16 %v1357, %v1355
      %v1390 = vpack.c.bf16 %v1358, %v1356
      %1391 = vrot.lane.b32.xlu0 %v462, 120
      %v1392 = vpop.permute.xlu0 %1391
      %1393 = vrot.lane.b32.xlu0 %v463, 120
      %v1394 = vpop.permute.xlu0 %1393
      %1395 = vrot.lane.b32.xlu0 %v464, 120
      %v1396 = vpop.permute.xlu0 %1395
      %1397 = vrot.lane.b32.xlu0 %v465, 120
      %v1398 = vpop.permute.xlu0 %1397
      %1399 = vrot.lane.b32.xlu0 %v466, 120
      %v1400 = vpop.permute.xlu0 %1399
      %1401 = vrot.lane.b32.xlu0 %v467, 120
      %v1402 = vpop.permute.xlu0 %1401
      %1403 = vrot.lane.b32.xlu0 %v468, 120
      %v1404 = vpop.permute.xlu0 %1403
      %1405 = vrot.lane.b32.xlu0 %v469, 120
      %v1406 = vpop.permute.xlu0 %1405
      %1407 = vrot.lane.b32.xlu0 %v470, 120
      %v1408 = vpop.permute.xlu0 %1407
      %1409 = vrot.lane.b32.xlu0 %v471, 120
      %v1410 = vpop.permute.xlu0 %1409
      %1411 = vrot.lane.b32.xlu0 %v472, 120
      %v1412 = vpop.permute.xlu0 %1411
      %1413 = vrot.lane.b32.xlu0 %v473, 120
      %v1414 = vpop.permute.xlu0 %1413
      %1415 = vrot.lane.b32.xlu0 %v474, 120
      %v1416 = vpop.permute.xlu0 %1415
      %1417 = vrot.lane.b32.xlu0 %v475, 120
      %v1418 = vpop.permute.xlu0 %1417
      %1419 = vrot.lane.b32.xlu0 %v476, 120
      %v1420 = vpop.permute.xlu0 %1419
      %1421 = vrot.lane.b32.xlu0 %v477, 120
      %v1422 = vpop.permute.xlu0 %1421
      %1439 = vmatprep.subr.bf16.mxu0 0
      %1440 = vmatpush1.bf16.msra.mxu0 %v1392
      %1441 = vmatprep.subr.bf16.mxu0 0
      %1442 = vmatpush1.bf16.msra.mxu0 %v1394
      %1443 = vmatprep.subr.bf16.mxu0 0
      %1444 = vmatpush1.bf16.msra.mxu0 %v1396
      %1445 = vmatprep.subr.bf16.mxu0 0
      %1446 = vmatpush1.bf16.msra.mxu0 %v1398
      %1447 = vmatprep.subr.bf16.mxu0 0
      %1448 = vmatpush1.bf16.msra.mxu0 %v1400
      %1449 = vmatprep.subr.bf16.mxu0 0
      %1450 = vmatpush1.bf16.msra.mxu0 %v1402
      %1451 = vmatprep.subr.bf16.mxu0 0
      %1452 = vmatpush1.bf16.msra.mxu0 %v1404
      %1453 = vmatprep.subr.bf16.mxu0 0
      %1454 = vmatpush1.bf16.msra.mxu0 %v1406
      %1455 = vmatprep.subr.bf16.mxu0 0
      %1456 = vmatpush1.bf16.msra.mxu0 %v1408
      %1457 = vmatprep.subr.bf16.mxu0 0
      %1458 = vmatpush1.bf16.msra.mxu0 %v1410
      %1459 = vmatprep.subr.bf16.mxu0 0
      %1460 = vmatpush1.bf16.msra.mxu0 %v1412
      %1461 = vmatprep.subr.bf16.mxu0 0
      %1462 = vmatpush1.bf16.msra.mxu0 %v1414
      %1463 = vmatprep.subr.bf16.mxu0 0
      %1464 = vmatpush1.bf16.msra.mxu0 %v1416
      %1465 = vmatprep.subr.bf16.mxu0 0
      %1466 = vmatpush1.bf16.msra.mxu0 %v1418
      %1467 = vmatprep.subr.bf16.mxu0 0
      %1468 = vmatpush1.bf16.msra.mxu0 %v1420
      %1469 = vmatprep.subr.bf16.mxu0 0
      %1470 = vmatpush1.bf16.msra.mxu0 %v1422
      %1471 = vmatprep.mubr.bf16.mxu0 %v1360
      %1472 = vmatmul.mubr.bf16.gmra.mrb[0].mxu0 %v1359
      %v1473 = vpop.f32.mrb[0].mxu0
      %v1474 = vadd.f32 0.0, %v1473
      %v1475 = vpop.f32.mrb[0].mxu0
      %v1476 = vpop.f32.mrb[0].mxu0
      %v1477 = vadd.f32 0.0, %v1476
      %v1478 = vpop.f32.mrb[0].mxu0
      %1479 = vmatprep.mubr.bf16.mxu0 %v1362
      %1480 = vmatmul.mubr.bf16.gmra.mrb[0].mxu0 %v1361
      %v1481 = vpop.f32.mrb[0].mxu0
      %v1482 = vadd.f32 0.0, %v1481
      %v1483 = vpop.f32.mrb[0].mxu0
      %v1484 = vpop.f32.mrb[0].mxu0
      %v1485 = vadd.f32 0.0, %v1484
      %v1486 = vpop.f32.mrb[0].mxu0
      %1487 = vmatprep.mubr.bf16.mxu0 %v1364
      %1488 = vmatmul.mubr.bf16.gmra.mrb[0].mxu0 %v1363
      %v1489 = vpop.f32.mrb[0].mxu0
      %v1490 = vadd.f32 0.0, %v1489
      %v1491 = vpop.f32.mrb[0].mxu0
      %v1492 = vpop.f32.mrb[0].mxu0
      %v1493 = vadd.f32 0.0, %v1492
      %v1494 = vpop.f32.mrb[0].mxu0
      %1495 = vmatprep.mubr.bf16.mxu0 %v1366
      %1496 = vmatmul.mubr.bf16.gmra.mrb[0].mxu0 %v1365
      %v1497 = vpop.f32.mrb[0].mxu0
      %v1498 = vadd.f32 0.0, %v1497
      %v1499 = vpop.f32.mrb[0].mxu0
      %v1500 = vpop.f32.mrb[0].mxu0
      %v1501 = vadd.f32 0.0, %v1500
      %v1502 = vpop.f32.mrb[0].mxu0
      %1503 = vmatprep.mubr.bf16.mxu0 %v1368
      %1504 = vmatmul.mubr.bf16.gmra.mrb[0].mxu0 %v1367
      %v1505 = vpop.f32.mrb[0].mxu0
      %v1506 = vadd.f32 0.0, %v1505
      %v1507 = vpop.f32.mrb[0].mxu0
      %v1508 = vpop.f32.mrb[0].mxu0
      %v1509 = vadd.f32 0.0, %v1508
      %v1510 = vpop.f32.mrb[0].mxu0
      %1511 = vmatprep.mubr.bf16.mxu0 %v1370
      %1512 = vmatmul.mubr.bf16.gmra.mrb[0].mxu0 %v1369
      %v1513 = vpop.f32.mrb[0].mxu0
      %v1514 = vadd.f32 0.0, %v1513
      %v1515 = vpop.f32.mrb[0].mxu0
      %v1516 = vpop.f32.mrb[0].mxu0
      %v1517 = vadd.f32 0.0, %v1516
      %v1518 = vpop.f32.mrb[0].mxu0
      %1519 = vmatprep.mubr.bf16.mxu0 %v1372
      %1520 = vmatmul.mubr.bf16.gmra.mrb[0].mxu0 %v1371
      %v1521 = vpop.f32.mrb[0].mxu0
      %v1522 = vadd.f32 0.0, %v1521
      %v1523 = vpop.f32.mrb[0].mxu0
      %v1524 = vpop.f32.mrb[0].mxu0
      %v1525 = vadd.f32 0.0, %v1524
      %v1526 = vpop.f32.mrb[0].mxu0
      %1527 = vmatprep.mubr.bf16.mxu0 %v1374
      %1528 = vmatmul.mubr.bf16.gmra.mrb[0].mxu0 %v1373
      %v1529 = vpop.f32.mrb[0].mxu0
      %v1530 = vadd.f32 0.0, %v1529
      %v1531 = vpop.f32.mrb[0].mxu0
      %v1532 = vpop.f32.mrb[0].mxu0
      %v1533 = vadd.f32 0.0, %v1532
      %v1534 = vpop.f32.mrb[0].mxu0
      %1535 = vmatprep.mubr.bf16.mxu0 %v1376
      %1536 = vmatmul.mubr.bf16.gmra.mrb[0].mxu0 %v1375
      %v1537 = vpop.f32.mrb[0].mxu0
      %v1538 = vadd.f32 0.0, %v1537
      %v1539 = vpop.f32.mrb[0].mxu0
      %v1540 = vpop.f32.mrb[0].mxu0
      %v1541 = vadd.f32 0.0, %v1540
      %v1542 = vpop.f32.mrb[0].mxu0
      %1543 = vmatprep.mubr.bf16.mxu0 %v1378
      %1544 = vmatmul.mubr.bf16.gmra.mrb[0].mxu0 %v1377
      %v1545 = vpop.f32.mrb[0].mxu0
      %v1546 = vadd.f32 0.0, %v1545
      %v1547 = vpop.f32.mrb[0].mxu0
      %v1548 = vpop.f32.mrb[0].mxu0
      %v1549 = vadd.f32 0.0, %v1548
      %v1550 = vpop.f32.mrb[0].mxu0
      %1551 = vmatprep.mubr.bf16.mxu0 %v1380
      %1552 = vmatmul.mubr.bf16.gmra.mrb[0].mxu0 %v1379
      %v1553 = vpop.f32.mrb[0].mxu0
      %v1554 = vadd.f32 0.0, %v1553
      %v1555 = vpop.f32.mrb[0].mxu0
      %v1556 = vpop.f32.mrb[0].mxu0
      %v1557 = vadd.f32 0.0, %v1556
      %v1558 = vpop.f32.mrb[0].mxu0
      %1559 = vmatprep.mubr.bf16.mxu0 %v1382
      %1560 = vmatmul.mubr.bf16.gmra.mrb[0].mxu0 %v1381
      %v1561 = vpop.f32.mrb[0].mxu0
      %v1562 = vadd.f32 0.0, %v1561
      %v1563 = vpop.f32.mrb[0].mxu0
      %v1564 = vpop.f32.mrb[0].mxu0
      %v1565 = vadd.f32 0.0, %v1564
      %v1566 = vpop.f32.mrb[0].mxu0
      %1567 = vmatprep.mubr.bf16.mxu0 %v1384
      %1568 = vmatmul.mubr.bf16.gmra.mrb[0].mxu0 %v1383
      %v1569 = vpop.f32.mrb[0].mxu0
      %v1570 = vadd.f32 0.0, %v1569
      %v1571 = vpop.f32.mrb[0].mxu0
      %v1572 = vpop.f32.mrb[0].mxu0
      %v1573 = vadd.f32 0.0, %v1572
      %v1574 = vpop.f32.mrb[0].mxu0
      %1575 = vmatprep.mubr.bf16.mxu0 %v1386
      %1576 = vmatmul.mubr.bf16.gmra.mrb[0].mxu0 %v1385
      %v1577 = vpop.f32.mrb[0].mxu0
      %v1578 = vadd.f32 0.0, %v1577
      %v1579 = vpop.f32.mrb[0].mxu0
      %v1580 = vpop.f32.mrb[0].mxu0
      %v1581 = vadd.f32 0.0, %v1580
      %v1582 = vpop.f32.mrb[0].mxu0
      %1583 = vmatprep.mubr.bf16.mxu0 %v1388
      %1584 = vmatmul.mubr.bf16.gmra.mrb[0].mxu0 %v1387
      %v1585 = vpop.f32.mrb[0].mxu0
      %v1586 = vadd.f32 0.0, %v1585
      %v1587 = vpop.f32.mrb[0].mxu0
      %v1588 = vpop.f32.mrb[0].mxu0
      %v1589 = vadd.f32 0.0, %v1588
      %v1590 = vpop.f32.mrb[0].mxu0
      %1591 = vmatprep.mubr.bf16.mxu0 %v1390
      %1592 = vmatmul.mubr.bf16.gmra.mrb[0].mxu0 %v1389
      %v1593 = vpop.f32.mrb[0].mxu0
      %v1594 = vadd.f32 0.0, %v1593
      %v1595 = vpop.f32.mrb[0].mxu0
      %v1596 = vpop.f32.mrb[0].mxu0
      %v1597 = vadd.f32 0.0, %v1596
      %v1598 = vpop.f32.mrb[0].mxu0
      %1599 = vdwg.mxu0
      %v1600 = vpack.c.bf16 %v1477, %v1474
      %v1601 = vpack.c.bf16 %v1485, %v1482
      %v1602 = vpack.c.bf16 %v1493, %v1490
      %v1603 = vpack.c.bf16 %v1501, %v1498
      %v1604 = vpack.c.bf16 %v1509, %v1506
      %v1605 = vpack.c.bf16 %v1517, %v1514
      %v1606 = vpack.c.bf16 %v1525, %v1522
      %v1607 = vpack.c.bf16 %v1533, %v1530
      %v1608 = vpack.c.bf16 %v1541, %v1538
      %v1609 = vpack.c.bf16 %v1549, %v1546
      %v1610 = vpack.c.bf16 %v1557, %v1554
      %v1611 = vpack.c.bf16 %v1565, %v1562
      %v1612 = vpack.c.bf16 %v1573, %v1570
      %v1613 = vpack.c.bf16 %v1581, %v1578
      %v1614 = vpack.c.bf16 %v1589, %v1586
      %v1615 = vpack.c.bf16 %v1597, %v1594
      %v1616 = vld [vmem:[%s2] sm:$0x3]
      %v1617 = vld [vmem:[%s3] sm:$0x1]
      %v1619 = vlaneseq
      %v1620 = vshrl.u32 %v1619, 7
      %v1621 = vsub.s32 0, %v1620
      %v1622 = vrot.slane %v1617, %v1621
      %v1625 = vsel %vm248, %v1600, 0
      %v1628 = vsel %vm248, %v1601, 0
      %v1631 = vsel %vm248, %v1602, 0
      %v1634 = vsel %vm248, %v1603, 0
      %v1637 = vsel %vm248, %v1604, 0
      %v1640 = vsel %vm248, %v1605, 0
      %v1643 = vsel %vm248, %v1606, 0
      %v1646 = vsel %vm248, %v1607, 0
      %v1649 = vsel %vm248, %v1608, 0
      %v1652 = vsel %vm248, %v1609, 0
      %v1655 = vsel %vm248, %v1610, 0
      %v1658 = vsel %vm248, %v1611, 0
      %v1661 = vsel %vm248, %v1612, 0
      %v1664 = vsel %vm248, %v1613, 0
      %v1667 = vsel %vm248, %v1614, 0
      %v1670 = vsel %vm248, %v1615, 0
      %v1673 = vsel %vm297, %v1616, 0
      %1675 = vmatprep.subr.bf16.mxu0 0
      %1676 = vmatpush1.bf16.msra.mxu0 %v1673
      %1677 = vmatprep.subr.bf16.mxu0 0
      %1678 = vmatpush1.bf16.msra.mxu0 0
      %1679 = vmatprep.subr.bf16.mxu0 0
      %1680 = vmatpush1.bf16.msra.mxu0 0
      %1681 = vmatprep.subr.bf16.mxu0 0
      %1682 = vmatpush1.bf16.msra.mxu0 0
      %1683 = vmatprep.subr.bf16.mxu0 0
      %1684 = vmatpush1.bf16.msra.mxu0 0
      %1685 = vmatprep.subr.bf16.mxu0 0
      %1686 = vmatpush1.bf16.msra.mxu0 0
      %1687 = vmatprep.subr.bf16.mxu0 0
      %1688 = vmatpush1.bf16.msra.mxu0 0
      %1689 = vmatprep.subr.bf16.mxu0 0
      %1690 = vmatpush1.bf16.msra.mxu0 0
      %1691 = vmatprep.subr.bf16.mxu0 0
      %1692 = vmatpush1.bf16.msra.mxu0 0
      %1693 = vmatprep.subr.bf16.mxu0 0
      %1694 = vmatpush1.bf16.msra.mxu0 0
      %1695 = vmatprep.subr.bf16.mxu0 0
      %1696 = vmatpush1.bf16.msra.mxu0 0
      %1697 = vmatprep.subr.bf16.mxu0 0
      %1698 = vmatpush1.bf16.msra.mxu0 0
      %1699 = vmatprep.subr.bf16.mxu0 0
      %1700 = vmatpush1.bf16.msra.mxu0 0
      %1701 = vmatprep.subr.bf16.mxu0 0
      %1702 = vmatpush1.bf16.msra.mxu0 0
      %1703 = vmatprep.subr.bf16.mxu0 0
      %1704 = vmatpush1.bf16.msra.mxu0 0
      %1705 = vmatprep.subr.bf16.mxu0 0
      %1706 = vmatpush1.bf16.msra.mxu0 0
      %1707 = vmatprep.mubr.bf16.mxu0 0
      %1708 = vmatmul.mubr.bf16.gmra.mrb[0].mxu0 %v1625
      %v1709 = vpop.f32.mrb[0].mxu0
      %v1710 = vadd.f32 %v1622, %v1709
      %v1711 = vpop.f32.mrb[0].mxu0
      %v1712 = vpop.f32.mrb[0].mxu0
      %v1713 = vadd.f32 %v1622, %v1712
      %v1714 = vpop.f32.mrb[0].mxu0
      %1715 = vmatprep.mubr.bf16.mxu0 0
      %1716 = vmatmul.mubr.bf16.gmra.mrb[0].mxu0 %v1628
      %v1717 = vpop.f32.mrb[0].mxu0
      %v1718 = vadd.f32 %v1622, %v1717
      %v1719 = vpop.f32.mrb[0].mxu0
      %v1720 = vpop.f32.mrb[0].mxu0
      %v1721 = vadd.f32 %v1622, %v1720
      %v1722 = vpop.f32.mrb[0].mxu0
      %1723 = vmatprep.mubr.bf16.mxu0 0
      %1724 = vmatmul.mubr.bf16.gmra.mrb[0].mxu0 %v1631
      %v1725 = vpop.f32.mrb[0].mxu0
      %v1726 = vadd.f32 %v1622, %v1725
      %v1727 = vpop.f32.mrb[0].mxu0
      %v1728 = vpop.f32.mrb[0].mxu0
      %v1729 = vadd.f32 %v1622, %v1728
      %v1730 = vpop.f32.mrb[0].mxu0
      %1731 = vmatprep.mubr.bf16.mxu0 0
      %1732 = vmatmul.mubr.bf16.gmra.mrb[0].mxu0 %v1634
      %v1733 = vpop.f32.mrb[0].mxu0
      %v1734 = vadd.f32 %v1622, %v1733
      %v1735 = vpop.f32.mrb[0].mxu0
      %v1736 = vpop.f32.mrb[0].mxu0
      %v1737 = vadd.f32 %v1622, %v1736
      %v1738 = vpop.f32.mrb[0].mxu0
      %1739 = vmatprep.mubr.bf16.mxu0 0
      %1740 = vmatmul.mubr.bf16.gmra.mrb[0].mxu0 %v1637
      %v1741 = vpop.f32.mrb[0].mxu0
      %v1742 = vadd.f32 %v1622, %v1741
      %v1743 = vpop.f32.mrb[0].mxu0
      %v1744 = vpop.f32.mrb[0].mxu0
      %v1745 = vadd.f32 %v1622, %v1744
      %v1746 = vpop.f32.mrb[0].mxu0
      %1747 = vmatprep.mubr.bf16.mxu0 0
      %1748 = vmatmul.mubr.bf16.gmra.mrb[0].mxu0 %v1640
      %v1749 = vpop.f32.mrb[0].mxu0
      %v1750 = vadd.f32 %v1622, %v1749
      %v1751 = vpop.f32.mrb[0].mxu0
      %v1752 = vpop.f32.mrb[0].mxu0
      %v1753 = vadd.f32 %v1622, %v1752
      %v1754 = vpop.f32.mrb[0].mxu0
      %1755 = vmatprep.mubr.bf16.mxu0 0
      %1756 = vmatmul.mubr.bf16.gmra.mrb[0].mxu0 %v1643
      %v1757 = vpop.f32.mrb[0].mxu0
      %v1758 = vadd.f32 %v1622, %v1757
      %v1759 = vpop.f32.mrb[0].mxu0
      %v1760 = vpop.f32.mrb[0].mxu0
      %v1761 = vadd.f32 %v1622, %v1760
      %v1762 = vpop.f32.mrb[0].mxu0
      %1763 = vmatprep.mubr.bf16.mxu0 0
      %1764 = vmatmul.mubr.bf16.gmra.mrb[0].mxu0 %v1646
      %v1765 = vpop.f32.mrb[0].mxu0
      %v1766 = vadd.f32 %v1622, %v1765
      %v1767 = vpop.f32.mrb[0].mxu0
      %v1768 = vpop.f32.mrb[0].mxu0
      %v1769 = vadd.f32 %v1622, %v1768
      %v1770 = vpop.f32.mrb[0].mxu0
      %1771 = vmatprep.mubr.bf16.mxu0 0
      %1772 = vmatmul.mubr.bf16.gmra.mrb[0].mxu0 %v1649
      %v1773 = vpop.f32.mrb[0].mxu0
      %v1774 = vadd.f32 %v1622, %v1773
      %v1775 = vpop.f32.mrb[0].mxu0
      %v1776 = vpop.f32.mrb[0].mxu0
      %v1777 = vadd.f32 %v1622, %v1776
      %v1778 = vpop.f32.mrb[0].mxu0
      %1779 = vmatprep.mubr.bf16.mxu0 0
      %1780 = vmatmul.mubr.bf16.gmra.mrb[0].mxu0 %v1652
      %v1781 = vpop.f32.mrb[0].mxu0
      %v1782 = vadd.f32 %v1622, %v1781
      %v1783 = vpop.f32.mrb[0].mxu0
      %v1784 = vpop.f32.mrb[0].mxu0
      %v1785 = vadd.f32 %v1622, %v1784
      %v1786 = vpop.f32.mrb[0].mxu0
      %1787 = vmatprep.mubr.bf16.mxu0 0
      %1788 = vmatmul.mubr.bf16.gmra.mrb[0].mxu0 %v1655
      %v1789 = vpop.f32.mrb[0].mxu0
      %v1790 = vadd.f32 %v1622, %v1789
      %v1791 = vpop.f32.mrb[0].mxu0
      %v1792 = vpop.f32.mrb[0].mxu0
      %v1793 = vadd.f32 %v1622, %v1792
      %v1794 = vpop.f32.mrb[0].mxu0
      %1795 = vmatprep.mubr.bf16.mxu0 0
      %1796 = vmatmul.mubr.bf16.gmra.mrb[0].mxu0 %v1658
      %v1797 = vpop.f32.mrb[0].mxu0
      %v1798 = vadd.f32 %v1622, %v1797
      %v1799 = vpop.f32.mrb[0].mxu0
      %v1800 = vpop.f32.mrb[0].mxu0
      %v1801 = vadd.f32 %v1622, %v1800
      %v1802 = vpop.f32.mrb[0].mxu0
      %1803 = vmatprep.mubr.bf16.mxu0 0
      %1804 = vmatmul.mubr.bf16.gmra.mrb[0].mxu0 %v1661
      %v1805 = vpop.f32.mrb[0].mxu0
      %v1806 = vadd.f32 %v1622, %v1805
      %v1807 = vpop.f32.mrb[0].mxu0
      %v1808 = vpop.f32.mrb[0].mxu0
      %v1809 = vadd.f32 %v1622, %v1808
      %v1810 = vpop.f32.mrb[0].mxu0
      %1811 = vmatprep.mubr.bf16.mxu0 0
      %1812 = vmatmul.mubr.bf16.gmra.mrb[0].mxu0 %v1664
      %v1813 = vpop.f32.mrb[0].mxu0
      %v1814 = vadd.f32 %v1622, %v1813
      %v1815 = vpop.f32.mrb[0].mxu0
      %v1816 = vpop.f32.mrb[0].mxu0
      %v1817 = vadd.f32 %v1622, %v1816
      %v1818 = vpop.f32.mrb[0].mxu0
      %1819 = vmatprep.mubr.bf16.mxu0 0
      %1820 = vmatmul.mubr.bf16.gmra.mrb[0].mxu0 %v1667
      %v1821 = vpop.f32.mrb[0].mxu0
      %v1822 = vadd.f32 %v1622, %v1821
      %v1823 = vpop.f32.mrb[0].mxu0
      %v1824 = vpop.f32.mrb[0].mxu0
      %v1825 = vadd.f32 %v1622, %v1824
      %v1826 = vpop.f32.mrb[0].mxu0
      %1827 = vmatprep.mubr.bf16.mxu0 0
      %1828 = vmatmul.mubr.bf16.gmra.mrb[0].mxu0 %v1670
      %v1829 = vpop.f32.mrb[0].mxu0
      %v1830 = vadd.f32 %v1622, %v1829
      %v1831 = vpop.f32.mrb[0].mxu0
      %v1832 = vpop.f32.mrb[0].mxu0
      %v1833 = vadd.f32 %v1622, %v1832
      %v1834 = vpop.f32.mrb[0].mxu0
      %1835 = vdwg.mxu0
      %v1836 = vadd.f32 %v199, %v1710
      %v1837 = vadd.f32 %v200, %v1713
      %v1838 = vadd.f32 %v201, %v1718
      %v1839 = vadd.f32 %v202, %v1721
      %v1840 = vadd.f32 %v203, %v1726
      %v1841 = vadd.f32 %v204, %v1729
      %v1842 = vadd.f32 %v205, %v1734
      %v1843 = vadd.f32 %v206, %v1737
      %v1844 = vadd.f32 %v207, %v1742
      %v1845 = vadd.f32 %v208, %v1745
      %v1846 = vadd.f32 %v209, %v1750
      %v1847 = vadd.f32 %v210, %v1753
      %v1848 = vadd.f32 %v211, %v1758
      %v1849 = vadd.f32 %v212, %v1761
      %v1850 = vadd.f32 %v213, %v1766
      %v1851 = vadd.f32 %v214, %v1769
      %v1852 = vadd.f32 %v215, %v1774
      %v1853 = vadd.f32 %v216, %v1777
      %v1854 = vadd.f32 %v217, %v1782
      %v1855 = vadd.f32 %v218, %v1785
      %v1856 = vadd.f32 %v219, %v1790
      %v1857 = vadd.f32 %v220, %v1793
      %v1858 = vadd.f32 %v221, %v1798
      %v1859 = vadd.f32 %v222, %v1801
      %v1860 = vadd.f32 %v223, %v1806
      %v1861 = vadd.f32 %v224, %v1809
      %v1862 = vadd.f32 %v225, %v1814
      %v1863 = vadd.f32 %v226, %v1817
      %v1864 = vadd.f32 %v227, %v1822
      %v1865 = vadd.f32 %v228, %v1825
      %v1866 = vadd.f32 %v229, %v1830
      %v1867 = vadd.f32 %v230, %v1833
      %1868 = vst.msk [vmem:[%s197] sm:$0xff] %vm248, %v1836
      %1869 = vst.msk [vmem:[%s197 + $0x8] sm:$0xff] %vm248, %v1837
      %1870 = vst.msk [vmem:[%s197 + $0x10] sm:$0xff] %vm248, %v1838
      %1871 = vst.msk [vmem:[%s197 + $0x18] sm:$0xff] %vm248, %v1839
      %1872 = vst.msk [vmem:[%s197 + $0x20] sm:$0xff] %vm248, %v1840
      %1873 = vst.msk [vmem:[%s197 + $0x28] sm:$0xff] %vm248, %v1841
      %1874 = vst.msk [vmem:[%s197 + $0x30] sm:$0xff] %vm248, %v1842
      %1875 = vst.msk [vmem:[%s197 + $0x38] sm:$0xff] %vm248, %v1843
      %1876 = vst.msk [vmem:[%s197 + $0x40] sm:$0xff] %vm248, %v1844
      %1877 = vst.msk [vmem:[%s197 + $0x48] sm:$0xff] %vm248, %v1845
      %1878 = vst.msk [vmem:[%s197 + $0x50] sm:$0xff] %vm248, %v1846
      %1879 = vst.msk [vmem:[%s197 + $0x58] sm:$0xff] %vm248, %v1847
      %1880 = vst.msk [vmem:[%s197 + $0x60] sm:$0xff] %vm248, %v1848
      %1881 = vst.msk [vmem:[%s197 + $0x68] sm:$0xff] %vm248, %v1849
      %1882 = vst.msk [vmem:[%s197 + $0x70] sm:$0xff] %vm248, %v1850
      %1883 = vst.msk [vmem:[%s197 + $0x78] sm:$0xff] %vm248, %v1851
      %1884 = vst.msk [vmem:[%s197 + $0x80] sm:$0xff] %vm248, %v1852
      %1885 = vst.msk [vmem:[%s197 + $0x88] sm:$0xff] %vm248, %v1853
      %1886 = vst.msk [vmem:[%s197 + $0x90] sm:$0xff] %vm248, %v1854
      %1887 = vst.msk [vmem:[%s197 + $0x98] sm:$0xff] %vm248, %v1855
      %1888 = vst.msk [vmem:[%s197 + $0xa0] sm:$0xff] %vm248, %v1856
      %1889 = vst.msk [vmem:[%s197 + $0xa8] sm:$0xff] %vm248, %v1857
      %1890 = vst.msk [vmem:[%s197 + $0xb0] sm:$0xff] %vm248, %v1858
      %1891 = vst.msk [vmem:[%s197 + $0xb8] sm:$0xff] %vm248, %v1859
      %1892 = vst.msk [vmem:[%s197 + $0xc0] sm:$0xff] %vm248, %v1860
      %1893 = vst.msk [vmem:[%s197 + $0xc8] sm:$0xff] %vm248, %v1861
      %1894 = vst.msk [vmem:[%s197 + $0xd0] sm:$0xff] %vm248, %v1862
      %1895 = vst.msk [vmem:[%s197 + $0xd8] sm:$0xff] %vm248, %v1863
      %1896 = vst.msk [vmem:[%s197 + $0xe0] sm:$0xff] %vm248, %v1864
      %1897 = vst.msk [vmem:[%s197 + $0xe8] sm:$0xff] %vm248, %v1865
      %1898 = vst.msk [vmem:[%s197 + $0xf0] sm:$0xff] %vm248, %v1866
      %1899 = vst.msk [vmem:[%s197 + $0xf8] sm:$0xff] %vm248, %v1867
      %p1900 = scmp.lt.s32.totalorder %s15, 1
      %s1901 = scalar_select %p1900, %s15, 1
      %s1902 = smul.addr %s1901, 32
      %s1903 = smul.addr %s1902, 8
      %s1904 = scalar_lea.vmem %s4, %s1903
      // Predicated region
      $region37: #{mask_head_forward.11} parent=35 // pred_check
        %p1905 = pneg %p122
      $region38: #{mask_head_forward.11} parent=35 // pred_check_branch
        %1907 = sbr.rel (%p1905) target = $region40
      $region39: #{mask_head_forward.11} parent=35 // pred_region
        _
      $region40: #{mask_head_forward.11} parent=35 // pred_fallthru
        _
    $region36: #{mask_head_forward.11} parent=5 // pred_fallthru
      _
    %p1908 = scmp.le.s32.totalorder 2, %s10
    // Predicated region
    $region41: #{mask_head_forward.11} parent=5 // pred_check
      %p1909 = pneg %p1908
    $region42: #{mask_head_forward.11} parent=5 // pred_check_branch
      %1911 = sbr.rel (%p1909) target = $region44
    $region43: #{mask_head_forward.11} parent=5 // pred_region
      %s1912 = ssub.s32 %s10, 2
      // Predicated region
      $region45: #{mask_head_forward.11} parent=43 // pred_check
        %p1913 = pneg %p128
      $region46: #{mask_head_forward.11} parent=43 // pred_check_branch
        %1915 = sbr.rel (%p1913) target = $region48
      $region47: #{mask_head_forward.11} parent=43 // pred_region
        %p1916 = scmp.lt.s32.totalorder %s16, 1
        %s1917 = scalar_select %p1916, %s16, 1
        %s1918 = smul.addr %s1917, 32
        %s1919 = smul.addr %s1918, 8
        %s1920 = scalar_lea.vmem %s4, %s1919
      $region48: #{mask_head_forward.11} parent=43 // pred_fallthru
        _
    $region44: #{mask_head_forward.11} parent=5 // pred_fallthru
      _
  $region6: #{mask_head_forward.11} parent=0 // loop_footer
    %s14 = sadd.s32 1, %s10
  $region7: #{mask_head_forward.11} parent=0 // loop_footer_branch
    %9 = sbr.rel target = $region3
  $region8: #{mask_head_forward.11} parent=0 // loop_exit
    _

// kernel: mask_head_forward.13
$region0: #{mask_head_forward.13}
  #allocation0 [shape = 'u32[]', space=smem, size = 0x4, offset = 0x4, fixed_abs, tag = 'smem constant byte address 0x4 - core index']
  #allocation1 [shape = 'u32[144,128]{1,0:T(1,128)}', space=vmem, size = 0x12000, scoped, tag = 'internal scratch']
  %s0 = inlined_call_operand.vmem [shape: f32[4,512,4], index: 0, kind: input, shape index: {}]
  %s1 = inlined_call_operand.vmem [shape: bf16[4,4,16], index: 1, kind: input, shape index: {}]
  %s2 = inlined_call_operand.vmem [shape: f32[4,1,16], index: 2, kind: input, shape index: {}]
  %s3 = inlined_call_operand.vmem [shape: bf16[4,16,12], index: 3, kind: input, shape index: {}]
  %s4 = inlined_call_operand.vmem [shape: f32[4,1,12], index: 4, kind: input, shape index: {}]
  %s5 = inlined_call_operand.vmem [shape: f32[4,512,12], index: 5, kind: output, shape index: {}]
  %s6 = sld [smem:[#allocation0]]
  $region53: #{mask_head_forward.13} parent=0
    _
  %s8 = ssub.s32 1, %s6
  %s9 = scalar_select 0, %s8, %s6
  loop: start=0, step=1, limit=10
  $region2: #{mask_head_forward.13} parent=0 // loop_pre_header
    _
  $region3: #{mask_head_forward.13} parent=0 // loop_header
    %s11 = sphi 0, %s15
    %p12 = scmp.ge.s32.totalorder %s11, 10
    %s18 = sphi 0, %s30
    %s19 = sphi 0, %s26
    %s20 = sphi 0, %s18
    %s21 = sphi 0, %s19
    %s22 = sphi 0, %s20
    %s23 = sphi 0, %s21
    %s35 = sphi 0, %s37
    %s38 = sphi 0, %s35
    %s39 = sphi 0, %s38
    %s55 = sphi 0, %s39
    %s61 = sphi 0, %s63
    %s64 = sphi 0, %s61
    %s65 = sphi 0, %s64
    %s81 = sphi 0, %s65
    %s87 = sphi 0, %s89
    %s90 = sphi 0, %s87
    %s91 = sphi 0, %s90
    %s107 = sphi 0, %s91
    %s113 = sphi 0, %s115
    %s116 = sphi 0, %s113
    %s117 = sphi 0, %s116
    %s133 = sphi 0, %s117
    %s139 = sphi 0, %s141
    %s142 = sphi 0, %s139
    %s143 = sphi 0, %s142
    %s159 = sphi 0, %s143
    %s167 = sphi 0, %s169
    %s170 = sphi 0, %s167
    %s171 = sphi 0, %s170
    %s187 = sphi 0, %s171
  $region4: #{mask_head_forward.13} parent=0 // loop_header_branch
    %14 = sbr.rel (%p12) target = $region8
  $region5: #{mask_head_forward.13} parent=0 // loop_body
    %s16 = ssub.s32 %s11, 1
    %s17 = ssub.s32 %s11, 2
    %s24 = sadd.s32 1, %s19
    %p25 = scmp.ge.s32.totalorder %s24, 2
    %s26 = scalar_select %p25, 0, %s24
    %s27 = sadd.s32 1, %s18
    %s28 = scalar_select %p25, %s27, %s18
    %p29 = scmp.ge.s32.totalorder %s28, 4
    %s30 = scalar_select %p29, 0, %s28
    %s31 = ssub.s32 %s18, %s30
    %s32 = ssub.s32 %s19, %s26
    %s33 = sor.u32 %s31, %s32
    %p34 = scmp.eq.s32.totalorder %s33, 0
    %s36 = sadd.s32 %s35, 1
    %s37 = scalar_select %p34, %s35, %s36
    %p40 = pneg %p34
    %p41 = scmp.eq.s32.totalorder %s11, 7
    %p42 = por %p40, %p41
    %p43 = scmp.ne.s32.totalorder %s35, %s38
    %p44 = scmp.eq.s32.totalorder %s11, 0
    %p45 = por %p43, %p44
    %p46 = scmp.ne.s32.totalorder %s35, %s38
    %p47 = scmp.eq.s32.totalorder %s16, 7
    %p48 = por %p46, %p47
    %p49 = scmp.ne.s32.totalorder %s38, %s39
    %p50 = scmp.eq.s32.totalorder %s16, 0
    %p51 = por %p49, %p50
    %p52 = scmp.ne.s32.totalorder %s38, %s39
    %p53 = scmp.eq.s32.totalorder %s17, 7
    %p54 = por %p52, %p53
    %p56 = scmp.ne.s32.totalorder %s39, %s55
    %p57 = scmp.eq.s32.totalorder %s17, 0
    %p58 = por %p56, %p57
    %s59 = ssub.s32 %s18, %s30
    %p60 = scmp.eq.s32.totalorder %s59, 0
    %s62 = sadd.s32 %s61, 1
    %s63 = scalar_select %p60, %s61, %s62
    %p66 = pneg %p60
    %p67 = scmp.eq.s32.totalorder %s11, 7
    %p68 = por %p66, %p67
    %p69 = scmp.ne.s32.totalorder %s61, %s64
    %p70 = scmp.eq.s32.totalorder %s11, 0
    %p71 = por %p69, %p70
    %p72 = scmp.ne.s32.totalorder %s61, %s64
    %p73 = scmp.eq.s32.totalorder %s16, 7
    %p74 = por %p72, %p73
    %p75 = scmp.ne.s32.totalorder %s64, %s65
    %p76 = scmp.eq.s32.totalorder %s16, 0
    %p77 = por %p75, %p76
    %p78 = scmp.ne.s32.totalorder %s64, %s65
    %p79 = scmp.eq.s32.totalorder %s17, 7
    %p80 = por %p78, %p79
    %p82 = scmp.ne.s32.totalorder %s65, %s81
    %p83 = scmp.eq.s32.totalorder %s17, 0
    %p84 = por %p82, %p83
    %s85 = ssub.s32 %s18, %s30
    %p86 = scmp.eq.s32.totalorder %s85, 0
    %s88 = sadd.s32 %s87, 1
    %s89 = scalar_select %p86, %s87, %s88
    %p92 = pneg %p86
    %p93 = scmp.eq.s32.totalorder %s11, 7
    %p94 = por %p92, %p93
    %p95 = scmp.ne.s32.totalorder %s87, %s90
    %p96 = scmp.eq.s32.totalorder %s11, 0
    %p97 = por %p95, %p96
    %p98 = scmp.ne.s32.totalorder %s87, %s90
    %p99 = scmp.eq.s32.totalorder %s16, 7
    %p100 = por %p98, %p99
    %p101 = scmp.ne.s32.totalorder %s90, %s91
    %p102 = scmp.eq.s32.totalorder %s16, 0
    %p103 = por %p101, %p102
    %p104 = scmp.ne.s32.totalorder %s90, %s91
    %p105 = scmp.eq.s32.totalorder %s17, 7
    %p106 = por %p104, %p105
    %p108 = scmp.ne.s32.totalorder %s91, %s107
    %p109 = scmp.eq.s32.totalorder %s17, 0
    %p110 = por %p108, %p109
    %s111 = ssub.s32 %s18, %s30
    %p112 = scmp.eq.s32.totalorder %s111, 0
    %s114 = sadd.s32 %s113, 1
    %s115 = scalar_select %p112, %s113, %s114
    %p118 = pneg %p112
    %p119 = scmp.eq.s32.totalorder %s11, 7
    %p120 = por %p118, %p119
    %p121 = scmp.ne.s32.totalorder %s113, %s116
    %p122 = scmp.eq.s32.totalorder %s11, 0
    %p123 = por %p121, %p122
    %p124 = scmp.ne.s32.totalorder %s113, %s116
    %p125 = scmp.eq.s32.totalorder %s16, 7
    %p126 = por %p124, %p125
    %p127 = scmp.ne.s32.totalorder %s116, %s117
    %p128 = scmp.eq.s32.totalorder %s16, 0
    %p129 = por %p127, %p128
    %p130 = scmp.ne.s32.totalorder %s116, %s117
    %p131 = scmp.eq.s32.totalorder %s17, 7
    %p132 = por %p130, %p131
    %p134 = scmp.ne.s32.totalorder %s117, %s133
    %p135 = scmp.eq.s32.totalorder %s17, 0
    %p136 = por %p134, %p135
    %s137 = ssub.s32 %s18, %s30
    %p138 = scmp.eq.s32.totalorder %s137, 0
    %s140 = sadd.s32 %s139, 1
    %s141 = scalar_select %p138, %s139, %s140
    %p144 = pneg %p138
    %p145 = scmp.eq.s32.totalorder %s11, 7
    %p146 = por %p144, %p145
    %p147 = scmp.ne.s32.totalorder %s139, %s142
    %p148 = scmp.eq.s32.totalorder %s11, 0
    %p149 = por %p147, %p148
    %p150 = scmp.ne.s32.totalorder %s139, %s142
    %p151 = scmp.eq.s32.totalorder %s16, 7
    %p152 = por %p150, %p151
    %p153 = scmp.ne.s32.totalorder %s142, %s143
    %p154 = scmp.eq.s32.totalorder %s16, 0
    %p155 = por %p153, %p154
    %p156 = scmp.ne.s32.totalorder %s142, %s143
    %p157 = scmp.eq.s32.totalorder %s17, 7
    %p158 = por %p156, %p157
    %p160 = scmp.ne.s32.totalorder %s143, %s159
    %p161 = scmp.eq.s32.totalorder %s17, 0
    %p162 = por %p160, %p161
    %s163 = ssub.s32 %s18, %s30
    %s164 = ssub.s32 %s19, %s26
    %s165 = sor.u32 %s163, %s164
    %p166 = scmp.eq.s32.totalorder %s165, 0
    %s168 = sadd.s32 %s167, 1
    %s169 = scalar_select %p166, %s167, %s168
    %p172 = pneg %p166
    %p173 = scmp.eq.s32.totalorder %s11, 7
    %p174 = por %p172, %p173
    %p175 = scmp.ne.s32.totalorder %s167, %s170
    %p176 = scmp.eq.s32.totalorder %s11, 0
    %p177 = por %p175, %p176
    %p178 = scmp.ne.s32.totalorder %s167, %s170
    %p179 = scmp.eq.s32.totalorder %s16, 7
    %p180 = por %p178, %p179
    %p181 = scmp.ne.s32.totalorder %s170, %s171
    %p182 = scmp.eq.s32.totalorder %s16, 0
    %p183 = por %p181, %p182
    %p184 = scmp.ne.s32.totalorder %s170, %s171
    %p185 = scmp.eq.s32.totalorder %s17, 7
    %p186 = por %p184, %p185
    %p188 = scmp.ne.s32.totalorder %s171, %s187
    %p189 = scmp.eq.s32.totalorder %s17, 0
    %p190 = por %p188, %p189
    %p191 = scmp.le.s32.totalorder 1, %s11
    %p192 = scmp.lt.s32.totalorder %s11, 9
    %p193 = pnand %p191, %p192
    %p194 = pneg %p193
    // Predicated region
    $region9: #{mask_head_forward.13} parent=5 // pred_check
      _
    $region10: #{mask_head_forward.13} parent=5 // pred_check_branch
      %196 = sbr.rel (%p193) target = $region12
    $region11: #{mask_head_forward.13} parent=5 // pred_region
      %s197 = ssub.s32 %s11, 1
    $region12: #{mask_head_forward.13} parent=5 // pred_fallthru
      _
    %p198 = scmp.lt.s32.totalorder %s11, 8
    // Predicated region
    $region13: #{mask_head_forward.13} parent=5 // pred_check
      %p199 = pneg %p198
    $region14: #{mask_head_forward.13} parent=5 // pred_check_branch
      %201 = sbr.rel (%p199) target = $region16
    $region15: #{mask_head_forward.13} parent=5 // pred_region
      // Predicated region
      $region17: #{mask_head_forward.13} parent=15 // pred_check
        %p202 = pneg %p45
      $region18: #{mask_head_forward.13} parent=15 // pred_check_branch
        %204 = sbr.rel (%p202) target = $region20
      $region19: #{mask_head_forward.13} parent=15 // pred_region
        %s205 = smul.u32 32, %s19
        %p206 = scmp.lt.s32.totalorder %s18, 3
        %s207 = scalar_select %p206, %s18, 3
        %p208 = scmp.lt.s32.totalorder %s205, 63
        %s209 = scalar_select %p208, %s205, 63
        %s210 = smul.addr %s207, 64
        %s211 = sadd.s32 %s209, %s210
        %s212 = smul.addr %s211, 8
        %s213 = scalar_lea.vmem %s0, %s212
        %s214 = smul.u32 32, %s19
      $region20: #{mask_head_forward.13} parent=15 // pred_fallthru
        _
      // Predicated region
      $region21: #{mask_head_forward.13} parent=15 // pred_check
        %p215 = pneg %p71
      $region22: #{mask_head_forward.13} parent=15 // pred_check_branch
        %217 = sbr.rel (%p215) target = $region24
      $region23: #{mask_head_forward.13} parent=15 // pred_region
        %p218 = scmp.lt.s32.totalorder %s18, 3
        %s219 = scalar_select %p218, %s18, 3
        %s220 = smul.addr %s219, 2
        %s221 = scalar_lea.vmem %s1, %s220
      $region24: #{mask_head_forward.13} parent=15 // pred_fallthru
        _
      // Predicated region
      $region25: #{mask_head_forward.13} parent=15 // pred_check
        %p222 = pneg %p97
      $region26: #{mask_head_forward.13} parent=15 // pred_check_branch
        %224 = sbr.rel (%p222) target = $region28
      $region27: #{mask_head_forward.13} parent=15 // pred_region
        %p225 = scmp.lt.s32.totalorder %s18, 3
        %s226 = scalar_select %p225, %s18, 3
        %s227 = scalar_lea.vmem %s2, %s226
      $region28: #{mask_head_forward.13} parent=15 // pred_fallthru
        _
      // Predicated region
      $region29: #{mask_head_forward.13} parent=15 // pred_check
        %p228 = pneg %p123
      $region30: #{mask_head_forward.13} parent=15 // pred_check_branch
        %230 = sbr.rel (%p228) target = $region32
      $region31: #{mask_head_forward.13} parent=15 // pred_region
        %p231 = scmp.lt.s32.totalorder %s18, 3
        %s232 = scalar_select %p231, %s18, 3
        %s233 = smul.addr %s232, 2
        %s234 = smul.addr %s233, 4
        %s235 = scalar_lea.vmem %s3, %s234
      $region32: #{mask_head_forward.13} parent=15 // pred_fallthru
        _
      // Predicated region
      $region33: #{mask_head_forward.13} parent=15 // pred_check
        %p236 = pneg %p149
      $region34: #{mask_head_forward.13} parent=15 // pred_check_branch
        %238 = sbr.rel (%p236) target = $region36
      $region35: #{mask_head_forward.13} parent=15 // pred_region
        %p239 = scmp.lt.s32.totalorder %s18, 3
        %s240 = scalar_select %p239, %s18, 3
        %s241 = scalar_lea.vmem %s4, %s240
      $region36: #{mask_head_forward.13} parent=15 // pred_fallthru
        _
    $region16: #{mask_head_forward.13} parent=5 // pred_fallthru
      _
    %p242 = scmp.le.s32.totalorder 1, %s11
    %p243 = scmp.lt.s32.totalorder %s11, 9
    %p244 = pnand %p242, %p243
    %p245 = pneg %p244
    // Predicated region
    $region37: #{mask_head_forward.13} parent=5 // pred_check
      _
    $region38: #{mask_head_forward.13} parent=5 // pred_check_branch
      %247 = sbr.rel (%p244) target = $region40
    $region39: #{mask_head_forward.13} parent=5 // pred_region
      %s248 = ssub.s32 %s11, 1
      %s249 = smul.u32 32, %s21
      %p250 = scmp.lt.s32.totalorder %s20, 3
      %s251 = scalar_select %p250, %s20, 3
      %p252 = scmp.lt.s32.totalorder %s249, 63
      %s253 = scalar_select %p252, %s249, 63
      %s254 = smul.addr %s251, 64
      %s255 = sadd.s32 %s253, %s254
      %s256 = smul.addr %s255, 8
      %s257 = scalar_lea.vmem %s0, %s256
      %p258 = pneg %p51
      %p259 = pneg %p48
      %p260 = scmp.lt.s32.totalorder %s20, 3
      %s261 = scalar_select %p260, %s20, 3
      %s262 = smul.addr %s261, 2
      %s263 = scalar_lea.vmem %s1, %s262
      %p264 = pneg %p77
      %p265 = pneg %p74
      %p266 = scmp.lt.s32.totalorder %s20, 3
      %s267 = scalar_select %p266, %s20, 3
      %s268 = scalar_lea.vmem %s2, %s267
      %p269 = pneg %p103
      %p270 = pneg %p100
      %p271 = scmp.lt.s32.totalorder %s20, 3
      %s272 = scalar_select %p271, %s20, 3
      %s273 = smul.addr %s272, 2
      %s274 = smul.addr %s273, 4
      %s275 = scalar_lea.vmem %s3, %s274
      %p276 = pneg %p129
      %p277 = pneg %p126
      %p278 = scmp.lt.s32.totalorder %s20, 3
      %s279 = scalar_select %p278, %s20, 3
      %s280 = scalar_lea.vmem %s4, %s279
      %p281 = pneg %p155
      %p282 = pneg %p152
      %p283 = pneg %p183
      %p284 = pneg %p180
      %s285 = smul.u32 32, %s21
      %p286 = scmp.lt.s32.totalorder %s20, 3
      %s287 = scalar_select %p286, %s20, 3
      %p288 = scmp.lt.s32.totalorder %s285, 63
      %s289 = scalar_select %p288, %s285, 63
      %s290 = smul.addr %s287, 64
      %s291 = sadd.s32 %s289, %s290
      %s292 = smul.addr %s291, 8
      %s293 = scalar_lea.vmem %s5, %s292
      %s294 = smul.u32 32, %s21
      %p295 = scmp.lt.s32.totalorder %s20, 3
      %s296 = scalar_select %p295, %s20, 3
      %p297 = scmp.lt.s32.totalorder %s294, 63
      %s298 = scalar_select %p297, %s294, 63
      %s299 = smul.addr %s296, 64
      %s300 = sadd.s32 %s298, %s299
      %s301 = smul.addr %s300, 8
      %s302 = scalar_lea.vmem %s0, %s301
      %s303 = smul.u32 32, %s21
      %p304 = scmp.lt.s32.totalorder %s20, 3
      %s305 = scalar_select %p304, %s20, 3
      %s306 = smul.addr %s305, 2
      %s307 = scalar_lea.vmem %s1, %s306
      %p308 = scmp.lt.s32.totalorder %s20, 3
      %s309 = scalar_select %p308, %s20, 3
      %s310 = scalar_lea.vmem %s2, %s309
      %p311 = scmp.lt.s32.totalorder %s20, 3
      %s312 = scalar_select %p311, %s20, 3
      %s313 = smul.addr %s312, 2
      %s314 = smul.addr %s313, 4
      %s315 = scalar_lea.vmem %s3, %s314
      %p316 = scmp.lt.s32.totalorder %s20, 3
      %s317 = scalar_select %p316, %s20, 3
      %s318 = scalar_lea.vmem %s4, %s317
      %s319 = smul.u32 32, %s21
      %p320 = scmp.lt.s32.totalorder %s20, 3
      %s321 = scalar_select %p320, %s20, 3
      %p322 = scmp.lt.s32.totalorder %s319, 63
      %s323 = scalar_select %p322, %s319, 63
      %s324 = smul.addr %s321, 64
      %s325 = sadd.s32 %s323, %s324
      %s326 = smul.addr %s325, 8
      %s327 = scalar_lea.vmem %s5, %s326
      %s328 = smul.u32 32, %s21
      %v330 = vld [vmem:[%s302] sm:$0xff]
      %v331 = vld [vmem:[%s302 + $0x8] sm:$0xff]
      %v332 = vld [vmem:[%s302 + $0x10] sm:$0xff]
      %v333 = vld [vmem:[%s302 + $0x18] sm:$0xff]
      %v334 = vld [vmem:[%s302 + $0x20] sm:$0xff]
      %v335 = vld [vmem:[%s302 + $0x28] sm:$0xff]
      %v336 = vld [vmem:[%s302 + $0x30] sm:$0xff]
      %v337 = vld [vmem:[%s302 + $0x38] sm:$0xff]
      %v338 = vld [vmem:[%s302 + $0x40] sm:$0xff]
      %v339 = vld [vmem:[%s302 + $0x48] sm:$0xff]
      %v340 = vld [vmem:[%s302 + $0x50] sm:$0xff]
      %v341 = vld [vmem:[%s302 + $0x58] sm:$0xff]
      %v342 = vld [vmem:[%s302 + $0x60] sm:$0xff]
      %v343 = vld [vmem:[%s302 + $0x68] sm:$0xff]
      %v344 = vld [vmem:[%s302 + $0x70] sm:$0xff]
      %v345 = vld [vmem:[%s302 + $0x78] sm:$0xff]
      %v346 = vld [vmem:[%s302 + $0x80] sm:$0xff]
      %v347 = vld [vmem:[%s302 + $0x88] sm:$0xff]
      %v348 = vld [vmem:[%s302 + $0x90] sm:$0xff]
      %v349 = vld [vmem:[%s302 + $0x98] sm:$0xff]
      %v350 = vld [vmem:[%s302 + $0xa0] sm:$0xff]
      %v351 = vld [vmem:[%s302 + $0xa8] sm:$0xff]
      %v352 = vld [vmem:[%s302 + $0xb0] sm:$0xff]
      %v353 = vld [vmem:[%s302 + $0xb8] sm:$0xff]
      %v354 = vld [vmem:[%s302 + $0xc0] sm:$0xff]
      %v355 = vld [vmem:[%s302 + $0xc8] sm:$0xff]
      %v356 = vld [vmem:[%s302 + $0xd0] sm:$0xff]
      %v357 = vld [vmem:[%s302 + $0xd8] sm:$0xff]
      %v358 = vld [vmem:[%s302 + $0xe0] sm:$0xff]
      %v359 = vld [vmem:[%s302 + $0xe8] sm:$0xff]
      %v360 = vld [vmem:[%s302 + $0xf0] sm:$0xff]
      %v361 = vld [vmem:[%s302 + $0xf8] sm:$0xff]
      %v362 = vpack.c.bf16 %v331, %v330
      %v363 = vpack.c.bf16 %v333, %v332
      %v364 = vpack.c.bf16 %v335, %v334
      %v365 = vpack.c.bf16 %v337, %v336
      %v366 = vpack.c.bf16 %v339, %v338
      %v367 = vpack.c.bf16 %v341, %v340
      %v368 = vpack.c.bf16 %v343, %v342
      %v369 = vpack.c.bf16 %v345, %v344
      %v370 = vpack.c.bf16 %v347, %v346
      %v371 = vpack.c.bf16 %v349, %v348
      %v372 = vpack.c.bf16 %v351, %v350
      %v373 = vpack.c.bf16 %v353, %v352
      %v374 = vpack.c.bf16 %v355, %v354
      %v375 = vpack.c.bf16 %v357, %v356
      %v376 = vpack.c.bf16 %v359, %v358
      %v377 = vpack.c.bf16 %v361, %v360
      %v378 = vld [vmem:[%s307] sm:$0x3]
      %v379 = vld [vmem:[%s310] sm:$0x1]
      %v381 = vlaneseq
      %v382 = vshrl.u32 %v381, 7
      %v383 = vsub.s32 0, %v382
      %v384 = vrot.slane %v379, %v383
      %vm386 = vcmask 31744
      %v388 = vsel %vm386, %v362, 0
      %v391 = vsel %vm386, %v363, 0
      %v394 = vsel %vm386, %v364, 0
      %v397 = vsel %vm386, %v365, 0
      %v400 = vsel %vm386, %v366, 0
      %v403 = vsel %vm386, %v367, 0
      %v406 = vsel %vm386, %v368, 0
      %v409 = vsel %vm386, %v369, 0
      %v412 = vsel %vm386, %v370, 0
      %v415 = vsel %vm386, %v371, 0
      %v418 = vsel %vm386, %v372, 0
      %v421 = vsel %vm386, %v373, 0
      %v424 = vsel %vm386, %v374, 0
      %v427 = vsel %vm386, %v375, 0
      %v430 = vsel %vm386, %v376, 0
      %v433 = vsel %vm386, %v377, 0
      %vm435 = vcmask 1041408
      %v437 = vsel %vm435, %v378, 0
      %439 = vmatprep.subr.bf16.mxu0 0
      %440 = vmatpush1.bf16.msra.mxu0 %v437
      %441 = vmatprep.subr.bf16.mxu0 0
      %442 = vmatpush1.bf16.msra.mxu0 0
      %443 = vmatprep.subr.bf16.mxu0 0
      %444 = vmatpush1.bf16.msra.mxu0 0
      %445 = vmatprep.subr.bf16.mxu0 0
      %446 = vmatpush1.bf16.msra.mxu0 0
      %447 = vmatprep.subr.bf16.mxu0 0
      %448 = vmatpush1.bf16.msra.mxu0 0
      %449 = vmatprep.subr.bf16.mxu0 0
      %450 = vmatpush1.bf16.msra.mxu0 0
      %451 = vmatprep.subr.bf16.mxu0 0
      %452 = vmatpush1.bf16.msra.mxu0 0
      %453 = vmatprep.subr.bf16.mxu0 0
      %454 = vmatpush1.bf16.msra.mxu0 0
      %455 = vmatprep.subr.bf16.mxu0 0
      %456 = vmatpush1.bf16.msra.mxu0 0
      %457 = vmatprep.subr.bf16.mxu0 0
      %458 = vmatpush1.bf16.msra.mxu0 0
      %459 = vmatprep.subr.bf16.mxu0 0
      %460 = vmatpush1.bf16.msra.mxu0 0
      %461 = vmatprep.subr.bf16.mxu0 0
      %462 = vmatpush1.bf16.msra.mxu0 0
      %463 = vmatprep.subr.bf16.mxu0 0
      %464 = vmatpush1.bf16.msra.mxu0 0
      %465 = vmatprep.subr.bf16.mxu0 0
      %466 = vmatpush1.bf16.msra.mxu0 0
      %467 = vmatprep.subr.bf16.mxu0 0
      %468 = vmatpush1.bf16.msra.mxu0 0
      %469 = vmatprep.subr.bf16.mxu0 0
      %470 = vmatpush1.bf16.msra.mxu0 0
      %471 = vmatprep.mubr.bf16.mxu0 0
      %472 = vmatmul.mubr.bf16.gmra.mrb[0].mxu0 %v388
      %v473 = vpop.f32.mrb[0].mxu0
      %v474 = vadd.f32 %v384, %v473
      %v475 = vpop.f32.mrb[0].mxu0
      %v476 = vpop.f32.mrb[0].mxu0
      %v477 = vadd.f32 %v384, %v476
      %v478 = vpop.f32.mrb[0].mxu0
      %479 = vmatprep.mubr.bf16.mxu0 0
      %480 = vmatmul.mubr.bf16.gmra.mrb[0].mxu0 %v391
      %v481 = vpop.f32.mrb[0].mxu0
      %v482 = vadd.f32 %v384, %v481
      %v483 = vpop.f32.mrb[0].mxu0
      %v484 = vpop.f32.mrb[0].mxu0
      %v485 = vadd.f32 %v384, %v484
      %v486 = vpop.f32.mrb[0].mxu0
      %487 = vmatprep.mubr.bf16.mxu0 0
      %488 = vmatmul.mubr.bf16.gmra.mrb[0].mxu0 %v394
      %v489 = vpop.f32.mrb[0].mxu0
      %v490 = vadd.f32 %v384, %v489
      %v491 = vpop.f32.mrb[0].mxu0
      %v492 = vpop.f32.mrb[0].mxu0
      %v493 = vadd.f32 %v384, %v492
      %v494 = vpop.f32.mrb[0].mxu0
      %495 = vmatprep.mubr.bf16.mxu0 0
      %496 = vmatmul.mubr.bf16.gmra.mrb[0].mxu0 %v397
      %v497 = vpop.f32.mrb[0].mxu0
      %v498 = vadd.f32 %v384, %v497
      %v499 = vpop.f32.mrb[0].mxu0
      %v500 = vpop.f32.mrb[0].mxu0
      %v501 = vadd.f32 %v384, %v500
      %v502 = vpop.f32.mrb[0].mxu0
      %503 = vmatprep.mubr.bf16.mxu0 0
      %504 = vmatmul.mubr.bf16.gmra.mrb[0].mxu0 %v400
      %v505 = vpop.f32.mrb[0].mxu0
      %v506 = vadd.f32 %v384, %v505
      %v507 = vpop.f32.mrb[0].mxu0
      %v508 = vpop.f32.mrb[0].mxu0
      %v509 = vadd.f32 %v384, %v508
      %v510 = vpop.f32.mrb[0].mxu0
      %511 = vmatprep.mubr.bf16.mxu0 0
      %512 = vmatmul.mubr.bf16.gmra.mrb[0].mxu0 %v403
      %v513 = vpop.f32.mrb[0].mxu0
      %v514 = vadd.f32 %v384, %v513
      %v515 = vpop.f32.mrb[0].mxu0
      %v516 = vpop.f32.mrb[0].mxu0
      %v517 = vadd.f32 %v384, %v516
      %v518 = vpop.f32.mrb[0].mxu0
      %519 = vmatprep.mubr.bf16.mxu0 0
      %520 = vmatmul.mubr.bf16.gmra.mrb[0].mxu0 %v406
      %v521 = vpop.f32.mrb[0].mxu0
      %v522 = vadd.f32 %v384, %v521
      %v523 = vpop.f32.mrb[0].mxu0
      %v524 = vpop.f32.mrb[0].mxu0
      %v525 = vadd.f32 %v384, %v524
      %v526 = vpop.f32.mrb[0].mxu0
      %527 = vmatprep.mubr.bf16.mxu0 0
      %528 = vmatmul.mubr.bf16.gmra.mrb[0].mxu0 %v409
      %v529 = vpop.f32.mrb[0].mxu0
      %v530 = vadd.f32 %v384, %v529
      %v531 = vpop.f32.mrb[0].mxu0
      %v532 = vpop.f32.mrb[0].mxu0
      %v533 = vadd.f32 %v384, %v532
      %v534 = vpop.f32.mrb[0].mxu0
      %535 = vmatprep.mubr.bf16.mxu0 0
      %536 = vmatmul.mubr.bf16.gmra.mrb[0].mxu0 %v412
      %v537 = vpop.f32.mrb[0].mxu0
      %v538 = vadd.f32 %v384, %v537
      %v539 = vpop.f32.mrb[0].mxu0
      %v540 = vpop.f32.mrb[0].mxu0
      %v541 = vadd.f32 %v384, %v540
      %v542 = vpop.f32.mrb[0].mxu0
      %543 = vmatprep.mubr.bf16.mxu0 0
      %544 = vmatmul.mubr.bf16.gmra.mrb[0].mxu0 %v415
      %v545 = vpop.f32.mrb[0].mxu0
      %v546 = vadd.f32 %v384, %v545
      %v547 = vpop.f32.mrb[0].mxu0
      %v548 = vpop.f32.mrb[0].mxu0
      %v549 = vadd.f32 %v384, %v548
      %v550 = vpop.f32.mrb[0].mxu0
      %551 = vmatprep.mubr.bf16.mxu0 0
      %552 = vmatmul.mubr.bf16.gmra.mrb[0].mxu0 %v418
      %v553 = vpop.f32.mrb[0].mxu0
      %v554 = vadd.f32 %v384, %v553
      %v555 = vpop.f32.mrb[0].mxu0
      %v556 = vpop.f32.mrb[0].mxu0
      %v557 = vadd.f32 %v384, %v556
      %v558 = vpop.f32.mrb[0].mxu0
      %559 = vmatprep.mubr.bf16.mxu0 0
      %560 = vmatmul.mubr.bf16.gmra.mrb[0].mxu0 %v421
      %v561 = vpop.f32.mrb[0].mxu0
      %v562 = vadd.f32 %v384, %v561
      %v563 = vpop.f32.mrb[0].mxu0
      %v564 = vpop.f32.mrb[0].mxu0
      %v565 = vadd.f32 %v384, %v564
      %v566 = vpop.f32.mrb[0].mxu0
      %567 = vmatprep.mubr.bf16.mxu0 0
      %568 = vmatmul.mubr.bf16.gmra.mrb[0].mxu0 %v424
      %v569 = vpop.f32.mrb[0].mxu0
      %v570 = vadd.f32 %v384, %v569
      %v571 = vpop.f32.mrb[0].mxu0
      %v572 = vpop.f32.mrb[0].mxu0
      %v573 = vadd.f32 %v384, %v572
      %v574 = vpop.f32.mrb[0].mxu0
      %575 = vmatprep.mubr.bf16.mxu0 0
      %576 = vmatmul.mubr.bf16.gmra.mrb[0].mxu0 %v427
      %v577 = vpop.f32.mrb[0].mxu0
      %v578 = vadd.f32 %v384, %v577
      %v579 = vpop.f32.mrb[0].mxu0
      %v580 = vpop.f32.mrb[0].mxu0
      %v581 = vadd.f32 %v384, %v580
      %v582 = vpop.f32.mrb[0].mxu0
      %583 = vmatprep.mubr.bf16.mxu0 0
      %584 = vmatmul.mubr.bf16.gmra.mrb[0].mxu0 %v430
      %v585 = vpop.f32.mrb[0].mxu0
      %v586 = vadd.f32 %v384, %v585
      %v587 = vpop.f32.mrb[0].mxu0
      %v588 = vpop.f32.mrb[0].mxu0
      %v589 = vadd.f32 %v384, %v588
      %v590 = vpop.f32.mrb[0].mxu0
      %591 = vmatprep.mubr.bf16.mxu0 0
      %592 = vmatmul.mubr.bf16.gmra.mrb[0].mxu0 %v433
      %v593 = vpop.f32.mrb[0].mxu0
      %v594 = vadd.f32 %v384, %v593
      %v595 = vpop.f32.mrb[0].mxu0
      %v596 = vpop.f32.mrb[0].mxu0
      %v597 = vadd.f32 %v384, %v596
      %v598 = vpop.f32.mrb[0].mxu0
      %599 = vdwg.mxu0
      %v600 = vmax.f32 %v474, 0.0
      %v601 = vmax.f32 %v477, 0.0
      %v602 = vmax.f32 %v482, 0.0
      %v603 = vmax.f32 %v485, 0.0
      %v604 = vmax.f32 %v490, 0.0
      %v605 = vmax.f32 %v493, 0.0
      %v606 = vmax.f32 %v498, 0.0
      %v607 = vmax.f32 %v501, 0.0
      %v608 = vmax.f32 %v506, 0.0
      %v609 = vmax.f32 %v509, 0.0
      %v610 = vmax.f32 %v514, 0.0
      %v611 = vmax.f32 %v517, 0.0
      %v612 = vmax.f32 %v522, 0.0
      %v613 = vmax.f32 %v525, 0.0
      %v614 = vmax.f32 %v530, 0.0
      %v615 = vmax.f32 %v533, 0.0
      %v616 = vmax.f32 %v538, 0.0
      %v617 = vmax.f32 %v541, 0.0
      %v618 = vmax.f32 %v546, 0.0
      %v619 = vmax.f32 %v549, 0.0
      %v620 = vmax.f32 %v554, 0.0
      %v621 = vmax.f32 %v557, 0.0
      %v622 = vmax.f32 %v562, 0.0
      %v623 = vmax.f32 %v565, 0.0
      %v624 = vmax.f32 %v570, 0.0
      %v625 = vmax.f32 %v573, 0.0
      %v626 = vmax.f32 %v578, 0.0
      %v627 = vmax.f32 %v581, 0.0
      %v628 = vmax.f32 %v586, 0.0
      %v629 = vmax.f32 %v589, 0.0
      %v630 = vmax.f32 %v594, 0.0
      %v631 = vmax.f32 %v597, 0.0
      %v632 = vpack.c.bf16 %v601, %v600
      %v633 = vpack.c.bf16 %v603, %v602
      %v634 = vpack.c.bf16 %v605, %v604
      %v635 = vpack.c.bf16 %v607, %v606
      %v636 = vpack.c.bf16 %v609, %v608
      %v637 = vpack.c.bf16 %v611, %v610
      %v638 = vpack.c.bf16 %v613, %v612
      %v639 = vpack.c.bf16 %v615, %v614
      %v640 = vpack.c.bf16 %v617, %v616
      %v641 = vpack.c.bf16 %v619, %v618
      %v642 = vpack.c.bf16 %v621, %v620
      %v643 = vpack.c.bf16 %v623, %v622
      %v644 = vpack.c.bf16 %v625, %v624
      %v645 = vpack.c.bf16 %v627, %v626
      %v646 = vpack.c.bf16 %v629, %v628
      %v647 = vpack.c.bf16 %v631, %v630
      %v648 = vld [vmem:[%s315] sm:$0xf]
      %v649 = vld [vmem:[%s315 + $0x4] sm:$0xf]
      %v650 = vld [vmem:[%s318] sm:$0x1]
      %v652 = vlaneseq
      %v653 = vshrl.u32 %v652, 7
      %v654 = vsub.s32 0, %v653
      %v655 = vrot.slane %v650, %v654
      %v659 = vunpack.c.l.b16 %v648
      %v660 = vunpack.c.l.b16 %v649
      %v661 = vpack.c.b16 %v660, %v659
      %vm663 = vcmask 130048
      %v665 = vsel %vm663, %v632, 0
      %v668 = vsel %vm663, %v633, 0
      %v671 = vsel %vm663, %v634, 0
      %v674 = vsel %vm663, %v635, 0
      %v677 = vsel %vm663, %v636, 0
      %v680 = vsel %vm663, %v637, 0
      %v683 = vsel %vm663, %v638, 0
      %v686 = vsel %vm663, %v639, 0
      %v689 = vsel %vm663, %v640, 0
      %v692 = vsel %vm663, %v641, 0
      %v695 = vsel %vm663, %v642, 0
      %v698 = vsel %vm663, %v643, 0
      %v701 = vsel %vm663, %v644, 0
      %v704 = vsel %vm663, %v645, 0
      %v707 = vsel %vm663, %v646, 0
      %v710 = vsel %vm663, %v647, 0
      %712 = vmatprep.subr.bf16.mxu0 0
      %713 = vmatpush1.bf16.msra.mxu0 %v661
      %714 = vmatprep.subr.bf16.mxu0 0
      %715 = vmatpush1.bf16.msra.mxu0 0
      %716 = vmatprep.subr.bf16.mxu0 0
      %717 = vmatpush1.bf16.msra.mxu0 0
      %718 = vmatprep.subr.bf16.mxu0 0
      %719 = vmatpush1.bf16.msra.mxu0 0
      %720 = vmatprep.subr.bf16.mxu0 0
      %721 = vmatpush1.bf16.msra.mxu0 0
      %722 = vmatprep.subr.bf16.mxu0 0
      %723 = vmatpush1.bf16.msra.mxu0 0
      %724 = vmatprep.subr.bf16.mxu0 0
      %725 = vmatpush1.bf16.msra.mxu0 0
      %726 = vmatprep.subr.bf16.mxu0 0
      %727 = vmatpush1.bf16.msra.mxu0 0
      %728 = vmatprep.subr.bf16.mxu0 0
      %729 = vmatpush1.bf16.msra.mxu0 0
      %730 = vmatprep.subr.bf16.mxu0 0
      %731 = vmatpush1.bf16.msra.mxu0 0
      %732 = vmatprep.subr.bf16.mxu0 0
      %733 = vmatpush1.bf16.msra.mxu0 0
      %734 = vmatprep.subr.bf16.mxu0 0
      %735 = vmatpush1.bf16.msra.mxu0 0
      %736 = vmatprep.subr.bf16.mxu0 0
      %737 = vmatpush1.bf16.msra.mxu0 0
      %738 = vmatprep.subr.bf16.mxu0 0
      %739 = vmatpush1.bf16.msra.mxu0 0
      %740 = vmatprep.subr.bf16.mxu0 0
      %741 = vmatpush1.bf16.msra.mxu0 0
      %742 = vmatprep.subr.bf16.mxu0 0
      %743 = vmatpush1.bf16.msra.mxu0 0
      %744 = vmatprep.mubr.bf16.mxu0 0
      %745 = vmatmul.mubr.bf16.gmra.mrb[0].mxu0 %v665
      %v746 = vpop.f32.mrb[0].mxu0
      %v747 = vadd.f32 %v655, %v746
      %v748 = vpop.f32.mrb[0].mxu0
      %v749 = vpop.f32.mrb[0].mxu0
      %v750 = vadd.f32 %v655, %v749
      %v751 = vpop.f32.mrb[0].mxu0
      %752 = vmatprep.mubr.bf16.mxu0 0
      %753 = vmatmul.mubr.bf16.gmra.mrb[0].mxu0 %v668
      %v754 = vpop.f32.mrb[0].mxu0
      %v755 = vadd.f32 %v655, %v754
      %v756 = vpop.f32.mrb[0].mxu0
      %v757 = vpop.f32.mrb[0].mxu0
      %v758 = vadd.f32 %v655, %v757
      %v759 = vpop.f32.mrb[0].mxu0
      %760 = vmatprep.mubr.bf16.mxu0 0
      %761 = vmatmul.mubr.bf16.gmra.mrb[0].mxu0 %v671
      %v762 = vpop.f32.mrb[0].mxu0
      %v763 = vadd.f32 %v655, %v762
      %v764 = vpop.f32.mrb[0].mxu0
      %v765 = vpop.f32.mrb[0].mxu0
      %v766 = vadd.f32 %v655, %v765
      %v767 = vpop.f32.mrb[0].mxu0
      %768 = vmatprep.mubr.bf16.mxu0 0
      %769 = vmatmul.mubr.bf16.gmra.mrb[0].mxu0 %v674
      %v770 = vpop.f32.mrb[0].mxu0
      %v771 = vadd.f32 %v655, %v770
      %v772 = vpop.f32.mrb[0].mxu0
      %v773 = vpop.f32.mrb[0].mxu0
      %v774 = vadd.f32 %v655, %v773
      %v775 = vpop.f32.mrb[0].mxu0
      %776 = vmatprep.mubr.bf16.mxu0 0
      %777 = vmatmul.mubr.bf16.gmra.mrb[0].mxu0 %v677
      %v778 = vpop.f32.mrb[0].mxu0
      %v779 = vadd.f32 %v655, %v778
      %v780 = vpop.f32.mrb[0].mxu0
      %v781 = vpop.f32.mrb[0].mxu0
      %v782 = vadd.f32 %v655, %v781
      %v783 = vpop.f32.mrb[0].mxu0
      %784 = vmatprep.mubr.bf16.mxu0 0
      %785 = vmatmul.mubr.bf16.gmra.mrb[0].mxu0 %v680
      %v786 = vpop.f32.mrb[0].mxu0
      %v787 = vadd.f32 %v655, %v786
      %v788 = vpop.f32.mrb[0].mxu0
      %v789 = vpop.f32.mrb[0].mxu0
      %v790 = vadd.f32 %v655, %v789
      %v791 = vpop.f32.mrb[0].mxu0
      %792 = vmatprep.mubr.bf16.mxu0 0
      %793 = vmatmul.mubr.bf16.gmra.mrb[0].mxu0 %v683
      %v794 = vpop.f32.mrb[0].mxu0
      %v795 = vadd.f32 %v655, %v794
      %v796 = vpop.f32.mrb[0].mxu0
      %v797 = vpop.f32.mrb[0].mxu0
      %v798 = vadd.f32 %v655, %v797
      %v799 = vpop.f32.mrb[0].mxu0
      %800 = vmatprep.mubr.bf16.mxu0 0
      %801 = vmatmul.mubr.bf16.gmra.mrb[0].mxu0 %v686
      %v802 = vpop.f32.mrb[0].mxu0
      %v803 = vadd.f32 %v655, %v802
      %v804 = vpop.f32.mrb[0].mxu0
      %v805 = vpop.f32.mrb[0].mxu0
      %v806 = vadd.f32 %v655, %v805
      %v807 = vpop.f32.mrb[0].mxu0
      %808 = vmatprep.mubr.bf16.mxu0 0
      %809 = vmatmul.mubr.bf16.gmra.mrb[0].mxu0 %v689
      %v810 = vpop.f32.mrb[0].mxu0
      %v811 = vadd.f32 %v655, %v810
      %v812 = vpop.f32.mrb[0].mxu0
      %v813 = vpop.f32.mrb[0].mxu0
      %v814 = vadd.f32 %v655, %v813
      %v815 = vpop.f32.mrb[0].mxu0
      %816 = vmatprep.mubr.bf16.mxu0 0
      %817 = vmatmul.mubr.bf16.gmra.mrb[0].mxu0 %v692
      %v818 = vpop.f32.mrb[0].mxu0
      %v819 = vadd.f32 %v655, %v818
      %v820 = vpop.f32.mrb[0].mxu0
      %v821 = vpop.f32.mrb[0].mxu0
      %v822 = vadd.f32 %v655, %v821
      %v823 = vpop.f32.mrb[0].mxu0
      %824 = vmatprep.mubr.bf16.mxu0 0
      %825 = vmatmul.mubr.bf16.gmra.mrb[0].mxu0 %v695
      %v826 = vpop.f32.mrb[0].mxu0
      %v827 = vadd.f32 %v655, %v826
      %v828 = vpop.f32.mrb[0].mxu0
      %v829 = vpop.f32.mrb[0].mxu0
      %v830 = vadd.f32 %v655, %v829
      %v831 = vpop.f32.mrb[0].mxu0
      %832 = vmatprep.mubr.bf16.mxu0 0
      %833 = vmatmul.mubr.bf16.gmra.mrb[0].mxu0 %v698
      %v834 = vpop.f32.mrb[0].mxu0
      %v835 = vadd.f32 %v655, %v834
      %v836 = vpop.f32.mrb[0].mxu0
      %v837 = vpop.f32.mrb[0].mxu0
      %v838 = vadd.f32 %v655, %v837
      %v839 = vpop.f32.mrb[0].mxu0
      %840 = vmatprep.mubr.bf16.mxu0 0
      %841 = vmatmul.mubr.bf16.gmra.mrb[0].mxu0 %v701
      %v842 = vpop.f32.mrb[0].mxu0
      %v843 = vadd.f32 %v655, %v842
      %v844 = vpop.f32.mrb[0].mxu0
      %v845 = vpop.f32.mrb[0].mxu0
      %v846 = vadd.f32 %v655, %v845
      %v847 = vpop.f32.mrb[0].mxu0
      %848 = vmatprep.mubr.bf16.mxu0 0
      %849 = vmatmul.mubr.bf16.gmra.mrb[0].mxu0 %v704
      %v850 = vpop.f32.mrb[0].mxu0
      %v851 = vadd.f32 %v655, %v850
      %v852 = vpop.f32.mrb[0].mxu0
      %v853 = vpop.f32.mrb[0].mxu0
      %v854 = vadd.f32 %v655, %v853
      %v855 = vpop.f32.mrb[0].mxu0
      %856 = vmatprep.mubr.bf16.mxu0 0
      %857 = vmatmul.mubr.bf16.gmra.mrb[0].mxu0 %v707
      %v858 = vpop.f32.mrb[0].mxu0
      %v859 = vadd.f32 %v655, %v858
      %v860 = vpop.f32.mrb[0].mxu0
      %v861 = vpop.f32.mrb[0].mxu0
      %v862 = vadd.f32 %v655, %v861
      %v863 = vpop.f32.mrb[0].mxu0
      %864 = vmatprep.mubr.bf16.mxu0 0
      %865 = vmatmul.mubr.bf16.gmra.mrb[0].mxu0 %v710
      %v866 = vpop.f32.mrb[0].mxu0
      %v867 = vadd.f32 %v655, %v866
      %v868 = vpop.f32.mrb[0].mxu0
      %v869 = vpop.f32.mrb[0].mxu0
      %v870 = vadd.f32 %v655, %v869
      %v871 = vpop.f32.mrb[0].mxu0
      %872 = vdwg.mxu0
      %vm873 = vcmask 97280
      %874 = vst.msk [vmem:[%s327] sm:$0xff] %vm873, %v747
      %875 = vst.msk [vmem:[%s327 + $0x8] sm:$0xff] %vm873, %v750
      %876 = vst.msk [vmem:[%s327 + $0x10] sm:$0xff] %vm873, %v755
      %877 = vst.msk [vmem:[%s327 + $0x18] sm:$0xff] %vm873, %v758
      %878 = vst.msk [vmem:[%s327 + $0x20] sm:$0xff] %vm873, %v763
      %879 = vst.msk [vmem:[%s327 + $0x28] sm:$0xff] %vm873, %v766
      %880 = vst.msk [vmem:[%s327 + $0x30] sm:$0xff] %vm873, %v771
      %881 = vst.msk [vmem:[%s327 + $0x38] sm:$0xff] %vm873, %v774
      %882 = vst.msk [vmem:[%s327 + $0x40] sm:$0xff] %vm873, %v779
      %883 = vst.msk [vmem:[%s327 + $0x48] sm:$0xff] %vm873, %v782
      %884 = vst.msk [vmem:[%s327 + $0x50] sm:$0xff] %vm873, %v787
      %885 = vst.msk [vmem:[%s327 + $0x58] sm:$0xff] %vm873, %v790
      %886 = vst.msk [vmem:[%s327 + $0x60] sm:$0xff] %vm873, %v795
      %887 = vst.msk [vmem:[%s327 + $0x68] sm:$0xff] %vm873, %v798
      %888 = vst.msk [vmem:[%s327 + $0x70] sm:$0xff] %vm873, %v803
      %889 = vst.msk [vmem:[%s327 + $0x78] sm:$0xff] %vm873, %v806
      %890 = vst.msk [vmem:[%s327 + $0x80] sm:$0xff] %vm873, %v811
      %891 = vst.msk [vmem:[%s327 + $0x88] sm:$0xff] %vm873, %v814
      %892 = vst.msk [vmem:[%s327 + $0x90] sm:$0xff] %vm873, %v819
      %893 = vst.msk [vmem:[%s327 + $0x98] sm:$0xff] %vm873, %v822
      %894 = vst.msk [vmem:[%s327 + $0xa0] sm:$0xff] %vm873, %v827
      %895 = vst.msk [vmem:[%s327 + $0xa8] sm:$0xff] %vm873, %v830
      %896 = vst.msk [vmem:[%s327 + $0xb0] sm:$0xff] %vm873, %v835
      %897 = vst.msk [vmem:[%s327 + $0xb8] sm:$0xff] %vm873, %v838
      %898 = vst.msk [vmem:[%s327 + $0xc0] sm:$0xff] %vm873, %v843
      %899 = vst.msk [vmem:[%s327 + $0xc8] sm:$0xff] %vm873, %v846
      %900 = vst.msk [vmem:[%s327 + $0xd0] sm:$0xff] %vm873, %v851
      %901 = vst.msk [vmem:[%s327 + $0xd8] sm:$0xff] %vm873, %v854
      %902 = vst.msk [vmem:[%s327 + $0xe0] sm:$0xff] %vm873, %v859
      %903 = vst.msk [vmem:[%s327 + $0xe8] sm:$0xff] %vm873, %v862
      %904 = vst.msk [vmem:[%s327 + $0xf0] sm:$0xff] %vm873, %v867
      %905 = vst.msk [vmem:[%s327 + $0xf8] sm:$0xff] %vm873, %v870
      %s906 = smul.u32 32, %s21
      %p907 = scmp.lt.s32.totalorder %s20, 3
      %s908 = scalar_select %p907, %s20, 3
      %p909 = scmp.lt.s32.totalorder %s906, 63
      %s910 = scalar_select %p909, %s906, 63
      %s911 = smul.addr %s908, 64
      %s912 = sadd.s32 %s910, %s911
      %s913 = smul.addr %s912, 8
      %s914 = scalar_lea.vmem %s5, %s913
      // Predicated region
      $region41: #{mask_head_forward.13} parent=39 // pred_check
        %p915 = pneg %p180
      $region42: #{mask_head_forward.13} parent=39 // pred_check_branch
        %917 = sbr.rel (%p915) target = $region44
      $region43: #{mask_head_forward.13} parent=39 // pred_region
        %s918 = smul.u32 32, %s21
      $region44: #{mask_head_forward.13} parent=39 // pred_fallthru
        _
    $region40: #{mask_head_forward.13} parent=5 // pred_fallthru
      _
    %p919 = scmp.le.s32.totalorder 2, %s11
    // Predicated region
    $region45: #{mask_head_forward.13} parent=5 // pred_check
      %p920 = pneg %p919
    $region46: #{mask_head_forward.13} parent=5 // pred_check_branch
      %922 = sbr.rel (%p920) target = $region48
    $region47: #{mask_head_forward.13} parent=5 // pred_region
      %s923 = ssub.s32 %s11, 2
      // Predicated region
      $region49: #{mask_head_forward.13} parent=47 // pred_check
        %p924 = pneg %p186
      $region50: #{mask_head_forward.13} parent=47 // pred_check_branch
        %926 = sbr.rel (%p924) target = $region52
      $region51: #{mask_head_forward.13} parent=47 // pred_region
        %s927 = smul.u32 32, %s23
        %p928 = scmp.lt.s32.totalorder %s22, 3
        %s929 = scalar_select %p928, %s22, 3
        %p930 = scmp.lt.s32.totalorder %s927, 63
        %s931 = scalar_select %p930, %s927, 63
        %s932 = smul.addr %s929, 64
        %s933 = sadd.s32 %s931, %s932
        %s934 = smul.addr %s933, 8
        %s935 = scalar_lea.vmem %s5, %s934
      $region52: #{mask_head_forward.13} parent=47 // pred_fallthru
        _
    $region48: #{mask_head_forward.13} parent=5 // pred_fallthru
      _
  $region6: #{mask_head_forward.13} parent=0 // loop_footer
    %s15 = sadd.s32 1, %s11
  $region7: #{mask_head_forward.13} parent=0 // loop_footer_branch
    %10 = sbr.rel target = $region3
  $region8: #{mask_head_forward.13} parent=0 // loop_exit
    _

// kernel: squeeze.4
$region0: #{squeeze.4}
  %s0 = inlined_call_operand.vmem [shape: f32[1,512,12], index: 0, kind: input, shape index: {}]
  %s1 = inlined_call_operand.vmem [shape: f32[2,16,16,2,2,3], index: 1, kind: output, shape index: {}]
  %v2 = vld [vmem:[%s0] sm:$0xff]
  %vm3 = vcmask 130048
  %4 = vst.msk [vmem:[%s1] sm:$0x1] %vm3, %v2
  %s5 = scalar_lea.vmem %s1, 31
  %6 = vst.msk [vmem:[%s5] sm:$0x2] %vm3, %v2
  %s7 = scalar_lea.vmem %s1, 62
  %8 = vst.msk [vmem:[%s7] sm:$0x4] %vm3, %v2
  %s9 = scalar_lea.vmem %s1, 93
  %10 = vst.msk [vmem:[%s9] sm:$0x8] %vm3, %v2
  %s11 = scalar_lea.vmem %s1, 124
  %12 = vst.msk [vmem:[%s11] sm:$0x10] %vm3, %v2
  %s13 = scalar_lea.vmem %s1, 155
  %14 = vst.msk [vmem:[%s13] sm:$0x20] %vm3, %v2
  %s15 = scalar_lea.vmem %s1, 186
  %16 = vst.msk [vmem:[%s15] sm:$0x40] %vm3, %v2
  %s17 = scalar_lea.vmem %s1, 217
  %18 = vst.msk [vmem:[%s17] sm:$0x80] %vm3, %v2
  %s19 = scalar_lea.vmem %s0, 8
  %v20 = vld [vmem:[%s19] sm:$0xff]
  %vm21 = vcmask 130048
  %s22 = scalar_lea.vmem %s1, 8
  %23 = vst.msk [vmem:[%s22] sm:$0x1] %vm21, %v20
  %s24 = scalar_lea.vmem %s1, 39
  %25 = vst.msk [vmem:[%s24] sm:$0x2] %vm21, %v20
  %s26 = scalar_lea.vmem %s1, 70
  %27 = vst.msk [vmem:[%s26] sm:$0x4] %vm21, %v20
  %s28 = scalar_lea.vmem %s1, 101
  %29 = vst.msk [vmem:[%s28] sm:$0x8] %vm21, %v20
  %s30 = scalar_lea.vmem %s1, 132
  %31 = vst.msk [vmem:[%s30] sm:$0x10] %vm21, %v20
  %s32 = scalar_lea.vmem %s1, 163
  %33 = vst.msk [vmem:[%s32] sm:$0x20] %vm21, %v20
  %s34 = scalar_lea.vmem %s1, 194
  %35 = vst.msk [vmem:[%s34] sm:$0x40] %vm21, %v20
  %s36 = scalar_lea.vmem %s1, 225
  %37 = vst.msk [vmem:[%s36] sm:$0x80] %vm21, %v20
  %s38 = scalar_lea.vmem %s0, 16
  %v39 = vld [vmem:[%s38] sm:$0xff]
  %vm40 = vcmask 130048
  %s41 = scalar_lea.vmem %s1, 16
  %42 = vst.msk [vmem:[%s41] sm:$0x1] %vm40, %v39
  %s43 = scalar_lea.vmem %s1, 47
  %44 = vst.msk [vmem:[%s43] sm:$0x2] %vm40, %v39
  %s45 = scalar_lea.vmem %s1, 78
  %46 = vst.msk [vmem:[%s45] sm:$0x4] %vm40, %v39
  %s47 = scalar_lea.vmem %s1, 109
  %48 = vst.msk [vmem:[%s47] sm:$0x8] %vm40, %v39
  %s49 = scalar_lea.vmem %s1, 140
  %50 = vst.msk [vmem:[%s49] sm:$0x10] %vm40, %v39
  %s51 = scalar_lea.vmem %s1, 171
  %52 = vst.msk [vmem:[%s51] sm:$0x20] %vm40, %v39
  %s53 = scalar_lea.vmem %s1, 202
  %54 = vst.msk [vmem:[%s53] sm:$0x40] %vm40, %v39
  %s55 = scalar_lea.vmem %s1, 233
  %56 = vst.msk [vmem:[%s55] sm:$0x80] %vm40, %v39
  %s57 = scalar_lea.vmem %s0, 24
  %v58 = vld [vmem:[%s57] sm:$0xff]
  %vm59 = vcmask 130048
  %s60 = scalar_lea.vmem %s1, 24
  %61 = vst.msk [vmem:[%s60] sm:$0x1] %vm59, %v58
  %s62 = scalar_lea.vmem %s1, 55
  %63 = vst.msk [vmem:[%s62] sm:$0x2] %vm59, %v58
  %s64 = scalar_lea.vmem %s1, 86
  %65 = vst.msk [vmem:[%s64] sm:$0x4] %vm59, %v58
  %s66 = scalar_lea.vmem %s1, 117
  %67 = vst.msk [vmem:[%s66] sm:$0x8] %vm59, %v58
  %s68 = scalar_lea.vmem %s1, 148
  %69 = vst.msk [vmem:[%s68] sm:$0x10] %vm59, %v58
  %s70 = scalar_lea.vmem %s1, 179
  %71 = vst.msk [vmem:[%s70] sm:$0x20] %vm59, %v58
  %s72 = scalar_lea.vmem %s1, 210
  %73 = vst.msk [vmem:[%s72] sm:$0x40] %vm59, %v58
  %s74 = scalar_lea.vmem %s1, 241
  %75 = vst.msk [vmem:[%s74] sm:$0x80] %vm59, %v58
  %s76 = scalar_lea.vmem %s0, 32
  %v77 = vld [vmem:[%s76] sm:$0xf]
  %vm78 = vcmask 130048
  %s79 = scalar_lea.vmem %s1, 256
  %80 = vst.msk [vmem:[%s79] sm:$0x1] %vm78, %v77
  %s81 = scalar_lea.vmem %s1, 287
  %82 = vst.msk [vmem:[%s81] sm:$0x2] %vm78, %v77
  %s83 = scalar_lea.vmem %s1, 318
  %84 = vst.msk [vmem:[%s83] sm:$0x4] %vm78, %v77
  %s85 = scalar_lea.vmem %s1, 349
  %86 = vst.msk [vmem:[%s85] sm:$0x8] %vm78, %v77
  %s87 = scalar_lea.vmem %s0, 40
  %v88 = vld [vmem:[%s87] sm:$0xf]
  %vm89 = vcmask 130048
  %s90 = scalar_lea.vmem %s1, 264
  %91 = vst.msk [vmem:[%s90] sm:$0x1] %vm89, %v88
  %s92 = scalar_lea.vmem %s1, 295
  %93 = vst.msk [vmem:[%s92] sm:$0x2] %vm89, %v88
  %s94 = scalar_lea.vmem %s1, 326
  %95 = vst.msk [vmem:[%s94] sm:$0x4] %vm89, %v88
  %s96 = scalar_lea.vmem %s1, 357
  %97 = vst.msk [vmem:[%s96] sm:$0x8] %vm89, %v88
  %s98 = scalar_lea.vmem %s0, 48
  %v99 = vld [vmem:[%s98] sm:$0xf]
  %vm100 = vcmask 130048
  %s101 = scalar_lea.vmem %s1, 272
  %102 = vst.msk [vmem:[%s101] sm:$0x1] %vm100, %v99
  %s103 = scalar_lea.vmem %s1, 303
  %104 = vst.msk [vmem:[%s103] sm:$0x2] %vm100, %v99
  %s105 = scalar_lea.vmem %s1, 334
  %106 = vst.msk [vmem:[%s105] sm:$0x4] %vm100, %v99
  %s107 = scalar_lea.vmem %s1, 365
  %108 = vst.msk [vmem:[%s107] sm:$0x8] %vm100, %v99
  %s109 = scalar_lea.vmem %s0, 56
  %v110 = vld [vmem:[%s109] sm:$0xf]
  %vm111 = vcmask 130048
  %s112 = scalar_lea.vmem %s1, 280
  %113 = vst.msk [vmem:[%s112] sm:$0x1] %vm111, %v110
  %s114 = scalar_lea.vmem %s1, 311
  %115 = vst.msk [vmem:[%s114] sm:$0x2] %vm111, %v110
  %s116 = scalar_lea.vmem %s1, 342
  %117 = vst.msk [vmem:[%s116] sm:$0x4] %vm111, %v110
  %s118 = scalar_lea.vmem %s1, 373
  %119 = vst.msk [vmem:[%s118] sm:$0x8] %vm111, %v110
  %v120 = vld [vmem:[%s0] ss:$8 sm:$0xf]
  %s121 = scalar_lea.vmem %s0, 4294967265
  %v122 = vld [vmem:[%s121] ss:$8 sm:$0xf0]
  %vm123 = vcmask 1047556
  %v124 = vsel %vm123, %v122, %v120
  %125 = vrot.lane.b32.xlu0 %v124, 112
  %v126 = vpop.permute.xlu0 %125
  %vm127 = vcmask 130048
  %s128 = scalar_lea.vmem %s1, 1
  %129 = vst.msk [vmem:[%s128] ss:$8 sm:$0xf] %vm127, %v126
  %s130 = scalar_lea.vmem %s1, 1
  %131 = vst.msk [vmem:[%s130] ss:$8 sm:$0xf0] %vm127, %v126
  %s132 = scalar_lea.vmem %s0, 2
  %v133 = vld [vmem:[%s132] ss:$8 sm:$0xf]
  %s134 = scalar_lea.vmem %s0, 4294967267
  %v135 = vld [vmem:[%s134] ss:$8 sm:$0xf0]
  %vm136 = vcmask 1047556
  %v137 = vsel %vm136, %v135, %v133
  %138 = vrot.lane.b32.xlu0 %v137, 112
  %v139 = vpop.permute.xlu0 %138
  %vm140 = vcmask 130048
  %s141 = scalar_lea.vmem %s1, 65
  %142 = vst.msk [vmem:[%s141] ss:$8 sm:$0xf] %vm140, %v139
  %s143 = scalar_lea.vmem %s1, 65
  %144 = vst.msk [vmem:[%s143] ss:$8 sm:$0xf0] %vm140, %v139
  %s145 = scalar_lea.vmem %s0, 4
  %v146 = vld [vmem:[%s145] ss:$8 sm:$0xf]
  %s147 = scalar_lea.vmem %s0, 4294967269
  %v148 = vld [vmem:[%s147] ss:$8 sm:$0xf0]
  %vm149 = vcmask 1047556
  %v150 = vsel %vm149, %v148, %v146
  %151 = vrot.lane.b32.xlu0 %v150, 112
  %v152 = vpop.permute.xlu0 %151
  %vm153 = vcmask 130048
  %s154 = scalar_lea.vmem %s1, 129
  %155 = vst.msk [vmem:[%s154] ss:$8 sm:$0xf] %vm153, %v152
  %s156 = scalar_lea.vmem %s1, 129
  %157 = vst.msk [vmem:[%s156] ss:$8 sm:$0xf0] %vm153, %v152
  %s158 = scalar_lea.vmem %s0, 6
  %v159 = vld [vmem:[%s158] ss:$8 sm:$0xf]
  %s160 = scalar_lea.vmem %s0, 4294967271
  %v161 = vld [vmem:[%s160] ss:$8 sm:$0xf0]
  %vm162 = vcmask 1047556
  %v163 = vsel %vm162, %v161, %v159
  %164 = vrot.lane.b32.xlu0 %v163, 112
  %v165 = vpop.permute.xlu0 %164
  %vm166 = vcmask 130048
  %s167 = scalar_lea.vmem %s1, 193
  %168 = vst.msk [vmem:[%s167] ss:$8 sm:$0xf] %vm166, %v165
  %s169 = scalar_lea.vmem %s1, 193
  %170 = vst.msk [vmem:[%s169] ss:$8 sm:$0xf0] %vm166, %v165
  %s171 = scalar_lea.vmem %s0, 32
  %v172 = vld [vmem:[%s171] ss:$8 sm:$0xf]
  %s173 = scalar_lea.vmem %s0, 1
  %v174 = vld [vmem:[%s173] ss:$8 sm:$0xf0]
  %vm175 = vcmask 1047556
  %v176 = vsel %vm175, %v174, %v172
  %177 = vrot.lane.b32.xlu0 %v176, 112
  %v178 = vpop.permute.xlu0 %177
  %vm179 = vcmask 130048
  %s180 = scalar_lea.vmem %s1, 257
  %181 = vst.msk [vmem:[%s180] ss:$8 sm:$0xf] %vm179, %v178
  %s182 = scalar_lea.vmem %s1, 257
  %183 = vst.msk [vmem:[%s182] ss:$8 sm:$0xf0] %vm179, %v178
  %s184 = scalar_lea.vmem %s0, 34
  %v185 = vld [vmem:[%s184] ss:$8 sm:$0xf]
  %s186 = scalar_lea.vmem %s0, 3
  %v187 = vld [vmem:[%s186] ss:$8 sm:$0xf0]
  %vm188 = vcmask 1047556
  %v189 = vsel %vm188, %v187, %v185
  %190 = vrot.lane.b32.xlu0 %v189, 112
  %v191 = vpop.permute.xlu0 %190
  %vm192 = vcmask 130048
  %s193 = scalar_lea.vmem %s1, 321
  %194 = vst.msk [vmem:[%s193] ss:$8 sm:$0xf] %vm192, %v191
  %s195 = scalar_lea.vmem %s1, 321
  %196 = vst.msk [vmem:[%s195] ss:$8 sm:$0xf0] %vm192, %v191
  %v197 = vld [vmem:[%s0] ss:$8 sm:$0xf]
  %s198 = scalar_lea.vmem %s0, 4294967265
  %v199 = vld [vmem:[%s198] ss:$8 sm:$0xf0]
  %vm200 = vcmask 1047556
  %v201 = vsel %vm200, %v199, %v197
  %202 = vrot.lane.b32.xlu0 %v201, 96
  %v203 = vpop.permute.xlu0 %202
  %vm204 = vcmask 130048
  %s205 = scalar_lea.vmem %s1, 2
  %206 = vst.msk [vmem:[%s205] ss:$8 sm:$0xf] %vm204, %v203
  %s207 = scalar_lea.vmem %s1, 2
  %208 = vst.msk [vmem:[%s207] ss:$8 sm:$0xf0] %vm204, %v203
  %s209 = scalar_lea.vmem %s0, 2
  %v210 = vld [vmem:[%s209] ss:$8 sm:$0xf]
  %s211 = scalar_lea.vmem %s0, 4294967267
  %v212 = vld [vmem:[%s211] ss:$8 sm:$0xf0]
  %vm213 = vcmask 1047556
  %v214 = vsel %vm213, %v212, %v210
  %215 = vrot.lane.b32.xlu0 %v214, 96
  %v216 = vpop.permute.xlu0 %215
  %vm217 = vcmask 130048
  %s218 = scalar_lea.vmem %s1, 66
  %219 = vst.msk [vmem:[%s218] ss:$8 sm:$0xf] %vm217, %v216
  %s220 = scalar_lea.vmem %s1, 66
  %221 = vst.msk [vmem:[%s220] ss:$8 sm:$0xf0] %vm217, %v216
  %s222 = scalar_lea.vmem %s0, 4
  %v223 = vld [vmem:[%s222] ss:$8 sm:$0xf]
  %s224 = scalar_lea.vmem %s0, 4294967269
  %v225 = vld [vmem:[%s224] ss:$8 sm:$0xf0]
  %vm226 = vcmask 1047556
  %v227 = vsel %vm226, %v225, %v223
  %228 = vrot.lane.b32.xlu0 %v227, 96
  %v229 = vpop.permute.xlu0 %228
  %vm230 = vcmask 130048
  %s231 = scalar_lea.vmem %s1, 130
  %232 = vst.msk [vmem:[%s231] ss:$8 sm:$0xf] %vm230, %v229
  %s233 = scalar_lea.vmem %s1, 130
  %234 = vst.msk [vmem:[%s233] ss:$8 sm:$0xf0] %vm230, %v229
  %s235 = scalar_lea.vmem %s0, 6
  %v236 = vld [vmem:[%s235] ss:$8 sm:$0xf]
  %s237 = scalar_lea.vmem %s0, 4294967271
  %v238 = vld [vmem:[%s237] ss:$8 sm:$0xf0]
  %vm239 = vcmask 1047556
  %v240 = vsel %vm239, %v238, %v236
  %241 = vrot.lane.b32.xlu0 %v240, 96
  %v242 = vpop.permute.xlu0 %241
  %vm243 = vcmask 130048
  %s244 = scalar_lea.vmem %s1, 194
  %245 = vst.msk [vmem:[%s244] ss:$8 sm:$0xf] %vm243, %v242
  %s246 = scalar_lea.vmem %s1, 194
  %247 = vst.msk [vmem:[%s246] ss:$8 sm:$0xf0] %vm243, %v242
  %s248 = scalar_lea.vmem %s0, 32
  %v249 = vld [vmem:[%s248] ss:$8 sm:$0xf]
  %s250 = scalar_lea.vmem %s0, 1
  %v251 = vld [vmem:[%s250] ss:$8 sm:$0xf0]
  %vm252 = vcmask 1047556
  %v253 = vsel %vm252, %v251, %v249
  %254 = vrot.lane.b32.xlu0 %v253, 96
  %v255 = vpop.permute.xlu0 %254
  %vm256 = vcmask 130048
  %s257 = scalar_lea.vmem %s1, 258
  %258 = vst.msk [vmem:[%s257] ss:$8 sm:$0xf] %vm256, %v255
  %s259 = scalar_lea.vmem %s1, 258
  %260 = vst.msk [vmem:[%s259] ss:$8 sm:$0xf0] %vm256, %v255
  %s261 = scalar_lea.vmem %s0, 34
  %v262 = vld [vmem:[%s261] ss:$8 sm:$0xf]
  %s263 = scalar_lea.vmem %s0, 3
  %v264 = vld [vmem:[%s263] ss:$8 sm:$0xf0]
  %vm265 = vcmask 1047556
  %v266 = vsel %vm265, %v264, %v262
  %267 = vrot.lane.b32.xlu0 %v266, 96
  %v268 = vpop.permute.xlu0 %267
  %vm269 = vcmask 130048
  %s270 = scalar_lea.vmem %s1, 322
  %271 = vst.msk [vmem:[%s270] ss:$8 sm:$0xf] %vm269, %v268
  %s272 = scalar_lea.vmem %s1, 322
  %273 = vst.msk [vmem:[%s272] ss:$8 sm:$0xf0] %vm269, %v268
  %v274 = vld [vmem:[%s0] ss:$8 sm:$0xf]
  %s275 = scalar_lea.vmem %s0, 4294967265
  %v276 = vld [vmem:[%s275] ss:$8 sm:$0xf0]
  %vm277 = vcmask 1047556
  %v278 = vsel %vm277, %v276, %v274
  %279 = vrot.lane.b32.xlu0 %v278, 80
  %v280 = vpop.permute.xlu0 %279
  %vm281 = vcmask 130048
  %s282 = scalar_lea.vmem %s1, 3
  %283 = vst.msk [vmem:[%s282] ss:$8 sm:$0xf] %vm281, %v280
  %s284 = scalar_lea.vmem %s1, 3
  %285 = vst.msk [vmem:[%s284] ss:$8 sm:$0xf0] %vm281, %v280
  %s286 = scalar_lea.vmem %s0, 2
  %v287 = vld [vmem:[%s286] ss:$8 sm:$0xf]
  %s288 = scalar_lea.vmem %s0, 4294967267
  %v289 = vld [vmem:[%s288] ss:$8 sm:$0xf0]
  %vm290 = vcmask 1047556
  %v291 = vsel %vm290, %v289, %v287
  %292 = vrot.lane.b32.xlu0 %v291, 80
  %v293 = vpop.permute.xlu0 %292
  %vm294 = vcmask 130048
  %s295 = scalar_lea.vmem %s1, 67
  %296 = vst.msk [vmem:[%s295] ss:$8 sm:$0xf] %vm294, %v293
  %s297 = scalar_lea.vmem %s1, 67
  %298 = vst.msk [vmem:[%s297] ss:$8 sm:$0xf0] %vm294, %v293
  %s299 = scalar_lea.vmem %s0, 4
  %v300 = vld [vmem:[%s299] ss:$8 sm:$0xf]
  %s301 = scalar_lea.vmem %s0, 4294967269
  %v302 = vld [vmem:[%s301] ss:$8 sm:$0xf0]
  %vm303 = vcmask 1047556
  %v304 = vsel %vm303, %v302, %v300
  %305 = vrot.lane.b32.xlu0 %v304, 80
  %v306 = vpop.permute.xlu0 %305
  %vm307 = vcmask 130048
  %s308 = scalar_lea.vmem %s1, 131
  %309 = vst.msk [vmem:[%s308] ss:$8 sm:$0xf] %vm307, %v306
  %s310 = scalar_lea.vmem %s1, 131
  %311 = vst.msk [vmem:[%s310] ss:$8 sm:$0xf0] %vm307, %v306
  %s312 = scalar_lea.vmem %s0, 6
  %v313 = vld [vmem:[%s312] ss:$8 sm:$0xf]
  %s314 = scalar_lea.vmem %s0, 4294967271
  %v315 = vld [vmem:[%s314] ss:$8 sm:$0xf0]
  %vm316 = vcmask 1047556
  %v317 = vsel %vm316, %v315, %v313
  %318 = vrot.lane.b32.xlu0 %v317, 80
  %v319 = vpop.permute.xlu0 %318
  %vm320 = vcmask 130048
  %s321 = scalar_lea.vmem %s1, 195
  %322 = vst.msk [vmem:[%s321] ss:$8 sm:$0xf] %vm320, %v319
  %s323 = scalar_lea.vmem %s1, 195
  %324 = vst.msk [vmem:[%s323] ss:$8 sm:$0xf0] %vm320, %v319
  %s325 = scalar_lea.vmem %s0, 32
  %v326 = vld [vmem:[%s325] ss:$8 sm:$0xf]
  %s327 = scalar_lea.vmem %s0, 1
  %v328 = vld [vmem:[%s327] ss:$8 sm:$0xf0]
  %vm329 = vcmask 1047556
  %v330 = vsel %vm329, %v328, %v326
  %331 = vrot.lane.b32.xlu0 %v330, 80
  %v332 = vpop.permute.xlu0 %331
  %vm333 = vcmask 130048
  %s334 = scalar_lea.vmem %s1, 259
  %335 = vst.msk [vmem:[%s334] ss:$8 sm:$0xf] %vm333, %v332
  %s336 = scalar_lea.vmem %s1, 259
  %337 = vst.msk [vmem:[%s336] ss:$8 sm:$0xf0] %vm333, %v332
  %s338 = scalar_lea.vmem %s0, 34
  %v339 = vld [vmem:[%s338] ss:$8 sm:$0xf]
  %s340 = scalar_lea.vmem %s0, 3
  %v341 = vld [vmem:[%s340] ss:$8 sm:$0xf0]
  %vm342 = vcmask 1047556
  %v343 = vsel %vm342, %v341, %v339
  %344 = vrot.lane.b32.xlu0 %v343, 80
  %v345 = vpop.permute.xlu0 %344
  %vm346 = vcmask 130048
  %s347 = scalar_lea.vmem %s1, 323
  %348 = vst.msk [vmem:[%s347] ss:$8 sm:$0xf] %vm346, %v345
  %s349 = scalar_lea.vmem %s1, 323
  %350 = vst.msk [vmem:[%s349] ss:$8 sm:$0xf0] %vm346, %v345
  %v351 = vld [vmem:[%s0] ss:$8 sm:$0xf]
  %s352 = scalar_lea.vmem %s0, 4294967265
  %v353 = vld [vmem:[%s352] ss:$8 sm:$0xf0]
  %vm354 = vcmask 1047556
  %v355 = vsel %vm354, %v353, %v351
  %356 = vrot.lane.b32.xlu0 %v355, 64
  %v357 = vpop.permute.xlu0 %356
  %vm358 = vcmask 130048
  %s359 = scalar_lea.vmem %s1, 4
  %360 = vst.msk [vmem:[%s359] ss:$8 sm:$0xf] %vm358, %v357
  %s361 = scalar_lea.vmem %s1, 4
  %362 = vst.msk [vmem:[%s361] ss:$8 sm:$0xf0] %vm358, %v357
  %s363 = scalar_lea.vmem %s0, 2
  %v364 = vld [vmem:[%s363] ss:$8 sm:$0xf]
  %s365 = scalar_lea.vmem %s0, 4294967267
  %v366 = vld [vmem:[%s365] ss:$8 sm:$0xf0]
  %vm367 = vcmask 1047556
  %v368 = vsel %vm367, %v366, %v364
  %369 = vrot.lane.b32.xlu0 %v368, 64
  %v370 = vpop.permute.xlu0 %369
  %vm371 = vcmask 130048
  %s372 = scalar_lea.vmem %s1, 68
  %373 = vst.msk [vmem:[%s372] ss:$8 sm:$0xf] %vm371, %v370
  %s374 = scalar_lea.vmem %s1, 68
  %375 = vst.msk [vmem:[%s374] ss:$8 sm:$0xf0] %vm371, %v370
  %s376 = scalar_lea.vmem %s0, 4
  %v377 = vld [vmem:[%s376] ss:$8 sm:$0xf]
  %s378 = scalar_lea.vmem %s0, 4294967269
  %v379 = vld [vmem:[%s378] ss:$8 sm:$0xf0]
  %vm380 = vcmask 1047556
  %v381 = vsel %vm380, %v379, %v377
  %382 = vrot.lane.b32.xlu0 %v381, 64
  %v383 = vpop.permute.xlu0 %382
  %vm384 = vcmask 130048
  %s385 = scalar_lea.vmem %s1, 132
  %386 = vst.msk [vmem:[%s385] ss:$8 sm:$0xf] %vm384, %v383
  %s387 = scalar_lea.vmem %s1, 132
  %388 = vst.msk [vmem:[%s387] ss:$8 sm:$0xf0] %vm384, %v383
  %s389 = scalar_lea.vmem %s0, 6
  %v390 = vld [vmem:[%s389] ss:$8 sm:$0xf]
  %s391 = scalar_lea.vmem %s0, 4294967271
  %v392 = vld [vmem:[%s391] ss:$8 sm:$0xf0]
  %vm393 = vcmask 1047556
  %v394 = vsel %vm393, %v392, %v390
  %395 = vrot.lane.b32.xlu0 %v394, 64
  %v396 = vpop.permute.xlu0 %395
  %vm397 = vcmask 130048
  %s398 = scalar_lea.vmem %s1, 196
  %399 = vst.msk [vmem:[%s398] ss:$8 sm:$0xf] %vm397, %v396
  %s400 = scalar_lea.vmem %s1, 196
  %401 = vst.msk [vmem:[%s400] ss:$8 sm:$0xf0] %vm397, %v396
  %s402 = scalar_lea.vmem %s0, 32
  %v403 = vld [vmem:[%s402] ss:$8 sm:$0xf]
  %s404 = scalar_lea.vmem %s0, 1
  %v405 = vld [vmem:[%s404] ss:$8 sm:$0xf0]
  %vm406 = vcmask 1047556
  %v407 = vsel %vm406, %v405, %v403
  %408 = vrot.lane.b32.xlu0 %v407, 64
  %v409 = vpop.permute.xlu0 %408
  %vm410 = vcmask 130048
  %s411 = scalar_lea.vmem %s1, 260
  %412 = vst.msk [vmem:[%s411] ss:$8 sm:$0xf] %vm410, %v409
  %s413 = scalar_lea.vmem %s1, 260
  %414 = vst.msk [vmem:[%s413] ss:$8 sm:$0xf0] %vm410, %v409
  %s415 = scalar_lea.vmem %s0, 34
  %v416 = vld [vmem:[%s415] ss:$8 sm:$0xf]
  %s417 = scalar_lea.vmem %s0, 3
  %v418 = vld [vmem:[%s417] ss:$8 sm:$0xf0]
  %vm419 = vcmask 1047556
  %v420 = vsel %vm419, %v418, %v416
  %421 = vrot.lane.b32.xlu0 %v420, 64
  %v422 = vpop.permute.xlu0 %421
  %vm423 = vcmask 130048
  %s424 = scalar_lea.vmem %s1, 324
  %425 = vst.msk [vmem:[%s424] ss:$8 sm:$0xf] %vm423, %v422
  %s426 = scalar_lea.vmem %s1, 324
  %427 = vst.msk [vmem:[%s426] ss:$8 sm:$0xf0] %vm423, %v422
  %v428 = vld [vmem:[%s0] ss:$8 sm:$0xf]
  %s429 = scalar_lea.vmem %s0, 4294967265
  %v430 = vld [vmem:[%s429] ss:$8 sm:$0xf0]
  %vm431 = vcmask 1047556
  %v432 = vsel %vm431, %v430, %v428
  %433 = vrot.lane.b32.xlu0 %v432, 48
  %v434 = vpop.permute.xlu0 %433
  %vm435 = vcmask 130048
  %s436 = scalar_lea.vmem %s1, 5
  %437 = vst.msk [vmem:[%s436] ss:$8 sm:$0xf] %vm435, %v434
  %s438 = scalar_lea.vmem %s1, 5
  %439 = vst.msk [vmem:[%s438] ss:$8 sm:$0xf0] %vm435, %v434
  %s440 = scalar_lea.vmem %s0, 2
  %v441 = vld [vmem:[%s440] ss:$8 sm:$0xf]
  %s442 = scalar_lea.vmem %s0, 4294967267
  %v443 = vld [vmem:[%s442] ss:$8 sm:$0xf0]
  %vm444 = vcmask 1047556
  %v445 = vsel %vm444, %v443, %v441
  %446 = vrot.lane.b32.xlu0 %v445, 48
  %v447 = vpop.permute.xlu0 %446
  %vm448 = vcmask 130048
  %s449 = scalar_lea.vmem %s1, 69
  %450 = vst.msk [vmem:[%s449] ss:$8 sm:$0xf] %vm448, %v447
  %s451 = scalar_lea.vmem %s1, 69
  %452 = vst.msk [vmem:[%s451] ss:$8 sm:$0xf0] %vm448, %v447
  %s453 = scalar_lea.vmem %s0, 4
  %v454 = vld [vmem:[%s453] ss:$8 sm:$0xf]
  %s455 = scalar_lea.vmem %s0, 4294967269
  %v456 = vld [vmem:[%s455] ss:$8 sm:$0xf0]
  %vm457 = vcmask 1047556
  %v458 = vsel %vm457, %v456, %v454
  %459 = vrot.lane.b32.xlu0 %v458, 48
  %v460 = vpop.permute.xlu0 %459
  %vm461 = vcmask 130048
  %s462 = scalar_lea.vmem %s1, 133
  %463 = vst.msk [vmem:[%s462] ss:$8 sm:$0xf] %vm461, %v460
  %s464 = scalar_lea.vmem %s1, 133
  %465 = vst.msk [vmem:[%s464] ss:$8 sm:$0xf0] %vm461, %v460
  %s466 = scalar_lea.vmem %s0, 6
  %v467 = vld [vmem:[%s466] ss:$8 sm:$0xf]
  %s468 = scalar_lea.vmem %s0, 4294967271
  %v469 = vld [vmem:[%s468] ss:$8 sm:$0xf0]
  %vm470 = vcmask 1047556
  %v471 = vsel %vm470, %v469, %v467
  %472 = vrot.lane.b32.xlu0 %v471, 48
  %v473 = vpop.permute.xlu0 %472
  %vm474 = vcmask 130048
  %s475 = scalar_lea.vmem %s1, 197
  %476 = vst.msk [vmem:[%s475] ss:$8 sm:$0xf] %vm474, %v473
  %s477 = scalar_lea.vmem %s1, 197
  %478 = vst.msk [vmem:[%s477] ss:$8 sm:$0xf0] %vm474, %v473
  %s479 = scalar_lea.vmem %s0, 32
  %v480 = vld [vmem:[%s479] ss:$8 sm:$0xf]
  %s481 = scalar_lea.vmem %s0, 1
  %v482 = vld [vmem:[%s481] ss:$8 sm:$0xf0]
  %vm483 = vcmask 1047556
  %v484 = vsel %vm483, %v482, %v480
  %485 = vrot.lane.b32.xlu0 %v484, 48
  %v486 = vpop.permute.xlu0 %485
  %vm487 = vcmask 130048
  %s488 = scalar_lea.vmem %s1, 261
  %489 = vst.msk [vmem:[%s488] ss:$8 sm:$0xf] %vm487, %v486
  %s490 = scalar_lea.vmem %s1, 261
  %491 = vst.msk [vmem:[%s490] ss:$8 sm:$0xf0] %vm487, %v486
  %s492 = scalar_lea.vmem %s0, 34
  %v493 = vld [vmem:[%s492] ss:$8 sm:$0xf]
  %s494 = scalar_lea.vmem %s0, 3
  %v495 = vld [vmem:[%s494] ss:$8 sm:$0xf0]
  %vm496 = vcmask 1047556
  %v497 = vsel %vm496, %v495, %v493
  %498 = vrot.lane.b32.xlu0 %v497, 48
  %v499 = vpop.permute.xlu0 %498
  %vm500 = vcmask 130048
  %s501 = scalar_lea.vmem %s1, 325
  %502 = vst.msk [vmem:[%s501] ss:$8 sm:$0xf] %vm500, %v499
  %s503 = scalar_lea.vmem %s1, 325
  %504 = vst.msk [vmem:[%s503] ss:$8 sm:$0xf0] %vm500, %v499
  %v505 = vld [vmem:[%s0] ss:$8 sm:$0xf]
  %s506 = scalar_lea.vmem %s0, 4294967265
  %v507 = vld [vmem:[%s506] ss:$8 sm:$0xf0]
  %vm508 = vcmask 1047556
  %v509 = vsel %vm508, %v507, %v505
  %510 = vrot.lane.b32.xlu0 %v509, 32
  %v511 = vpop.permute.xlu0 %510
  %vm512 = vcmask 130048
  %s513 = scalar_lea.vmem %s1, 6
  %514 = vst.msk [vmem:[%s513] ss:$8 sm:$0xf] %vm512, %v511
  %s515 = scalar_lea.vmem %s1, 6
  %516 = vst.msk [vmem:[%s515] ss:$8 sm:$0xf0] %vm512, %v511
  %s517 = scalar_lea.vmem %s0, 2
  %v518 = vld [vmem:[%s517] ss:$8 sm:$0xf]
  %s519 = scalar_lea.vmem %s0, 4294967267
  %v520 = vld [vmem:[%s519] ss:$8 sm:$0xf0]
  %vm521 = vcmask 1047556
  %v522 = vsel %vm521, %v520, %v518
  %523 = vrot.lane.b32.xlu0 %v522, 32
  %v524 = vpop.permute.xlu0 %523
  %vm525 = vcmask 130048
  %s526 = scalar_lea.vmem %s1, 70
  %527 = vst.msk [vmem:[%s526] ss:$8 sm:$0xf] %vm525, %v524
  %s528 = scalar_lea.vmem %s1, 70
  %529 = vst.msk [vmem:[%s528] ss:$8 sm:$0xf0] %vm525, %v524
  %s530 = scalar_lea.vmem %s0, 4
  %v531 = vld [vmem:[%s530] ss:$8 sm:$0xf]
  %s532 = scalar_lea.vmem %s0, 4294967269
  %v533 = vld [vmem:[%s532] ss:$8 sm:$0xf0]
  %vm534 = vcmask 1047556
  %v535 = vsel %vm534, %v533, %v531
  %536 = vrot.lane.b32.xlu0 %v535, 32
  %v537 = vpop.permute.xlu0 %536
  %vm538 = vcmask 130048
  %s539 = scalar_lea.vmem %s1, 134
  %540 = vst.msk [vmem:[%s539] ss:$8 sm:$0xf] %vm538, %v537
  %s541 = scalar_lea.vmem %s1, 134
  %542 = vst.msk [vmem:[%s541] ss:$8 sm:$0xf0] %vm538, %v537
  %s543 = scalar_lea.vmem %s0, 6
  %v544 = vld [vmem:[%s543] ss:$8 sm:$0xf]
  %s545 = scalar_lea.vmem %s0, 4294967271
  %v546 = vld [vmem:[%s545] ss:$8 sm:$0xf0]
  %vm547 = vcmask 1047556
  %v548 = vsel %vm547, %v546, %v544
  %549 = vrot.lane.b32.xlu0 %v548, 32
  %v550 = vpop.permute.xlu0 %549
  %vm551 = vcmask 130048
  %s552 = scalar_lea.vmem %s1, 198
  %553 = vst.msk [vmem:[%s552] ss:$8 sm:$0xf] %vm551, %v550
  %s554 = scalar_lea.vmem %s1, 198
  %555 = vst.msk [vmem:[%s554] ss:$8 sm:$0xf0] %vm551, %v550
  %s556 = scalar_lea.vmem %s0, 32
  %v557 = vld [vmem:[%s556] ss:$8 sm:$0xf]
  %s558 = scalar_lea.vmem %s0, 1
  %v559 = vld [vmem:[%s558] ss:$8 sm:$0xf0]
  %vm560 = vcmask 1047556
  %v561 = vsel %vm560, %v559, %v557
  %562 = vrot.lane.b32.xlu0 %v561, 32
  %v563 = vpop.permute.xlu0 %562
  %vm564 = vcmask 130048
  %s565 = scalar_lea.vmem %s1, 262
  %566 = vst.msk [vmem:[%s565] ss:$8 sm:$0xf] %vm564, %v563
  %s567 = scalar_lea.vmem %s1, 262
  %568 = vst.msk [vmem:[%s567] ss:$8 sm:$0xf0] %vm564, %v563
  %s569 = scalar_lea.vmem %s0, 34
  %v570 = vld [vmem:[%s569] ss:$8 sm:$0xf]
  %s571 = scalar_lea.vmem %s0, 3
  %v572 = vld [vmem:[%s571] ss:$8 sm:$0xf0]
  %vm573 = vcmask 1047556
  %v574 = vsel %vm573, %v572, %v570
  %575 = vrot.lane.b32.xlu0 %v574, 32
  %v576 = vpop.permute.xlu0 %575
  %vm577 = vcmask 130048
  %s578 = scalar_lea.vmem %s1, 326
  %579 = vst.msk [vmem:[%s578] ss:$8 sm:$0xf] %vm577, %v576
  %s580 = scalar_lea.vmem %s1, 326
  %581 = vst.msk [vmem:[%s580] ss:$8 sm:$0xf0] %vm577, %v576
  %v582 = vld [vmem:[%s0] ss:$8 sm:$0xf]
  %s583 = scalar_lea.vmem %s0, 4294967265
  %v584 = vld [vmem:[%s583] ss:$8 sm:$0xf0]
  %vm585 = vcmask 1047556
  %v586 = vsel %vm585, %v584, %v582
  %587 = vrot.lane.b32.xlu0 %v586, 16
  %v588 = vpop.permute.xlu0 %587
  %vm589 = vcmask 130048
  %s590 = scalar_lea.vmem %s1, 7
  %591 = vst.msk [vmem:[%s590] ss:$8 sm:$0xf] %vm589, %v588
  %s592 = scalar_lea.vmem %s1, 7
  %593 = vst.msk [vmem:[%s592] ss:$8 sm:$0xf0] %vm589, %v588
  %s594 = scalar_lea.vmem %s0, 2
  %v595 = vld [vmem:[%s594] ss:$8 sm:$0xf]
  %s596 = scalar_lea.vmem %s0, 4294967267
  %v597 = vld [vmem:[%s596] ss:$8 sm:$0xf0]
  %vm598 = vcmask 1047556
  %v599 = vsel %vm598, %v597, %v595
  %600 = vrot.lane.b32.xlu0 %v599, 16
  %v601 = vpop.permute.xlu0 %600
  %vm602 = vcmask 130048
  %s603 = scalar_lea.vmem %s1, 71
  %604 = vst.msk [vmem:[%s603] ss:$8 sm:$0xf] %vm602, %v601
  %s605 = scalar_lea.vmem %s1, 71
  %606 = vst.msk [vmem:[%s605] ss:$8 sm:$0xf0] %vm602, %v601
  %s607 = scalar_lea.vmem %s0, 4
  %v608 = vld [vmem:[%s607] ss:$8 sm:$0xf]
  %s609 = scalar_lea.vmem %s0, 4294967269
  %v610 = vld [vmem:[%s609] ss:$8 sm:$0xf0]
  %vm611 = vcmask 1047556
  %v612 = vsel %vm611, %v610, %v608
  %613 = vrot.lane.b32.xlu0 %v612, 16
  %v614 = vpop.permute.xlu0 %613
  %vm615 = vcmask 130048
  %s616 = scalar_lea.vmem %s1, 135
  %617 = vst.msk [vmem:[%s616] ss:$8 sm:$0xf] %vm615, %v614
  %s618 = scalar_lea.vmem %s1, 135
  %619 = vst.msk [vmem:[%s618] ss:$8 sm:$0xf0] %vm615, %v614
  %s620 = scalar_lea.vmem %s0, 6
  %v621 = vld [vmem:[%s620] ss:$8 sm:$0xf]
  %s622 = scalar_lea.vmem %s0, 4294967271
  %v623 = vld [vmem:[%s622] ss:$8 sm:$0xf0]
  %vm624 = vcmask 1047556
  %v625 = vsel %vm624, %v623, %v621
  %626 = vrot.lane.b32.xlu0 %v625, 16
  %v627 = vpop.permute.xlu0 %626
  %vm628 = vcmask 130048
  %s629 = scalar_lea.vmem %s1, 199
  %630 = vst.msk [vmem:[%s629] ss:$8 sm:$0xf] %vm628, %v627
  %s631 = scalar_lea.vmem %s1, 199
  %632 = vst.msk [vmem:[%s631] ss:$8 sm:$0xf0] %vm628, %v627
  %s633 = scalar_lea.vmem %s0, 32
  %v634 = vld [vmem:[%s633] ss:$8 sm:$0xf]
  %s635 = scalar_lea.vmem %s0, 1
  %v636 = vld [vmem:[%s635] ss:$8 sm:$0xf0]
  %vm637 = vcmask 1047556
  %v638 = vsel %vm637, %v636, %v634
  %639 = vrot.lane.b32.xlu0 %v638, 16
  %v640 = vpop.permute.xlu0 %639
  %vm641 = vcmask 130048
  %s642 = scalar_lea.vmem %s1, 263
  %643 = vst.msk [vmem:[%s642] ss:$8 sm:$0xf] %vm641, %v640
  %s644 = scalar_lea.vmem %s1, 263
  %645 = vst.msk [vmem:[%s644] ss:$8 sm:$0xf0] %vm641, %v640
  %s646 = scalar_lea.vmem %s0, 34
  %v647 = vld [vmem:[%s646] ss:$8 sm:$0xf]
  %s648 = scalar_lea.vmem %s0, 3
  %v649 = vld [vmem:[%s648] ss:$8 sm:$0xf0]
  %vm650 = vcmask 1047556
  %v651 = vsel %vm650, %v649, %v647
  %652 = vrot.lane.b32.xlu0 %v651, 16
  %v653 = vpop.permute.xlu0 %652
  %vm654 = vcmask 130048
  %s655 = scalar_lea.vmem %s1, 327
  %656 = vst.msk [vmem:[%s655] ss:$8 sm:$0xf] %vm654, %v653
  %s657 = scalar_lea.vmem %s1, 327
  %658 = vst.msk [vmem:[%s657] ss:$8 sm:$0xf0] %vm654, %v653

</llo_original>
